<compile_context>
chip_gen: v7x
topology: tpu7x:2x2x1
jax: 0.10.0
libtpu: 0.0.40
codegen_flags: <defaults>
</compile_context>

<pallas_src>
import numpy as np

import jax
import jax.numpy as jnp
from jax.experimental import pallas as pl
from jax.experimental.pallas import tpu as pltpu


# ---------------------------------------------------------------------------
# Fused Pallas kernel: one grid step == BT images through the whole network.
# ---------------------------------------------------------------------------

def _fused_cnn_kernel(
    x_ref,                        # (BT*28, 28*CIN) f32   batch-merged NHWC rows
    m1t_ref, m1b_ref,             # (BT*28, 1) f32        image top / bottom row masks (block 1)
    m2t_ref, m2b_ref,             # (BT*14, 1) f32        image top / bottom row masks (block 2)
    a1_ref, b1_ref,               # (3, 28*CIN, 28*CH) bf16, (1, 28*CH) f32
    a2_ref, b2_ref,               # (3, 28*CH,  28*CH) bf16, (1, 28*CH) f32
    a3_ref, b3_ref,               # (3, 14*CH,  14*CH) bf16, (1, 14*CH) f32
    a4_ref, b4_ref,               # (3, 14*CH,  14*CH) bf16, (1, 14*CH) f32
    c1e_ref, c1o_ref, r1_ref,     # (28*CH, 14*CH) x2 bf16, (BT*14, BT*28) bf16
    c2e_ref, c2o_ref, r2_ref,     # (14*CH,  7*CH) x2 bf16, (BT*7,  BT*14) bf16 (h-major output)
    wl_ref, bl_ref,               # (7, 7*CH, OUTP) bf16, (1, OUTP) f32
    o_ref,                        # (BT, OUTP) f32
):
    f32, bf16 = jnp.float32, jnp.bfloat16

    def conv3x3_relu(x, a_ref, bias_ref, mt, mb):
        """'same' 3x3 conv + bias + ReLU on a batch-merged (BT*H, W*Cin) slab.

        W padding is folded into the banded weights A_dy; H padding is a sublane roll
        (XLU) + 0/1 boundary mask (VPU), so the MXU only sees the 3 banded matmuls.
        """
        n = x.shape[0]
        mid  = x.astype(bf16)
        up   = (pltpu.roll(x, shift=1, axis=0) * mt).astype(bf16)       # row h-1, 0 at image top
        down = (pltpu.roll(x, shift=n - 1, axis=0) * mb).astype(bf16)   # row h+1, 0 at image bottom
        acc = jnp.dot(up,   a_ref[0], preferred_element_type=f32)
        acc = acc + jnp.dot(mid,  a_ref[1], preferred_element_type=f32)
        acc = acc + jnp.dot(down, a_ref[2], preferred_element_type=f32)
        return jnp.maximum(acc + bias_ref[...], 0.0)                    # f32 elementwise (v5e-safe)

    def maxpool2x2(x, ce_ref, co_ref, r_ref):
        """2x2/stride-2 max pool: column pairs via exact 0/1 selector matmuls,
        row pairs via sublane roll + max + one even-row selector matmul."""
        n = x.shape[0]
        xb = x.astype(bf16)
        cm = jnp.maximum(jnp.dot(xb, ce_ref[...], preferred_element_type=f32),
                         jnp.dot(xb, co_ref[...], preferred_element_type=f32))
        rm = jnp.maximum(cm, pltpu.roll(cm, shift=n - 1, axis=0))       # max(row 2k, row 2k+1)
        return jnp.dot(r_ref[...], rm.astype(bf16), preferred_element_type=f32)

    x = x_ref[...]
    m1t, m1b = m1t_ref[...], m1b_ref[...]
    m2t, m2b = m2t_ref[...], m2b_ref[...]

    # block_1
    x = conv3x3_relu(x, a1_ref, b1_ref, m1t, m1b)        # (BT*28, 28*CH)
    x = conv3x3_relu(x, a2_ref, b2_ref, m1t, m1b)        # (BT*28, 28*CH)
    x = maxpool2x2(x, c1e_ref, c1o_ref, r1_ref)          # (BT*14, 14*CH)  image-major rows
    # block_2
    x = conv3x3_relu(x, a3_ref, b3_ref, m2t, m2b)        # (BT*14, 14*CH)
    x = conv3x3_relu(x, a4_ref, b4_ref, m2t, m2b)        # (BT*14, 14*CH)
    x = maxpool2x2(x, c2e_ref, c2o_ref, r2_ref)          # (7*BT, 7*CH)   rows ordered h*BT + img

    # classifier: out[img] = bias + sum_h pooled[h, img] @ wl[h]   (PyTorch NCHW flatten order
    # is pre-folded into wl); accumulated as a single lane-dense (BT, OUTP) slab.
    bt = o_ref.shape[0]
    acc = jnp.zeros((bt, o_ref.shape[1]), f32)
    for h in range(wl_ref.shape[0]):
        blk = x[h * bt:(h + 1) * bt, :].astype(bf16)     # (BT, 7*CH), sublane-aligned slice
        acc = acc + jnp.dot(blk, wl_ref[h], preferred_element_type=f32)
    o_ref[...] = acc + bl_ref[...]


# ---------------------------------------------------------------------------
# Host-side wrapper (single pallas_call, batch tiles on the grid)
# ---------------------------------------------------------------------------

def cnn_model_forward(x_nchw, kp):
    """Forward pass equivalent to CNN_Model.forward (input is NCHW like PyTorch)."""
    B, CIN, H, W = x_nchw.shape
    assert (H, W) == (28, 28), "classifier expects 28x28 input (hidden*7*7 features)"

    BT = kp["m1t"].shape[0] // 28            # batch tile baked into the prepared params
    OUT = kp["bl"].shape[1]
    OUTP = kp["wl"].shape[-1]                # classifier lanes padded to a multiple of 128

    # NCHW -> NHWC -> batch-merged rows: (B*28, 28*CIN), row = img*28 + h, col = w*CIN + c.
    x2d = jnp.transpose(x_nchw, (0, 2, 3, 1)).reshape(B * H, W * CIN).astype(jnp.float32)

    b_pad = ((B + BT - 1) // BT) * BT
    if b_pad != B:
        x2d = jnp.pad(x2d, ((0, (b_pad - B) * H), (0, 0)))

    bl_pad = jnp.pad(kp["bl"], ((0, 0), (0, OUTP - OUT)))

    weights = (kp["m1t"], kp["m1b"], kp["m2t"], kp["m2b"],
               kp["a1"], kp["bb1"], kp["a2"], kp["bb2"],
               kp["a3"], kp["bb3"], kp["a4"], kp["bb4"],
               kp["c1e"], kp["c1o"], kp["r1"],
               kp["c2e"], kp["c2o"], kp["r2"],
               kp["wl"], bl_pad)

    def _resident(arr):
        # Full array, same block every grid step -> fetched once, stays resident in VMEM.
        rank = arr.ndim
        return pl.BlockSpec(arr.shape, lambda b, _r=rank: (0,) * _r)

    in_specs = ([pl.BlockSpec((BT * H, W * CIN), lambda b: (b, 0))]
                + [_resident(w) for w in weights])

    out = pl.pallas_call(
        _fused_cnn_kernel,
        out_shape=jax.ShapeDtypeStruct((b_pad, OUTP), jnp.float32),
        grid=(b_pad // BT,),
        in_specs=in_specs,
        out_specs=pl.BlockSpec((BT, OUTP), lambda b: (b, 0)),
        compiler_params=pltpu.CompilerParams(dimension_semantics=("parallel",)),
    )(x2d, *weights)
    return out[:B, :OUT]


# ---------------------------------------------------------------------------
# One-time parameter preparation (host side): PyTorch layout -> kernel operands
# ---------------------------------------------------------------------------

def prepare_params(params, batch_tile=8):
    """Convert PyTorch-layout parameters into the fused kernel's operands (run once)."""
    BT = int(batch_tile)
    f32 = np.float32
    bf16 = jnp.bfloat16

    w1 = np.asarray(params["w1"], f32)
    CH, CIN = w1.shape[0], w1.shape[1]
    wl = np.asarray(params["wl"], f32)
    OUT = wl.shape[0]
    OUTP = ((OUT + 127) // 128) * 128        # lane-dense classifier output

    def banded(w_oihw, W):
        # A_dy[w_in*Cin + c, w*Cout + co] = weight[co, c, dy, dx] with w_in = w + dx - 1
        w = np.asarray(w_oihw, f32)
        mats = []
        for dy in range(3):
            a = np.zeros((W * w.shape[1], W * w.shape[0]), f32)
            for dx in range(3):
                tap = w[:, :, dy, dx].T                       # (Cin, Cout)
                a += np.kron(np.eye(W, W, 1 - dx, dtype=f32), tap)
            mats.append(a)
        return jnp.asarray(np.stack(mats), dtype=bf16)        # exact band structure, bf16 taps

    def bias_row(b, W):        # column index w*Cout + co picks b[co]
        return jnp.asarray(np.tile(np.asarray(b, f32), W)[None, :])

    def col_sel(W, C, parity):  # 0/1 selector of columns (2*wo + parity)*C + c  (exact in bf16)
        return jnp.asarray(np.kron(np.eye(W, dtype=f32)[:, parity::2],
                                   np.eye(C, dtype=f32)), dtype=bf16)

    def row_sel_even(Hi):       # (BT*Hi/2, BT*Hi): row img*Hi + 2*ho -> row img*(Hi/2) + ho
        e = np.eye(Hi, dtype=f32)[0::2, :]
        return jnp.asarray(np.kron(np.eye(BT, dtype=f32), e), dtype=bf16)

    def row_sel_even_hmajor(Hi):  # same selection, but output rows ordered ho*BT + img
        Ho = Hi // 2
        m = np.zeros((BT * Ho, BT * Hi), f32)
        for img in range(BT):
            for ho in range(Ho):
                m[ho * BT + img, img * Hi + 2 * ho] = 1.0
        return jnp.asarray(m, dtype=bf16)

    def boundary_masks(Hi):     # zero the image-boundary row that a sublane roll wraps in
        r = np.arange(BT * Hi) % Hi
        top = (r != 0).astype(f32)[:, None]
        bot = (r != Hi - 1).astype(f32)[:, None]
        return jnp.asarray(top), jnp.asarray(bot)

    m1t, m1b = boundary_masks(28)
    m2t, m2b = boundary_masks(14)

    # Classifier: PyTorch flattens NCHW (index c*49 + h*7 + w); the kernel's pooled slab
    # has per-h columns w*CH + c -> permute once here and pad output lanes to OUTP.
    wl_k = wl.reshape(OUT, CH, 7, 7).transpose(2, 3, 1, 0).reshape(7, 7 * CH, OUT)
    wl_pad = np.zeros((7, 7 * CH, OUTP), f32)
    wl_pad[:, :, :OUT] = wl_k

    return dict(
        m1t=m1t, m1b=m1b, m2t=m2t, m2b=m2b,
        a1=banded(params["w1"], 28), bb1=bias_row(params["b1"], 28),
        a2=banded(params["w2"], 28), bb2=bias_row(params["b2"], 28),
        a3=banded(params["w3"], 14), bb3=bias_row(params["b3"], 14),
        a4=banded(params["w4"], 14), bb4=bias_row(params["b4"], 14),
        c1e=col_sel(28, CH, 0), c1o=col_sel(28, CH, 1), r1=row_sel_even(28),
        c2e=col_sel(14, CH, 0), c2o=col_sel(14, CH, 1), r2=row_sel_even_hmajor(14),
        wl=jnp.asarray(wl_pad, dtype=bf16),
        bl=jnp.asarray(np.asarray(params["bl"], f32)[None, :]),
    )


# ---------------------------------------------------------------------------
# Deterministic synthetic parameters (shapes from CNN_Model.__init__)
# ---------------------------------------------------------------------------

def init_params(key, input_layer, hidden_layer, output_layer):
    ks = jax.random.split(key, 10)

    def conv_w(k, cout, cin):
        return jax.random.normal(k, (cout, cin, 3, 3), jnp.float32) * 0.1

    def vec(k, n):
        return jax.random.normal(k, (n,), jnp.float32) * 0.01

    return dict(
        w1=conv_w(ks[0], hidden_layer, input_layer),  b1=vec(ks[1], hidden_layer),
        w2=conv_w(ks[2], hidden_layer, hidden_layer), b2=vec(ks[3], hidden_layer),
        w3=conv_w(ks[4], hidden_layer, hidden_layer), b3=vec(ks[5], hidden_layer),
        w4=conv_w(ks[6], hidden_layer, hidden_layer), b4=vec(ks[7], hidden_layer),
        wl=jax.random.normal(ks[8], (output_layer, hidden_layer * 7 * 7), jnp.float32) * 0.05,
        bl=vec(ks[9], output_layer),
    )


# ---------------------------------------------------------------------------
# Pure-JAX reference (correctness check against the PyTorch semantics)
# ---------------------------------------------------------------------------

def reference_forward(x_nchw, params):
    hi = jax.lax.Precision.HIGHEST

    def conv(x, w, b):
        y = jax.lax.conv_general_dilated(
            x, w, window_strides=(1, 1), padding=((1, 1), (1, 1)),
            dimension_numbers=("NCHW", "OIHW", "NCHW"), precision=hi)
        return jax.nn.relu(y + b[None, :, None, None])

    def pool(x):
        B, C, H, W = x.shape
        return x.reshape(B, C, H // 2, 2, W // 2, 2).max(axis=(3, 5))

    h = conv(x_nchw, params["w1"], params["b1"])
    h = conv(h, params["w2"], params["b2"])
    h = pool(h)
    h = conv(h, params["w3"], params["b3"])
    h = conv(h, params["w4"], params["b4"])
    h = pool(h)
    flat = h.reshape(h.shape[0], -1)                     # NCHW flatten, like nn.Flatten
    return jnp.dot(flat, params["wl"].T, precision=hi) + params["bl"][None, :]


if __name__ == "__main__":
    # Spatial MUST be 28x28 (two 2x2 pools -> 7x7 classifier features). B=16 with BT=8
    # gives a 2-step grid so v7x's two TensorCores each take a tile.
    B, C_IN, HIDDEN, OUT = 16, 3, 8, 10

    key = jax.random.PRNGKey(0)
    kx, kw = jax.random.split(key)
    x = jax.random.normal(kx, (B, C_IN, 28, 28), jnp.float32)
    params = init_params(kw, C_IN, HIDDEN, OUT)
    kparams = prepare_params(params, batch_tile=8)   # one-time layout/weight transform

    fwd = jax.jit(cnn_model_forward)
    out = fwd(x, kparams)
    jax.block_until_ready(out)

    assert out.shape == (B, OUT), out.shape
    assert bool(jnp.all(jnp.isfinite(out)))

    ref = reference_forward(x, params)
    err = float(jnp.max(jnp.abs(out - ref)))
    assert err < 5e-2, f"mismatch vs reference (bf16 MXU inputs): max abs err = {err}"

    print("KERNEL_OK")
</pallas_src>

<mosaic_0001>
module attributes {stable_mosaic.version = 11 : i64} {
  func.func @_fused_cnn_kernel(%arg0: i32, %arg1: memref<224x84xf32, #tpu.memory_space<vmem>>, %arg2: memref<224x1xf32, #tpu.memory_space<vmem>>, %arg3: memref<224x1xf32, #tpu.memory_space<vmem>>, %arg4: memref<112x1xf32, #tpu.memory_space<vmem>>, %arg5: memref<112x1xf32, #tpu.memory_space<vmem>>, %arg6: memref<3x84x224xbf16, #tpu.memory_space<vmem>>, %arg7: memref<1x224xf32, #tpu.memory_space<vmem>>, %arg8: memref<3x224x224xbf16, #tpu.memory_space<vmem>>, %arg9: memref<1x224xf32, #tpu.memory_space<vmem>>, %arg10: memref<3x112x112xbf16, #tpu.memory_space<vmem>>, %arg11: memref<1x112xf32, #tpu.memory_space<vmem>>, %arg12: memref<3x112x112xbf16, #tpu.memory_space<vmem>>, %arg13: memref<1x112xf32, #tpu.memory_space<vmem>>, %arg14: memref<224x112xbf16, #tpu.memory_space<vmem>>, %arg15: memref<224x112xbf16, #tpu.memory_space<vmem>>, %arg16: memref<112x224xbf16, #tpu.memory_space<vmem>>, %arg17: memref<112x56xbf16, #tpu.memory_space<vmem>>, %arg18: memref<112x56xbf16, #tpu.memory_space<vmem>>, %arg19: memref<56x112xbf16, #tpu.memory_space<vmem>>, %arg20: memref<7x56x128xbf16, #tpu.memory_space<vmem>>, %arg21: memref<1x128xf32, #tpu.memory_space<vmem>>, %arg22: memref<8x128xf32, #tpu.memory_space<vmem>>) attributes {dimension_semantics = [#tpu.dimension_semantics<parallel>], iteration_bounds = array<i64: 2>, scalar_prefetch = 0 : i64, scratch_operands = 0 : i64, tpu.core_type = #tpu.core_type<tc>, window_params = [{transform_indices = @transform_0, window_bounds = array<i64: 224, 84>}, {pipeline_mode = #tpu.pipeline_mode<synchronous>, transform_indices = @transform_1, window_bounds = array<i64: 224, 1>}, {pipeline_mode = #tpu.pipeline_mode<synchronous>, transform_indices = @transform_2, window_bounds = array<i64: 224, 1>}, {pipeline_mode = #tpu.pipeline_mode<synchronous>, transform_indices = @transform_3, window_bounds = array<i64: 112, 1>}, {pipeline_mode = #tpu.pipeline_mode<synchronous>, transform_indices = @transform_4, window_bounds = array<i64: 112, 1>}, {pipeline_mode = #tpu.pipeline_mode<synchronous>, transform_indices = @transform_5, window_bounds = array<i64: 3, 84, 224>}, {pipeline_mode = #tpu.pipeline_mode<synchronous>, transform_indices = @transform_6, window_bounds = array<i64: 1, 224>}, {pipeline_mode = #tpu.pipeline_mode<synchronous>, transform_indices = @transform_7, window_bounds = array<i64: 3, 224, 224>}, {pipeline_mode = #tpu.pipeline_mode<synchronous>, transform_indices = @transform_8, window_bounds = array<i64: 1, 224>}, {pipeline_mode = #tpu.pipeline_mode<synchronous>, transform_indices = @transform_9, window_bounds = array<i64: 3, 112, 112>}, {pipeline_mode = #tpu.pipeline_mode<synchronous>, transform_indices = @transform_10, window_bounds = array<i64: 1, 112>}, {pipeline_mode = #tpu.pipeline_mode<synchronous>, transform_indices = @transform_11, window_bounds = array<i64: 3, 112, 112>}, {pipeline_mode = #tpu.pipeline_mode<synchronous>, transform_indices = @transform_12, window_bounds = array<i64: 1, 112>}, {pipeline_mode = #tpu.pipeline_mode<synchronous>, transform_indices = @transform_13, window_bounds = array<i64: 224, 112>}, {pipeline_mode = #tpu.pipeline_mode<synchronous>, transform_indices = @transform_14, window_bounds = array<i64: 224, 112>}, {pipeline_mode = #tpu.pipeline_mode<synchronous>, transform_indices = @transform_15, window_bounds = array<i64: 112, 224>}, {pipeline_mode = #tpu.pipeline_mode<synchronous>, transform_indices = @transform_16, window_bounds = array<i64: 112, 56>}, {pipeline_mode = #tpu.pipeline_mode<synchronous>, transform_indices = @transform_17, window_bounds = array<i64: 112, 56>}, {pipeline_mode = #tpu.pipeline_mode<synchronous>, transform_indices = @transform_18, window_bounds = array<i64: 56, 112>}, {pipeline_mode = #tpu.pipeline_mode<synchronous>, transform_indices = @transform_19, window_bounds = array<i64: 7, 56, 128>}, {pipeline_mode = #tpu.pipeline_mode<synchronous>, transform_indices = @transform_20, window_bounds = array<i64: 1, 128>}, {transform_indices = @transform_21, window_bounds = array<i64: 8, 128>}]} {
    %c0 = arith.constant 0 : index
    %c0_0 = arith.constant 0 : index
    %0 = vector.load %arg1[%c0, %c0_0] : memref<224x84xf32, #tpu.memory_space<vmem>>, vector<224x84xf32>
    %c0_1 = arith.constant 0 : index
    %c0_2 = arith.constant 0 : index
    %1 = vector.load %arg2[%c0_1, %c0_2] : memref<224x1xf32, #tpu.memory_space<vmem>>, vector<224x1xf32>
    %c0_3 = arith.constant 0 : index
    %c0_4 = arith.constant 0 : index
    %2 = vector.load %arg3[%c0_3, %c0_4] : memref<224x1xf32, #tpu.memory_space<vmem>>, vector<224x1xf32>
    %c0_5 = arith.constant 0 : index
    %c0_6 = arith.constant 0 : index
    %3 = vector.load %arg4[%c0_5, %c0_6] : memref<112x1xf32, #tpu.memory_space<vmem>>, vector<112x1xf32>
    %c0_7 = arith.constant 0 : index
    %c0_8 = arith.constant 0 : index
    %4 = vector.load %arg5[%c0_7, %c0_8] : memref<112x1xf32, #tpu.memory_space<vmem>>, vector<112x1xf32>
    %5 = arith.truncf %0 : vector<224x84xf32> to vector<224x84xbf16>
    %c1_i32 = arith.constant 1 : i32
    %6 = tpu.dynamic_rotate %0 by %c1_i32 dim 0 : vector<224x84xf32>, i32 -> vector<224x84xf32>
    %7 = vector.broadcast %1 : vector<224x1xf32> to vector<224x84xf32>
    %8 = arith.mulf %6, %7 : vector<224x84xf32>
    %9 = arith.truncf %8 : vector<224x84xf32> to vector<224x84xbf16>
    %c223_i32 = arith.constant 223 : i32
    %10 = tpu.dynamic_rotate %0 by %c223_i32 dim 0 : vector<224x84xf32>, i32 -> vector<224x84xf32>
    %11 = vector.broadcast %2 : vector<224x1xf32> to vector<224x84xf32>
    %12 = arith.mulf %10, %11 : vector<224x84xf32>
    %13 = arith.truncf %12 : vector<224x84xf32> to vector<224x84xbf16>
    %c0_9 = arith.constant 0 : index
    %c0_10 = arith.constant 0 : index
    %c0_11 = arith.constant 0 : index
    %14 = vector.load %arg6[%c0_9, %c0_10, %c0_11] : memref<3x84x224xbf16, #tpu.memory_space<vmem>>, vector<1x84x224xbf16>
    %15 = vector.shape_cast %14 : vector<1x84x224xbf16> to vector<84x224xbf16>
    %cst = arith.constant dense<0.000000e+00> : vector<224x224xf32>
    %16 = tpu.matmul %9, %15, %cst {dimension_numbers = #tpu.dot_dimension_numbers<[1], [0], [0], [1], [0, 0, 1, 1], [], []>} : vector<224x84xbf16>, vector<84x224xbf16>, vector<224x224xf32> -> vector<224x224xf32>
    %c1 = arith.constant 1 : index
    %c0_12 = arith.constant 0 : index
    %c0_13 = arith.constant 0 : index
    %17 = vector.load %arg6[%c1, %c0_12, %c0_13] : memref<3x84x224xbf16, #tpu.memory_space<vmem>>, vector<1x84x224xbf16>
    %18 = vector.shape_cast %17 : vector<1x84x224xbf16> to vector<84x224xbf16>
    %cst_14 = arith.constant dense<0.000000e+00> : vector<224x224xf32>
    %19 = tpu.matmul %5, %18, %cst_14 {dimension_numbers = #tpu.dot_dimension_numbers<[1], [0], [0], [1], [0, 0, 1, 1], [], []>} : vector<224x84xbf16>, vector<84x224xbf16>, vector<224x224xf32> -> vector<224x224xf32>
    %20 = arith.addf %16, %19 : vector<224x224xf32>
    %c2 = arith.constant 2 : index
    %c0_15 = arith.constant 0 : index
    %c0_16 = arith.constant 0 : index
    %21 = vector.load %arg6[%c2, %c0_15, %c0_16] : memref<3x84x224xbf16, #tpu.memory_space<vmem>>, vector<1x84x224xbf16>
    %22 = vector.shape_cast %21 : vector<1x84x224xbf16> to vector<84x224xbf16>
    %cst_17 = arith.constant dense<0.000000e+00> : vector<224x224xf32>
    %23 = tpu.matmul %13, %22, %cst_17 {dimension_numbers = #tpu.dot_dimension_numbers<[1], [0], [0], [1], [0, 0, 1, 1], [], []>} : vector<224x84xbf16>, vector<84x224xbf16>, vector<224x224xf32> -> vector<224x224xf32>
    %24 = arith.addf %20, %23 : vector<224x224xf32>
    %c0_18 = arith.constant 0 : index
    %c0_19 = arith.constant 0 : index
    %25 = vector.load %arg7[%c0_18, %c0_19] : memref<1x224xf32, #tpu.memory_space<vmem>>, vector<1x224xf32>
    %26 = vector.broadcast %25 : vector<1x224xf32> to vector<224x224xf32>
    %27 = arith.addf %24, %26 : vector<224x224xf32>
    %cst_20 = arith.constant 0.000000e+00 : f32
    %28 = vector.broadcast %cst_20 : f32 to vector<224x224xf32>
    %29 = arith.maximumf %27, %28 : vector<224x224xf32>
    %30 = arith.truncf %29 : vector<224x224xf32> to vector<224x224xbf16>
    %c1_i32_21 = arith.constant 1 : i32
    %31 = tpu.dynamic_rotate %29 by %c1_i32_21 dim 0 : vector<224x224xf32>, i32 -> vector<224x224xf32>
    %32 = vector.broadcast %1 : vector<224x1xf32> to vector<224x224xf32>
    %33 = arith.mulf %31, %32 : vector<224x224xf32>
    %34 = arith.truncf %33 : vector<224x224xf32> to vector<224x224xbf16>
    %c223_i32_22 = arith.constant 223 : i32
    %35 = tpu.dynamic_rotate %29 by %c223_i32_22 dim 0 : vector<224x224xf32>, i32 -> vector<224x224xf32>
    %36 = vector.broadcast %2 : vector<224x1xf32> to vector<224x224xf32>
    %37 = arith.mulf %35, %36 : vector<224x224xf32>
    %38 = arith.truncf %37 : vector<224x224xf32> to vector<224x224xbf16>
    %c0_23 = arith.constant 0 : index
    %c0_24 = arith.constant 0 : index
    %c0_25 = arith.constant 0 : index
    %39 = vector.load %arg8[%c0_23, %c0_24, %c0_25] : memref<3x224x224xbf16, #tpu.memory_space<vmem>>, vector<1x224x224xbf16>
    %40 = vector.shape_cast %39 : vector<1x224x224xbf16> to vector<224x224xbf16>
    %cst_26 = arith.constant dense<0.000000e+00> : vector<224x224xf32>
    %41 = tpu.matmul %34, %40, %cst_26 {dimension_numbers = #tpu.dot_dimension_numbers<[1], [0], [0], [1], [0, 0, 1, 1], [], []>} : vector<224x224xbf16>, vector<224x224xbf16>, vector<224x224xf32> -> vector<224x224xf32>
    %c1_27 = arith.constant 1 : index
    %c0_28 = arith.constant 0 : index
    %c0_29 = arith.constant 0 : index
    %42 = vector.load %arg8[%c1_27, %c0_28, %c0_29] : memref<3x224x224xbf16, #tpu.memory_space<vmem>>, vector<1x224x224xbf16>
    %43 = vector.shape_cast %42 : vector<1x224x224xbf16> to vector<224x224xbf16>
    %cst_30 = arith.constant dense<0.000000e+00> : vector<224x224xf32>
    %44 = tpu.matmul %30, %43, %cst_30 {dimension_numbers = #tpu.dot_dimension_numbers<[1], [0], [0], [1], [0, 0, 1, 1], [], []>} : vector<224x224xbf16>, vector<224x224xbf16>, vector<224x224xf32> -> vector<224x224xf32>
    %45 = arith.addf %41, %44 : vector<224x224xf32>
    %c2_31 = arith.constant 2 : index
    %c0_32 = arith.constant 0 : index
    %c0_33 = arith.constant 0 : index
    %46 = vector.load %arg8[%c2_31, %c0_32, %c0_33] : memref<3x224x224xbf16, #tpu.memory_space<vmem>>, vector<1x224x224xbf16>
    %47 = vector.shape_cast %46 : vector<1x224x224xbf16> to vector<224x224xbf16>
    %cst_34 = arith.constant dense<0.000000e+00> : vector<224x224xf32>
    %48 = tpu.matmul %38, %47, %cst_34 {dimension_numbers = #tpu.dot_dimension_numbers<[1], [0], [0], [1], [0, 0, 1, 1], [], []>} : vector<224x224xbf16>, vector<224x224xbf16>, vector<224x224xf32> -> vector<224x224xf32>
    %49 = arith.addf %45, %48 : vector<224x224xf32>
    %c0_35 = arith.constant 0 : index
    %c0_36 = arith.constant 0 : index
    %50 = vector.load %arg9[%c0_35, %c0_36] : memref<1x224xf32, #tpu.memory_space<vmem>>, vector<1x224xf32>
    %51 = vector.broadcast %50 : vector<1x224xf32> to vector<224x224xf32>
    %52 = arith.addf %49, %51 : vector<224x224xf32>
    %cst_37 = arith.constant 0.000000e+00 : f32
    %53 = vector.broadcast %cst_37 : f32 to vector<224x224xf32>
    %54 = arith.maximumf %52, %53 : vector<224x224xf32>
    %55 = arith.truncf %54 : vector<224x224xf32> to vector<224x224xbf16>
    %c0_38 = arith.constant 0 : index
    %c0_39 = arith.constant 0 : index
    %56 = vector.load %arg14[%c0_38, %c0_39] : memref<224x112xbf16, #tpu.memory_space<vmem>>, vector<224x112xbf16>
    %cst_40 = arith.constant dense<0.000000e+00> : vector<224x112xf32>
    %57 = tpu.matmul %55, %56, %cst_40 {dimension_numbers = #tpu.dot_dimension_numbers<[1], [0], [0], [1], [0, 0, 1, 1], [], []>} : vector<224x224xbf16>, vector<224x112xbf16>, vector<224x112xf32> -> vector<224x112xf32>
    %c0_41 = arith.constant 0 : index
    %c0_42 = arith.constant 0 : index
    %58 = vector.load %arg15[%c0_41, %c0_42] : memref<224x112xbf16, #tpu.memory_space<vmem>>, vector<224x112xbf16>
    %cst_43 = arith.constant dense<0.000000e+00> : vector<224x112xf32>
    %59 = tpu.matmul %55, %58, %cst_43 {dimension_numbers = #tpu.dot_dimension_numbers<[1], [0], [0], [1], [0, 0, 1, 1], [], []>} : vector<224x224xbf16>, vector<224x112xbf16>, vector<224x112xf32> -> vector<224x112xf32>
    %60 = arith.maximumf %57, %59 : vector<224x112xf32>
    %c223_i32_44 = arith.constant 223 : i32
    %61 = tpu.dynamic_rotate %60 by %c223_i32_44 dim 0 : vector<224x112xf32>, i32 -> vector<224x112xf32>
    %62 = arith.maximumf %60, %61 : vector<224x112xf32>
    %c0_45 = arith.constant 0 : index
    %c0_46 = arith.constant 0 : index
    %63 = vector.load %arg16[%c0_45, %c0_46] : memref<112x224xbf16, #tpu.memory_space<vmem>>, vector<112x224xbf16>
    %64 = arith.truncf %62 : vector<224x112xf32> to vector<224x112xbf16>
    %cst_47 = arith.constant dense<0.000000e+00> : vector<112x112xf32>
    %65 = tpu.matmul %63, %64, %cst_47 {dimension_numbers = #tpu.dot_dimension_numbers<[1], [0], [0], [1], [0, 0, 1, 1], [], []>} : vector<112x224xbf16>, vector<224x112xbf16>, vector<112x112xf32> -> vector<112x112xf32>
    %66 = arith.truncf %65 : vector<112x112xf32> to vector<112x112xbf16>
    %c1_i32_48 = arith.constant 1 : i32
    %67 = tpu.dynamic_rotate %65 by %c1_i32_48 dim 0 : vector<112x112xf32>, i32 -> vector<112x112xf32>
    %68 = vector.broadcast %3 : vector<112x1xf32> to vector<112x112xf32>
    %69 = arith.mulf %67, %68 : vector<112x112xf32>
    %70 = arith.truncf %69 : vector<112x112xf32> to vector<112x112xbf16>
    %c111_i32 = arith.constant 111 : i32
    %71 = tpu.dynamic_rotate %65 by %c111_i32 dim 0 : vector<112x112xf32>, i32 -> vector<112x112xf32>
    %72 = vector.broadcast %4 : vector<112x1xf32> to vector<112x112xf32>
    %73 = arith.mulf %71, %72 : vector<112x112xf32>
    %74 = arith.truncf %73 : vector<112x112xf32> to vector<112x112xbf16>
    %c0_49 = arith.constant 0 : index
    %c0_50 = arith.constant 0 : index
    %c0_51 = arith.constant 0 : index
    %75 = vector.load %arg10[%c0_49, %c0_50, %c0_51] : memref<3x112x112xbf16, #tpu.memory_space<vmem>>, vector<1x112x112xbf16>
    %76 = vector.shape_cast %75 : vector<1x112x112xbf16> to vector<112x112xbf16>
    %cst_52 = arith.constant dense<0.000000e+00> : vector<112x112xf32>
    %77 = tpu.matmul %70, %76, %cst_52 {dimension_numbers = #tpu.dot_dimension_numbers<[1], [0], [0], [1], [0, 0, 1, 1], [], []>} : vector<112x112xbf16>, vector<112x112xbf16>, vector<112x112xf32> -> vector<112x112xf32>
    %c1_53 = arith.constant 1 : index
    %c0_54 = arith.constant 0 : index
    %c0_55 = arith.constant 0 : index
    %78 = vector.load %arg10[%c1_53, %c0_54, %c0_55] : memref<3x112x112xbf16, #tpu.memory_space<vmem>>, vector<1x112x112xbf16>
    %79 = vector.shape_cast %78 : vector<1x112x112xbf16> to vector<112x112xbf16>
    %cst_56 = arith.constant dense<0.000000e+00> : vector<112x112xf32>
    %80 = tpu.matmul %66, %79, %cst_56 {dimension_numbers = #tpu.dot_dimension_numbers<[1], [0], [0], [1], [0, 0, 1, 1], [], []>} : vector<112x112xbf16>, vector<112x112xbf16>, vector<112x112xf32> -> vector<112x112xf32>
    %81 = arith.addf %77, %80 : vector<112x112xf32>
    %c2_57 = arith.constant 2 : index
    %c0_58 = arith.constant 0 : index
    %c0_59 = arith.constant 0 : index
    %82 = vector.load %arg10[%c2_57, %c0_58, %c0_59] : memref<3x112x112xbf16, #tpu.memory_space<vmem>>, vector<1x112x112xbf16>
    %83 = vector.shape_cast %82 : vector<1x112x112xbf16> to vector<112x112xbf16>
    %cst_60 = arith.constant dense<0.000000e+00> : vector<112x112xf32>
    %84 = tpu.matmul %74, %83, %cst_60 {dimension_numbers = #tpu.dot_dimension_numbers<[1], [0], [0], [1], [0, 0, 1, 1], [], []>} : vector<112x112xbf16>, vector<112x112xbf16>, vector<112x112xf32> -> vector<112x112xf32>
    %85 = arith.addf %81, %84 : vector<112x112xf32>
    %c0_61 = arith.constant 0 : index
    %c0_62 = arith.constant 0 : index
    %86 = vector.load %arg11[%c0_61, %c0_62] : memref<1x112xf32, #tpu.memory_space<vmem>>, vector<1x112xf32>
    %87 = vector.broadcast %86 : vector<1x112xf32> to vector<112x112xf32>
    %88 = arith.addf %85, %87 : vector<112x112xf32>
    %cst_63 = arith.constant 0.000000e+00 : f32
    %89 = vector.broadcast %cst_63 : f32 to vector<112x112xf32>
    %90 = arith.maximumf %88, %89 : vector<112x112xf32>
    %91 = arith.truncf %90 : vector<112x112xf32> to vector<112x112xbf16>
    %c1_i32_64 = arith.constant 1 : i32
    %92 = tpu.dynamic_rotate %90 by %c1_i32_64 dim 0 : vector<112x112xf32>, i32 -> vector<112x112xf32>
    %93 = vector.broadcast %3 : vector<112x1xf32> to vector<112x112xf32>
    %94 = arith.mulf %92, %93 : vector<112x112xf32>
    %95 = arith.truncf %94 : vector<112x112xf32> to vector<112x112xbf16>
    %c111_i32_65 = arith.constant 111 : i32
    %96 = tpu.dynamic_rotate %90 by %c111_i32_65 dim 0 : vector<112x112xf32>, i32 -> vector<112x112xf32>
    %97 = vector.broadcast %4 : vector<112x1xf32> to vector<112x112xf32>
    %98 = arith.mulf %96, %97 : vector<112x112xf32>
    %99 = arith.truncf %98 : vector<112x112xf32> to vector<112x112xbf16>
    %c0_66 = arith.constant 0 : index
    %c0_67 = arith.constant 0 : index
    %c0_68 = arith.constant 0 : index
    %100 = vector.load %arg12[%c0_66, %c0_67, %c0_68] : memref<3x112x112xbf16, #tpu.memory_space<vmem>>, vector<1x112x112xbf16>
    %101 = vector.shape_cast %100 : vector<1x112x112xbf16> to vector<112x112xbf16>
    %cst_69 = arith.constant dense<0.000000e+00> : vector<112x112xf32>
    %102 = tpu.matmul %95, %101, %cst_69 {dimension_numbers = #tpu.dot_dimension_numbers<[1], [0], [0], [1], [0, 0, 1, 1], [], []>} : vector<112x112xbf16>, vector<112x112xbf16>, vector<112x112xf32> -> vector<112x112xf32>
    %c1_70 = arith.constant 1 : index
    %c0_71 = arith.constant 0 : index
    %c0_72 = arith.constant 0 : index
    %103 = vector.load %arg12[%c1_70, %c0_71, %c0_72] : memref<3x112x112xbf16, #tpu.memory_space<vmem>>, vector<1x112x112xbf16>
    %104 = vector.shape_cast %103 : vector<1x112x112xbf16> to vector<112x112xbf16>
    %cst_73 = arith.constant dense<0.000000e+00> : vector<112x112xf32>
    %105 = tpu.matmul %91, %104, %cst_73 {dimension_numbers = #tpu.dot_dimension_numbers<[1], [0], [0], [1], [0, 0, 1, 1], [], []>} : vector<112x112xbf16>, vector<112x112xbf16>, vector<112x112xf32> -> vector<112x112xf32>
    %106 = arith.addf %102, %105 : vector<112x112xf32>
    %c2_74 = arith.constant 2 : index
    %c0_75 = arith.constant 0 : index
    %c0_76 = arith.constant 0 : index
    %107 = vector.load %arg12[%c2_74, %c0_75, %c0_76] : memref<3x112x112xbf16, #tpu.memory_space<vmem>>, vector<1x112x112xbf16>
    %108 = vector.shape_cast %107 : vector<1x112x112xbf16> to vector<112x112xbf16>
    %cst_77 = arith.constant dense<0.000000e+00> : vector<112x112xf32>
    %109 = tpu.matmul %99, %108, %cst_77 {dimension_numbers = #tpu.dot_dimension_numbers<[1], [0], [0], [1], [0, 0, 1, 1], [], []>} : vector<112x112xbf16>, vector<112x112xbf16>, vector<112x112xf32> -> vector<112x112xf32>
    %110 = arith.addf %106, %109 : vector<112x112xf32>
    %c0_78 = arith.constant 0 : index
    %c0_79 = arith.constant 0 : index
    %111 = vector.load %arg13[%c0_78, %c0_79] : memref<1x112xf32, #tpu.memory_space<vmem>>, vector<1x112xf32>
    %112 = vector.broadcast %111 : vector<1x112xf32> to vector<112x112xf32>
    %113 = arith.addf %110, %112 : vector<112x112xf32>
    %cst_80 = arith.constant 0.000000e+00 : f32
    %114 = vector.broadcast %cst_80 : f32 to vector<112x112xf32>
    %115 = arith.maximumf %113, %114 : vector<112x112xf32>
    %116 = arith.truncf %115 : vector<112x112xf32> to vector<112x112xbf16>
    %c0_81 = arith.constant 0 : index
    %c0_82 = arith.constant 0 : index
    %117 = vector.load %arg17[%c0_81, %c0_82] : memref<112x56xbf16, #tpu.memory_space<vmem>>, vector<112x56xbf16>
    %cst_83 = arith.constant dense<0.000000e+00> : vector<112x56xf32>
    %118 = tpu.matmul %116, %117, %cst_83 {dimension_numbers = #tpu.dot_dimension_numbers<[1], [0], [0], [1], [0, 0, 1, 1], [], []>} : vector<112x112xbf16>, vector<112x56xbf16>, vector<112x56xf32> -> vector<112x56xf32>
    %c0_84 = arith.constant 0 : index
    %c0_85 = arith.constant 0 : index
    %119 = vector.load %arg18[%c0_84, %c0_85] : memref<112x56xbf16, #tpu.memory_space<vmem>>, vector<112x56xbf16>
    %cst_86 = arith.constant dense<0.000000e+00> : vector<112x56xf32>
    %120 = tpu.matmul %116, %119, %cst_86 {dimension_numbers = #tpu.dot_dimension_numbers<[1], [0], [0], [1], [0, 0, 1, 1], [], []>} : vector<112x112xbf16>, vector<112x56xbf16>, vector<112x56xf32> -> vector<112x56xf32>
    %121 = arith.maximumf %118, %120 : vector<112x56xf32>
    %c111_i32_87 = arith.constant 111 : i32
    %122 = tpu.dynamic_rotate %121 by %c111_i32_87 dim 0 : vector<112x56xf32>, i32 -> vector<112x56xf32>
    %123 = arith.maximumf %121, %122 : vector<112x56xf32>
    %c0_88 = arith.constant 0 : index
    %c0_89 = arith.constant 0 : index
    %124 = vector.load %arg19[%c0_88, %c0_89] : memref<56x112xbf16, #tpu.memory_space<vmem>>, vector<56x112xbf16>
    %125 = arith.truncf %123 : vector<112x56xf32> to vector<112x56xbf16>
    %cst_90 = arith.constant dense<0.000000e+00> : vector<56x56xf32>
    %126 = tpu.matmul %124, %125, %cst_90 {dimension_numbers = #tpu.dot_dimension_numbers<[1], [0], [0], [1], [0, 0, 1, 1], [], []>} : vector<56x112xbf16>, vector<112x56xbf16>, vector<56x56xf32> -> vector<56x56xf32>
    %cst_91 = arith.constant 0.000000e+00 : f32
    %127 = vector.broadcast %cst_91 : f32 to vector<8x128xf32>
    %128 = vector.extract_strided_slice %126 {offsets = [0, 0], sizes = [8, 56], strides = [1, 1]} : vector<56x56xf32> to vector<8x56xf32>
    %129 = arith.truncf %128 : vector<8x56xf32> to vector<8x56xbf16>
    %c0_92 = arith.constant 0 : index
    %c0_93 = arith.constant 0 : index
    %c0_94 = arith.constant 0 : index
    %130 = vector.load %arg20[%c0_92, %c0_93, %c0_94] : memref<7x56x128xbf16, #tpu.memory_space<vmem>>, vector<1x56x128xbf16>
    %131 = vector.shape_cast %130 : vector<1x56x128xbf16> to vector<56x128xbf16>
    %cst_95 = arith.constant dense<0.000000e+00> : vector<8x128xf32>
    %132 = tpu.matmul %129, %131, %cst_95 {dimension_numbers = #tpu.dot_dimension_numbers<[1], [0], [0], [1], [0, 0, 1, 1], [], []>} : vector<8x56xbf16>, vector<56x128xbf16>, vector<8x128xf32> -> vector<8x128xf32>
    %133 = arith.addf %127, %132 : vector<8x128xf32>
    %134 = vector.extract_strided_slice %126 {offsets = [8, 0], sizes = [8, 56], strides = [1, 1]} : vector<56x56xf32> to vector<8x56xf32>
    %135 = arith.truncf %134 : vector<8x56xf32> to vector<8x56xbf16>
    %c1_96 = arith.constant 1 : index
    %c0_97 = arith.constant 0 : index
    %c0_98 = arith.constant 0 : index
    %136 = vector.load %arg20[%c1_96, %c0_97, %c0_98] : memref<7x56x128xbf16, #tpu.memory_space<vmem>>, vector<1x56x128xbf16>
    %137 = vector.shape_cast %136 : vector<1x56x128xbf16> to vector<56x128xbf16>
    %cst_99 = arith.constant dense<0.000000e+00> : vector<8x128xf32>
    %138 = tpu.matmul %135, %137, %cst_99 {dimension_numbers = #tpu.dot_dimension_numbers<[1], [0], [0], [1], [0, 0, 1, 1], [], []>} : vector<8x56xbf16>, vector<56x128xbf16>, vector<8x128xf32> -> vector<8x128xf32>
    %139 = arith.addf %133, %138 : vector<8x128xf32>
    %140 = vector.extract_strided_slice %126 {offsets = [16, 0], sizes = [8, 56], strides = [1, 1]} : vector<56x56xf32> to vector<8x56xf32>
    %141 = arith.truncf %140 : vector<8x56xf32> to vector<8x56xbf16>
    %c2_100 = arith.constant 2 : index
    %c0_101 = arith.constant 0 : index
    %c0_102 = arith.constant 0 : index
    %142 = vector.load %arg20[%c2_100, %c0_101, %c0_102] : memref<7x56x128xbf16, #tpu.memory_space<vmem>>, vector<1x56x128xbf16>
    %143 = vector.shape_cast %142 : vector<1x56x128xbf16> to vector<56x128xbf16>
    %cst_103 = arith.constant dense<0.000000e+00> : vector<8x128xf32>
    %144 = tpu.matmul %141, %143, %cst_103 {dimension_numbers = #tpu.dot_dimension_numbers<[1], [0], [0], [1], [0, 0, 1, 1], [], []>} : vector<8x56xbf16>, vector<56x128xbf16>, vector<8x128xf32> -> vector<8x128xf32>
    %145 = arith.addf %139, %144 : vector<8x128xf32>
    %146 = vector.extract_strided_slice %126 {offsets = [24, 0], sizes = [8, 56], strides = [1, 1]} : vector<56x56xf32> to vector<8x56xf32>
    %147 = arith.truncf %146 : vector<8x56xf32> to vector<8x56xbf16>
    %c3 = arith.constant 3 : index
    %c0_104 = arith.constant 0 : index
    %c0_105 = arith.constant 0 : index
    %148 = vector.load %arg20[%c3, %c0_104, %c0_105] : memref<7x56x128xbf16, #tpu.memory_space<vmem>>, vector<1x56x128xbf16>
    %149 = vector.shape_cast %148 : vector<1x56x128xbf16> to vector<56x128xbf16>
    %cst_106 = arith.constant dense<0.000000e+00> : vector<8x128xf32>
    %150 = tpu.matmul %147, %149, %cst_106 {dimension_numbers = #tpu.dot_dimension_numbers<[1], [0], [0], [1], [0, 0, 1, 1], [], []>} : vector<8x56xbf16>, vector<56x128xbf16>, vector<8x128xf32> -> vector<8x128xf32>
    %151 = arith.addf %145, %150 : vector<8x128xf32>
    %152 = vector.extract_strided_slice %126 {offsets = [32, 0], sizes = [8, 56], strides = [1, 1]} : vector<56x56xf32> to vector<8x56xf32>
    %153 = arith.truncf %152 : vector<8x56xf32> to vector<8x56xbf16>
    %c4 = arith.constant 4 : index
    %c0_107 = arith.constant 0 : index
    %c0_108 = arith.constant 0 : index
    %154 = vector.load %arg20[%c4, %c0_107, %c0_108] : memref<7x56x128xbf16, #tpu.memory_space<vmem>>, vector<1x56x128xbf16>
    %155 = vector.shape_cast %154 : vector<1x56x128xbf16> to vector<56x128xbf16>
    %cst_109 = arith.constant dense<0.000000e+00> : vector<8x128xf32>
    %156 = tpu.matmul %153, %155, %cst_109 {dimension_numbers = #tpu.dot_dimension_numbers<[1], [0], [0], [1], [0, 0, 1, 1], [], []>} : vector<8x56xbf16>, vector<56x128xbf16>, vector<8x128xf32> -> vector<8x128xf32>
    %157 = arith.addf %151, %156 : vector<8x128xf32>
    %158 = vector.extract_strided_slice %126 {offsets = [40, 0], sizes = [8, 56], strides = [1, 1]} : vector<56x56xf32> to vector<8x56xf32>
    %159 = arith.truncf %158 : vector<8x56xf32> to vector<8x56xbf16>
    %c5 = arith.constant 5 : index
    %c0_110 = arith.constant 0 : index
    %c0_111 = arith.constant 0 : index
    %160 = vector.load %arg20[%c5, %c0_110, %c0_111] : memref<7x56x128xbf16, #tpu.memory_space<vmem>>, vector<1x56x128xbf16>
    %161 = vector.shape_cast %160 : vector<1x56x128xbf16> to vector<56x128xbf16>
    %cst_112 = arith.constant dense<0.000000e+00> : vector<8x128xf32>
    %162 = tpu.matmul %159, %161, %cst_112 {dimension_numbers = #tpu.dot_dimension_numbers<[1], [0], [0], [1], [0, 0, 1, 1], [], []>} : vector<8x56xbf16>, vector<56x128xbf16>, vector<8x128xf32> -> vector<8x128xf32>
    %163 = arith.addf %157, %162 : vector<8x128xf32>
    %164 = vector.extract_strided_slice %126 {offsets = [48, 0], sizes = [8, 56], strides = [1, 1]} : vector<56x56xf32> to vector<8x56xf32>
    %165 = arith.truncf %164 : vector<8x56xf32> to vector<8x56xbf16>
    %c6 = arith.constant 6 : index
    %c0_113 = arith.constant 0 : index
    %c0_114 = arith.constant 0 : index
    %166 = vector.load %arg20[%c6, %c0_113, %c0_114] : memref<7x56x128xbf16, #tpu.memory_space<vmem>>, vector<1x56x128xbf16>
    %167 = vector.shape_cast %166 : vector<1x56x128xbf16> to vector<56x128xbf16>
    %cst_115 = arith.constant dense<0.000000e+00> : vector<8x128xf32>
    %168 = tpu.matmul %165, %167, %cst_115 {dimension_numbers = #tpu.dot_dimension_numbers<[1], [0], [0], [1], [0, 0, 1, 1], [], []>} : vector<8x56xbf16>, vector<56x128xbf16>, vector<8x128xf32> -> vector<8x128xf32>
    %169 = arith.addf %163, %168 : vector<8x128xf32>
    %c0_116 = arith.constant 0 : index
    %c0_117 = arith.constant 0 : index
    %170 = vector.load %arg21[%c0_116, %c0_117] : memref<1x128xf32, #tpu.memory_space<vmem>>, vector<1x128xf32>
    %171 = vector.broadcast %170 : vector<1x128xf32> to vector<8x128xf32>
    %172 = arith.addf %169, %171 : vector<8x128xf32>
    %c0_118 = arith.constant 0 : index
    %c0_119 = arith.constant 0 : index
    %173 = vector.load %arg22[%c0_118, %c0_119] : memref<8x128xf32, #tpu.memory_space<vmem>>, vector<8x128xf32>
    tpu.vector_store %arg22[%c0_118, %c0_119], %172 {strides = array<i32>} : memref<8x128xf32, #tpu.memory_space<vmem>>, vector<8x128xf32>,
    return
  }
  func.func @transform_0(%arg0: i32) -> (i32, i32) {
    %c0_i32 = arith.constant 0 : i32
    %c0_i32_0 = arith.constant 0 : i32
    return %arg0, %c0_i32 : i32, i32
  }
  func.func @transform_1(%arg0: i32) -> (i32, i32) {
    %c0_i32 = arith.constant 0 : i32
    %c0_i32_0 = arith.constant 0 : i32
    %c0_i32_1 = arith.constant 0 : i32
    return %c0_i32, %c0_i32_0 : i32, i32
  }
  func.func @transform_2(%arg0: i32) -> (i32, i32) {
    %c0_i32 = arith.constant 0 : i32
    %c0_i32_0 = arith.constant 0 : i32
    %c0_i32_1 = arith.constant 0 : i32
    return %c0_i32, %c0_i32_0 : i32, i32
  }
  func.func @transform_3(%arg0: i32) -> (i32, i32) {
    %c0_i32 = arith.constant 0 : i32
    %c0_i32_0 = arith.constant 0 : i32
    %c0_i32_1 = arith.constant 0 : i32
    return %c0_i32, %c0_i32_0 : i32, i32
  }
  func.func @transform_4(%arg0: i32) -> (i32, i32) {
    %c0_i32 = arith.constant 0 : i32
    %c0_i32_0 = arith.constant 0 : i32
    %c0_i32_1 = arith.constant 0 : i32
    return %c0_i32, %c0_i32_0 : i32, i32
  }
  func.func @transform_5(%arg0: i32) -> (i32, i32, i32) {
    %c0_i32 = arith.constant 0 : i32
    %c0_i32_0 = arith.constant 0 : i32
    %c0_i32_1 = arith.constant 0 : i32
    %c0_i32_2 = arith.constant 0 : i32
    return %c0_i32, %c0_i32_0, %c0_i32_1 : i32, i32, i32
  }
  func.func @transform_6(%arg0: i32) -> (i32, i32) {
    %c0_i32 = arith.constant 0 : i32
    %c0_i32_0 = arith.constant 0 : i32
    %c0_i32_1 = arith.constant 0 : i32
    return %c0_i32, %c0_i32_0 : i32, i32
  }
  func.func @transform_7(%arg0: i32) -> (i32, i32, i32) {
    %c0_i32 = arith.constant 0 : i32
    %c0_i32_0 = arith.constant 0 : i32
    %c0_i32_1 = arith.constant 0 : i32
    %c0_i32_2 = arith.constant 0 : i32
    return %c0_i32, %c0_i32_0, %c0_i32_1 : i32, i32, i32
  }
  func.func @transform_8(%arg0: i32) -> (i32, i32) {
    %c0_i32 = arith.constant 0 : i32
    %c0_i32_0 = arith.constant 0 : i32
    %c0_i32_1 = arith.constant 0 : i32
    return %c0_i32, %c0_i32_0 : i32, i32
  }
  func.func @transform_9(%arg0: i32) -> (i32, i32, i32) {
    %c0_i32 = arith.constant 0 : i32
    %c0_i32_0 = arith.constant 0 : i32
    %c0_i32_1 = arith.constant 0 : i32
    %c0_i32_2 = arith.constant 0 : i32
    return %c0_i32, %c0_i32_0, %c0_i32_1 : i32, i32, i32
  }
  func.func @transform_10(%arg0: i32) -> (i32, i32) {
    %c0_i32 = arith.constant 0 : i32
    %c0_i32_0 = arith.constant 0 : i32
    %c0_i32_1 = arith.constant 0 : i32
    return %c0_i32, %c0_i32_0 : i32, i32
  }
  func.func @transform_11(%arg0: i32) -> (i32, i32, i32) {
    %c0_i32 = arith.constant 0 : i32
    %c0_i32_0 = arith.constant 0 : i32
    %c0_i32_1 = arith.constant 0 : i32
    %c0_i32_2 = arith.constant 0 : i32
    return %c0_i32, %c0_i32_0, %c0_i32_1 : i32, i32, i32
  }
  func.func @transform_12(%arg0: i32) -> (i32, i32) {
    %c0_i32 = arith.constant 0 : i32
    %c0_i32_0 = arith.constant 0 : i32
    %c0_i32_1 = arith.constant 0 : i32
    return %c0_i32, %c0_i32_0 : i32, i32
  }
  func.func @transform_13(%arg0: i32) -> (i32, i32) {
    %c0_i32 = arith.constant 0 : i32
    %c0_i32_0 = arith.constant 0 : i32
    %c0_i32_1 = arith.constant 0 : i32
    return %c0_i32, %c0_i32_0 : i32, i32
  }
  func.func @transform_14(%arg0: i32) -> (i32, i32) {
    %c0_i32 = arith.constant 0 : i32
    %c0_i32_0 = arith.constant 0 : i32
    %c0_i32_1 = arith.constant 0 : i32
    return %c0_i32, %c0_i32_0 : i32, i32
  }
  func.func @transform_15(%arg0: i32) -> (i32, i32) {
    %c0_i32 = arith.constant 0 : i32
    %c0_i32_0 = arith.constant 0 : i32
    %c0_i32_1 = arith.constant 0 : i32
    return %c0_i32, %c0_i32_0 : i32, i32
  }
  func.func @transform_16(%arg0: i32) -> (i32, i32) {
    %c0_i32 = arith.constant 0 : i32
    %c0_i32_0 = arith.constant 0 : i32
    %c0_i32_1 = arith.constant 0 : i32
    return %c0_i32, %c0_i32_0 : i32, i32
  }
  func.func @transform_17(%arg0: i32) -> (i32, i32) {
    %c0_i32 = arith.constant 0 : i32
    %c0_i32_0 = arith.constant 0 : i32
    %c0_i32_1 = arith.constant 0 : i32
    return %c0_i32, %c0_i32_0 : i32, i32
  }
  func.func @transform_18(%arg0: i32) -> (i32, i32) {
    %c0_i32 = arith.constant 0 : i32
    %c0_i32_0 = arith.constant 0 : i32
    %c0_i32_1 = arith.constant 0 : i32
    return %c0_i32, %c0_i32_0 : i32, i32
  }
  func.func @transform_19(%arg0: i32) -> (i32, i32, i32) {
    %c0_i32 = arith.constant 0 : i32
    %c0_i32_0 = arith.constant 0 : i32
    %c0_i32_1 = arith.constant 0 : i32
    %c0_i32_2 = arith.constant 0 : i32
    return %c0_i32, %c0_i32_0, %c0_i32_1 : i32, i32, i32
  }
  func.func @transform_20(%arg0: i32) -> (i32, i32) {
    %c0_i32 = arith.constant 0 : i32
    %c0_i32_0 = arith.constant 0 : i32
    %c0_i32_1 = arith.constant 0 : i32
    return %c0_i32, %c0_i32_0 : i32, i32
  }
  func.func @transform_21(%arg0: i32) -> (i32, i32) {
    %c0_i32 = arith.constant 0 : i32
    %c0_i32_0 = arith.constant 0 : i32
    return %arg0, %c0_i32 : i32, i32
  }
}

</mosaic_0001>

<llo_original>
// kernel: cnn_model_forward.1
$region0: #{cnn_model_forward.1}
  #allocation0 [shape = 'u32[]', space=smem, size = 0x4, offset = 0x4, fixed_abs, tag = 'smem constant byte address 0x4 - core index']
  #allocation1 [shape = 'u32[144,128]{1,0:T(1,128)}', space=vmem, size = 0x12000, scoped, tag = 'internal scratch']
  %s0 = inlined_call_operand.vmem [shape: f32[448,84], index: 0, kind: input, shape index: {}]
  %s1 = inlined_call_operand.vmem [shape: f32[224,1], index: 1, kind: input, shape index: {}]
  %s2 = inlined_call_operand.vmem [shape: f32[224,1], index: 2, kind: input, shape index: {}]
  %s3 = inlined_call_operand.vmem [shape: f32[112,1], index: 3, kind: input, shape index: {}]
  %s4 = inlined_call_operand.vmem [shape: f32[112,1], index: 4, kind: input, shape index: {}]
  %s5 = inlined_call_operand.vmem [shape: bf16[3,84,224], index: 5, kind: input, shape index: {}]
  %s6 = inlined_call_operand.vmem [shape: f32[1,224], index: 6, kind: input, shape index: {}]
  %s7 = inlined_call_operand.vmem [shape: bf16[3,224,224], index: 7, kind: input, shape index: {}]
  %s8 = inlined_call_operand.vmem [shape: f32[1,224], index: 8, kind: input, shape index: {}]
  %s9 = inlined_call_operand.vmem [shape: bf16[3,112,112], index: 9, kind: input, shape index: {}]
  %s10 = inlined_call_operand.vmem [shape: f32[1,112], index: 10, kind: input, shape index: {}]
  %s11 = inlined_call_operand.vmem [shape: bf16[3,112,112], index: 11, kind: input, shape index: {}]
  %s12 = inlined_call_operand.vmem [shape: f32[1,112], index: 12, kind: input, shape index: {}]
  %s13 = inlined_call_operand.vmem [shape: bf16[224,112], index: 13, kind: input, shape index: {}]
  %s14 = inlined_call_operand.vmem [shape: bf16[224,112], index: 14, kind: input, shape index: {}]
  %s15 = inlined_call_operand.vmem [shape: bf16[112,224], index: 15, kind: input, shape index: {}]
  %s16 = inlined_call_operand.vmem [shape: bf16[112,56], index: 16, kind: input, shape index: {}]
  %s17 = inlined_call_operand.vmem [shape: bf16[112,56], index: 17, kind: input, shape index: {}]
  %s18 = inlined_call_operand.vmem [shape: bf16[56,112], index: 18, kind: input, shape index: {}]
  %s19 = inlined_call_operand.vmem [shape: bf16[7,56,128], index: 19, kind: input, shape index: {}]
  %s20 = inlined_call_operand.vmem [shape: f32[1,128], index: 20, kind: input, shape index: {}]
  %s21 = inlined_call_operand.hbm [shape: f32[16,128], index: 21, kind: output, shape index: {}]
  %s22 = sld [smem:[#allocation0]]
  $region117: #{cnn_model_forward.1} parent=0
    _
  %s24 = ssub.s32 1, %s22
  %s25 = scalar_select 0, %s24, %s22
  $region1: #{cnn_model_forward.1} parent=0
    #allocation2 [shape = 'u8[8192]{0}', space=vmem, size = 0x2000, scoped, tag = 'output window, operand 0']
    #allocation3 [shape = 's32[2]{0}', space=sflag, size = 0x8, scoped, tag = 'scoped memory for cnn_model_forward.1']
    %26 = vsyncpa [#allocation3], 0
    %s27 = scalar_lea.sflag [#allocation3], 1
    %28 = vsyncpa %s27, 0
    loop: start=0, step=1, limit=4
    $region2: #{cnn_model_forward.1} parent=1 // loop_pre_header
      _
    $region3: #{cnn_model_forward.1} parent=1 // loop_header
      %s30 = sphi 0, %s34
      %p31 = scmp.ge.s32.totalorder %s30, 4
      %s40 = sphi 0, %s42
      %s43 = sphi 0, %s40
      %s44 = sphi 0, %s43
      %s60 = sphi 0, %s44
      %s64 = sphi 0, %s64
      %s66 = sphi 0, %s64
      %s67 = sphi 0, %s66
      %s81 = sphi 0, %s67
      %s85 = sphi 0, %s85
      %s87 = sphi 0, %s85
      %s88 = sphi 0, %s87
      %s102 = sphi 0, %s88
      %s106 = sphi 0, %s106
      %s108 = sphi 0, %s106
      %s109 = sphi 0, %s108
      %s123 = sphi 0, %s109
      %s127 = sphi 0, %s127
      %s129 = sphi 0, %s127
      %s130 = sphi 0, %s129
      %s144 = sphi 0, %s130
      %s148 = sphi 0, %s148
      %s150 = sphi 0, %s148
      %s151 = sphi 0, %s150
      %s165 = sphi 0, %s151
      %s169 = sphi 0, %s169
      %s171 = sphi 0, %s169
      %s172 = sphi 0, %s171
      %s186 = sphi 0, %s172
      %s190 = sphi 0, %s190
      %s192 = sphi 0, %s190
      %s193 = sphi 0, %s192
      %s207 = sphi 0, %s193
      %s211 = sphi 0, %s211
      %s213 = sphi 0, %s211
      %s214 = sphi 0, %s213
      %s228 = sphi 0, %s214
      %s232 = sphi 0, %s232
      %s234 = sphi 0, %s232
      %s235 = sphi 0, %s234
      %s249 = sphi 0, %s235
      %s253 = sphi 0, %s253
      %s255 = sphi 0, %s253
      %s256 = sphi 0, %s255
      %s270 = sphi 0, %s256
      %s274 = sphi 0, %s274
      %s276 = sphi 0, %s274
      %s277 = sphi 0, %s276
      %s291 = sphi 0, %s277
      %s295 = sphi 0, %s295
      %s297 = sphi 0, %s295
      %s298 = sphi 0, %s297
      %s312 = sphi 0, %s298
      %s316 = sphi 0, %s316
      %s318 = sphi 0, %s316
      %s319 = sphi 0, %s318
      %s333 = sphi 0, %s319
      %s337 = sphi 0, %s337
      %s339 = sphi 0, %s337
      %s340 = sphi 0, %s339
      %s354 = sphi 0, %s340
      %s358 = sphi 0, %s358
      %s360 = sphi 0, %s358
      %s361 = sphi 0, %s360
      %s375 = sphi 0, %s361
      %s379 = sphi 0, %s379
      %s381 = sphi 0, %s379
      %s382 = sphi 0, %s381
      %s396 = sphi 0, %s382
      %s400 = sphi 0, %s400
      %s402 = sphi 0, %s400
      %s403 = sphi 0, %s402
      %s417 = sphi 0, %s403
      %s421 = sphi 0, %s421
      %s423 = sphi 0, %s421
      %s424 = sphi 0, %s423
      %s438 = sphi 0, %s424
      %s442 = sphi 0, %s442
      %s444 = sphi 0, %s442
      %s445 = sphi 0, %s444
      %s459 = sphi 0, %s445
      %s463 = sphi 0, %s463
      %s465 = sphi 0, %s463
      %s466 = sphi 0, %s465
      %s480 = sphi 0, %s466
      %s486 = sphi 0, %s488
      %s489 = sphi 0, %s486
      %s490 = sphi 0, %s489
      %s506 = sphi 0, %s490
    $region4: #{cnn_model_forward.1} parent=1 // loop_header_branch
      %33 = sbr.rel (%p31) target = $region8
    $region5: #{cnn_model_forward.1} parent=1 // loop_body
      %s35 = ssub.s32 %s30, 1
      %s36 = ssub.s32 %s30, 2
      %s37 = sadd.s32 %s30, 1
      %s38 = ssub.s32 %s30, %s37
      %p39 = scmp.eq.s32.totalorder %s38, 0
      %s41 = sadd.s32 %s40, 1
      %s42 = scalar_select %p39, %s40, %s41
      %p45 = pneg %p39
      %p46 = scmp.eq.s32.totalorder %s30, 1
      %p47 = por %p45, %p46
      %p48 = scmp.ne.s32.totalorder %s40, %s43
      %p49 = scmp.eq.s32.totalorder %s30, 0
      %p50 = por %p48, %p49
      %p51 = scmp.ne.s32.totalorder %s40, %s43
      %p52 = scmp.eq.s32.totalorder %s35, 1
      %p53 = por %p51, %p52
      %p54 = scmp.ne.s32.totalorder %s43, %s44
      %p55 = scmp.eq.s32.totalorder %s35, 0
      %p56 = por %p54, %p55
      %p57 = scmp.ne.s32.totalorder %s43, %s44
      %p58 = scmp.eq.s32.totalorder %s36, 1
      %p59 = por %p57, %p58
      %p61 = scmp.ne.s32.totalorder %s44, %s60
      %p62 = scmp.eq.s32.totalorder %s36, 0
      %p63 = por %p61, %p62
      %s65 = sadd.s32 %s64, 1
      %p68 = scmp.eq.s32.totalorder %s30, 1
      %p69 = scmp.ne.s32.totalorder %s64, %s66
      %p70 = scmp.eq.s32.totalorder %s30, 0
      %p71 = por %p69, %p70
      %p72 = scmp.ne.s32.totalorder %s64, %s66
      %p73 = scmp.eq.s32.totalorder %s35, 1
      %p74 = por %p72, %p73
      %p75 = scmp.ne.s32.totalorder %s66, %s67
      %p76 = scmp.eq.s32.totalorder %s35, 0
      %p77 = por %p75, %p76
      %p78 = scmp.ne.s32.totalorder %s66, %s67
      %p79 = scmp.eq.s32.totalorder %s36, 1
      %p80 = por %p78, %p79
      %p82 = scmp.ne.s32.totalorder %s67, %s81
      %p83 = scmp.eq.s32.totalorder %s36, 0
      %p84 = por %p82, %p83
      %s86 = sadd.s32 %s85, 1
      %p89 = scmp.eq.s32.totalorder %s30, 1
      %p90 = scmp.ne.s32.totalorder %s85, %s87
      %p91 = scmp.eq.s32.totalorder %s30, 0
      %p92 = por %p90, %p91
      %p93 = scmp.ne.s32.totalorder %s85, %s87
      %p94 = scmp.eq.s32.totalorder %s35, 1
      %p95 = por %p93, %p94
      %p96 = scmp.ne.s32.totalorder %s87, %s88
      %p97 = scmp.eq.s32.totalorder %s35, 0
      %p98 = por %p96, %p97
      %p99 = scmp.ne.s32.totalorder %s87, %s88
      %p100 = scmp.eq.s32.totalorder %s36, 1
      %p101 = por %p99, %p100
      %p103 = scmp.ne.s32.totalorder %s88, %s102
      %p104 = scmp.eq.s32.totalorder %s36, 0
      %p105 = por %p103, %p104
      %s107 = sadd.s32 %s106, 1
      %p110 = scmp.eq.s32.totalorder %s30, 1
      %p111 = scmp.ne.s32.totalorder %s106, %s108
      %p112 = scmp.eq.s32.totalorder %s30, 0
      %p113 = por %p111, %p112
      %p114 = scmp.ne.s32.totalorder %s106, %s108
      %p115 = scmp.eq.s32.totalorder %s35, 1
      %p116 = por %p114, %p115
      %p117 = scmp.ne.s32.totalorder %s108, %s109
      %p118 = scmp.eq.s32.totalorder %s35, 0
      %p119 = por %p117, %p118
      %p120 = scmp.ne.s32.totalorder %s108, %s109
      %p121 = scmp.eq.s32.totalorder %s36, 1
      %p122 = por %p120, %p121
      %p124 = scmp.ne.s32.totalorder %s109, %s123
      %p125 = scmp.eq.s32.totalorder %s36, 0
      %p126 = por %p124, %p125
      %s128 = sadd.s32 %s127, 1
      %p131 = scmp.eq.s32.totalorder %s30, 1
      %p132 = scmp.ne.s32.totalorder %s127, %s129
      %p133 = scmp.eq.s32.totalorder %s30, 0
      %p134 = por %p132, %p133
      %p135 = scmp.ne.s32.totalorder %s127, %s129
      %p136 = scmp.eq.s32.totalorder %s35, 1
      %p137 = por %p135, %p136
      %p138 = scmp.ne.s32.totalorder %s129, %s130
      %p139 = scmp.eq.s32.totalorder %s35, 0
      %p140 = por %p138, %p139
      %p141 = scmp.ne.s32.totalorder %s129, %s130
      %p142 = scmp.eq.s32.totalorder %s36, 1
      %p143 = por %p141, %p142
      %p145 = scmp.ne.s32.totalorder %s130, %s144
      %p146 = scmp.eq.s32.totalorder %s36, 0
      %p147 = por %p145, %p146
      %s149 = sadd.s32 %s148, 1
      %p152 = scmp.eq.s32.totalorder %s30, 1
      %p153 = scmp.ne.s32.totalorder %s148, %s150
      %p154 = scmp.eq.s32.totalorder %s30, 0
      %p155 = por %p153, %p154
      %p156 = scmp.ne.s32.totalorder %s148, %s150
      %p157 = scmp.eq.s32.totalorder %s35, 1
      %p158 = por %p156, %p157
      %p159 = scmp.ne.s32.totalorder %s150, %s151
      %p160 = scmp.eq.s32.totalorder %s35, 0
      %p161 = por %p159, %p160
      %p162 = scmp.ne.s32.totalorder %s150, %s151
      %p163 = scmp.eq.s32.totalorder %s36, 1
      %p164 = por %p162, %p163
      %p166 = scmp.ne.s32.totalorder %s151, %s165
      %p167 = scmp.eq.s32.totalorder %s36, 0
      %p168 = por %p166, %p167
      %s170 = sadd.s32 %s169, 1
      %p173 = scmp.eq.s32.totalorder %s30, 1
      %p174 = scmp.ne.s32.totalorder %s169, %s171
      %p175 = scmp.eq.s32.totalorder %s30, 0
      %p176 = por %p174, %p175
      %p177 = scmp.ne.s32.totalorder %s169, %s171
      %p178 = scmp.eq.s32.totalorder %s35, 1
      %p179 = por %p177, %p178
      %p180 = scmp.ne.s32.totalorder %s171, %s172
      %p181 = scmp.eq.s32.totalorder %s35, 0
      %p182 = por %p180, %p181
      %p183 = scmp.ne.s32.totalorder %s171, %s172
      %p184 = scmp.eq.s32.totalorder %s36, 1
      %p185 = por %p183, %p184
      %p187 = scmp.ne.s32.totalorder %s172, %s186
      %p188 = scmp.eq.s32.totalorder %s36, 0
      %p189 = por %p187, %p188
      %s191 = sadd.s32 %s190, 1
      %p194 = scmp.eq.s32.totalorder %s30, 1
      %p195 = scmp.ne.s32.totalorder %s190, %s192
      %p196 = scmp.eq.s32.totalorder %s30, 0
      %p197 = por %p195, %p196
      %p198 = scmp.ne.s32.totalorder %s190, %s192
      %p199 = scmp.eq.s32.totalorder %s35, 1
      %p200 = por %p198, %p199
      %p201 = scmp.ne.s32.totalorder %s192, %s193
      %p202 = scmp.eq.s32.totalorder %s35, 0
      %p203 = por %p201, %p202
      %p204 = scmp.ne.s32.totalorder %s192, %s193
      %p205 = scmp.eq.s32.totalorder %s36, 1
      %p206 = por %p204, %p205
      %p208 = scmp.ne.s32.totalorder %s193, %s207
      %p209 = scmp.eq.s32.totalorder %s36, 0
      %p210 = por %p208, %p209
      %s212 = sadd.s32 %s211, 1
      %p215 = scmp.eq.s32.totalorder %s30, 1
      %p216 = scmp.ne.s32.totalorder %s211, %s213
      %p217 = scmp.eq.s32.totalorder %s30, 0
      %p218 = por %p216, %p217
      %p219 = scmp.ne.s32.totalorder %s211, %s213
      %p220 = scmp.eq.s32.totalorder %s35, 1
      %p221 = por %p219, %p220
      %p222 = scmp.ne.s32.totalorder %s213, %s214
      %p223 = scmp.eq.s32.totalorder %s35, 0
      %p224 = por %p222, %p223
      %p225 = scmp.ne.s32.totalorder %s213, %s214
      %p226 = scmp.eq.s32.totalorder %s36, 1
      %p227 = por %p225, %p226
      %p229 = scmp.ne.s32.totalorder %s214, %s228
      %p230 = scmp.eq.s32.totalorder %s36, 0
      %p231 = por %p229, %p230
      %s233 = sadd.s32 %s232, 1
      %p236 = scmp.eq.s32.totalorder %s30, 1
      %p237 = scmp.ne.s32.totalorder %s232, %s234
      %p238 = scmp.eq.s32.totalorder %s30, 0
      %p239 = por %p237, %p238
      %p240 = scmp.ne.s32.totalorder %s232, %s234
      %p241 = scmp.eq.s32.totalorder %s35, 1
      %p242 = por %p240, %p241
      %p243 = scmp.ne.s32.totalorder %s234, %s235
      %p244 = scmp.eq.s32.totalorder %s35, 0
      %p245 = por %p243, %p244
      %p246 = scmp.ne.s32.totalorder %s234, %s235
      %p247 = scmp.eq.s32.totalorder %s36, 1
      %p248 = por %p246, %p247
      %p250 = scmp.ne.s32.totalorder %s235, %s249
      %p251 = scmp.eq.s32.totalorder %s36, 0
      %p252 = por %p250, %p251
      %s254 = sadd.s32 %s253, 1
      %p257 = scmp.eq.s32.totalorder %s30, 1
      %p258 = scmp.ne.s32.totalorder %s253, %s255
      %p259 = scmp.eq.s32.totalorder %s30, 0
      %p260 = por %p258, %p259
      %p261 = scmp.ne.s32.totalorder %s253, %s255
      %p262 = scmp.eq.s32.totalorder %s35, 1
      %p263 = por %p261, %p262
      %p264 = scmp.ne.s32.totalorder %s255, %s256
      %p265 = scmp.eq.s32.totalorder %s35, 0
      %p266 = por %p264, %p265
      %p267 = scmp.ne.s32.totalorder %s255, %s256
      %p268 = scmp.eq.s32.totalorder %s36, 1
      %p269 = por %p267, %p268
      %p271 = scmp.ne.s32.totalorder %s256, %s270
      %p272 = scmp.eq.s32.totalorder %s36, 0
      %p273 = por %p271, %p272
      %s275 = sadd.s32 %s274, 1
      %p278 = scmp.eq.s32.totalorder %s30, 1
      %p279 = scmp.ne.s32.totalorder %s274, %s276
      %p280 = scmp.eq.s32.totalorder %s30, 0
      %p281 = por %p279, %p280
      %p282 = scmp.ne.s32.totalorder %s274, %s276
      %p283 = scmp.eq.s32.totalorder %s35, 1
      %p284 = por %p282, %p283
      %p285 = scmp.ne.s32.totalorder %s276, %s277
      %p286 = scmp.eq.s32.totalorder %s35, 0
      %p287 = por %p285, %p286
      %p288 = scmp.ne.s32.totalorder %s276, %s277
      %p289 = scmp.eq.s32.totalorder %s36, 1
      %p290 = por %p288, %p289
      %p292 = scmp.ne.s32.totalorder %s277, %s291
      %p293 = scmp.eq.s32.totalorder %s36, 0
      %p294 = por %p292, %p293
      %s296 = sadd.s32 %s295, 1
      %p299 = scmp.eq.s32.totalorder %s30, 1
      %p300 = scmp.ne.s32.totalorder %s295, %s297
      %p301 = scmp.eq.s32.totalorder %s30, 0
      %p302 = por %p300, %p301
      %p303 = scmp.ne.s32.totalorder %s295, %s297
      %p304 = scmp.eq.s32.totalorder %s35, 1
      %p305 = por %p303, %p304
      %p306 = scmp.ne.s32.totalorder %s297, %s298
      %p307 = scmp.eq.s32.totalorder %s35, 0
      %p308 = por %p306, %p307
      %p309 = scmp.ne.s32.totalorder %s297, %s298
      %p310 = scmp.eq.s32.totalorder %s36, 1
      %p311 = por %p309, %p310
      %p313 = scmp.ne.s32.totalorder %s298, %s312
      %p314 = scmp.eq.s32.totalorder %s36, 0
      %p315 = por %p313, %p314
      %s317 = sadd.s32 %s316, 1
      %p320 = scmp.eq.s32.totalorder %s30, 1
      %p321 = scmp.ne.s32.totalorder %s316, %s318
      %p322 = scmp.eq.s32.totalorder %s30, 0
      %p323 = por %p321, %p322
      %p324 = scmp.ne.s32.totalorder %s316, %s318
      %p325 = scmp.eq.s32.totalorder %s35, 1
      %p326 = por %p324, %p325
      %p327 = scmp.ne.s32.totalorder %s318, %s319
      %p328 = scmp.eq.s32.totalorder %s35, 0
      %p329 = por %p327, %p328
      %p330 = scmp.ne.s32.totalorder %s318, %s319
      %p331 = scmp.eq.s32.totalorder %s36, 1
      %p332 = por %p330, %p331
      %p334 = scmp.ne.s32.totalorder %s319, %s333
      %p335 = scmp.eq.s32.totalorder %s36, 0
      %p336 = por %p334, %p335
      %s338 = sadd.s32 %s337, 1
      %p341 = scmp.eq.s32.totalorder %s30, 1
      %p342 = scmp.ne.s32.totalorder %s337, %s339
      %p343 = scmp.eq.s32.totalorder %s30, 0
      %p344 = por %p342, %p343
      %p345 = scmp.ne.s32.totalorder %s337, %s339
      %p346 = scmp.eq.s32.totalorder %s35, 1
      %p347 = por %p345, %p346
      %p348 = scmp.ne.s32.totalorder %s339, %s340
      %p349 = scmp.eq.s32.totalorder %s35, 0
      %p350 = por %p348, %p349
      %p351 = scmp.ne.s32.totalorder %s339, %s340
      %p352 = scmp.eq.s32.totalorder %s36, 1
      %p353 = por %p351, %p352
      %p355 = scmp.ne.s32.totalorder %s340, %s354
      %p356 = scmp.eq.s32.totalorder %s36, 0
      %p357 = por %p355, %p356
      %s359 = sadd.s32 %s358, 1
      %p362 = scmp.eq.s32.totalorder %s30, 1
      %p363 = scmp.ne.s32.totalorder %s358, %s360
      %p364 = scmp.eq.s32.totalorder %s30, 0
      %p365 = por %p363, %p364
      %p366 = scmp.ne.s32.totalorder %s358, %s360
      %p367 = scmp.eq.s32.totalorder %s35, 1
      %p368 = por %p366, %p367
      %p369 = scmp.ne.s32.totalorder %s360, %s361
      %p370 = scmp.eq.s32.totalorder %s35, 0
      %p371 = por %p369, %p370
      %p372 = scmp.ne.s32.totalorder %s360, %s361
      %p373 = scmp.eq.s32.totalorder %s36, 1
      %p374 = por %p372, %p373
      %p376 = scmp.ne.s32.totalorder %s361, %s375
      %p377 = scmp.eq.s32.totalorder %s36, 0
      %p378 = por %p376, %p377
      %s380 = sadd.s32 %s379, 1
      %p383 = scmp.eq.s32.totalorder %s30, 1
      %p384 = scmp.ne.s32.totalorder %s379, %s381
      %p385 = scmp.eq.s32.totalorder %s30, 0
      %p386 = por %p384, %p385
      %p387 = scmp.ne.s32.totalorder %s379, %s381
      %p388 = scmp.eq.s32.totalorder %s35, 1
      %p389 = por %p387, %p388
      %p390 = scmp.ne.s32.totalorder %s381, %s382
      %p391 = scmp.eq.s32.totalorder %s35, 0
      %p392 = por %p390, %p391
      %p393 = scmp.ne.s32.totalorder %s381, %s382
      %p394 = scmp.eq.s32.totalorder %s36, 1
      %p395 = por %p393, %p394
      %p397 = scmp.ne.s32.totalorder %s382, %s396
      %p398 = scmp.eq.s32.totalorder %s36, 0
      %p399 = por %p397, %p398
      %s401 = sadd.s32 %s400, 1
      %p404 = scmp.eq.s32.totalorder %s30, 1
      %p405 = scmp.ne.s32.totalorder %s400, %s402
      %p406 = scmp.eq.s32.totalorder %s30, 0
      %p407 = por %p405, %p406
      %p408 = scmp.ne.s32.totalorder %s400, %s402
      %p409 = scmp.eq.s32.totalorder %s35, 1
      %p410 = por %p408, %p409
      %p411 = scmp.ne.s32.totalorder %s402, %s403
      %p412 = scmp.eq.s32.totalorder %s35, 0
      %p413 = por %p411, %p412
      %p414 = scmp.ne.s32.totalorder %s402, %s403
      %p415 = scmp.eq.s32.totalorder %s36, 1
      %p416 = por %p414, %p415
      %p418 = scmp.ne.s32.totalorder %s403, %s417
      %p419 = scmp.eq.s32.totalorder %s36, 0
      %p420 = por %p418, %p419
      %s422 = sadd.s32 %s421, 1
      %p425 = scmp.eq.s32.totalorder %s30, 1
      %p426 = scmp.ne.s32.totalorder %s421, %s423
      %p427 = scmp.eq.s32.totalorder %s30, 0
      %p428 = por %p426, %p427
      %p429 = scmp.ne.s32.totalorder %s421, %s423
      %p430 = scmp.eq.s32.totalorder %s35, 1
      %p431 = por %p429, %p430
      %p432 = scmp.ne.s32.totalorder %s423, %s424
      %p433 = scmp.eq.s32.totalorder %s35, 0
      %p434 = por %p432, %p433
      %p435 = scmp.ne.s32.totalorder %s423, %s424
      %p436 = scmp.eq.s32.totalorder %s36, 1
      %p437 = por %p435, %p436
      %p439 = scmp.ne.s32.totalorder %s424, %s438
      %p440 = scmp.eq.s32.totalorder %s36, 0
      %p441 = por %p439, %p440
      %s443 = sadd.s32 %s442, 1
      %p446 = scmp.eq.s32.totalorder %s30, 1
      %p447 = scmp.ne.s32.totalorder %s442, %s444
      %p448 = scmp.eq.s32.totalorder %s30, 0
      %p449 = por %p447, %p448
      %p450 = scmp.ne.s32.totalorder %s442, %s444
      %p451 = scmp.eq.s32.totalorder %s35, 1
      %p452 = por %p450, %p451
      %p453 = scmp.ne.s32.totalorder %s444, %s445
      %p454 = scmp.eq.s32.totalorder %s35, 0
      %p455 = por %p453, %p454
      %p456 = scmp.ne.s32.totalorder %s444, %s445
      %p457 = scmp.eq.s32.totalorder %s36, 1
      %p458 = por %p456, %p457
      %p460 = scmp.ne.s32.totalorder %s445, %s459
      %p461 = scmp.eq.s32.totalorder %s36, 0
      %p462 = por %p460, %p461
      %s464 = sadd.s32 %s463, 1
      %p467 = scmp.eq.s32.totalorder %s30, 1
      %p468 = scmp.ne.s32.totalorder %s463, %s465
      %p469 = scmp.eq.s32.totalorder %s30, 0
      %p470 = por %p468, %p469
      %p471 = scmp.ne.s32.totalorder %s463, %s465
      %p472 = scmp.eq.s32.totalorder %s35, 1
      %p473 = por %p471, %p472
      %p474 = scmp.ne.s32.totalorder %s465, %s466
      %p475 = scmp.eq.s32.totalorder %s35, 0
      %p476 = por %p474, %p475
      %p477 = scmp.ne.s32.totalorder %s465, %s466
      %p478 = scmp.eq.s32.totalorder %s36, 1
      %p479 = por %p477, %p478
      %p481 = scmp.ne.s32.totalorder %s466, %s480
      %p482 = scmp.eq.s32.totalorder %s36, 0
      %p483 = por %p481, %p482
      %s484 = ssub.s32 %s30, %s37
      %p485 = scmp.eq.s32.totalorder %s484, 0
      %s487 = sadd.s32 %s486, 1
      %s488 = scalar_select %p485, %s486, %s487
      %p491 = pneg %p485
      %p492 = scmp.eq.s32.totalorder %s30, 1
      %p493 = por %p491, %p492
      %p494 = scmp.ne.s32.totalorder %s486, %s489
      %p495 = scmp.eq.s32.totalorder %s30, 0
      %p496 = por %p494, %p495
      %p497 = scmp.ne.s32.totalorder %s486, %s489
      %p498 = scmp.eq.s32.totalorder %s35, 1
      %p499 = por %p497, %p498
      %p500 = scmp.ne.s32.totalorder %s489, %s490
      %p501 = scmp.eq.s32.totalorder %s35, 0
      %p502 = por %p500, %p501
      %p503 = scmp.ne.s32.totalorder %s489, %s490
      %p504 = scmp.eq.s32.totalorder %s36, 1
      %p505 = por %p503, %p504
      %p507 = scmp.ne.s32.totalorder %s490, %s506
      %p508 = scmp.eq.s32.totalorder %s36, 0
      %p509 = por %p507, %p508
      %p510 = scmp.le.s32.totalorder 1, %s30
      %p511 = scmp.lt.s32.totalorder %s30, 3
      %p512 = pnand %p510, %p511
      %p513 = pneg %p512
      // Predicated region
      $region9: #{cnn_model_forward.1} parent=5 // pred_check
        _
      $region10: #{cnn_model_forward.1} parent=5 // pred_check_branch
        %515 = sbr.rel (%p512) target = $region12
      $region11: #{cnn_model_forward.1} parent=5 // pred_region
        %s516 = ssub.s32 %s30, 1
        // Predicated region
        $region13: #{cnn_model_forward.1} parent=11 // pred_check
          %p517 = pneg %p77
        $region14: #{cnn_model_forward.1} parent=11 // pred_check_branch
          %519 = sbr.rel (%p517) target = $region16
        $region15: #{cnn_model_forward.1} parent=11 // pred_region
          _
        $region16: #{cnn_model_forward.1} parent=11 // pred_fallthru
          _
        // Predicated region
        $region17: #{cnn_model_forward.1} parent=11 // pred_check
          %p520 = pneg %p98
        $region18: #{cnn_model_forward.1} parent=11 // pred_check_branch
          %522 = sbr.rel (%p520) target = $region20
        $region19: #{cnn_model_forward.1} parent=11 // pred_region
          _
        $region20: #{cnn_model_forward.1} parent=11 // pred_fallthru
          _
        // Predicated region
        $region21: #{cnn_model_forward.1} parent=11 // pred_check
          %p523 = pneg %p119
        $region22: #{cnn_model_forward.1} parent=11 // pred_check_branch
          %525 = sbr.rel (%p523) target = $region24
        $region23: #{cnn_model_forward.1} parent=11 // pred_region
          _
        $region24: #{cnn_model_forward.1} parent=11 // pred_fallthru
          _
        // Predicated region
        $region25: #{cnn_model_forward.1} parent=11 // pred_check
          %p526 = pneg %p140
        $region26: #{cnn_model_forward.1} parent=11 // pred_check_branch
          %528 = sbr.rel (%p526) target = $region28
        $region27: #{cnn_model_forward.1} parent=11 // pred_region
          _
        $region28: #{cnn_model_forward.1} parent=11 // pred_fallthru
          _
        // Predicated region
        $region29: #{cnn_model_forward.1} parent=11 // pred_check
          %p529 = pneg %p161
        $region30: #{cnn_model_forward.1} parent=11 // pred_check_branch
          %531 = sbr.rel (%p529) target = $region32
        $region31: #{cnn_model_forward.1} parent=11 // pred_region
          _
        $region32: #{cnn_model_forward.1} parent=11 // pred_fallthru
          _
        // Predicated region
        $region33: #{cnn_model_forward.1} parent=11 // pred_check
          %p532 = pneg %p182
        $region34: #{cnn_model_forward.1} parent=11 // pred_check_branch
          %534 = sbr.rel (%p532) target = $region36
        $region35: #{cnn_model_forward.1} parent=11 // pred_region
          _
        $region36: #{cnn_model_forward.1} parent=11 // pred_fallthru
          _
        // Predicated region
        $region37: #{cnn_model_forward.1} parent=11 // pred_check
          %p535 = pneg %p203
        $region38: #{cnn_model_forward.1} parent=11 // pred_check_branch
          %537 = sbr.rel (%p535) target = $region40
        $region39: #{cnn_model_forward.1} parent=11 // pred_region
          _
        $region40: #{cnn_model_forward.1} parent=11 // pred_fallthru
          _
        // Predicated region
        $region41: #{cnn_model_forward.1} parent=11 // pred_check
          %p538 = pneg %p224
        $region42: #{cnn_model_forward.1} parent=11 // pred_check_branch
          %540 = sbr.rel (%p538) target = $region44
        $region43: #{cnn_model_forward.1} parent=11 // pred_region
          _
        $region44: #{cnn_model_forward.1} parent=11 // pred_fallthru
          _
        // Predicated region
        $region45: #{cnn_model_forward.1} parent=11 // pred_check
          %p541 = pneg %p245
        $region46: #{cnn_model_forward.1} parent=11 // pred_check_branch
          %543 = sbr.rel (%p541) target = $region48
        $region47: #{cnn_model_forward.1} parent=11 // pred_region
          _
        $region48: #{cnn_model_forward.1} parent=11 // pred_fallthru
          _
        // Predicated region
        $region49: #{cnn_model_forward.1} parent=11 // pred_check
          %p544 = pneg %p266
        $region50: #{cnn_model_forward.1} parent=11 // pred_check_branch
          %546 = sbr.rel (%p544) target = $region52
        $region51: #{cnn_model_forward.1} parent=11 // pred_region
          _
        $region52: #{cnn_model_forward.1} parent=11 // pred_fallthru
          _
        // Predicated region
        $region53: #{cnn_model_forward.1} parent=11 // pred_check
          %p547 = pneg %p287
        $region54: #{cnn_model_forward.1} parent=11 // pred_check_branch
          %549 = sbr.rel (%p547) target = $region56
        $region55: #{cnn_model_forward.1} parent=11 // pred_region
          _
        $region56: #{cnn_model_forward.1} parent=11 // pred_fallthru
          _
        // Predicated region
        $region57: #{cnn_model_forward.1} parent=11 // pred_check
          %p550 = pneg %p308
        $region58: #{cnn_model_forward.1} parent=11 // pred_check_branch
          %552 = sbr.rel (%p550) target = $region60
        $region59: #{cnn_model_forward.1} parent=11 // pred_region
          _
        $region60: #{cnn_model_forward.1} parent=11 // pred_fallthru
          _
        // Predicated region
        $region61: #{cnn_model_forward.1} parent=11 // pred_check
          %p553 = pneg %p329
        $region62: #{cnn_model_forward.1} parent=11 // pred_check_branch
          %555 = sbr.rel (%p553) target = $region64
        $region63: #{cnn_model_forward.1} parent=11 // pred_region
          _
        $region64: #{cnn_model_forward.1} parent=11 // pred_fallthru
          _
        // Predicated region
        $region65: #{cnn_model_forward.1} parent=11 // pred_check
          %p556 = pneg %p350
        $region66: #{cnn_model_forward.1} parent=11 // pred_check_branch
          %558 = sbr.rel (%p556) target = $region68
        $region67: #{cnn_model_forward.1} parent=11 // pred_region
          _
        $region68: #{cnn_model_forward.1} parent=11 // pred_fallthru
          _
        // Predicated region
        $region69: #{cnn_model_forward.1} parent=11 // pred_check
          %p559 = pneg %p371
        $region70: #{cnn_model_forward.1} parent=11 // pred_check_branch
          %561 = sbr.rel (%p559) target = $region72
        $region71: #{cnn_model_forward.1} parent=11 // pred_region
          _
        $region72: #{cnn_model_forward.1} parent=11 // pred_fallthru
          _
        // Predicated region
        $region73: #{cnn_model_forward.1} parent=11 // pred_check
          %p562 = pneg %p392
        $region74: #{cnn_model_forward.1} parent=11 // pred_check_branch
          %564 = sbr.rel (%p562) target = $region76
        $region75: #{cnn_model_forward.1} parent=11 // pred_region
          _
        $region76: #{cnn_model_forward.1} parent=11 // pred_fallthru
          _
        // Predicated region
        $region77: #{cnn_model_forward.1} parent=11 // pred_check
          %p565 = pneg %p413
        $region78: #{cnn_model_forward.1} parent=11 // pred_check_branch
          %567 = sbr.rel (%p565) target = $region80
        $region79: #{cnn_model_forward.1} parent=11 // pred_region
          _
        $region80: #{cnn_model_forward.1} parent=11 // pred_fallthru
          _
        // Predicated region
        $region81: #{cnn_model_forward.1} parent=11 // pred_check
          %p568 = pneg %p434
        $region82: #{cnn_model_forward.1} parent=11 // pred_check_branch
          %570 = sbr.rel (%p568) target = $region84
        $region83: #{cnn_model_forward.1} parent=11 // pred_region
          _
        $region84: #{cnn_model_forward.1} parent=11 // pred_fallthru
          _
        // Predicated region
        $region85: #{cnn_model_forward.1} parent=11 // pred_check
          %p571 = pneg %p455
        $region86: #{cnn_model_forward.1} parent=11 // pred_check_branch
          %573 = sbr.rel (%p571) target = $region88
        $region87: #{cnn_model_forward.1} parent=11 // pred_region
          _
        $region88: #{cnn_model_forward.1} parent=11 // pred_fallthru
          _
        // Predicated region
        $region89: #{cnn_model_forward.1} parent=11 // pred_check
          %p574 = pneg %p476
        $region90: #{cnn_model_forward.1} parent=11 // pred_check_branch
          %576 = sbr.rel (%p574) target = $region92
        $region91: #{cnn_model_forward.1} parent=11 // pred_region
          _
        $region92: #{cnn_model_forward.1} parent=11 // pred_fallthru
          _
      $region12: #{cnn_model_forward.1} parent=5 // pred_fallthru
        _
      %p577 = scmp.lt.s32.totalorder %s30, 2
      // Predicated region
      $region93: #{cnn_model_forward.1} parent=5 // pred_check
        %p578 = pneg %p577
      $region94: #{cnn_model_forward.1} parent=5 // pred_check_branch
        %580 = sbr.rel (%p578) target = $region96
      $region95: #{cnn_model_forward.1} parent=5 // pred_region
        // Predicated region
        $region97: #{cnn_model_forward.1} parent=95 // pred_check
          %p581 = pneg %p50
        $region98: #{cnn_model_forward.1} parent=95 // pred_check_branch
          %583 = sbr.rel (%p581) target = $region100
        $region99: #{cnn_model_forward.1} parent=95 // pred_region
          %s584 = smul.u32 28, %s30
          %p585 = scmp.lt.s32.totalorder %s584, 55
          %s586 = scalar_select %p585, %s584, 55
          %s587 = smul.addr %s586, 8
          %s588 = scalar_lea.vmem %s0, %s587
          %s589 = smul.u32 28, %s30
        $region100: #{cnn_model_forward.1} parent=95 // pred_fallthru
          _
      $region96: #{cnn_model_forward.1} parent=5 // pred_fallthru
        _
      %p590 = scmp.le.s32.totalorder 1, %s30
      %p591 = scmp.lt.s32.totalorder %s30, 3
      %p592 = pnand %p590, %p591
      %p593 = pneg %p592
      // Predicated region
      $region101: #{cnn_model_forward.1} parent=5 // pred_check
        _
      $region102: #{cnn_model_forward.1} parent=5 // pred_check_branch
        %595 = sbr.rel (%p592) target = $region104
      $region103: #{cnn_model_forward.1} parent=5 // pred_region
        %s596 = ssub.s32 %s30, 1
        %s597 = smul.u32 28, %s35
        %p598 = scmp.lt.s32.totalorder %s597, 55
        %s599 = scalar_select %p598, %s597, 55
        %s600 = smul.addr %s599, 8
        %s601 = scalar_lea.vmem %s0, %s600
        %p602 = pneg %p56
        %p603 = pneg %p53
        %p604 = pneg %p77
        %p605 = pneg %p74
        %p606 = pneg %p98
        %p607 = pneg %p95
        %p608 = pneg %p119
        %p609 = pneg %p116
        %p610 = pneg %p140
        %p611 = pneg %p137
        %p612 = pneg %p161
        %p613 = pneg %p158
        %p614 = pneg %p182
        %p615 = pneg %p179
        %p616 = pneg %p203
        %p617 = pneg %p200
        %p618 = pneg %p224
        %p619 = pneg %p221
        %p620 = pneg %p245
        %p621 = pneg %p242
        %p622 = pneg %p266
        %p623 = pneg %p263
        %p624 = pneg %p287
        %p625 = pneg %p284
        %p626 = pneg %p308
        %p627 = pneg %p305
        %p628 = pneg %p329
        %p629 = pneg %p326
        %p630 = pneg %p350
        %p631 = pneg %p347
        %p632 = pneg %p371
        %p633 = pneg %p368
        %p634 = pneg %p392
        %p635 = pneg %p389
        %p636 = pneg %p413
        %p637 = pneg %p410
        %p638 = pneg %p434
        %p639 = pneg %p431
        %p640 = pneg %p455
        %p641 = pneg %p452
        %p642 = pneg %p476
        %p643 = pneg %p473
        %p644 = pneg %p502
        %p645 = pneg %p499
        %s646 = sand.u32 %s489, 1
        %s647 = scalar_lea.sflag [#allocation3], %s646
        %s648 = sand.u32 %s489, 1
        %s649 = smul.addr %s648, 8
        %s650 = scalar_lea.vmem [#allocation2], %s649
        %s651 = smul.u32 28, %s35
        %p652 = scmp.lt.s32.totalorder %s651, 55
        %s653 = scalar_select %p652, %s651, 55
        %s654 = smul.addr %s653, 8
        %s655 = scalar_lea.vmem %s0, %s654
        %s656 = smul.u32 28, %s35
        %v658 = vld [vmem:[%s655] sm:$0xff]
        %v659 = vld [vmem:[%s655 + $0x8] sm:$0xff]
        %v660 = vld [vmem:[%s655 + $0x10] sm:$0xff]
        %v661 = vld [vmem:[%s655 + $0x18] sm:$0xff]
        %v662 = vld [vmem:[%s655 + $0x20] sm:$0xff]
        %v663 = vld [vmem:[%s655 + $0x28] sm:$0xff]
        %v664 = vld [vmem:[%s655 + $0x30] sm:$0xff]
        %v665 = vld [vmem:[%s655 + $0x38] sm:$0xff]
        %v666 = vld [vmem:[%s655 + $0x40] sm:$0xff]
        %v667 = vld [vmem:[%s655 + $0x48] sm:$0xff]
        %v668 = vld [vmem:[%s655 + $0x50] sm:$0xff]
        %v669 = vld [vmem:[%s655 + $0x58] sm:$0xff]
        %v670 = vld [vmem:[%s655 + $0x60] sm:$0xff]
        %v671 = vld [vmem:[%s655 + $0x68] sm:$0xff]
        %v672 = vld [vmem:[%s655 + $0x70] sm:$0xff]
        %v673 = vld [vmem:[%s655 + $0x78] sm:$0xff]
        %v674 = vld [vmem:[%s655 + $0x80] sm:$0xff]
        %v675 = vld [vmem:[%s655 + $0x88] sm:$0xff]
        %v676 = vld [vmem:[%s655 + $0x90] sm:$0xff]
        %v677 = vld [vmem:[%s655 + $0x98] sm:$0xff]
        %v678 = vld [vmem:[%s655 + $0xa0] sm:$0xff]
        %v679 = vld [vmem:[%s655 + $0xa8] sm:$0xff]
        %v680 = vld [vmem:[%s655 + $0xb0] sm:$0xff]
        %v681 = vld [vmem:[%s655 + $0xb8] sm:$0xff]
        %v682 = vld [vmem:[%s655 + $0xc0] sm:$0xff]
        %v683 = vld [vmem:[%s655 + $0xc8] sm:$0xff]
        %v684 = vld [vmem:[%s655 + $0xd0] sm:$0xff]
        %v685 = vld [vmem:[%s655 + $0xd8] sm:$0xff]
        %v686 = vld [vmem:[%s1] sm:$0xff]
        %v687 = vld [vmem:[%s1 + $0x8] sm:$0xff]
        %v688 = vld [vmem:[%s1 + $0x10] sm:$0xff]
        %v689 = vld [vmem:[%s1 + $0x18] sm:$0xff]
        %v690 = vld [vmem:[%s1 + $0x20] sm:$0xff]
        %v691 = vld [vmem:[%s1 + $0x28] sm:$0xff]
        %v692 = vld [vmem:[%s1 + $0x30] sm:$0xff]
        %v693 = vld [vmem:[%s1 + $0x38] sm:$0xff]
        %v694 = vld [vmem:[%s1 + $0x40] sm:$0xff]
        %v695 = vld [vmem:[%s1 + $0x48] sm:$0xff]
        %v696 = vld [vmem:[%s1 + $0x50] sm:$0xff]
        %v697 = vld [vmem:[%s1 + $0x58] sm:$0xff]
        %v698 = vld [vmem:[%s1 + $0x60] sm:$0xff]
        %v699 = vld [vmem:[%s1 + $0x68] sm:$0xff]
        %v700 = vld [vmem:[%s1 + $0x70] sm:$0xff]
        %v701 = vld [vmem:[%s1 + $0x78] sm:$0xff]
        %v702 = vld [vmem:[%s1 + $0x80] sm:$0xff]
        %v703 = vld [vmem:[%s1 + $0x88] sm:$0xff]
        %v704 = vld [vmem:[%s1 + $0x90] sm:$0xff]
        %v705 = vld [vmem:[%s1 + $0x98] sm:$0xff]
        %v706 = vld [vmem:[%s1 + $0xa0] sm:$0xff]
        %v707 = vld [vmem:[%s1 + $0xa8] sm:$0xff]
        %v708 = vld [vmem:[%s1 + $0xb0] sm:$0xff]
        %v709 = vld [vmem:[%s1 + $0xb8] sm:$0xff]
        %v710 = vld [vmem:[%s1 + $0xc0] sm:$0xff]
        %v711 = vld [vmem:[%s1 + $0xc8] sm:$0xff]
        %v712 = vld [vmem:[%s1 + $0xd0] sm:$0xff]
        %v713 = vld [vmem:[%s1 + $0xd8] sm:$0xff]
        %v714 = vld [vmem:[%s2] sm:$0xff]
        %v715 = vld [vmem:[%s2 + $0x8] sm:$0xff]
        %v716 = vld [vmem:[%s2 + $0x10] sm:$0xff]
        %v717 = vld [vmem:[%s2 + $0x18] sm:$0xff]
        %v718 = vld [vmem:[%s2 + $0x20] sm:$0xff]
        %v719 = vld [vmem:[%s2 + $0x28] sm:$0xff]
        %v720 = vld [vmem:[%s2 + $0x30] sm:$0xff]
        %v721 = vld [vmem:[%s2 + $0x38] sm:$0xff]
        %v722 = vld [vmem:[%s2 + $0x40] sm:$0xff]
        %v723 = vld [vmem:[%s2 + $0x48] sm:$0xff]
        %v724 = vld [vmem:[%s2 + $0x50] sm:$0xff]
        %v725 = vld [vmem:[%s2 + $0x58] sm:$0xff]
        %v726 = vld [vmem:[%s2 + $0x60] sm:$0xff]
        %v727 = vld [vmem:[%s2 + $0x68] sm:$0xff]
        %v728 = vld [vmem:[%s2 + $0x70] sm:$0xff]
        %v729 = vld [vmem:[%s2 + $0x78] sm:$0xff]
        %v730 = vld [vmem:[%s2 + $0x80] sm:$0xff]
        %v731 = vld [vmem:[%s2 + $0x88] sm:$0xff]
        %v732 = vld [vmem:[%s2 + $0x90] sm:$0xff]
        %v733 = vld [vmem:[%s2 + $0x98] sm:$0xff]
        %v734 = vld [vmem:[%s2 + $0xa0] sm:$0xff]
        %v735 = vld [vmem:[%s2 + $0xa8] sm:$0xff]
        %v736 = vld [vmem:[%s2 + $0xb0] sm:$0xff]
        %v737 = vld [vmem:[%s2 + $0xb8] sm:$0xff]
        %v738 = vld [vmem:[%s2 + $0xc0] sm:$0xff]
        %v739 = vld [vmem:[%s2 + $0xc8] sm:$0xff]
        %v740 = vld [vmem:[%s2 + $0xd0] sm:$0xff]
        %v741 = vld [vmem:[%s2 + $0xd8] sm:$0xff]
        %v742 = vld [vmem:[%s3] sm:$0xff]
        %v743 = vld [vmem:[%s3 + $0x8] sm:$0xff]
        %v744 = vld [vmem:[%s3 + $0x10] sm:$0xff]
        %v745 = vld [vmem:[%s3 + $0x18] sm:$0xff]
        %v746 = vld [vmem:[%s3 + $0x20] sm:$0xff]
        %v747 = vld [vmem:[%s3 + $0x28] sm:$0xff]
        %v748 = vld [vmem:[%s3 + $0x30] sm:$0xff]
        %v749 = vld [vmem:[%s3 + $0x38] sm:$0xff]
        %v750 = vld [vmem:[%s3 + $0x40] sm:$0xff]
        %v751 = vld [vmem:[%s3 + $0x48] sm:$0xff]
        %v752 = vld [vmem:[%s3 + $0x50] sm:$0xff]
        %v753 = vld [vmem:[%s3 + $0x58] sm:$0xff]
        %v754 = vld [vmem:[%s3 + $0x60] sm:$0xff]
        %v755 = vld [vmem:[%s3 + $0x68] sm:$0xff]
        %v756 = vld [vmem:[%s4] sm:$0xff]
        %v757 = vld [vmem:[%s4 + $0x8] sm:$0xff]
        %v758 = vld [vmem:[%s4 + $0x10] sm:$0xff]
        %v759 = vld [vmem:[%s4 + $0x18] sm:$0xff]
        %v760 = vld [vmem:[%s4 + $0x20] sm:$0xff]
        %v761 = vld [vmem:[%s4 + $0x28] sm:$0xff]
        %v762 = vld [vmem:[%s4 + $0x30] sm:$0xff]
        %v763 = vld [vmem:[%s4 + $0x38] sm:$0xff]
        %v764 = vld [vmem:[%s4 + $0x40] sm:$0xff]
        %v765 = vld [vmem:[%s4 + $0x48] sm:$0xff]
        %v766 = vld [vmem:[%s4 + $0x50] sm:$0xff]
        %v767 = vld [vmem:[%s4 + $0x58] sm:$0xff]
        %v768 = vld [vmem:[%s4 + $0x60] sm:$0xff]
        %v769 = vld [vmem:[%s4 + $0x68] sm:$0xff]
        %v770 = vpack.c.bf16 %v659, %v658
        %v771 = vpack.c.bf16 %v661, %v660
        %v772 = vpack.c.bf16 %v663, %v662
        %v773 = vpack.c.bf16 %v665, %v664
        %v774 = vpack.c.bf16 %v667, %v666
        %v775 = vpack.c.bf16 %v669, %v668
        %v776 = vpack.c.bf16 %v671, %v670
        %v777 = vpack.c.bf16 %v673, %v672
        %v778 = vpack.c.bf16 %v675, %v674
        %v779 = vpack.c.bf16 %v677, %v676
        %v780 = vpack.c.bf16 %v679, %v678
        %v781 = vpack.c.bf16 %v681, %v680
        %v782 = vpack.c.bf16 %v683, %v682
        %v783 = vpack.c.bf16 %v685, %v684
        %v784 = vrot.slane %v658, 7
        %v785 = vrot.slane %v659, 7
        %v786 = vrot.slane %v660, 7
        %v787 = vrot.slane %v661, 7
        %v788 = vrot.slane %v662, 7
        %v789 = vrot.slane %v663, 7
        %v790 = vrot.slane %v664, 7
        %v791 = vrot.slane %v665, 7
        %v792 = vrot.slane %v666, 7
        %v793 = vrot.slane %v667, 7
        %v794 = vrot.slane %v668, 7
        %v795 = vrot.slane %v669, 7
        %v796 = vrot.slane %v670, 7
        %v797 = vrot.slane %v671, 7
        %v798 = vrot.slane %v672, 7
        %v799 = vrot.slane %v673, 7
        %v800 = vrot.slane %v674, 7
        %v801 = vrot.slane %v675, 7
        %v802 = vrot.slane %v676, 7
        %v803 = vrot.slane %v677, 7
        %v804 = vrot.slane %v678, 7
        %v805 = vrot.slane %v679, 7
        %v806 = vrot.slane %v680, 7
        %v807 = vrot.slane %v681, 7
        %v808 = vrot.slane %v682, 7
        %v809 = vrot.slane %v683, 7
        %v810 = vrot.slane %v684, 7
        %v811 = vrot.slane %v685, 7
        %v812 = vlaneseq
        %v813 = vshrl.u32 %v812, 7
        %vm814 = vcmp.lt.s32.totalorder %v813, 1
        %v815 = vsel %vm814, %v810, %v811
        %v816 = vsel %vm814, %v809, %v810
        %v817 = vsel %vm814, %v808, %v809
        %v818 = vsel %vm814, %v807, %v808
        %v819 = vsel %vm814, %v806, %v807
        %v820 = vsel %vm814, %v805, %v806
        %v821 = vsel %vm814, %v804, %v805
        %v822 = vsel %vm814, %v803, %v804
        %v823 = vsel %vm814, %v802, %v803
        %v824 = vsel %vm814, %v801, %v802
        %v825 = vsel %vm814, %v800, %v801
        %v826 = vsel %vm814, %v799, %v800
        %v827 = vsel %vm814, %v798, %v799
        %v828 = vsel %vm814, %v797, %v798
        %v829 = vsel %vm814, %v796, %v797
        %v830 = vsel %vm814, %v795, %v796
        %v831 = vsel %vm814, %v794, %v795
        %v832 = vsel %vm814, %v793, %v794
        %v833 = vsel %vm814, %v792, %v793
        %v834 = vsel %vm814, %v791, %v792
        %v835 = vsel %vm814, %v790, %v791
        %v836 = vsel %vm814, %v789, %v790
        %v837 = vsel %vm814, %v788, %v789
        %v838 = vsel %vm814, %v787, %v788
        %v839 = vsel %vm814, %v786, %v787
        %v840 = vsel %vm814, %v785, %v786
        %v841 = vsel %vm814, %v784, %v785
        %v842 = vsel %vm814, %v811, %v784
        %844 = vset.pattern.permute.xlu0 0
        %845 = vperm.xlu0 %844, %v686
        %v846 = vpop.permute.xlu0 %845
        %849 = vset.pattern.permute.xlu0 0
        %850 = vperm.xlu0 %849, %v687
        %v851 = vpop.permute.xlu0 %850
        %854 = vset.pattern.permute.xlu0 0
        %855 = vperm.xlu0 %854, %v688
        %v856 = vpop.permute.xlu0 %855
        %859 = vset.pattern.permute.xlu0 0
        %860 = vperm.xlu0 %859, %v689
        %v861 = vpop.permute.xlu0 %860
        %864 = vset.pattern.permute.xlu0 0
        %865 = vperm.xlu0 %864, %v690
        %v866 = vpop.permute.xlu0 %865
        %869 = vset.pattern.permute.xlu0 0
        %870 = vperm.xlu0 %869, %v691
        %v871 = vpop.permute.xlu0 %870
        %874 = vset.pattern.permute.xlu0 0
        %875 = vperm.xlu0 %874, %v692
        %v876 = vpop.permute.xlu0 %875
        %879 = vset.pattern.permute.xlu0 0
        %880 = vperm.xlu0 %879, %v693
        %v881 = vpop.permute.xlu0 %880
        %884 = vset.pattern.permute.xlu0 0
        %885 = vperm.xlu0 %884, %v694
        %v886 = vpop.permute.xlu0 %885
        %889 = vset.pattern.permute.xlu0 0
        %890 = vperm.xlu0 %889, %v695
        %v891 = vpop.permute.xlu0 %890
        %894 = vset.pattern.permute.xlu0 0
        %895 = vperm.xlu0 %894, %v696
        %v896 = vpop.permute.xlu0 %895
        %899 = vset.pattern.permute.xlu0 0
        %900 = vperm.xlu0 %899, %v697
        %v901 = vpop.permute.xlu0 %900
        %904 = vset.pattern.permute.xlu0 0
        %905 = vperm.xlu0 %904, %v698
        %v906 = vpop.permute.xlu0 %905
        %909 = vset.pattern.permute.xlu0 0
        %910 = vperm.xlu0 %909, %v699
        %v911 = vpop.permute.xlu0 %910
        %914 = vset.pattern.permute.xlu0 0
        %915 = vperm.xlu0 %914, %v700
        %v916 = vpop.permute.xlu0 %915
        %919 = vset.pattern.permute.xlu0 0
        %920 = vperm.xlu0 %919, %v701
        %v921 = vpop.permute.xlu0 %920
        %924 = vset.pattern.permute.xlu0 0
        %925 = vperm.xlu0 %924, %v702
        %v926 = vpop.permute.xlu0 %925
        %929 = vset.pattern.permute.xlu0 0
        %930 = vperm.xlu0 %929, %v703
        %v931 = vpop.permute.xlu0 %930
        %934 = vset.pattern.permute.xlu0 0
        %935 = vperm.xlu0 %934, %v704
        %v936 = vpop.permute.xlu0 %935
        %939 = vset.pattern.permute.xlu0 0
        %940 = vperm.xlu0 %939, %v705
        %v941 = vpop.permute.xlu0 %940
        %944 = vset.pattern.permute.xlu0 0
        %945 = vperm.xlu0 %944, %v706
        %v946 = vpop.permute.xlu0 %945
        %949 = vset.pattern.permute.xlu0 0
        %950 = vperm.xlu0 %949, %v707
        %v951 = vpop.permute.xlu0 %950
        %954 = vset.pattern.permute.xlu0 0
        %955 = vperm.xlu0 %954, %v708
        %v956 = vpop.permute.xlu0 %955
        %959 = vset.pattern.permute.xlu0 0
        %960 = vperm.xlu0 %959, %v709
        %v961 = vpop.permute.xlu0 %960
        %964 = vset.pattern.permute.xlu0 0
        %965 = vperm.xlu0 %964, %v710
        %v966 = vpop.permute.xlu0 %965
        %969 = vset.pattern.permute.xlu0 0
        %970 = vperm.xlu0 %969, %v711
        %v971 = vpop.permute.xlu0 %970
        %974 = vset.pattern.permute.xlu0 0
        %975 = vperm.xlu0 %974, %v712
        %v976 = vpop.permute.xlu0 %975
        %979 = vset.pattern.permute.xlu0 0
        %980 = vperm.xlu0 %979, %v713
        %v981 = vpop.permute.xlu0 %980
        %v983 = vmul.f32 %v842, %v846
        %v984 = vmul.f32 %v841, %v851
        %v985 = vmul.f32 %v840, %v856
        %v986 = vmul.f32 %v839, %v861
        %v987 = vmul.f32 %v838, %v866
        %v988 = vmul.f32 %v837, %v871
        %v989 = vmul.f32 %v836, %v876
        %v990 = vmul.f32 %v835, %v881
        %v991 = vmul.f32 %v834, %v886
        %v992 = vmul.f32 %v833, %v891
        %v993 = vmul.f32 %v832, %v896
        %v994 = vmul.f32 %v831, %v901
        %v995 = vmul.f32 %v830, %v906
        %v996 = vmul.f32 %v829, %v911
        %v997 = vmul.f32 %v828, %v916
        %v998 = vmul.f32 %v827, %v921
        %v999 = vmul.f32 %v826, %v926
        %v1000 = vmul.f32 %v825, %v931
        %v1001 = vmul.f32 %v824, %v936
        %v1002 = vmul.f32 %v823, %v941
        %v1003 = vmul.f32 %v822, %v946
        %v1004 = vmul.f32 %v821, %v951
        %v1005 = vmul.f32 %v820, %v956
        %v1006 = vmul.f32 %v819, %v961
        %v1007 = vmul.f32 %v818, %v966
        %v1008 = vmul.f32 %v817, %v971
        %v1009 = vmul.f32 %v816, %v976
        %v1010 = vmul.f32 %v815, %v981
        %v1011 = vpack.c.bf16 %v984, %v983
        %v1012 = vpack.c.bf16 %v986, %v985
        %v1013 = vpack.c.bf16 %v988, %v987
        %v1014 = vpack.c.bf16 %v990, %v989
        %v1015 = vpack.c.bf16 %v992, %v991
        %v1016 = vpack.c.bf16 %v994, %v993
        %v1017 = vpack.c.bf16 %v996, %v995
        %v1018 = vpack.c.bf16 %v998, %v997
        %v1019 = vpack.c.bf16 %v1000, %v999
        %v1020 = vpack.c.bf16 %v1002, %v1001
        %v1021 = vpack.c.bf16 %v1004, %v1003
        %v1022 = vpack.c.bf16 %v1006, %v1005
        %v1023 = vpack.c.bf16 %v1008, %v1007
        %v1024 = vpack.c.bf16 %v1010, %v1009
        %v1025 = vrot.slane %v658, 1
        %v1026 = vrot.slane %v659, 1
        %v1027 = vrot.slane %v660, 1
        %v1028 = vrot.slane %v661, 1
        %v1029 = vrot.slane %v662, 1
        %v1030 = vrot.slane %v663, 1
        %v1031 = vrot.slane %v664, 1
        %v1032 = vrot.slane %v665, 1
        %v1033 = vrot.slane %v666, 1
        %v1034 = vrot.slane %v667, 1
        %v1035 = vrot.slane %v668, 1
        %v1036 = vrot.slane %v669, 1
        %v1037 = vrot.slane %v670, 1
        %v1038 = vrot.slane %v671, 1
        %v1039 = vrot.slane %v672, 1
        %v1040 = vrot.slane %v673, 1
        %v1041 = vrot.slane %v674, 1
        %v1042 = vrot.slane %v675, 1
        %v1043 = vrot.slane %v676, 1
        %v1044 = vrot.slane %v677, 1
        %v1045 = vrot.slane %v678, 1
        %v1046 = vrot.slane %v679, 1
        %v1047 = vrot.slane %v680, 1
        %v1048 = vrot.slane %v681, 1
        %v1049 = vrot.slane %v682, 1
        %v1050 = vrot.slane %v683, 1
        %v1051 = vrot.slane %v684, 1
        %v1052 = vrot.slane %v685, 1
        %vm1053 = vcmp.lt.s32.totalorder %v813, 7
        %v1054 = vsel %vm1053, %v1051, %v1052
        %v1055 = vsel %vm1053, %v1050, %v1051
        %v1056 = vsel %vm1053, %v1049, %v1050
        %v1057 = vsel %vm1053, %v1048, %v1049
        %v1058 = vsel %vm1053, %v1047, %v1048
        %v1059 = vsel %vm1053, %v1046, %v1047
        %v1060 = vsel %vm1053, %v1045, %v1046
        %v1061 = vsel %vm1053, %v1044, %v1045
        %v1062 = vsel %vm1053, %v1043, %v1044
        %v1063 = vsel %vm1053, %v1042, %v1043
        %v1064 = vsel %vm1053, %v1041, %v1042
        %v1065 = vsel %vm1053, %v1040, %v1041
        %v1066 = vsel %vm1053, %v1039, %v1040
        %v1067 = vsel %vm1053, %v1038, %v1039
        %v1068 = vsel %vm1053, %v1037, %v1038
        %v1069 = vsel %vm1053, %v1036, %v1037
        %v1070 = vsel %vm1053, %v1035, %v1036
        %v1071 = vsel %vm1053, %v1034, %v1035
        %v1072 = vsel %vm1053, %v1033, %v1034
        %v1073 = vsel %vm1053, %v1032, %v1033
        %v1074 = vsel %vm1053, %v1031, %v1032
        %v1075 = vsel %vm1053, %v1030, %v1031
        %v1076 = vsel %vm1053, %v1029, %v1030
        %v1077 = vsel %vm1053, %v1028, %v1029
        %v1078 = vsel %vm1053, %v1027, %v1028
        %v1079 = vsel %vm1053, %v1026, %v1027
        %v1080 = vsel %vm1053, %v1025, %v1026
        %v1081 = vsel %vm1053, %v1052, %v1025
        %1083 = vset.pattern.permute.xlu0 0
        %1084 = vperm.xlu0 %1083, %v714
        %v1085 = vpop.permute.xlu0 %1084
        %1088 = vset.pattern.permute.xlu0 0
        %1089 = vperm.xlu0 %1088, %v715
        %v1090 = vpop.permute.xlu0 %1089
        %1093 = vset.pattern.permute.xlu0 0
        %1094 = vperm.xlu0 %1093, %v716
        %v1095 = vpop.permute.xlu0 %1094
        %1098 = vset.pattern.permute.xlu0 0
        %1099 = vperm.xlu0 %1098, %v717
        %v1100 = vpop.permute.xlu0 %1099
        %1103 = vset.pattern.permute.xlu0 0
        %1104 = vperm.xlu0 %1103, %v718
        %v1105 = vpop.permute.xlu0 %1104
        %1108 = vset.pattern.permute.xlu0 0
        %1109 = vperm.xlu0 %1108, %v719
        %v1110 = vpop.permute.xlu0 %1109
        %1113 = vset.pattern.permute.xlu0 0
        %1114 = vperm.xlu0 %1113, %v720
        %v1115 = vpop.permute.xlu0 %1114
        %1118 = vset.pattern.permute.xlu0 0
        %1119 = vperm.xlu0 %1118, %v721
        %v1120 = vpop.permute.xlu0 %1119
        %1123 = vset.pattern.permute.xlu0 0
        %1124 = vperm.xlu0 %1123, %v722
        %v1125 = vpop.permute.xlu0 %1124
        %1128 = vset.pattern.permute.xlu0 0
        %1129 = vperm.xlu0 %1128, %v723
        %v1130 = vpop.permute.xlu0 %1129
        %1133 = vset.pattern.permute.xlu0 0
        %1134 = vperm.xlu0 %1133, %v724
        %v1135 = vpop.permute.xlu0 %1134
        %1138 = vset.pattern.permute.xlu0 0
        %1139 = vperm.xlu0 %1138, %v725
        %v1140 = vpop.permute.xlu0 %1139
        %1143 = vset.pattern.permute.xlu0 0
        %1144 = vperm.xlu0 %1143, %v726
        %v1145 = vpop.permute.xlu0 %1144
        %1148 = vset.pattern.permute.xlu0 0
        %1149 = vperm.xlu0 %1148, %v727
        %v1150 = vpop.permute.xlu0 %1149
        %1153 = vset.pattern.permute.xlu0 0
        %1154 = vperm.xlu0 %1153, %v728
        %v1155 = vpop.permute.xlu0 %1154
        %1158 = vset.pattern.permute.xlu0 0
        %1159 = vperm.xlu0 %1158, %v729
        %v1160 = vpop.permute.xlu0 %1159
        %1163 = vset.pattern.permute.xlu0 0
        %1164 = vperm.xlu0 %1163, %v730
        %v1165 = vpop.permute.xlu0 %1164
        %1168 = vset.pattern.permute.xlu0 0
        %1169 = vperm.xlu0 %1168, %v731
        %v1170 = vpop.permute.xlu0 %1169
        %1173 = vset.pattern.permute.xlu0 0
        %1174 = vperm.xlu0 %1173, %v732
        %v1175 = vpop.permute.xlu0 %1174
        %1178 = vset.pattern.permute.xlu0 0
        %1179 = vperm.xlu0 %1178, %v733
        %v1180 = vpop.permute.xlu0 %1179
        %1183 = vset.pattern.permute.xlu0 0
        %1184 = vperm.xlu0 %1183, %v734
        %v1185 = vpop.permute.xlu0 %1184
        %1188 = vset.pattern.permute.xlu0 0
        %1189 = vperm.xlu0 %1188, %v735
        %v1190 = vpop.permute.xlu0 %1189
        %1193 = vset.pattern.permute.xlu0 0
        %1194 = vperm.xlu0 %1193, %v736
        %v1195 = vpop.permute.xlu0 %1194
        %1198 = vset.pattern.permute.xlu0 0
        %1199 = vperm.xlu0 %1198, %v737
        %v1200 = vpop.permute.xlu0 %1199
        %1203 = vset.pattern.permute.xlu0 0
        %1204 = vperm.xlu0 %1203, %v738
        %v1205 = vpop.permute.xlu0 %1204
        %1208 = vset.pattern.permute.xlu0 0
        %1209 = vperm.xlu0 %1208, %v739
        %v1210 = vpop.permute.xlu0 %1209
        %1213 = vset.pattern.permute.xlu0 0
        %1214 = vperm.xlu0 %1213, %v740
        %v1215 = vpop.permute.xlu0 %1214
        %1218 = vset.pattern.permute.xlu0 0
        %1219 = vperm.xlu0 %1218, %v741
        %v1220 = vpop.permute.xlu0 %1219
        %v1222 = vmul.f32 %v1080, %v1085
        %v1223 = vmul.f32 %v1079, %v1090
        %v1224 = vmul.f32 %v1078, %v1095
        %v1225 = vmul.f32 %v1077, %v1100
        %v1226 = vmul.f32 %v1076, %v1105
        %v1227 = vmul.f32 %v1075, %v1110
        %v1228 = vmul.f32 %v1074, %v1115
        %v1229 = vmul.f32 %v1073, %v1120
        %v1230 = vmul.f32 %v1072, %v1125
        %v1231 = vmul.f32 %v1071, %v1130
        %v1232 = vmul.f32 %v1070, %v1135
        %v1233 = vmul.f32 %v1069, %v1140
        %v1234 = vmul.f32 %v1068, %v1145
        %v1235 = vmul.f32 %v1067, %v1150
        %v1236 = vmul.f32 %v1066, %v1155
        %v1237 = vmul.f32 %v1065, %v1160
        %v1238 = vmul.f32 %v1064, %v1165
        %v1239 = vmul.f32 %v1063, %v1170
        %v1240 = vmul.f32 %v1062, %v1175
        %v1241 = vmul.f32 %v1061, %v1180
        %v1242 = vmul.f32 %v1060, %v1185
        %v1243 = vmul.f32 %v1059, %v1190
        %v1244 = vmul.f32 %v1058, %v1195
        %v1245 = vmul.f32 %v1057, %v1200
        %v1246 = vmul.f32 %v1056, %v1205
        %v1247 = vmul.f32 %v1055, %v1210
        %v1248 = vmul.f32 %v1054, %v1215
        %v1249 = vmul.f32 %v1081, %v1220
        %v1250 = vpack.c.bf16 %v1223, %v1222
        %v1251 = vpack.c.bf16 %v1225, %v1224
        %v1252 = vpack.c.bf16 %v1227, %v1226
        %v1253 = vpack.c.bf16 %v1229, %v1228
        %v1254 = vpack.c.bf16 %v1231, %v1230
        %v1255 = vpack.c.bf16 %v1233, %v1232
        %v1256 = vpack.c.bf16 %v1235, %v1234
        %v1257 = vpack.c.bf16 %v1237, %v1236
        %v1258 = vpack.c.bf16 %v1239, %v1238
        %v1259 = vpack.c.bf16 %v1241, %v1240
        %v1260 = vpack.c.bf16 %v1243, %v1242
        %v1261 = vpack.c.bf16 %v1245, %v1244
        %v1262 = vpack.c.bf16 %v1247, %v1246
        %v1263 = vpack.c.bf16 %v1249, %v1248
        %v1264 = vld [vmem:[%s5] sm:$0xff]
        %v1265 = vld [vmem:[%s5 + $0x8] sm:$0xff]
        %v1266 = vld [vmem:[%s5 + $0x10] sm:$0xff]
        %v1267 = vld [vmem:[%s5 + $0x18] sm:$0xff]
        %v1268 = vld [vmem:[%s5 + $0x20] sm:$0xff]
        %v1269 = vld [vmem:[%s5 + $0x28] sm:$0xff]
        %v1270 = vld [vmem:[%s5 + $0x30] sm:$0xff]
        %v1271 = vld [vmem:[%s5 + $0x38] sm:$0xff]
        %v1272 = vld [vmem:[%s5 + $0x40] sm:$0xff]
        %v1273 = vld [vmem:[%s5 + $0x48] sm:$0xff]
        %v1274 = vld [vmem:[%s5 + $0x50] sm:$0x33]
        %s1275 = scalar_lea.vmem %s5, 88
        %v1276 = vld [vmem:[%s1275] sm:$0xff]
        %v1277 = vld [vmem:[%s1275 + $0x8] sm:$0xff]
        %v1278 = vld [vmem:[%s1275 + $0x10] sm:$0xff]
        %v1279 = vld [vmem:[%s1275 + $0x18] sm:$0xff]
        %v1280 = vld [vmem:[%s1275 + $0x20] sm:$0xff]
        %v1281 = vld [vmem:[%s1275 + $0x28] sm:$0xff]
        %v1282 = vld [vmem:[%s1275 + $0x30] sm:$0xff]
        %v1283 = vld [vmem:[%s1275 + $0x38] sm:$0xff]
        %v1284 = vld [vmem:[%s1275 + $0x40] sm:$0xff]
        %v1285 = vld [vmem:[%s1275 + $0x48] sm:$0xff]
        %v1286 = vld [vmem:[%s1275 + $0x50] sm:$0x33]
        %v1298 = vunpack.c.l.b16 %v1276
        %v1299 = vunpack.c.h.b16 %v1276
        %v1300 = vunpack.c.l.b16 %v1277
        %v1301 = vunpack.c.h.b16 %v1277
        %v1302 = vunpack.c.l.b16 %v1278
        %v1303 = vunpack.c.h.b16 %v1278
        %v1304 = vunpack.c.l.b16 %v1279
        %v1305 = vunpack.c.h.b16 %v1279
        %v1306 = vunpack.c.l.b16 %v1280
        %v1307 = vunpack.c.h.b16 %v1280
        %v1308 = vunpack.c.l.b16 %v1281
        %v1309 = vunpack.c.h.b16 %v1281
        %v1310 = vunpack.c.l.b16 %v1282
        %v1311 = vunpack.c.h.b16 %v1282
        %v1312 = vunpack.c.l.b16 %v1283
        %v1313 = vunpack.c.h.b16 %v1283
        %v1314 = vunpack.c.l.b16 %v1284
        %v1315 = vunpack.c.h.b16 %v1284
        %v1316 = vunpack.c.l.b16 %v1285
        %v1317 = vunpack.c.h.b16 %v1285
        %v1318 = vunpack.c.l.b16 %v1286
        %v1319 = vunpack.c.h.b16 %v1286
        %v1320 = vpack.c.b16 %v1300, %v1298
        %v1321 = vpack.c.b16 %v1301, %v1299
        %v1322 = vpack.c.b16 %v1304, %v1302
        %v1323 = vpack.c.b16 %v1305, %v1303
        %v1324 = vpack.c.b16 %v1308, %v1306
        %v1325 = vpack.c.b16 %v1309, %v1307
        %v1326 = vpack.c.b16 %v1312, %v1310
        %v1327 = vpack.c.b16 %v1313, %v1311
        %v1328 = vpack.c.b16 %v1316, %v1314
        %v1329 = vpack.c.b16 %v1317, %v1315
        %v1330 = vpack.c.b16 %v1318, %v1318
        %v1331 = vpack.c.b16 %v1319, %v1319
        %vm1342 = vcmask 687104
        %v1344 = vsel %vm1342, %v770, 0
        %v1347 = vsel %vm1342, %v771, 0
        %v1350 = vsel %vm1342, %v772, 0
        %v1353 = vsel %vm1342, %v773, 0
        %v1356 = vsel %vm1342, %v774, 0
        %v1359 = vsel %vm1342, %v775, 0
        %v1362 = vsel %vm1342, %v776, 0
        %v1365 = vsel %vm1342, %v777, 0
        %v1368 = vsel %vm1342, %v778, 0
        %v1371 = vsel %vm1342, %v779, 0
        %v1374 = vsel %vm1342, %v780, 0
        %v1377 = vsel %vm1342, %v781, 0
        %v1380 = vsel %vm1342, %v782, 0
        %v1383 = vsel %vm1342, %v783, 0
        %vm1385 = vcmask 1041408
        %v1387 = vsel %vm1385, %v1330, 0
        %v1390 = vsel %vm1385, %v1331, 0
        %1392 = vmatprep.subr.bf16.mxu0 %v1321
        %1393 = vmatpush1.bf16.msra.mxu0 %v1320
        %1394 = vmatprep.subr.bf16.mxu0 %v1323
        %1395 = vmatpush1.bf16.msra.mxu0 %v1322
        %1396 = vmatprep.subr.bf16.mxu0 %v1325
        %1397 = vmatpush1.bf16.msra.mxu0 %v1324
        %1398 = vmatprep.subr.bf16.mxu0 %v1327
        %1399 = vmatpush1.bf16.msra.mxu0 %v1326
        %1400 = vmatprep.subr.bf16.mxu0 %v1329
        %1401 = vmatpush1.bf16.msra.mxu0 %v1328
        %1402 = vmatprep.subr.bf16.mxu0 %v1390
        %1403 = vmatpush1.bf16.msra.mxu0 %v1387
        %1404 = vmatprep.subr.bf16.mxu0 0
        %1405 = vmatpush1.bf16.msra.mxu0 0
        %1406 = vmatprep.subr.bf16.mxu0 0
        %1407 = vmatpush1.bf16.msra.mxu0 0
        %1408 = vmatprep.subr.bf16.mxu0 0
        %1409 = vmatpush1.bf16.msra.mxu0 0
        %1410 = vmatprep.subr.bf16.mxu0 0
        %1411 = vmatpush1.bf16.msra.mxu0 0
        %1412 = vmatprep.subr.bf16.mxu0 0
        %1413 = vmatpush1.bf16.msra.mxu0 0
        %1414 = vmatprep.subr.bf16.mxu0 0
        %1415 = vmatpush1.bf16.msra.mxu0 0
        %1416 = vmatprep.subr.bf16.mxu0 0
        %1417 = vmatpush1.bf16.msra.mxu0 0
        %1418 = vmatprep.subr.bf16.mxu0 0
        %1419 = vmatpush1.bf16.msra.mxu0 0
        %1420 = vmatprep.subr.bf16.mxu0 0
        %1421 = vmatpush1.bf16.msra.mxu0 0
        %1422 = vmatprep.subr.bf16.mxu0 0
        %1423 = vmatpush1.bf16.msra.mxu0 0
        %1424 = vmatprep.mubr.bf16.mxu0 0
        %1425 = vmatmul.mubr.bf16.gmra.mrb[0].mxu0 %v1344
        %v1426 = vpop.f32.mrb[0].mxu0
        %v1427 = vadd.f32 0.0, %v1426
        %v1428 = vpop.f32.mrb[0].mxu0
        %v1429 = vadd.f32 0.0, %v1428
        %v1430 = vpop.f32.mrb[0].mxu0
        %v1431 = vadd.f32 0.0, %v1430
        %v1432 = vpop.f32.mrb[0].mxu0
        %v1433 = vadd.f32 0.0, %v1432
        %1434 = vmatprep.mubr.bf16.mxu0 0
        %1435 = vmatmul.mubr.bf16.gmra.mrb[0].mxu0 %v1347
        %v1436 = vpop.f32.mrb[0].mxu0
        %v1437 = vadd.f32 0.0, %v1436
        %v1438 = vpop.f32.mrb[0].mxu0
        %v1439 = vadd.f32 0.0, %v1438
        %v1440 = vpop.f32.mrb[0].mxu0
        %v1441 = vadd.f32 0.0, %v1440
        %v1442 = vpop.f32.mrb[0].mxu0
        %v1443 = vadd.f32 0.0, %v1442
        %1444 = vmatprep.mubr.bf16.mxu0 0
        %1445 = vmatmul.mubr.bf16.gmra.mrb[0].mxu0 %v1350
        %v1446 = vpop.f32.mrb[0].mxu0
        %v1447 = vadd.f32 0.0, %v1446
        %v1448 = vpop.f32.mrb[0].mxu0
        %v1449 = vadd.f32 0.0, %v1448
        %v1450 = vpop.f32.mrb[0].mxu0
        %v1451 = vadd.f32 0.0, %v1450
        %v1452 = vpop.f32.mrb[0].mxu0
        %v1453 = vadd.f32 0.0, %v1452
        %1454 = vmatprep.mubr.bf16.mxu0 0
        %1455 = vmatmul.mubr.bf16.gmra.mrb[0].mxu0 %v1353
        %v1456 = vpop.f32.mrb[0].mxu0
        %v1457 = vadd.f32 0.0, %v1456
        %v1458 = vpop.f32.mrb[0].mxu0
        %v1459 = vadd.f32 0.0, %v1458
        %v1460 = vpop.f32.mrb[0].mxu0
        %v1461 = vadd.f32 0.0, %v1460
        %v1462 = vpop.f32.mrb[0].mxu0
        %v1463 = vadd.f32 0.0, %v1462
        %1464 = vmatprep.mubr.bf16.mxu0 0
        %1465 = vmatmul.mubr.bf16.gmra.mrb[0].mxu0 %v1356
        %v1466 = vpop.f32.mrb[0].mxu0
        %v1467 = vadd.f32 0.0, %v1466
        %v1468 = vpop.f32.mrb[0].mxu0
        %v1469 = vadd.f32 0.0, %v1468
        %v1470 = vpop.f32.mrb[0].mxu0
        %v1471 = vadd.f32 0.0, %v1470
        %v1472 = vpop.f32.mrb[0].mxu0
        %v1473 = vadd.f32 0.0, %v1472
        %1474 = vmatprep.mubr.bf16.mxu0 0
        %1475 = vmatmul.mubr.bf16.gmra.mrb[0].mxu0 %v1359
        %v1476 = vpop.f32.mrb[0].mxu0
        %v1477 = vadd.f32 0.0, %v1476
        %v1478 = vpop.f32.mrb[0].mxu0
        %v1479 = vadd.f32 0.0, %v1478
        %v1480 = vpop.f32.mrb[0].mxu0
        %v1481 = vadd.f32 0.0, %v1480
        %v1482 = vpop.f32.mrb[0].mxu0
        %v1483 = vadd.f32 0.0, %v1482
        %1484 = vmatprep.mubr.bf16.mxu0 0
        %1485 = vmatmul.mubr.bf16.gmra.mrb[0].mxu0 %v1362
        %v1486 = vpop.f32.mrb[0].mxu0
        %v1487 = vadd.f32 0.0, %v1486
        %v1488 = vpop.f32.mrb[0].mxu0
        %v1489 = vadd.f32 0.0, %v1488
        %v1490 = vpop.f32.mrb[0].mxu0
        %v1491 = vadd.f32 0.0, %v1490
        %v1492 = vpop.f32.mrb[0].mxu0
        %v1493 = vadd.f32 0.0, %v1492
        %1494 = vmatprep.mubr.bf16.mxu0 0
        %1495 = vmatmul.mubr.bf16.gmra.mrb[0].mxu0 %v1365
        %v1496 = vpop.f32.mrb[0].mxu0
        %v1497 = vadd.f32 0.0, %v1496
        %v1498 = vpop.f32.mrb[0].mxu0
        %v1499 = vadd.f32 0.0, %v1498
        %v1500 = vpop.f32.mrb[0].mxu0
        %v1501 = vadd.f32 0.0, %v1500
        %v1502 = vpop.f32.mrb[0].mxu0
        %v1503 = vadd.f32 0.0, %v1502
        %1504 = vmatprep.mubr.bf16.mxu0 0
        %1505 = vmatmul.mubr.bf16.gmra.mrb[0].mxu0 %v1368
        %v1506 = vpop.f32.mrb[0].mxu0
        %v1507 = vadd.f32 0.0, %v1506
        %v1508 = vpop.f32.mrb[0].mxu0
        %v1509 = vadd.f32 0.0, %v1508
        %v1510 = vpop.f32.mrb[0].mxu0
        %v1511 = vadd.f32 0.0, %v1510
        %v1512 = vpop.f32.mrb[0].mxu0
        %v1513 = vadd.f32 0.0, %v1512
        %1514 = vmatprep.mubr.bf16.mxu0 0
        %1515 = vmatmul.mubr.bf16.gmra.mrb[0].mxu0 %v1371
        %v1516 = vpop.f32.mrb[0].mxu0
        %v1517 = vadd.f32 0.0, %v1516
        %v1518 = vpop.f32.mrb[0].mxu0
        %v1519 = vadd.f32 0.0, %v1518
        %v1520 = vpop.f32.mrb[0].mxu0
        %v1521 = vadd.f32 0.0, %v1520
        %v1522 = vpop.f32.mrb[0].mxu0
        %v1523 = vadd.f32 0.0, %v1522
        %1524 = vmatprep.mubr.bf16.mxu0 0
        %1525 = vmatmul.mubr.bf16.gmra.mrb[0].mxu0 %v1374
        %v1526 = vpop.f32.mrb[0].mxu0
        %v1527 = vadd.f32 0.0, %v1526
        %v1528 = vpop.f32.mrb[0].mxu0
        %v1529 = vadd.f32 0.0, %v1528
        %v1530 = vpop.f32.mrb[0].mxu0
        %v1531 = vadd.f32 0.0, %v1530
        %v1532 = vpop.f32.mrb[0].mxu0
        %v1533 = vadd.f32 0.0, %v1532
        %1534 = vmatprep.mubr.bf16.mxu0 0
        %1535 = vmatmul.mubr.bf16.gmra.mrb[0].mxu0 %v1377
        %v1536 = vpop.f32.mrb[0].mxu0
        %v1537 = vadd.f32 0.0, %v1536
        %v1538 = vpop.f32.mrb[0].mxu0
        %v1539 = vadd.f32 0.0, %v1538
        %v1540 = vpop.f32.mrb[0].mxu0
        %v1541 = vadd.f32 0.0, %v1540
        %v1542 = vpop.f32.mrb[0].mxu0
        %v1543 = vadd.f32 0.0, %v1542
        %1544 = vmatprep.mubr.bf16.mxu0 0
        %1545 = vmatmul.mubr.bf16.gmra.mrb[0].mxu0 %v1380
        %v1546 = vpop.f32.mrb[0].mxu0
        %v1547 = vadd.f32 0.0, %v1546
        %v1548 = vpop.f32.mrb[0].mxu0
        %v1549 = vadd.f32 0.0, %v1548
        %v1550 = vpop.f32.mrb[0].mxu0
        %v1551 = vadd.f32 0.0, %v1550
        %v1552 = vpop.f32.mrb[0].mxu0
        %v1553 = vadd.f32 0.0, %v1552
        %1554 = vmatprep.mubr.bf16.mxu0 0
        %1555 = vmatmul.mubr.bf16.gmra.mrb[0].mxu0 %v1383
        %v1556 = vpop.f32.mrb[0].mxu0
        %v1557 = vadd.f32 0.0, %v1556
        %v1558 = vpop.f32.mrb[0].mxu0
        %v1559 = vadd.f32 0.0, %v1558
        %v1560 = vpop.f32.mrb[0].mxu0
        %v1561 = vadd.f32 0.0, %v1560
        %v1562 = vpop.f32.mrb[0].mxu0
        %v1563 = vadd.f32 0.0, %v1562
        %1564 = vdwg.mxu0
        %v1576 = vunpack.c.l.b16 %v1264
        %v1577 = vunpack.c.h.b16 %v1264
        %v1578 = vunpack.c.l.b16 %v1265
        %v1579 = vunpack.c.h.b16 %v1265
        %v1580 = vunpack.c.l.b16 %v1266
        %v1581 = vunpack.c.h.b16 %v1266
        %v1582 = vunpack.c.l.b16 %v1267
        %v1583 = vunpack.c.h.b16 %v1267
        %v1584 = vunpack.c.l.b16 %v1268
        %v1585 = vunpack.c.h.b16 %v1268
        %v1586 = vunpack.c.l.b16 %v1269
        %v1587 = vunpack.c.h.b16 %v1269
        %v1588 = vunpack.c.l.b16 %v1270
        %v1589 = vunpack.c.h.b16 %v1270
        %v1590 = vunpack.c.l.b16 %v1271
        %v1591 = vunpack.c.h.b16 %v1271
        %v1592 = vunpack.c.l.b16 %v1272
        %v1593 = vunpack.c.h.b16 %v1272
        %v1594 = vunpack.c.l.b16 %v1273
        %v1595 = vunpack.c.h.b16 %v1273
        %v1596 = vunpack.c.l.b16 %v1274
        %v1597 = vunpack.c.h.b16 %v1274
        %v1598 = vpack.c.b16 %v1578, %v1576
        %v1599 = vpack.c.b16 %v1579, %v1577
        %v1600 = vpack.c.b16 %v1582, %v1580
        %v1601 = vpack.c.b16 %v1583, %v1581
        %v1602 = vpack.c.b16 %v1586, %v1584
        %v1603 = vpack.c.b16 %v1587, %v1585
        %v1604 = vpack.c.b16 %v1590, %v1588
        %v1605 = vpack.c.b16 %v1591, %v1589
        %v1606 = vpack.c.b16 %v1594, %v1592
        %v1607 = vpack.c.b16 %v1595, %v1593
        %v1608 = vpack.c.b16 %v1596, %v1596
        %v1609 = vpack.c.b16 %v1597, %v1597
        %v1621 = vsel %vm1342, %v1011, 0
        %v1624 = vsel %vm1342, %v1012, 0
        %v1627 = vsel %vm1342, %v1013, 0
        %v1630 = vsel %vm1342, %v1014, 0
        %v1633 = vsel %vm1342, %v1015, 0
        %v1636 = vsel %vm1342, %v1016, 0
        %v1639 = vsel %vm1342, %v1017, 0
        %v1642 = vsel %vm1342, %v1018, 0
        %v1645 = vsel %vm1342, %v1019, 0
        %v1648 = vsel %vm1342, %v1020, 0
        %v1651 = vsel %vm1342, %v1021, 0
        %v1654 = vsel %vm1342, %v1022, 0
        %v1657 = vsel %vm1342, %v1023, 0
        %v1660 = vsel %vm1342, %v1024, 0
        %v1663 = vsel %vm1385, %v1608, 0
        %v1666 = vsel %vm1385, %v1609, 0
        %1668 = vmatprep.subr.bf16.mxu0 %v1599
        %1669 = vmatpush1.bf16.msra.mxu0 %v1598
        %1670 = vmatprep.subr.bf16.mxu0 %v1601
        %1671 = vmatpush1.bf16.msra.mxu0 %v1600
        %1672 = vmatprep.subr.bf16.mxu0 %v1603
        %1673 = vmatpush1.bf16.msra.mxu0 %v1602
        %1674 = vmatprep.subr.bf16.mxu0 %v1605
        %1675 = vmatpush1.bf16.msra.mxu0 %v1604
        %1676 = vmatprep.subr.bf16.mxu0 %v1607
        %1677 = vmatpush1.bf16.msra.mxu0 %v1606
        %1678 = vmatprep.subr.bf16.mxu0 %v1666
        %1679 = vmatpush1.bf16.msra.mxu0 %v1663
        %1680 = vmatprep.subr.bf16.mxu0 0
        %1681 = vmatpush1.bf16.msra.mxu0 0
        %1682 = vmatprep.subr.bf16.mxu0 0
        %1683 = vmatpush1.bf16.msra.mxu0 0
        %1684 = vmatprep.subr.bf16.mxu0 0
        %1685 = vmatpush1.bf16.msra.mxu0 0
        %1686 = vmatprep.subr.bf16.mxu0 0
        %1687 = vmatpush1.bf16.msra.mxu0 0
        %1688 = vmatprep.subr.bf16.mxu0 0
        %1689 = vmatpush1.bf16.msra.mxu0 0
        %1690 = vmatprep.subr.bf16.mxu0 0
        %1691 = vmatpush1.bf16.msra.mxu0 0
        %1692 = vmatprep.subr.bf16.mxu0 0
        %1693 = vmatpush1.bf16.msra.mxu0 0
        %1694 = vmatprep.subr.bf16.mxu0 0
        %1695 = vmatpush1.bf16.msra.mxu0 0
        %1696 = vmatprep.subr.bf16.mxu0 0
        %1697 = vmatpush1.bf16.msra.mxu0 0
        %1698 = vmatprep.subr.bf16.mxu0 0
        %1699 = vmatpush1.bf16.msra.mxu0 0
        %1700 = vmatprep.mubr.bf16.mxu0 0
        %1701 = vmatmul.mubr.bf16.gmra.mrb[0].mxu0 %v1621
        %v1702 = vpop.f32.mrb[0].mxu0
        %v1703 = vadd.f32 %v1427, %v1702
        %v1704 = vpop.f32.mrb[0].mxu0
        %v1705 = vadd.f32 %v1429, %v1704
        %v1706 = vpop.f32.mrb[0].mxu0
        %v1707 = vadd.f32 %v1431, %v1706
        %v1708 = vpop.f32.mrb[0].mxu0
        %v1709 = vadd.f32 %v1433, %v1708
        %1710 = vmatprep.mubr.bf16.mxu0 0
        %1711 = vmatmul.mubr.bf16.gmra.mrb[0].mxu0 %v1624
        %v1712 = vpop.f32.mrb[0].mxu0
        %v1713 = vadd.f32 %v1437, %v1712
        %v1714 = vpop.f32.mrb[0].mxu0
        %v1715 = vadd.f32 %v1439, %v1714
        %v1716 = vpop.f32.mrb[0].mxu0
        %v1717 = vadd.f32 %v1441, %v1716
        %v1718 = vpop.f32.mrb[0].mxu0
        %v1719 = vadd.f32 %v1443, %v1718
        %1720 = vmatprep.mubr.bf16.mxu0 0
        %1721 = vmatmul.mubr.bf16.gmra.mrb[0].mxu0 %v1627
        %v1722 = vpop.f32.mrb[0].mxu0
        %v1723 = vadd.f32 %v1447, %v1722
        %v1724 = vpop.f32.mrb[0].mxu0
        %v1725 = vadd.f32 %v1449, %v1724
        %v1726 = vpop.f32.mrb[0].mxu0
        %v1727 = vadd.f32 %v1451, %v1726
        %v1728 = vpop.f32.mrb[0].mxu0
        %v1729 = vadd.f32 %v1453, %v1728
        %1730 = vmatprep.mubr.bf16.mxu0 0
        %1731 = vmatmul.mubr.bf16.gmra.mrb[0].mxu0 %v1630
        %v1732 = vpop.f32.mrb[0].mxu0
        %v1733 = vadd.f32 %v1457, %v1732
        %v1734 = vpop.f32.mrb[0].mxu0
        %v1735 = vadd.f32 %v1459, %v1734
        %v1736 = vpop.f32.mrb[0].mxu0
        %v1737 = vadd.f32 %v1461, %v1736
        %v1738 = vpop.f32.mrb[0].mxu0
        %v1739 = vadd.f32 %v1463, %v1738
        %1740 = vmatprep.mubr.bf16.mxu0 0
        %1741 = vmatmul.mubr.bf16.gmra.mrb[0].mxu0 %v1633
        %v1742 = vpop.f32.mrb[0].mxu0
        %v1743 = vadd.f32 %v1467, %v1742
        %v1744 = vpop.f32.mrb[0].mxu0
        %v1745 = vadd.f32 %v1469, %v1744
        %v1746 = vpop.f32.mrb[0].mxu0
        %v1747 = vadd.f32 %v1471, %v1746
        %v1748 = vpop.f32.mrb[0].mxu0
        %v1749 = vadd.f32 %v1473, %v1748
        %1750 = vmatprep.mubr.bf16.mxu0 0
        %1751 = vmatmul.mubr.bf16.gmra.mrb[0].mxu0 %v1636
        %v1752 = vpop.f32.mrb[0].mxu0
        %v1753 = vadd.f32 %v1477, %v1752
        %v1754 = vpop.f32.mrb[0].mxu0
        %v1755 = vadd.f32 %v1479, %v1754
        %v1756 = vpop.f32.mrb[0].mxu0
        %v1757 = vadd.f32 %v1481, %v1756
        %v1758 = vpop.f32.mrb[0].mxu0
        %v1759 = vadd.f32 %v1483, %v1758
        %1760 = vmatprep.mubr.bf16.mxu0 0
        %1761 = vmatmul.mubr.bf16.gmra.mrb[0].mxu0 %v1639
        %v1762 = vpop.f32.mrb[0].mxu0
        %v1763 = vadd.f32 %v1487, %v1762
        %v1764 = vpop.f32.mrb[0].mxu0
        %v1765 = vadd.f32 %v1489, %v1764
        %v1766 = vpop.f32.mrb[0].mxu0
        %v1767 = vadd.f32 %v1491, %v1766
        %v1768 = vpop.f32.mrb[0].mxu0
        %v1769 = vadd.f32 %v1493, %v1768
        %1770 = vmatprep.mubr.bf16.mxu0 0
        %1771 = vmatmul.mubr.bf16.gmra.mrb[0].mxu0 %v1642
        %v1772 = vpop.f32.mrb[0].mxu0
        %v1773 = vadd.f32 %v1497, %v1772
        %v1774 = vpop.f32.mrb[0].mxu0
        %v1775 = vadd.f32 %v1499, %v1774
        %v1776 = vpop.f32.mrb[0].mxu0
        %v1777 = vadd.f32 %v1501, %v1776
        %v1778 = vpop.f32.mrb[0].mxu0
        %v1779 = vadd.f32 %v1503, %v1778
        %1780 = vmatprep.mubr.bf16.mxu0 0
        %1781 = vmatmul.mubr.bf16.gmra.mrb[0].mxu0 %v1645
        %v1782 = vpop.f32.mrb[0].mxu0
        %v1783 = vadd.f32 %v1507, %v1782
        %v1784 = vpop.f32.mrb[0].mxu0
        %v1785 = vadd.f32 %v1509, %v1784
        %v1786 = vpop.f32.mrb[0].mxu0
        %v1787 = vadd.f32 %v1511, %v1786
        %v1788 = vpop.f32.mrb[0].mxu0
        %v1789 = vadd.f32 %v1513, %v1788
        %1790 = vmatprep.mubr.bf16.mxu0 0
        %1791 = vmatmul.mubr.bf16.gmra.mrb[0].mxu0 %v1648
        %v1792 = vpop.f32.mrb[0].mxu0
        %v1793 = vadd.f32 %v1517, %v1792
        %v1794 = vpop.f32.mrb[0].mxu0
        %v1795 = vadd.f32 %v1519, %v1794
        %v1796 = vpop.f32.mrb[0].mxu0
        %v1797 = vadd.f32 %v1521, %v1796
        %v1798 = vpop.f32.mrb[0].mxu0
        %v1799 = vadd.f32 %v1523, %v1798
        %1800 = vmatprep.mubr.bf16.mxu0 0
        %1801 = vmatmul.mubr.bf16.gmra.mrb[0].mxu0 %v1651
        %v1802 = vpop.f32.mrb[0].mxu0
        %v1803 = vadd.f32 %v1527, %v1802
        %v1804 = vpop.f32.mrb[0].mxu0
        %v1805 = vadd.f32 %v1529, %v1804
        %v1806 = vpop.f32.mrb[0].mxu0
        %v1807 = vadd.f32 %v1531, %v1806
        %v1808 = vpop.f32.mrb[0].mxu0
        %v1809 = vadd.f32 %v1533, %v1808
        %1810 = vmatprep.mubr.bf16.mxu0 0
        %1811 = vmatmul.mubr.bf16.gmra.mrb[0].mxu0 %v1654
        %v1812 = vpop.f32.mrb[0].mxu0
        %v1813 = vadd.f32 %v1537, %v1812
        %v1814 = vpop.f32.mrb[0].mxu0
        %v1815 = vadd.f32 %v1539, %v1814
        %v1816 = vpop.f32.mrb[0].mxu0
        %v1817 = vadd.f32 %v1541, %v1816
        %v1818 = vpop.f32.mrb[0].mxu0
        %v1819 = vadd.f32 %v1543, %v1818
        %1820 = vmatprep.mubr.bf16.mxu0 0
        %1821 = vmatmul.mubr.bf16.gmra.mrb[0].mxu0 %v1657
        %v1822 = vpop.f32.mrb[0].mxu0
        %v1823 = vadd.f32 %v1547, %v1822
        %v1824 = vpop.f32.mrb[0].mxu0
        %v1825 = vadd.f32 %v1549, %v1824
        %v1826 = vpop.f32.mrb[0].mxu0
        %v1827 = vadd.f32 %v1551, %v1826
        %v1828 = vpop.f32.mrb[0].mxu0
        %v1829 = vadd.f32 %v1553, %v1828
        %1830 = vmatprep.mubr.bf16.mxu0 0
        %1831 = vmatmul.mubr.bf16.gmra.mrb[0].mxu0 %v1660
        %v1832 = vpop.f32.mrb[0].mxu0
        %v1833 = vadd.f32 %v1557, %v1832
        %v1834 = vpop.f32.mrb[0].mxu0
        %v1835 = vadd.f32 %v1559, %v1834
        %v1836 = vpop.f32.mrb[0].mxu0
        %v1837 = vadd.f32 %v1561, %v1836
        %v1838 = vpop.f32.mrb[0].mxu0
        %v1839 = vadd.f32 %v1563, %v1838
        %1840 = vdwg.mxu0
        %s1841 = scalar_lea.vmem %s5, 176
        %v1842 = vld [vmem:[%s1841] sm:$0xff]
        %v1843 = vld [vmem:[%s1841 + $0x8] sm:$0xff]
        %v1844 = vld [vmem:[%s1841 + $0x10] sm:$0xff]
        %v1845 = vld [vmem:[%s1841 + $0x18] sm:$0xff]
        %v1846 = vld [vmem:[%s1841 + $0x20] sm:$0xff]
        %v1847 = vld [vmem:[%s1841 + $0x28] sm:$0xff]
        %v1848 = vld [vmem:[%s1841 + $0x30] sm:$0xff]
        %v1849 = vld [vmem:[%s1841 + $0x38] sm:$0xff]
        %v1850 = vld [vmem:[%s1841 + $0x40] sm:$0xff]
        %v1851 = vld [vmem:[%s1841 + $0x48] sm:$0xff]
        %v1852 = vld [vmem:[%s1841 + $0x50] sm:$0x33]
        %v1864 = vunpack.c.l.b16 %v1842
        %v1865 = vunpack.c.h.b16 %v1842
        %v1866 = vunpack.c.l.b16 %v1843
        %v1867 = vunpack.c.h.b16 %v1843
        %v1868 = vunpack.c.l.b16 %v1844
        %v1869 = vunpack.c.h.b16 %v1844
        %v1870 = vunpack.c.l.b16 %v1845
        %v1871 = vunpack.c.h.b16 %v1845
        %v1872 = vunpack.c.l.b16 %v1846
        %v1873 = vunpack.c.h.b16 %v1846
        %v1874 = vunpack.c.l.b16 %v1847
        %v1875 = vunpack.c.h.b16 %v1847
        %v1876 = vunpack.c.l.b16 %v1848
        %v1877 = vunpack.c.h.b16 %v1848
        %v1878 = vunpack.c.l.b16 %v1849
        %v1879 = vunpack.c.h.b16 %v1849
        %v1880 = vunpack.c.l.b16 %v1850
        %v1881 = vunpack.c.h.b16 %v1850
        %v1882 = vunpack.c.l.b16 %v1851
        %v1883 = vunpack.c.h.b16 %v1851
        %v1884 = vunpack.c.l.b16 %v1852
        %v1885 = vunpack.c.h.b16 %v1852
        %v1886 = vpack.c.b16 %v1866, %v1864
        %v1887 = vpack.c.b16 %v1867, %v1865
        %v1888 = vpack.c.b16 %v1870, %v1868
        %v1889 = vpack.c.b16 %v1871, %v1869
        %v1890 = vpack.c.b16 %v1874, %v1872
        %v1891 = vpack.c.b16 %v1875, %v1873
        %v1892 = vpack.c.b16 %v1878, %v1876
        %v1893 = vpack.c.b16 %v1879, %v1877
        %v1894 = vpack.c.b16 %v1882, %v1880
        %v1895 = vpack.c.b16 %v1883, %v1881
        %v1896 = vpack.c.b16 %v1884, %v1884
        %v1897 = vpack.c.b16 %v1885, %v1885
        %v1909 = vsel %vm1342, %v1250, 0
        %v1912 = vsel %vm1342, %v1251, 0
        %v1915 = vsel %vm1342, %v1252, 0
        %v1918 = vsel %vm1342, %v1253, 0
        %v1921 = vsel %vm1342, %v1254, 0
        %v1924 = vsel %vm1342, %v1255, 0
        %v1927 = vsel %vm1342, %v1256, 0
        %v1930 = vsel %vm1342, %v1257, 0
        %v1933 = vsel %vm1342, %v1258, 0
        %v1936 = vsel %vm1342, %v1259, 0
        %v1939 = vsel %vm1342, %v1260, 0
        %v1942 = vsel %vm1342, %v1261, 0
        %v1945 = vsel %vm1342, %v1262, 0
        %v1948 = vsel %vm1342, %v1263, 0
        %v1951 = vsel %vm1385, %v1896, 0
        %v1954 = vsel %vm1385, %v1897, 0
        %1956 = vmatprep.subr.bf16.mxu0 %v1887
        %1957 = vmatpush1.bf16.msra.mxu0 %v1886
        %1958 = vmatprep.subr.bf16.mxu0 %v1889
        %1959 = vmatpush1.bf16.msra.mxu0 %v1888
        %1960 = vmatprep.subr.bf16.mxu0 %v1891
        %1961 = vmatpush1.bf16.msra.mxu0 %v1890
        %1962 = vmatprep.subr.bf16.mxu0 %v1893
        %1963 = vmatpush1.bf16.msra.mxu0 %v1892
        %1964 = vmatprep.subr.bf16.mxu0 %v1895
        %1965 = vmatpush1.bf16.msra.mxu0 %v1894
        %1966 = vmatprep.subr.bf16.mxu0 %v1954
        %1967 = vmatpush1.bf16.msra.mxu0 %v1951
        %1968 = vmatprep.subr.bf16.mxu0 0
        %1969 = vmatpush1.bf16.msra.mxu0 0
        %1970 = vmatprep.subr.bf16.mxu0 0
        %1971 = vmatpush1.bf16.msra.mxu0 0
        %1972 = vmatprep.subr.bf16.mxu0 0
        %1973 = vmatpush1.bf16.msra.mxu0 0
        %1974 = vmatprep.subr.bf16.mxu0 0
        %1975 = vmatpush1.bf16.msra.mxu0 0
        %1976 = vmatprep.subr.bf16.mxu0 0
        %1977 = vmatpush1.bf16.msra.mxu0 0
        %1978 = vmatprep.subr.bf16.mxu0 0
        %1979 = vmatpush1.bf16.msra.mxu0 0
        %1980 = vmatprep.subr.bf16.mxu0 0
        %1981 = vmatpush1.bf16.msra.mxu0 0
        %1982 = vmatprep.subr.bf16.mxu0 0
        %1983 = vmatpush1.bf16.msra.mxu0 0
        %1984 = vmatprep.subr.bf16.mxu0 0
        %1985 = vmatpush1.bf16.msra.mxu0 0
        %1986 = vmatprep.subr.bf16.mxu0 0
        %1987 = vmatpush1.bf16.msra.mxu0 0
        %1988 = vmatprep.mubr.bf16.mxu0 0
        %1989 = vmatmul.mubr.bf16.gmra.mrb[0].mxu0 %v1909
        %v1990 = vpop.f32.mrb[0].mxu0
        %v1991 = vadd.f32 0.0, %v1990
        %v1992 = vpop.f32.mrb[0].mxu0
        %v1993 = vadd.f32 0.0, %v1992
        %v1994 = vpop.f32.mrb[0].mxu0
        %v1995 = vadd.f32 0.0, %v1994
        %v1996 = vpop.f32.mrb[0].mxu0
        %v1997 = vadd.f32 0.0, %v1996
        %1998 = vmatprep.mubr.bf16.mxu0 0
        %1999 = vmatmul.mubr.bf16.gmra.mrb[0].mxu0 %v1912
        %v2000 = vpop.f32.mrb[0].mxu0
        %v2001 = vadd.f32 0.0, %v2000
        %v2002 = vpop.f32.mrb[0].mxu0
        %v2003 = vadd.f32 0.0, %v2002
        %v2004 = vpop.f32.mrb[0].mxu0
        %v2005 = vadd.f32 0.0, %v2004
        %v2006 = vpop.f32.mrb[0].mxu0
        %v2007 = vadd.f32 0.0, %v2006
        %2008 = vmatprep.mubr.bf16.mxu0 0
        %2009 = vmatmul.mubr.bf16.gmra.mrb[0].mxu0 %v1915
        %v2010 = vpop.f32.mrb[0].mxu0
        %v2011 = vadd.f32 0.0, %v2010
        %v2012 = vpop.f32.mrb[0].mxu0
        %v2013 = vadd.f32 0.0, %v2012
        %v2014 = vpop.f32.mrb[0].mxu0
        %v2015 = vadd.f32 0.0, %v2014
        %v2016 = vpop.f32.mrb[0].mxu0
        %v2017 = vadd.f32 0.0, %v2016
        %2018 = vmatprep.mubr.bf16.mxu0 0
        %2019 = vmatmul.mubr.bf16.gmra.mrb[0].mxu0 %v1918
        %v2020 = vpop.f32.mrb[0].mxu0
        %v2021 = vadd.f32 0.0, %v2020
        %v2022 = vpop.f32.mrb[0].mxu0
        %v2023 = vadd.f32 0.0, %v2022
        %v2024 = vpop.f32.mrb[0].mxu0
        %v2025 = vadd.f32 0.0, %v2024
        %v2026 = vpop.f32.mrb[0].mxu0
        %v2027 = vadd.f32 0.0, %v2026
        %2028 = vmatprep.mubr.bf16.mxu0 0
        %2029 = vmatmul.mubr.bf16.gmra.mrb[0].mxu0 %v1921
        %v2030 = vpop.f32.mrb[0].mxu0
        %v2031 = vadd.f32 0.0, %v2030
        %v2032 = vpop.f32.mrb[0].mxu0
        %v2033 = vadd.f32 0.0, %v2032
        %v2034 = vpop.f32.mrb[0].mxu0
        %v2035 = vadd.f32 0.0, %v2034
        %v2036 = vpop.f32.mrb[0].mxu0
        %v2037 = vadd.f32 0.0, %v2036
        %2038 = vmatprep.mubr.bf16.mxu0 0
        %2039 = vmatmul.mubr.bf16.gmra.mrb[0].mxu0 %v1924
        %v2040 = vpop.f32.mrb[0].mxu0
        %v2041 = vadd.f32 0.0, %v2040
        %v2042 = vpop.f32.mrb[0].mxu0
        %v2043 = vadd.f32 0.0, %v2042
        %v2044 = vpop.f32.mrb[0].mxu0
        %v2045 = vadd.f32 0.0, %v2044
        %v2046 = vpop.f32.mrb[0].mxu0
        %v2047 = vadd.f32 0.0, %v2046
        %2048 = vmatprep.mubr.bf16.mxu0 0
        %2049 = vmatmul.mubr.bf16.gmra.mrb[0].mxu0 %v1927
        %v2050 = vpop.f32.mrb[0].mxu0
        %v2051 = vadd.f32 0.0, %v2050
        %v2052 = vpop.f32.mrb[0].mxu0
        %v2053 = vadd.f32 0.0, %v2052
        %v2054 = vpop.f32.mrb[0].mxu0
        %v2055 = vadd.f32 0.0, %v2054
        %v2056 = vpop.f32.mrb[0].mxu0
        %v2057 = vadd.f32 0.0, %v2056
        %2058 = vmatprep.mubr.bf16.mxu0 0
        %2059 = vmatmul.mubr.bf16.gmra.mrb[0].mxu0 %v1930
        %v2060 = vpop.f32.mrb[0].mxu0
        %v2061 = vadd.f32 0.0, %v2060
        %v2062 = vpop.f32.mrb[0].mxu0
        %v2063 = vadd.f32 0.0, %v2062
        %v2064 = vpop.f32.mrb[0].mxu0
        %v2065 = vadd.f32 0.0, %v2064
        %v2066 = vpop.f32.mrb[0].mxu0
        %v2067 = vadd.f32 0.0, %v2066
        %2068 = vmatprep.mubr.bf16.mxu0 0
        %2069 = vmatmul.mubr.bf16.gmra.mrb[0].mxu0 %v1933
        %v2070 = vpop.f32.mrb[0].mxu0
        %v2071 = vadd.f32 0.0, %v2070
        %v2072 = vpop.f32.mrb[0].mxu0
        %v2073 = vadd.f32 0.0, %v2072
        %v2074 = vpop.f32.mrb[0].mxu0
        %v2075 = vadd.f32 0.0, %v2074
        %v2076 = vpop.f32.mrb[0].mxu0
        %v2077 = vadd.f32 0.0, %v2076
        %2078 = vmatprep.mubr.bf16.mxu0 0
        %2079 = vmatmul.mubr.bf16.gmra.mrb[0].mxu0 %v1936
        %v2080 = vpop.f32.mrb[0].mxu0
        %v2081 = vadd.f32 0.0, %v2080
        %v2082 = vpop.f32.mrb[0].mxu0
        %v2083 = vadd.f32 0.0, %v2082
        %v2084 = vpop.f32.mrb[0].mxu0
        %v2085 = vadd.f32 0.0, %v2084
        %v2086 = vpop.f32.mrb[0].mxu0
        %v2087 = vadd.f32 0.0, %v2086
        %2088 = vmatprep.mubr.bf16.mxu0 0
        %2089 = vmatmul.mubr.bf16.gmra.mrb[0].mxu0 %v1939
        %v2090 = vpop.f32.mrb[0].mxu0
        %v2091 = vadd.f32 0.0, %v2090
        %v2092 = vpop.f32.mrb[0].mxu0
        %v2093 = vadd.f32 0.0, %v2092
        %v2094 = vpop.f32.mrb[0].mxu0
        %v2095 = vadd.f32 0.0, %v2094
        %v2096 = vpop.f32.mrb[0].mxu0
        %v2097 = vadd.f32 0.0, %v2096
        %2098 = vmatprep.mubr.bf16.mxu0 0
        %2099 = vmatmul.mubr.bf16.gmra.mrb[0].mxu0 %v1942
        %v2100 = vpop.f32.mrb[0].mxu0
        %v2101 = vadd.f32 0.0, %v2100
        %v2102 = vpop.f32.mrb[0].mxu0
        %v2103 = vadd.f32 0.0, %v2102
        %v2104 = vpop.f32.mrb[0].mxu0
        %v2105 = vadd.f32 0.0, %v2104
        %v2106 = vpop.f32.mrb[0].mxu0
        %v2107 = vadd.f32 0.0, %v2106
        %2108 = vmatprep.mubr.bf16.mxu0 0
        %2109 = vmatmul.mubr.bf16.gmra.mrb[0].mxu0 %v1945
        %v2110 = vpop.f32.mrb[0].mxu0
        %v2111 = vadd.f32 0.0, %v2110
        %v2112 = vpop.f32.mrb[0].mxu0
        %v2113 = vadd.f32 0.0, %v2112
        %v2114 = vpop.f32.mrb[0].mxu0
        %v2115 = vadd.f32 0.0, %v2114
        %v2116 = vpop.f32.mrb[0].mxu0
        %v2117 = vadd.f32 0.0, %v2116
        %2118 = vmatprep.mubr.bf16.mxu0 0
        %2119 = vmatmul.mubr.bf16.gmra.mrb[0].mxu0 %v1948
        %v2120 = vpop.f32.mrb[0].mxu0
        %v2121 = vadd.f32 0.0, %v2120
        %v2122 = vpop.f32.mrb[0].mxu0
        %v2123 = vadd.f32 0.0, %v2122
        %v2124 = vpop.f32.mrb[0].mxu0
        %v2125 = vadd.f32 0.0, %v2124
        %v2126 = vpop.f32.mrb[0].mxu0
        %v2127 = vadd.f32 0.0, %v2126
        %2128 = vdwg.mxu0
        %v2129 = vadd.f32 %v1703, %v1991
        %v2130 = vadd.f32 %v1705, %v1993
        %v2131 = vadd.f32 %v1707, %v1995
        %v2132 = vadd.f32 %v1709, %v1997
        %v2133 = vadd.f32 %v1713, %v2001
        %v2134 = vadd.f32 %v1715, %v2003
        %v2135 = vadd.f32 %v1717, %v2005
        %v2136 = vadd.f32 %v1719, %v2007
        %v2137 = vadd.f32 %v1723, %v2011
        %v2138 = vadd.f32 %v1725, %v2013
        %v2139 = vadd.f32 %v1727, %v2015
        %v2140 = vadd.f32 %v1729, %v2017
        %v2141 = vadd.f32 %v1733, %v2021
        %v2142 = vadd.f32 %v1735, %v2023
        %v2143 = vadd.f32 %v1737, %v2025
        %v2144 = vadd.f32 %v1739, %v2027
        %v2145 = vadd.f32 %v1743, %v2031
        %v2146 = vadd.f32 %v1745, %v2033
        %v2147 = vadd.f32 %v1747, %v2035
        %v2148 = vadd.f32 %v1749, %v2037
        %v2149 = vadd.f32 %v1753, %v2041
        %v2150 = vadd.f32 %v1755, %v2043
        %v2151 = vadd.f32 %v1757, %v2045
        %v2152 = vadd.f32 %v1759, %v2047
        %v2153 = vadd.f32 %v1763, %v2051
        %v2154 = vadd.f32 %v1765, %v2053
        %v2155 = vadd.f32 %v1767, %v2055
        %v2156 = vadd.f32 %v1769, %v2057
        %v2157 = vadd.f32 %v1773, %v2061
        %v2158 = vadd.f32 %v1775, %v2063
        %v2159 = vadd.f32 %v1777, %v2065
        %v2160 = vadd.f32 %v1779, %v2067
        %v2161 = vadd.f32 %v1783, %v2071
        %v2162 = vadd.f32 %v1785, %v2073
        %v2163 = vadd.f32 %v1787, %v2075
        %v2164 = vadd.f32 %v1789, %v2077
        %v2165 = vadd.f32 %v1793, %v2081
        %v2166 = vadd.f32 %v1795, %v2083
        %v2167 = vadd.f32 %v1797, %v2085
        %v2168 = vadd.f32 %v1799, %v2087
        %v2169 = vadd.f32 %v1803, %v2091
        %v2170 = vadd.f32 %v1805, %v2093
        %v2171 = vadd.f32 %v1807, %v2095
        %v2172 = vadd.f32 %v1809, %v2097
        %v2173 = vadd.f32 %v1813, %v2101
        %v2174 = vadd.f32 %v1815, %v2103
        %v2175 = vadd.f32 %v1817, %v2105
        %v2176 = vadd.f32 %v1819, %v2107
        %v2177 = vadd.f32 %v1823, %v2111
        %v2178 = vadd.f32 %v1825, %v2113
        %v2179 = vadd.f32 %v1827, %v2115
        %v2180 = vadd.f32 %v1829, %v2117
        %v2181 = vadd.f32 %v1833, %v2121
        %v2182 = vadd.f32 %v1835, %v2123
        %v2183 = vadd.f32 %v1837, %v2125
        %v2184 = vadd.f32 %v1839, %v2127
        %v2185 = vld [vmem:[%s6] sm:$0x3]
        %v2187 = vlaneseq
        %v2188 = vshrl.u32 %v2187, 7
        %v2189 = vsub.s32 0, %v2188
        %v2190 = vrot.slane %v2185, %v2189
        %v2191 = vlaneseq
        %v2192 = vshrl.u32 %v2191, 7
        %v2193 = vsub.s32 1, %v2192
        %v2194 = vrot.slane %v2185, %v2193
        %v2197 = vadd.f32 %v2129, %v2190
        %v2198 = vadd.f32 %v2130, %v2194
        %v2199 = vadd.f32 %v2131, %v2190
        %v2200 = vadd.f32 %v2132, %v2194
        %v2201 = vadd.f32 %v2133, %v2190
        %v2202 = vadd.f32 %v2134, %v2194
        %v2203 = vadd.f32 %v2135, %v2190
        %v2204 = vadd.f32 %v2136, %v2194
        %v2205 = vadd.f32 %v2137, %v2190
        %v2206 = vadd.f32 %v2138, %v2194
        %v2207 = vadd.f32 %v2139, %v2190
        %v2208 = vadd.f32 %v2140, %v2194
        %v2209 = vadd.f32 %v2141, %v2190
        %v2210 = vadd.f32 %v2142, %v2194
        %v2211 = vadd.f32 %v2143, %v2190
        %v2212 = vadd.f32 %v2144, %v2194
        %v2213 = vadd.f32 %v2145, %v2190
        %v2214 = vadd.f32 %v2146, %v2194
        %v2215 = vadd.f32 %v2147, %v2190
        %v2216 = vadd.f32 %v2148, %v2194
        %v2217 = vadd.f32 %v2149, %v2190
        %v2218 = vadd.f32 %v2150, %v2194
        %v2219 = vadd.f32 %v2151, %v2190
        %v2220 = vadd.f32 %v2152, %v2194
        %v2221 = vadd.f32 %v2153, %v2190
        %v2222 = vadd.f32 %v2154, %v2194
        %v2223 = vadd.f32 %v2155, %v2190
        %v2224 = vadd.f32 %v2156, %v2194
        %v2225 = vadd.f32 %v2157, %v2190
        %v2226 = vadd.f32 %v2158, %v2194
        %v2227 = vadd.f32 %v2159, %v2190
        %v2228 = vadd.f32 %v2160, %v2194
        %v2229 = vadd.f32 %v2161, %v2190
        %v2230 = vadd.f32 %v2162, %v2194
        %v2231 = vadd.f32 %v2163, %v2190
        %v2232 = vadd.f32 %v2164, %v2194
        %v2233 = vadd.f32 %v2165, %v2190
        %v2234 = vadd.f32 %v2166, %v2194
        %v2235 = vadd.f32 %v2167, %v2190
        %v2236 = vadd.f32 %v2168, %v2194
        %v2237 = vadd.f32 %v2169, %v2190
        %v2238 = vadd.f32 %v2170, %v2194
        %v2239 = vadd.f32 %v2171, %v2190
        %v2240 = vadd.f32 %v2172, %v2194
        %v2241 = vadd.f32 %v2173, %v2190
        %v2242 = vadd.f32 %v2174, %v2194
        %v2243 = vadd.f32 %v2175, %v2190
        %v2244 = vadd.f32 %v2176, %v2194
        %v2245 = vadd.f32 %v2177, %v2190
        %v2246 = vadd.f32 %v2178, %v2194
        %v2247 = vadd.f32 %v2179, %v2190
        %v2248 = vadd.f32 %v2180, %v2194
        %v2249 = vadd.f32 %v2181, %v2190
        %v2250 = vadd.f32 %v2182, %v2194
        %v2251 = vadd.f32 %v2183, %v2190
        %v2252 = vadd.f32 %v2184, %v2194
        %v2253 = vmax.f32 %v2197, 0.0
        %v2254 = vmax.f32 %v2198, 0.0
        %v2255 = vmax.f32 %v2199, 0.0
        %v2256 = vmax.f32 %v2200, 0.0
        %v2257 = vmax.f32 %v2201, 0.0
        %v2258 = vmax.f32 %v2202, 0.0
        %v2259 = vmax.f32 %v2203, 0.0
        %v2260 = vmax.f32 %v2204, 0.0
        %v2261 = vmax.f32 %v2205, 0.0
        %v2262 = vmax.f32 %v2206, 0.0
        %v2263 = vmax.f32 %v2207, 0.0
        %v2264 = vmax.f32 %v2208, 0.0
        %v2265 = vmax.f32 %v2209, 0.0
        %v2266 = vmax.f32 %v2210, 0.0
        %v2267 = vmax.f32 %v2211, 0.0
        %v2268 = vmax.f32 %v2212, 0.0
        %v2269 = vmax.f32 %v2213, 0.0
        %v2270 = vmax.f32 %v2214, 0.0
        %v2271 = vmax.f32 %v2215, 0.0
        %v2272 = vmax.f32 %v2216, 0.0
        %v2273 = vmax.f32 %v2217, 0.0
        %v2274 = vmax.f32 %v2218, 0.0
        %v2275 = vmax.f32 %v2219, 0.0
        %v2276 = vmax.f32 %v2220, 0.0
        %v2277 = vmax.f32 %v2221, 0.0
        %v2278 = vmax.f32 %v2222, 0.0
        %v2279 = vmax.f32 %v2223, 0.0
        %v2280 = vmax.f32 %v2224, 0.0
        %v2281 = vmax.f32 %v2225, 0.0
        %v2282 = vmax.f32 %v2226, 0.0
        %v2283 = vmax.f32 %v2227, 0.0
        %v2284 = vmax.f32 %v2228, 0.0
        %v2285 = vmax.f32 %v2229, 0.0
        %v2286 = vmax.f32 %v2230, 0.0
        %v2287 = vmax.f32 %v2231, 0.0
        %v2288 = vmax.f32 %v2232, 0.0
        %v2289 = vmax.f32 %v2233, 0.0
        %v2290 = vmax.f32 %v2234, 0.0
        %v2291 = vmax.f32 %v2235, 0.0
        %v2292 = vmax.f32 %v2236, 0.0
        %v2293 = vmax.f32 %v2237, 0.0
        %v2294 = vmax.f32 %v2238, 0.0
        %v2295 = vmax.f32 %v2239, 0.0
        %v2296 = vmax.f32 %v2240, 0.0
        %v2297 = vmax.f32 %v2241, 0.0
        %v2298 = vmax.f32 %v2242, 0.0
        %v2299 = vmax.f32 %v2243, 0.0
        %v2300 = vmax.f32 %v2244, 0.0
        %v2301 = vmax.f32 %v2245, 0.0
        %v2302 = vmax.f32 %v2246, 0.0
        %v2303 = vmax.f32 %v2247, 0.0
        %v2304 = vmax.f32 %v2248, 0.0
        %v2305 = vmax.f32 %v2249, 0.0
        %v2306 = vmax.f32 %v2250, 0.0
        %v2307 = vmax.f32 %v2251, 0.0
        %v2308 = vmax.f32 %v2252, 0.0
        %v2309 = vpack.c.bf16 %v2255, %v2253
        %v2310 = vpack.c.bf16 %v2256, %v2254
        %v2311 = vpack.c.bf16 %v2259, %v2257
        %v2312 = vpack.c.bf16 %v2260, %v2258
        %v2313 = vpack.c.bf16 %v2263, %v2261
        %v2314 = vpack.c.bf16 %v2264, %v2262
        %v2315 = vpack.c.bf16 %v2267, %v2265
        %v2316 = vpack.c.bf16 %v2268, %v2266
        %v2317 = vpack.c.bf16 %v2271, %v2269
        %v2318 = vpack.c.bf16 %v2272, %v2270
        %v2319 = vpack.c.bf16 %v2275, %v2273
        %v2320 = vpack.c.bf16 %v2276, %v2274
        %v2321 = vpack.c.bf16 %v2279, %v2277
        %v2322 = vpack.c.bf16 %v2280, %v2278
        %v2323 = vpack.c.bf16 %v2283, %v2281
        %v2324 = vpack.c.bf16 %v2284, %v2282
        %v2325 = vpack.c.bf16 %v2287, %v2285
        %v2326 = vpack.c.bf16 %v2288, %v2286
        %v2327 = vpack.c.bf16 %v2291, %v2289
        %v2328 = vpack.c.bf16 %v2292, %v2290
        %v2329 = vpack.c.bf16 %v2295, %v2293
        %v2330 = vpack.c.bf16 %v2296, %v2294
        %v2331 = vpack.c.bf16 %v2299, %v2297
        %v2332 = vpack.c.bf16 %v2300, %v2298
        %v2333 = vpack.c.bf16 %v2303, %v2301
        %v2334 = vpack.c.bf16 %v2304, %v2302
        %v2335 = vpack.c.bf16 %v2307, %v2305
        %v2336 = vpack.c.bf16 %v2308, %v2306
        %v2337 = vrot.slane %v2253, 7
        %v2338 = vrot.slane %v2254, 7
        %v2339 = vrot.slane %v2255, 7
        %v2340 = vrot.slane %v2256, 7
        %v2341 = vrot.slane %v2257, 7
        %v2342 = vrot.slane %v2258, 7
        %v2343 = vrot.slane %v2259, 7
        %v2344 = vrot.slane %v2260, 7
        %v2345 = vrot.slane %v2261, 7
        %v2346 = vrot.slane %v2262, 7
        %v2347 = vrot.slane %v2263, 7
        %v2348 = vrot.slane %v2264, 7
        %v2349 = vrot.slane %v2265, 7
        %v2350 = vrot.slane %v2266, 7
        %v2351 = vrot.slane %v2267, 7
        %v2352 = vrot.slane %v2268, 7
        %v2353 = vrot.slane %v2269, 7
        %v2354 = vrot.slane %v2270, 7
        %v2355 = vrot.slane %v2271, 7
        %v2356 = vrot.slane %v2272, 7
        %v2357 = vrot.slane %v2273, 7
        %v2358 = vrot.slane %v2274, 7
        %v2359 = vrot.slane %v2275, 7
        %v2360 = vrot.slane %v2276, 7
        %v2361 = vrot.slane %v2277, 7
        %v2362 = vrot.slane %v2278, 7
        %v2363 = vrot.slane %v2279, 7
        %v2364 = vrot.slane %v2280, 7
        %v2365 = vrot.slane %v2281, 7
        %v2366 = vrot.slane %v2282, 7
        %v2367 = vrot.slane %v2283, 7
        %v2368 = vrot.slane %v2284, 7
        %v2369 = vrot.slane %v2285, 7
        %v2370 = vrot.slane %v2286, 7
        %v2371 = vrot.slane %v2287, 7
        %v2372 = vrot.slane %v2288, 7
        %v2373 = vrot.slane %v2289, 7
        %v2374 = vrot.slane %v2290, 7
        %v2375 = vrot.slane %v2291, 7
        %v2376 = vrot.slane %v2292, 7
        %v2377 = vrot.slane %v2293, 7
        %v2378 = vrot.slane %v2294, 7
        %v2379 = vrot.slane %v2295, 7
        %v2380 = vrot.slane %v2296, 7
        %v2381 = vrot.slane %v2297, 7
        %v2382 = vrot.slane %v2298, 7
        %v2383 = vrot.slane %v2299, 7
        %v2384 = vrot.slane %v2300, 7
        %v2385 = vrot.slane %v2301, 7
        %v2386 = vrot.slane %v2302, 7
        %v2387 = vrot.slane %v2303, 7
        %v2388 = vrot.slane %v2304, 7
        %v2389 = vrot.slane %v2305, 7
        %v2390 = vrot.slane %v2306, 7
        %v2391 = vrot.slane %v2307, 7
        %v2392 = vrot.slane %v2308, 7
        %v2393 = vsel %vm814, %v2389, %v2391
        %v2394 = vsel %vm814, %v2390, %v2392
        %v2395 = vsel %vm814, %v2387, %v2389
        %v2396 = vsel %vm814, %v2388, %v2390
        %v2397 = vsel %vm814, %v2385, %v2387
        %v2398 = vsel %vm814, %v2386, %v2388
        %v2399 = vsel %vm814, %v2383, %v2385
        %v2400 = vsel %vm814, %v2384, %v2386
        %v2401 = vsel %vm814, %v2381, %v2383
        %v2402 = vsel %vm814, %v2382, %v2384
        %v2403 = vsel %vm814, %v2379, %v2381
        %v2404 = vsel %vm814, %v2380, %v2382
        %v2405 = vsel %vm814, %v2377, %v2379
        %v2406 = vsel %vm814, %v2378, %v2380
        %v2407 = vsel %vm814, %v2375, %v2377
        %v2408 = vsel %vm814, %v2376, %v2378
        %v2409 = vsel %vm814, %v2373, %v2375
        %v2410 = vsel %vm814, %v2374, %v2376
        %v2411 = vsel %vm814, %v2371, %v2373
        %v2412 = vsel %vm814, %v2372, %v2374
        %v2413 = vsel %vm814, %v2369, %v2371
        %v2414 = vsel %vm814, %v2370, %v2372
        %v2415 = vsel %vm814, %v2367, %v2369
        %v2416 = vsel %vm814, %v2368, %v2370
        %v2417 = vsel %vm814, %v2365, %v2367
        %v2418 = vsel %vm814, %v2366, %v2368
        %v2419 = vsel %vm814, %v2363, %v2365
        %v2420 = vsel %vm814, %v2364, %v2366
        %v2421 = vsel %vm814, %v2361, %v2363
        %v2422 = vsel %vm814, %v2362, %v2364
        %v2423 = vsel %vm814, %v2359, %v2361
        %v2424 = vsel %vm814, %v2360, %v2362
        %v2425 = vsel %vm814, %v2357, %v2359
        %v2426 = vsel %vm814, %v2358, %v2360
        %v2427 = vsel %vm814, %v2355, %v2357
        %v2428 = vsel %vm814, %v2356, %v2358
        %v2429 = vsel %vm814, %v2353, %v2355
        %v2430 = vsel %vm814, %v2354, %v2356
        %v2431 = vsel %vm814, %v2351, %v2353
        %v2432 = vsel %vm814, %v2352, %v2354
        %v2433 = vsel %vm814, %v2349, %v2351
        %v2434 = vsel %vm814, %v2350, %v2352
        %v2435 = vsel %vm814, %v2347, %v2349
        %v2436 = vsel %vm814, %v2348, %v2350
        %v2437 = vsel %vm814, %v2345, %v2347
        %v2438 = vsel %vm814, %v2346, %v2348
        %v2439 = vsel %vm814, %v2343, %v2345
        %v2440 = vsel %vm814, %v2344, %v2346
        %v2441 = vsel %vm814, %v2341, %v2343
        %v2442 = vsel %vm814, %v2342, %v2344
        %v2443 = vsel %vm814, %v2339, %v2341
        %v2444 = vsel %vm814, %v2340, %v2342
        %v2445 = vsel %vm814, %v2337, %v2339
        %v2446 = vsel %vm814, %v2338, %v2340
        %v2447 = vsel %vm814, %v2391, %v2337
        %v2448 = vsel %vm814, %v2392, %v2338
        %v2449 = vmul.f32 %v2447, %v846
        %v2450 = vmul.f32 %v2448, %v846
        %v2451 = vmul.f32 %v2445, %v851
        %v2452 = vmul.f32 %v2446, %v851
        %v2453 = vmul.f32 %v2443, %v856
        %v2454 = vmul.f32 %v2444, %v856
        %v2455 = vmul.f32 %v2441, %v861
        %v2456 = vmul.f32 %v2442, %v861
        %v2457 = vmul.f32 %v2439, %v866
        %v2458 = vmul.f32 %v2440, %v866
        %v2459 = vmul.f32 %v2437, %v871
        %v2460 = vmul.f32 %v2438, %v871
        %v2461 = vmul.f32 %v2435, %v876
        %v2462 = vmul.f32 %v2436, %v876
        %v2463 = vmul.f32 %v2433, %v881
        %v2464 = vmul.f32 %v2434, %v881
        %v2465 = vmul.f32 %v2431, %v886
        %v2466 = vmul.f32 %v2432, %v886
        %v2467 = vmul.f32 %v2429, %v891
        %v2468 = vmul.f32 %v2430, %v891
        %v2469 = vmul.f32 %v2427, %v896
        %v2470 = vmul.f32 %v2428, %v896
        %v2471 = vmul.f32 %v2425, %v901
        %v2472 = vmul.f32 %v2426, %v901
        %v2473 = vmul.f32 %v2423, %v906
        %v2474 = vmul.f32 %v2424, %v906
        %v2475 = vmul.f32 %v2421, %v911
        %v2476 = vmul.f32 %v2422, %v911
        %v2477 = vmul.f32 %v2419, %v916
        %v2478 = vmul.f32 %v2420, %v916
        %v2479 = vmul.f32 %v2417, %v921
        %v2480 = vmul.f32 %v2418, %v921
        %v2481 = vmul.f32 %v2415, %v926
        %v2482 = vmul.f32 %v2416, %v926
        %v2483 = vmul.f32 %v2413, %v931
        %v2484 = vmul.f32 %v2414, %v931
        %v2485 = vmul.f32 %v2411, %v936
        %v2486 = vmul.f32 %v2412, %v936
        %v2487 = vmul.f32 %v2409, %v941
        %v2488 = vmul.f32 %v2410, %v941
        %v2489 = vmul.f32 %v2407, %v946
        %v2490 = vmul.f32 %v2408, %v946
        %v2491 = vmul.f32 %v2405, %v951
        %v2492 = vmul.f32 %v2406, %v951
        %v2493 = vmul.f32 %v2403, %v956
        %v2494 = vmul.f32 %v2404, %v956
        %v2495 = vmul.f32 %v2401, %v961
        %v2496 = vmul.f32 %v2402, %v961
        %v2497 = vmul.f32 %v2399, %v966
        %v2498 = vmul.f32 %v2400, %v966
        %v2499 = vmul.f32 %v2397, %v971
        %v2500 = vmul.f32 %v2398, %v971
        %v2501 = vmul.f32 %v2395, %v976
        %v2502 = vmul.f32 %v2396, %v976
        %v2503 = vmul.f32 %v2393, %v981
        %v2504 = vmul.f32 %v2394, %v981
        %v2505 = vpack.c.bf16 %v2451, %v2449
        %v2506 = vpack.c.bf16 %v2452, %v2450
        %v2507 = vpack.c.bf16 %v2455, %v2453
        %v2508 = vpack.c.bf16 %v2456, %v2454
        %v2509 = vpack.c.bf16 %v2459, %v2457
        %v2510 = vpack.c.bf16 %v2460, %v2458
        %v2511 = vpack.c.bf16 %v2463, %v2461
        %v2512 = vpack.c.bf16 %v2464, %v2462
        %v2513 = vpack.c.bf16 %v2467, %v2465
        %v2514 = vpack.c.bf16 %v2468, %v2466
        %v2515 = vpack.c.bf16 %v2471, %v2469
        %v2516 = vpack.c.bf16 %v2472, %v2470
        %v2517 = vpack.c.bf16 %v2475, %v2473
        %v2518 = vpack.c.bf16 %v2476, %v2474
        %v2519 = vpack.c.bf16 %v2479, %v2477
        %v2520 = vpack.c.bf16 %v2480, %v2478
        %v2521 = vpack.c.bf16 %v2483, %v2481
        %v2522 = vpack.c.bf16 %v2484, %v2482
        %v2523 = vpack.c.bf16 %v2487, %v2485
        %v2524 = vpack.c.bf16 %v2488, %v2486
        %v2525 = vpack.c.bf16 %v2491, %v2489
        %v2526 = vpack.c.bf16 %v2492, %v2490
        %v2527 = vpack.c.bf16 %v2495, %v2493
        %v2528 = vpack.c.bf16 %v2496, %v2494
        %v2529 = vpack.c.bf16 %v2499, %v2497
        %v2530 = vpack.c.bf16 %v2500, %v2498
        %v2531 = vpack.c.bf16 %v2503, %v2501
        %v2532 = vpack.c.bf16 %v2504, %v2502
        %v2533 = vrot.slane %v2253, 1
        %v2534 = vrot.slane %v2254, 1
        %v2535 = vrot.slane %v2255, 1
        %v2536 = vrot.slane %v2256, 1
        %v2537 = vrot.slane %v2257, 1
        %v2538 = vrot.slane %v2258, 1
        %v2539 = vrot.slane %v2259, 1
        %v2540 = vrot.slane %v2260, 1
        %v2541 = vrot.slane %v2261, 1
        %v2542 = vrot.slane %v2262, 1
        %v2543 = vrot.slane %v2263, 1
        %v2544 = vrot.slane %v2264, 1
        %v2545 = vrot.slane %v2265, 1
        %v2546 = vrot.slane %v2266, 1
        %v2547 = vrot.slane %v2267, 1
        %v2548 = vrot.slane %v2268, 1
        %v2549 = vrot.slane %v2269, 1
        %v2550 = vrot.slane %v2270, 1
        %v2551 = vrot.slane %v2271, 1
        %v2552 = vrot.slane %v2272, 1
        %v2553 = vrot.slane %v2273, 1
        %v2554 = vrot.slane %v2274, 1
        %v2555 = vrot.slane %v2275, 1
        %v2556 = vrot.slane %v2276, 1
        %v2557 = vrot.slane %v2277, 1
        %v2558 = vrot.slane %v2278, 1
        %v2559 = vrot.slane %v2279, 1
        %v2560 = vrot.slane %v2280, 1
        %v2561 = vrot.slane %v2281, 1
        %v2562 = vrot.slane %v2282, 1
        %v2563 = vrot.slane %v2283, 1
        %v2564 = vrot.slane %v2284, 1
        %v2565 = vrot.slane %v2285, 1
        %v2566 = vrot.slane %v2286, 1
        %v2567 = vrot.slane %v2287, 1
        %v2568 = vrot.slane %v2288, 1
        %v2569 = vrot.slane %v2289, 1
        %v2570 = vrot.slane %v2290, 1
        %v2571 = vrot.slane %v2291, 1
        %v2572 = vrot.slane %v2292, 1
        %v2573 = vrot.slane %v2293, 1
        %v2574 = vrot.slane %v2294, 1
        %v2575 = vrot.slane %v2295, 1
        %v2576 = vrot.slane %v2296, 1
        %v2577 = vrot.slane %v2297, 1
        %v2578 = vrot.slane %v2298, 1
        %v2579 = vrot.slane %v2299, 1
        %v2580 = vrot.slane %v2300, 1
        %v2581 = vrot.slane %v2301, 1
        %v2582 = vrot.slane %v2302, 1
        %v2583 = vrot.slane %v2303, 1
        %v2584 = vrot.slane %v2304, 1
        %v2585 = vrot.slane %v2305, 1
        %v2586 = vrot.slane %v2306, 1
        %v2587 = vrot.slane %v2307, 1
        %v2588 = vrot.slane %v2308, 1
        %v2589 = vsel %vm1053, %v2585, %v2587
        %v2590 = vsel %vm1053, %v2586, %v2588
        %v2591 = vsel %vm1053, %v2583, %v2585
        %v2592 = vsel %vm1053, %v2584, %v2586
        %v2593 = vsel %vm1053, %v2581, %v2583
        %v2594 = vsel %vm1053, %v2582, %v2584
        %v2595 = vsel %vm1053, %v2579, %v2581
        %v2596 = vsel %vm1053, %v2580, %v2582
        %v2597 = vsel %vm1053, %v2577, %v2579
        %v2598 = vsel %vm1053, %v2578, %v2580
        %v2599 = vsel %vm1053, %v2575, %v2577
        %v2600 = vsel %vm1053, %v2576, %v2578
        %v2601 = vsel %vm1053, %v2573, %v2575
        %v2602 = vsel %vm1053, %v2574, %v2576
        %v2603 = vsel %vm1053, %v2571, %v2573
        %v2604 = vsel %vm1053, %v2572, %v2574
        %v2605 = vsel %vm1053, %v2569, %v2571
        %v2606 = vsel %vm1053, %v2570, %v2572
        %v2607 = vsel %vm1053, %v2567, %v2569
        %v2608 = vsel %vm1053, %v2568, %v2570
        %v2609 = vsel %vm1053, %v2565, %v2567
        %v2610 = vsel %vm1053, %v2566, %v2568
        %v2611 = vsel %vm1053, %v2563, %v2565
        %v2612 = vsel %vm1053, %v2564, %v2566
        %v2613 = vsel %vm1053, %v2561, %v2563
        %v2614 = vsel %vm1053, %v2562, %v2564
        %v2615 = vsel %vm1053, %v2559, %v2561
        %v2616 = vsel %vm1053, %v2560, %v2562
        %v2617 = vsel %vm1053, %v2557, %v2559
        %v2618 = vsel %vm1053, %v2558, %v2560
        %v2619 = vsel %vm1053, %v2555, %v2557
        %v2620 = vsel %vm1053, %v2556, %v2558
        %v2621 = vsel %vm1053, %v2553, %v2555
        %v2622 = vsel %vm1053, %v2554, %v2556
        %v2623 = vsel %vm1053, %v2551, %v2553
        %v2624 = vsel %vm1053, %v2552, %v2554
        %v2625 = vsel %vm1053, %v2549, %v2551
        %v2626 = vsel %vm1053, %v2550, %v2552
        %v2627 = vsel %vm1053, %v2547, %v2549
        %v2628 = vsel %vm1053, %v2548, %v2550
        %v2629 = vsel %vm1053, %v2545, %v2547
        %v2630 = vsel %vm1053, %v2546, %v2548
        %v2631 = vsel %vm1053, %v2543, %v2545
        %v2632 = vsel %vm1053, %v2544, %v2546
        %v2633 = vsel %vm1053, %v2541, %v2543
        %v2634 = vsel %vm1053, %v2542, %v2544
        %v2635 = vsel %vm1053, %v2539, %v2541
        %v2636 = vsel %vm1053, %v2540, %v2542
        %v2637 = vsel %vm1053, %v2537, %v2539
        %v2638 = vsel %vm1053, %v2538, %v2540
        %v2639 = vsel %vm1053, %v2535, %v2537
        %v2640 = vsel %vm1053, %v2536, %v2538
        %v2641 = vsel %vm1053, %v2533, %v2535
        %v2642 = vsel %vm1053, %v2534, %v2536
        %v2643 = vsel %vm1053, %v2587, %v2533
        %v2644 = vsel %vm1053, %v2588, %v2534
        %v2645 = vmul.f32 %v2641, %v1085
        %v2646 = vmul.f32 %v2642, %v1085
        %v2647 = vmul.f32 %v2639, %v1090
        %v2648 = vmul.f32 %v2640, %v1090
        %v2649 = vmul.f32 %v2637, %v1095
        %v2650 = vmul.f32 %v2638, %v1095
        %v2651 = vmul.f32 %v2635, %v1100
        %v2652 = vmul.f32 %v2636, %v1100
        %v2653 = vmul.f32 %v2633, %v1105
        %v2654 = vmul.f32 %v2634, %v1105
        %v2655 = vmul.f32 %v2631, %v1110
        %v2656 = vmul.f32 %v2632, %v1110
        %v2657 = vmul.f32 %v2629, %v1115
        %v2658 = vmul.f32 %v2630, %v1115
        %v2659 = vmul.f32 %v2627, %v1120
        %v2660 = vmul.f32 %v2628, %v1120
        %v2661 = vmul.f32 %v2625, %v1125
        %v2662 = vmul.f32 %v2626, %v1125
        %v2663 = vmul.f32 %v2623, %v1130
        %v2664 = vmul.f32 %v2624, %v1130
        %v2665 = vmul.f32 %v2621, %v1135
        %v2666 = vmul.f32 %v2622, %v1135
        %v2667 = vmul.f32 %v2619, %v1140
        %v2668 = vmul.f32 %v2620, %v1140
        %v2669 = vmul.f32 %v2617, %v1145
        %v2670 = vmul.f32 %v2618, %v1145
        %v2671 = vmul.f32 %v2615, %v1150
        %v2672 = vmul.f32 %v2616, %v1150
        %v2673 = vmul.f32 %v2613, %v1155
        %v2674 = vmul.f32 %v2614, %v1155
        %v2675 = vmul.f32 %v2611, %v1160
        %v2676 = vmul.f32 %v2612, %v1160
        %v2677 = vmul.f32 %v2609, %v1165
        %v2678 = vmul.f32 %v2610, %v1165
        %v2679 = vmul.f32 %v2607, %v1170
        %v2680 = vmul.f32 %v2608, %v1170
        %v2681 = vmul.f32 %v2605, %v1175
        %v2682 = vmul.f32 %v2606, %v1175
        %v2683 = vmul.f32 %v2603, %v1180
        %v2684 = vmul.f32 %v2604, %v1180
        %v2685 = vmul.f32 %v2601, %v1185
        %v2686 = vmul.f32 %v2602, %v1185
        %v2687 = vmul.f32 %v2599, %v1190
        %v2688 = vmul.f32 %v2600, %v1190
        %v2689 = vmul.f32 %v2597, %v1195
        %v2690 = vmul.f32 %v2598, %v1195
        %v2691 = vmul.f32 %v2595, %v1200
        %v2692 = vmul.f32 %v2596, %v1200
        %v2693 = vmul.f32 %v2593, %v1205
        %v2694 = vmul.f32 %v2594, %v1205
        %v2695 = vmul.f32 %v2591, %v1210
        %v2696 = vmul.f32 %v2592, %v1210
        %v2697 = vmul.f32 %v2589, %v1215
        %v2698 = vmul.f32 %v2590, %v1215
        %v2699 = vmul.f32 %v2643, %v1220
        %v2700 = vmul.f32 %v2644, %v1220
        %v2701 = vpack.c.bf16 %v2647, %v2645
        %v2702 = vpack.c.bf16 %v2648, %v2646
        %v2703 = vpack.c.bf16 %v2651, %v2649
        %v2704 = vpack.c.bf16 %v2652, %v2650
        %v2705 = vpack.c.bf16 %v2655, %v2653
        %v2706 = vpack.c.bf16 %v2656, %v2654
        %v2707 = vpack.c.bf16 %v2659, %v2657
        %v2708 = vpack.c.bf16 %v2660, %v2658
        %v2709 = vpack.c.bf16 %v2663, %v2661
        %v2710 = vpack.c.bf16 %v2664, %v2662
        %v2711 = vpack.c.bf16 %v2667, %v2665
        %v2712 = vpack.c.bf16 %v2668, %v2666
        %v2713 = vpack.c.bf16 %v2671, %v2669
        %v2714 = vpack.c.bf16 %v2672, %v2670
        %v2715 = vpack.c.bf16 %v2675, %v2673
        %v2716 = vpack.c.bf16 %v2676, %v2674
        %v2717 = vpack.c.bf16 %v2679, %v2677
        %v2718 = vpack.c.bf16 %v2680, %v2678
        %v2719 = vpack.c.bf16 %v2683, %v2681
        %v2720 = vpack.c.bf16 %v2684, %v2682
        %v2721 = vpack.c.bf16 %v2687, %v2685
        %v2722 = vpack.c.bf16 %v2688, %v2686
        %v2723 = vpack.c.bf16 %v2691, %v2689
        %v2724 = vpack.c.bf16 %v2692, %v2690
        %v2725 = vpack.c.bf16 %v2695, %v2693
        %v2726 = vpack.c.bf16 %v2696, %v2694
        %v2727 = vpack.c.bf16 %v2699, %v2697
        %v2728 = vpack.c.bf16 %v2700, %v2698
        %v2729 = vld [vmem:[%s7] sm:$0xff]
        %v2730 = vld [vmem:[%s7 + $0x8] sm:$0xff]
        %v2731 = vld [vmem:[%s7 + $0x10] sm:$0xff]
        %v2732 = vld [vmem:[%s7 + $0x18] sm:$0xff]
        %v2733 = vld [vmem:[%s7 + $0x20] sm:$0xff]
        %v2734 = vld [vmem:[%s7 + $0x28] sm:$0xff]
        %v2735 = vld [vmem:[%s7 + $0x30] sm:$0xff]
        %v2736 = vld [vmem:[%s7 + $0x38] sm:$0xff]
        %v2737 = vld [vmem:[%s7 + $0x40] sm:$0xff]
        %v2738 = vld [vmem:[%s7 + $0x48] sm:$0xff]
        %v2739 = vld [vmem:[%s7 + $0x50] sm:$0xff]
        %v2740 = vld [vmem:[%s7 + $0x58] sm:$0xff]
        %v2741 = vld [vmem:[%s7 + $0x60] sm:$0xff]
        %v2742 = vld [vmem:[%s7 + $0x68] sm:$0xff]
        %v2743 = vld [vmem:[%s7 + $0x70] sm:$0xff]
        %v2744 = vld [vmem:[%s7 + $0x78] sm:$0xff]
        %v2745 = vld [vmem:[%s7 + $0x80] sm:$0xff]
        %v2746 = vld [vmem:[%s7 + $0x88] sm:$0xff]
        %v2747 = vld [vmem:[%s7 + $0x90] sm:$0xff]
        %v2748 = vld [vmem:[%s7 + $0x98] sm:$0xff]
        %v2749 = vld [vmem:[%s7 + $0xa0] sm:$0xff]
        %v2750 = vld [vmem:[%s7 + $0xa8] sm:$0xff]
        %v2751 = vld [vmem:[%s7 + $0xb0] sm:$0xff]
        %v2752 = vld [vmem:[%s7 + $0xb8] sm:$0xff]
        %v2753 = vld [vmem:[%s7 + $0xc0] sm:$0xff]
        %v2754 = vld [vmem:[%s7 + $0xc8] sm:$0xff]
        %v2755 = vld [vmem:[%s7 + $0xd0] sm:$0xff]
        %v2756 = vld [vmem:[%s7 + $0xd8] sm:$0xff]
        %s2757 = scalar_lea.vmem %s7, 224
        %v2758 = vld [vmem:[%s2757] sm:$0xff]
        %v2759 = vld [vmem:[%s2757 + $0x8] sm:$0xff]
        %v2760 = vld [vmem:[%s2757 + $0x10] sm:$0xff]
        %v2761 = vld [vmem:[%s2757 + $0x18] sm:$0xff]
        %v2762 = vld [vmem:[%s2757 + $0x20] sm:$0xff]
        %v2763 = vld [vmem:[%s2757 + $0x28] sm:$0xff]
        %v2764 = vld [vmem:[%s2757 + $0x30] sm:$0xff]
        %v2765 = vld [vmem:[%s2757 + $0x38] sm:$0xff]
        %v2766 = vld [vmem:[%s2757 + $0x40] sm:$0xff]
        %v2767 = vld [vmem:[%s2757 + $0x48] sm:$0xff]
        %v2768 = vld [vmem:[%s2757 + $0x50] sm:$0xff]
        %v2769 = vld [vmem:[%s2757 + $0x58] sm:$0xff]
        %v2770 = vld [vmem:[%s2757 + $0x60] sm:$0xff]
        %v2771 = vld [vmem:[%s2757 + $0x68] sm:$0xff]
        %v2772 = vld [vmem:[%s2757 + $0x70] sm:$0xff]
        %v2773 = vld [vmem:[%s2757 + $0x78] sm:$0xff]
        %v2774 = vld [vmem:[%s2757 + $0x80] sm:$0xff]
        %v2775 = vld [vmem:[%s2757 + $0x88] sm:$0xff]
        %v2776 = vld [vmem:[%s2757 + $0x90] sm:$0xff]
        %v2777 = vld [vmem:[%s2757 + $0x98] sm:$0xff]
        %v2778 = vld [vmem:[%s2757 + $0xa0] sm:$0xff]
        %v2779 = vld [vmem:[%s2757 + $0xa8] sm:$0xff]
        %v2780 = vld [vmem:[%s2757 + $0xb0] sm:$0xff]
        %v2781 = vld [vmem:[%s2757 + $0xb8] sm:$0xff]
        %v2782 = vld [vmem:[%s2757 + $0xc0] sm:$0xff]
        %v2783 = vld [vmem:[%s2757 + $0xc8] sm:$0xff]
        %v2784 = vld [vmem:[%s2757 + $0xd0] sm:$0xff]
        %v2785 = vld [vmem:[%s2757 + $0xd8] sm:$0xff]
        %v2814 = vunpack.c.l.b16 %v2758
        %v2815 = vunpack.c.h.b16 %v2758
        %v2816 = vunpack.c.l.b16 %v2759
        %v2817 = vunpack.c.h.b16 %v2759
        %v2818 = vunpack.c.l.b16 %v2760
        %v2819 = vunpack.c.h.b16 %v2760
        %v2820 = vunpack.c.l.b16 %v2761
        %v2821 = vunpack.c.h.b16 %v2761
        %v2822 = vunpack.c.l.b16 %v2762
        %v2823 = vunpack.c.h.b16 %v2762
        %v2824 = vunpack.c.l.b16 %v2763
        %v2825 = vunpack.c.h.b16 %v2763
        %v2826 = vunpack.c.l.b16 %v2764
        %v2827 = vunpack.c.h.b16 %v2764
        %v2828 = vunpack.c.l.b16 %v2765
        %v2829 = vunpack.c.h.b16 %v2765
        %v2830 = vunpack.c.l.b16 %v2766
        %v2831 = vunpack.c.h.b16 %v2766
        %v2832 = vunpack.c.l.b16 %v2767
        %v2833 = vunpack.c.h.b16 %v2767
        %v2834 = vunpack.c.l.b16 %v2768
        %v2835 = vunpack.c.h.b16 %v2768
        %v2836 = vunpack.c.l.b16 %v2769
        %v2837 = vunpack.c.h.b16 %v2769
        %v2838 = vunpack.c.l.b16 %v2770
        %v2839 = vunpack.c.h.b16 %v2770
        %v2840 = vunpack.c.l.b16 %v2771
        %v2841 = vunpack.c.h.b16 %v2771
        %v2842 = vunpack.c.l.b16 %v2772
        %v2843 = vunpack.c.h.b16 %v2772
        %v2844 = vunpack.c.l.b16 %v2773
        %v2845 = vunpack.c.h.b16 %v2773
        %v2846 = vunpack.c.l.b16 %v2774
        %v2847 = vunpack.c.h.b16 %v2774
        %v2848 = vunpack.c.l.b16 %v2775
        %v2849 = vunpack.c.h.b16 %v2775
        %v2850 = vunpack.c.l.b16 %v2776
        %v2851 = vunpack.c.h.b16 %v2776
        %v2852 = vunpack.c.l.b16 %v2777
        %v2853 = vunpack.c.h.b16 %v2777
        %v2854 = vunpack.c.l.b16 %v2778
        %v2855 = vunpack.c.h.b16 %v2778
        %v2856 = vunpack.c.l.b16 %v2779
        %v2857 = vunpack.c.h.b16 %v2779
        %v2858 = vunpack.c.l.b16 %v2780
        %v2859 = vunpack.c.h.b16 %v2780
        %v2860 = vunpack.c.l.b16 %v2781
        %v2861 = vunpack.c.h.b16 %v2781
        %v2862 = vunpack.c.l.b16 %v2782
        %v2863 = vunpack.c.h.b16 %v2782
        %v2864 = vunpack.c.l.b16 %v2783
        %v2865 = vunpack.c.h.b16 %v2783
        %v2866 = vunpack.c.l.b16 %v2784
        %v2867 = vunpack.c.h.b16 %v2784
        %v2868 = vunpack.c.l.b16 %v2785
        %v2869 = vunpack.c.h.b16 %v2785
        %v2870 = vpack.c.b16 %v2816, %v2814
        %v2871 = vpack.c.b16 %v2817, %v2815
        %v2872 = vpack.c.b16 %v2820, %v2818
        %v2873 = vpack.c.b16 %v2821, %v2819
        %v2874 = vpack.c.b16 %v2824, %v2822
        %v2875 = vpack.c.b16 %v2825, %v2823
        %v2876 = vpack.c.b16 %v2828, %v2826
        %v2877 = vpack.c.b16 %v2829, %v2827
        %v2878 = vpack.c.b16 %v2832, %v2830
        %v2879 = vpack.c.b16 %v2833, %v2831
        %v2880 = vpack.c.b16 %v2836, %v2834
        %v2881 = vpack.c.b16 %v2837, %v2835
        %v2882 = vpack.c.b16 %v2840, %v2838
        %v2883 = vpack.c.b16 %v2841, %v2839
        %v2884 = vpack.c.b16 %v2844, %v2842
        %v2885 = vpack.c.b16 %v2845, %v2843
        %v2886 = vpack.c.b16 %v2848, %v2846
        %v2887 = vpack.c.b16 %v2849, %v2847
        %v2888 = vpack.c.b16 %v2852, %v2850
        %v2889 = vpack.c.b16 %v2853, %v2851
        %v2890 = vpack.c.b16 %v2856, %v2854
        %v2891 = vpack.c.b16 %v2857, %v2855
        %v2892 = vpack.c.b16 %v2860, %v2858
        %v2893 = vpack.c.b16 %v2861, %v2859
        %v2894 = vpack.c.b16 %v2864, %v2862
        %v2895 = vpack.c.b16 %v2865, %v2863
        %v2896 = vpack.c.b16 %v2868, %v2866
        %v2897 = vpack.c.b16 %v2869, %v2867
        %vm2926 = vcmask 785408
        %v2928 = vsel %vm2926, %v2310, 0
        %v2931 = vsel %vm2926, %v2312, 0
        %v2934 = vsel %vm2926, %v2314, 0
        %v2937 = vsel %vm2926, %v2316, 0
        %v2940 = vsel %vm2926, %v2318, 0
        %v2943 = vsel %vm2926, %v2320, 0
        %v2946 = vsel %vm2926, %v2322, 0
        %v2949 = vsel %vm2926, %v2324, 0
        %v2952 = vsel %vm2926, %v2326, 0
        %v2955 = vsel %vm2926, %v2328, 0
        %v2958 = vsel %vm2926, %v2330, 0
        %v2961 = vsel %vm2926, %v2332, 0
        %v2964 = vsel %vm2926, %v2334, 0
        %v2967 = vsel %vm2926, %v2336, 0
        %2969 = vmatprep.subr.bf16.mxu0 %v2871
        %2970 = vmatpush1.bf16.msra.mxu0 %v2870
        %2971 = vmatprep.subr.bf16.mxu0 %v2873
        %2972 = vmatpush1.bf16.msra.mxu0 %v2872
        %2973 = vmatprep.subr.bf16.mxu0 %v2875
        %2974 = vmatpush1.bf16.msra.mxu0 %v2874
        %2975 = vmatprep.subr.bf16.mxu0 %v2877
        %2976 = vmatpush1.bf16.msra.mxu0 %v2876
        %2977 = vmatprep.subr.bf16.mxu0 %v2879
        %2978 = vmatpush1.bf16.msra.mxu0 %v2878
        %2979 = vmatprep.subr.bf16.mxu0 %v2881
        %2980 = vmatpush1.bf16.msra.mxu0 %v2880
        %2981 = vmatprep.subr.bf16.mxu0 %v2883
        %2982 = vmatpush1.bf16.msra.mxu0 %v2882
        %2983 = vmatprep.subr.bf16.mxu0 %v2885
        %2984 = vmatpush1.bf16.msra.mxu0 %v2884
        %2985 = vmatprep.subr.bf16.mxu0 %v2887
        %2986 = vmatpush1.bf16.msra.mxu0 %v2886
        %2987 = vmatprep.subr.bf16.mxu0 %v2889
        %2988 = vmatpush1.bf16.msra.mxu0 %v2888
        %2989 = vmatprep.subr.bf16.mxu0 %v2891
        %2990 = vmatpush1.bf16.msra.mxu0 %v2890
        %2991 = vmatprep.subr.bf16.mxu0 %v2893
        %2992 = vmatpush1.bf16.msra.mxu0 %v2892
        %2993 = vmatprep.subr.bf16.mxu0 %v2895
        %2994 = vmatpush1.bf16.msra.mxu0 %v2894
        %2995 = vmatprep.subr.bf16.mxu0 %v2897
        %2996 = vmatpush1.bf16.msra.mxu0 %v2896
        %2997 = vmatprep.subr.bf16.mxu0 0
        %2998 = vmatpush1.bf16.msra.mxu0 0
        %2999 = vmatprep.subr.bf16.mxu0 0
        %3000 = vmatpush1.bf16.msra.mxu0 0
        %3001 = vmatprep.mubr.bf16.mxu0 %v2928
        %3002 = vmatmul.mubr.bf16.gmra.mrb[0].mxu0 %v2309
        %v3003 = vpop.f32.mrb[0].mxu0
        %v3004 = vadd.f32 0.0, %v3003
        %v3005 = vpop.f32.mrb[0].mxu0
        %v3006 = vadd.f32 0.0, %v3005
        %v3007 = vpop.f32.mrb[0].mxu0
        %v3008 = vadd.f32 0.0, %v3007
        %v3009 = vpop.f32.mrb[0].mxu0
        %v3010 = vadd.f32 0.0, %v3009
        %3011 = vmatprep.mubr.bf16.mxu0 %v2931
        %3012 = vmatmul.mubr.bf16.gmra.mrb[0].mxu0 %v2311
        %v3013 = vpop.f32.mrb[0].mxu0
        %v3014 = vadd.f32 0.0, %v3013
        %v3015 = vpop.f32.mrb[0].mxu0
        %v3016 = vadd.f32 0.0, %v3015
        %v3017 = vpop.f32.mrb[0].mxu0
        %v3018 = vadd.f32 0.0, %v3017
        %v3019 = vpop.f32.mrb[0].mxu0
        %v3020 = vadd.f32 0.0, %v3019
        %3021 = vmatprep.mubr.bf16.mxu0 %v2934
        %3022 = vmatmul.mubr.bf16.gmra.mrb[0].mxu0 %v2313
        %v3023 = vpop.f32.mrb[0].mxu0
        %v3024 = vadd.f32 0.0, %v3023
        %v3025 = vpop.f32.mrb[0].mxu0
        %v3026 = vadd.f32 0.0, %v3025
        %v3027 = vpop.f32.mrb[0].mxu0
        %v3028 = vadd.f32 0.0, %v3027
        %v3029 = vpop.f32.mrb[0].mxu0
        %v3030 = vadd.f32 0.0, %v3029
        %3031 = vmatprep.mubr.bf16.mxu0 %v2937
        %3032 = vmatmul.mubr.bf16.gmra.mrb[0].mxu0 %v2315
        %v3033 = vpop.f32.mrb[0].mxu0
        %v3034 = vadd.f32 0.0, %v3033
        %v3035 = vpop.f32.mrb[0].mxu0
        %v3036 = vadd.f32 0.0, %v3035
        %v3037 = vpop.f32.mrb[0].mxu0
        %v3038 = vadd.f32 0.0, %v3037
        %v3039 = vpop.f32.mrb[0].mxu0
        %v3040 = vadd.f32 0.0, %v3039
        %3041 = vmatprep.mubr.bf16.mxu0 %v2940
        %3042 = vmatmul.mubr.bf16.gmra.mrb[0].mxu0 %v2317
        %v3043 = vpop.f32.mrb[0].mxu0
        %v3044 = vadd.f32 0.0, %v3043
        %v3045 = vpop.f32.mrb[0].mxu0
        %v3046 = vadd.f32 0.0, %v3045
        %v3047 = vpop.f32.mrb[0].mxu0
        %v3048 = vadd.f32 0.0, %v3047
        %v3049 = vpop.f32.mrb[0].mxu0
        %v3050 = vadd.f32 0.0, %v3049
        %3051 = vmatprep.mubr.bf16.mxu0 %v2943
        %3052 = vmatmul.mubr.bf16.gmra.mrb[0].mxu0 %v2319
        %v3053 = vpop.f32.mrb[0].mxu0
        %v3054 = vadd.f32 0.0, %v3053
        %v3055 = vpop.f32.mrb[0].mxu0
        %v3056 = vadd.f32 0.0, %v3055
        %v3057 = vpop.f32.mrb[0].mxu0
        %v3058 = vadd.f32 0.0, %v3057
        %v3059 = vpop.f32.mrb[0].mxu0
        %v3060 = vadd.f32 0.0, %v3059
        %3061 = vmatprep.mubr.bf16.mxu0 %v2946
        %3062 = vmatmul.mubr.bf16.gmra.mrb[0].mxu0 %v2321
        %v3063 = vpop.f32.mrb[0].mxu0
        %v3064 = vadd.f32 0.0, %v3063
        %v3065 = vpop.f32.mrb[0].mxu0
        %v3066 = vadd.f32 0.0, %v3065
        %v3067 = vpop.f32.mrb[0].mxu0
        %v3068 = vadd.f32 0.0, %v3067
        %v3069 = vpop.f32.mrb[0].mxu0
        %v3070 = vadd.f32 0.0, %v3069
        %3071 = vmatprep.mubr.bf16.mxu0 %v2949
        %3072 = vmatmul.mubr.bf16.gmra.mrb[0].mxu0 %v2323
        %v3073 = vpop.f32.mrb[0].mxu0
        %v3074 = vadd.f32 0.0, %v3073
        %v3075 = vpop.f32.mrb[0].mxu0
        %v3076 = vadd.f32 0.0, %v3075
        %v3077 = vpop.f32.mrb[0].mxu0
        %v3078 = vadd.f32 0.0, %v3077
        %v3079 = vpop.f32.mrb[0].mxu0
        %v3080 = vadd.f32 0.0, %v3079
        %3081 = vmatprep.mubr.bf16.mxu0 %v2952
        %3082 = vmatmul.mubr.bf16.gmra.mrb[0].mxu0 %v2325
        %v3083 = vpop.f32.mrb[0].mxu0
        %v3084 = vadd.f32 0.0, %v3083
        %v3085 = vpop.f32.mrb[0].mxu0
        %v3086 = vadd.f32 0.0, %v3085
        %v3087 = vpop.f32.mrb[0].mxu0
        %v3088 = vadd.f32 0.0, %v3087
        %v3089 = vpop.f32.mrb[0].mxu0
        %v3090 = vadd.f32 0.0, %v3089
        %3091 = vmatprep.mubr.bf16.mxu0 %v2955
        %3092 = vmatmul.mubr.bf16.gmra.mrb[0].mxu0 %v2327
        %v3093 = vpop.f32.mrb[0].mxu0
        %v3094 = vadd.f32 0.0, %v3093
        %v3095 = vpop.f32.mrb[0].mxu0
        %v3096 = vadd.f32 0.0, %v3095
        %v3097 = vpop.f32.mrb[0].mxu0
        %v3098 = vadd.f32 0.0, %v3097
        %v3099 = vpop.f32.mrb[0].mxu0
        %v3100 = vadd.f32 0.0, %v3099
        %3101 = vmatprep.mubr.bf16.mxu0 %v2958
        %3102 = vmatmul.mubr.bf16.gmra.mrb[0].mxu0 %v2329
        %v3103 = vpop.f32.mrb[0].mxu0
        %v3104 = vadd.f32 0.0, %v3103
        %v3105 = vpop.f32.mrb[0].mxu0
        %v3106 = vadd.f32 0.0, %v3105
        %v3107 = vpop.f32.mrb[0].mxu0
        %v3108 = vadd.f32 0.0, %v3107
        %v3109 = vpop.f32.mrb[0].mxu0
        %v3110 = vadd.f32 0.0, %v3109
        %3111 = vmatprep.mubr.bf16.mxu0 %v2961
        %3112 = vmatmul.mubr.bf16.gmra.mrb[0].mxu0 %v2331
        %v3113 = vpop.f32.mrb[0].mxu0
        %v3114 = vadd.f32 0.0, %v3113
        %v3115 = vpop.f32.mrb[0].mxu0
        %v3116 = vadd.f32 0.0, %v3115
        %v3117 = vpop.f32.mrb[0].mxu0
        %v3118 = vadd.f32 0.0, %v3117
        %v3119 = vpop.f32.mrb[0].mxu0
        %v3120 = vadd.f32 0.0, %v3119
        %3121 = vmatprep.mubr.bf16.mxu0 %v2964
        %3122 = vmatmul.mubr.bf16.gmra.mrb[0].mxu0 %v2333
        %v3123 = vpop.f32.mrb[0].mxu0
        %v3124 = vadd.f32 0.0, %v3123
        %v3125 = vpop.f32.mrb[0].mxu0
        %v3126 = vadd.f32 0.0, %v3125
        %v3127 = vpop.f32.mrb[0].mxu0
        %v3128 = vadd.f32 0.0, %v3127
        %v3129 = vpop.f32.mrb[0].mxu0
        %v3130 = vadd.f32 0.0, %v3129
        %3131 = vmatprep.mubr.bf16.mxu0 %v2967
        %3132 = vmatmul.mubr.bf16.gmra.mrb[0].mxu0 %v2335
        %v3133 = vpop.f32.mrb[0].mxu0
        %v3134 = vadd.f32 0.0, %v3133
        %v3135 = vpop.f32.mrb[0].mxu0
        %v3136 = vadd.f32 0.0, %v3135
        %v3137 = vpop.f32.mrb[0].mxu0
        %v3138 = vadd.f32 0.0, %v3137
        %v3139 = vpop.f32.mrb[0].mxu0
        %v3140 = vadd.f32 0.0, %v3139
        %3141 = vdwg.mxu0
        %v3170 = vunpack.c.l.b16 %v2729
        %v3171 = vunpack.c.h.b16 %v2729
        %v3172 = vunpack.c.l.b16 %v2730
        %v3173 = vunpack.c.h.b16 %v2730
        %v3174 = vunpack.c.l.b16 %v2731
        %v3175 = vunpack.c.h.b16 %v2731
        %v3176 = vunpack.c.l.b16 %v2732
        %v3177 = vunpack.c.h.b16 %v2732
        %v3178 = vunpack.c.l.b16 %v2733
        %v3179 = vunpack.c.h.b16 %v2733
        %v3180 = vunpack.c.l.b16 %v2734
        %v3181 = vunpack.c.h.b16 %v2734
        %v3182 = vunpack.c.l.b16 %v2735
        %v3183 = vunpack.c.h.b16 %v2735
        %v3184 = vunpack.c.l.b16 %v2736
        %v3185 = vunpack.c.h.b16 %v2736
        %v3186 = vunpack.c.l.b16 %v2737
        %v3187 = vunpack.c.h.b16 %v2737
        %v3188 = vunpack.c.l.b16 %v2738
        %v3189 = vunpack.c.h.b16 %v2738
        %v3190 = vunpack.c.l.b16 %v2739
        %v3191 = vunpack.c.h.b16 %v2739
        %v3192 = vunpack.c.l.b16 %v2740
        %v3193 = vunpack.c.h.b16 %v2740
        %v3194 = vunpack.c.l.b16 %v2741
        %v3195 = vunpack.c.h.b16 %v2741
        %v3196 = vunpack.c.l.b16 %v2742
        %v3197 = vunpack.c.h.b16 %v2742
        %v3198 = vunpack.c.l.b16 %v2743
        %v3199 = vunpack.c.h.b16 %v2743
        %v3200 = vunpack.c.l.b16 %v2744
        %v3201 = vunpack.c.h.b16 %v2744
        %v3202 = vunpack.c.l.b16 %v2745
        %v3203 = vunpack.c.h.b16 %v2745
        %v3204 = vunpack.c.l.b16 %v2746
        %v3205 = vunpack.c.h.b16 %v2746
        %v3206 = vunpack.c.l.b16 %v2747
        %v3207 = vunpack.c.h.b16 %v2747
        %v3208 = vunpack.c.l.b16 %v2748
        %v3209 = vunpack.c.h.b16 %v2748
        %v3210 = vunpack.c.l.b16 %v2749
        %v3211 = vunpack.c.h.b16 %v2749
        %v3212 = vunpack.c.l.b16 %v2750
        %v3213 = vunpack.c.h.b16 %v2750
        %v3214 = vunpack.c.l.b16 %v2751
        %v3215 = vunpack.c.h.b16 %v2751
        %v3216 = vunpack.c.l.b16 %v2752
        %v3217 = vunpack.c.h.b16 %v2752
        %v3218 = vunpack.c.l.b16 %v2753
        %v3219 = vunpack.c.h.b16 %v2753
        %v3220 = vunpack.c.l.b16 %v2754
        %v3221 = vunpack.c.h.b16 %v2754
        %v3222 = vunpack.c.l.b16 %v2755
        %v3223 = vunpack.c.h.b16 %v2755
        %v3224 = vunpack.c.l.b16 %v2756
        %v3225 = vunpack.c.h.b16 %v2756
        %v3226 = vpack.c.b16 %v3172, %v3170
        %v3227 = vpack.c.b16 %v3173, %v3171
        %v3228 = vpack.c.b16 %v3176, %v3174
        %v3229 = vpack.c.b16 %v3177, %v3175
        %v3230 = vpack.c.b16 %v3180, %v3178
        %v3231 = vpack.c.b16 %v3181, %v3179
        %v3232 = vpack.c.b16 %v3184, %v3182
        %v3233 = vpack.c.b16 %v3185, %v3183
        %v3234 = vpack.c.b16 %v3188, %v3186
        %v3235 = vpack.c.b16 %v3189, %v3187
        %v3236 = vpack.c.b16 %v3192, %v3190
        %v3237 = vpack.c.b16 %v3193, %v3191
        %v3238 = vpack.c.b16 %v3196, %v3194
        %v3239 = vpack.c.b16 %v3197, %v3195
        %v3240 = vpack.c.b16 %v3200, %v3198
        %v3241 = vpack.c.b16 %v3201, %v3199
        %v3242 = vpack.c.b16 %v3204, %v3202
        %v3243 = vpack.c.b16 %v3205, %v3203
        %v3244 = vpack.c.b16 %v3208, %v3206
        %v3245 = vpack.c.b16 %v3209, %v3207
        %v3246 = vpack.c.b16 %v3212, %v3210
        %v3247 = vpack.c.b16 %v3213, %v3211
        %v3248 = vpack.c.b16 %v3216, %v3214
        %v3249 = vpack.c.b16 %v3217, %v3215
        %v3250 = vpack.c.b16 %v3220, %v3218
        %v3251 = vpack.c.b16 %v3221, %v3219
        %v3252 = vpack.c.b16 %v3224, %v3222
        %v3253 = vpack.c.b16 %v3225, %v3223
        %v3283 = vsel %vm2926, %v2506, 0
        %v3286 = vsel %vm2926, %v2508, 0
        %v3289 = vsel %vm2926, %v2510, 0
        %v3292 = vsel %vm2926, %v2512, 0
        %v3295 = vsel %vm2926, %v2514, 0
        %v3298 = vsel %vm2926, %v2516, 0
        %v3301 = vsel %vm2926, %v2518, 0
        %v3304 = vsel %vm2926, %v2520, 0
        %v3307 = vsel %vm2926, %v2522, 0
        %v3310 = vsel %vm2926, %v2524, 0
        %v3313 = vsel %vm2926, %v2526, 0
        %v3316 = vsel %vm2926, %v2528, 0
        %v3319 = vsel %vm2926, %v2530, 0
        %v3322 = vsel %vm2926, %v2532, 0
        %3324 = vmatprep.subr.bf16.mxu0 %v3227
        %3325 = vmatpush1.bf16.msra.mxu0 %v3226
        %3326 = vmatprep.subr.bf16.mxu0 %v3229
        %3327 = vmatpush1.bf16.msra.mxu0 %v3228
        %3328 = vmatprep.subr.bf16.mxu0 %v3231
        %3329 = vmatpush1.bf16.msra.mxu0 %v3230
        %3330 = vmatprep.subr.bf16.mxu0 %v3233
        %3331 = vmatpush1.bf16.msra.mxu0 %v3232
        %3332 = vmatprep.subr.bf16.mxu0 %v3235
        %3333 = vmatpush1.bf16.msra.mxu0 %v3234
        %3334 = vmatprep.subr.bf16.mxu0 %v3237
        %3335 = vmatpush1.bf16.msra.mxu0 %v3236
        %3336 = vmatprep.subr.bf16.mxu0 %v3239
        %3337 = vmatpush1.bf16.msra.mxu0 %v3238
        %3338 = vmatprep.subr.bf16.mxu0 %v3241
        %3339 = vmatpush1.bf16.msra.mxu0 %v3240
        %3340 = vmatprep.subr.bf16.mxu0 %v3243
        %3341 = vmatpush1.bf16.msra.mxu0 %v3242
        %3342 = vmatprep.subr.bf16.mxu0 %v3245
        %3343 = vmatpush1.bf16.msra.mxu0 %v3244
        %3344 = vmatprep.subr.bf16.mxu0 %v3247
        %3345 = vmatpush1.bf16.msra.mxu0 %v3246
        %3346 = vmatprep.subr.bf16.mxu0 %v3249
        %3347 = vmatpush1.bf16.msra.mxu0 %v3248
        %3348 = vmatprep.subr.bf16.mxu0 %v3251
        %3349 = vmatpush1.bf16.msra.mxu0 %v3250
        %3350 = vmatprep.subr.bf16.mxu0 %v3253
        %3351 = vmatpush1.bf16.msra.mxu0 %v3252
        %3352 = vmatprep.subr.bf16.mxu0 0
        %3353 = vmatpush1.bf16.msra.mxu0 0
        %3354 = vmatprep.subr.bf16.mxu0 0
        %3355 = vmatpush1.bf16.msra.mxu0 0
        %3356 = vmatprep.mubr.bf16.mxu0 %v3283
        %3357 = vmatmul.mubr.bf16.gmra.mrb[0].mxu0 %v2505
        %v3358 = vpop.f32.mrb[0].mxu0
        %v3359 = vadd.f32 %v3004, %v3358
        %v3360 = vpop.f32.mrb[0].mxu0
        %v3361 = vadd.f32 %v3006, %v3360
        %v3362 = vpop.f32.mrb[0].mxu0
        %v3363 = vadd.f32 %v3008, %v3362
        %v3364 = vpop.f32.mrb[0].mxu0
        %v3365 = vadd.f32 %v3010, %v3364
        %3366 = vmatprep.mubr.bf16.mxu0 %v3286
        %3367 = vmatmul.mubr.bf16.gmra.mrb[0].mxu0 %v2507
        %v3368 = vpop.f32.mrb[0].mxu0
        %v3369 = vadd.f32 %v3014, %v3368
        %v3370 = vpop.f32.mrb[0].mxu0
        %v3371 = vadd.f32 %v3016, %v3370
        %v3372 = vpop.f32.mrb[0].mxu0
        %v3373 = vadd.f32 %v3018, %v3372
        %v3374 = vpop.f32.mrb[0].mxu0
        %v3375 = vadd.f32 %v3020, %v3374
        %3376 = vmatprep.mubr.bf16.mxu0 %v3289
        %3377 = vmatmul.mubr.bf16.gmra.mrb[0].mxu0 %v2509
        %v3378 = vpop.f32.mrb[0].mxu0
        %v3379 = vadd.f32 %v3024, %v3378
        %v3380 = vpop.f32.mrb[0].mxu0
        %v3381 = vadd.f32 %v3026, %v3380
        %v3382 = vpop.f32.mrb[0].mxu0
        %v3383 = vadd.f32 %v3028, %v3382
        %v3384 = vpop.f32.mrb[0].mxu0
        %v3385 = vadd.f32 %v3030, %v3384
        %3386 = vmatprep.mubr.bf16.mxu0 %v3292
        %3387 = vmatmul.mubr.bf16.gmra.mrb[0].mxu0 %v2511
        %v3388 = vpop.f32.mrb[0].mxu0
        %v3389 = vadd.f32 %v3034, %v3388
        %v3390 = vpop.f32.mrb[0].mxu0
        %v3391 = vadd.f32 %v3036, %v3390
        %v3392 = vpop.f32.mrb[0].mxu0
        %v3393 = vadd.f32 %v3038, %v3392
        %v3394 = vpop.f32.mrb[0].mxu0
        %v3395 = vadd.f32 %v3040, %v3394
        %3396 = vmatprep.mubr.bf16.mxu0 %v3295
        %3397 = vmatmul.mubr.bf16.gmra.mrb[0].mxu0 %v2513
        %v3398 = vpop.f32.mrb[0].mxu0
        %v3399 = vadd.f32 %v3044, %v3398
        %v3400 = vpop.f32.mrb[0].mxu0
        %v3401 = vadd.f32 %v3046, %v3400
        %v3402 = vpop.f32.mrb[0].mxu0
        %v3403 = vadd.f32 %v3048, %v3402
        %v3404 = vpop.f32.mrb[0].mxu0
        %v3405 = vadd.f32 %v3050, %v3404
        %3406 = vmatprep.mubr.bf16.mxu0 %v3298
        %3407 = vmatmul.mubr.bf16.gmra.mrb[0].mxu0 %v2515
        %v3408 = vpop.f32.mrb[0].mxu0
        %v3409 = vadd.f32 %v3054, %v3408
        %v3410 = vpop.f32.mrb[0].mxu0
        %v3411 = vadd.f32 %v3056, %v3410
        %v3412 = vpop.f32.mrb[0].mxu0
        %v3413 = vadd.f32 %v3058, %v3412
        %v3414 = vpop.f32.mrb[0].mxu0
        %v3415 = vadd.f32 %v3060, %v3414
        %3416 = vmatprep.mubr.bf16.mxu0 %v3301
        %3417 = vmatmul.mubr.bf16.gmra.mrb[0].mxu0 %v2517
        %v3418 = vpop.f32.mrb[0].mxu0
        %v3419 = vadd.f32 %v3064, %v3418
        %v3420 = vpop.f32.mrb[0].mxu0
        %v3421 = vadd.f32 %v3066, %v3420
        %v3422 = vpop.f32.mrb[0].mxu0
        %v3423 = vadd.f32 %v3068, %v3422
        %v3424 = vpop.f32.mrb[0].mxu0
        %v3425 = vadd.f32 %v3070, %v3424
        %3426 = vmatprep.mubr.bf16.mxu0 %v3304
        %3427 = vmatmul.mubr.bf16.gmra.mrb[0].mxu0 %v2519
        %v3428 = vpop.f32.mrb[0].mxu0
        %v3429 = vadd.f32 %v3074, %v3428
        %v3430 = vpop.f32.mrb[0].mxu0
        %v3431 = vadd.f32 %v3076, %v3430
        %v3432 = vpop.f32.mrb[0].mxu0
        %v3433 = vadd.f32 %v3078, %v3432
        %v3434 = vpop.f32.mrb[0].mxu0
        %v3435 = vadd.f32 %v3080, %v3434
        %3436 = vmatprep.mubr.bf16.mxu0 %v3307
        %3437 = vmatmul.mubr.bf16.gmra.mrb[0].mxu0 %v2521
        %v3438 = vpop.f32.mrb[0].mxu0
        %v3439 = vadd.f32 %v3084, %v3438
        %v3440 = vpop.f32.mrb[0].mxu0
        %v3441 = vadd.f32 %v3086, %v3440
        %v3442 = vpop.f32.mrb[0].mxu0
        %v3443 = vadd.f32 %v3088, %v3442
        %v3444 = vpop.f32.mrb[0].mxu0
        %v3445 = vadd.f32 %v3090, %v3444
        %3446 = vmatprep.mubr.bf16.mxu0 %v3310
        %3447 = vmatmul.mubr.bf16.gmra.mrb[0].mxu0 %v2523
        %v3448 = vpop.f32.mrb[0].mxu0
        %v3449 = vadd.f32 %v3094, %v3448
        %v3450 = vpop.f32.mrb[0].mxu0
        %v3451 = vadd.f32 %v3096, %v3450
        %v3452 = vpop.f32.mrb[0].mxu0
        %v3453 = vadd.f32 %v3098, %v3452
        %v3454 = vpop.f32.mrb[0].mxu0
        %v3455 = vadd.f32 %v3100, %v3454
        %3456 = vmatprep.mubr.bf16.mxu0 %v3313
        %3457 = vmatmul.mubr.bf16.gmra.mrb[0].mxu0 %v2525
        %v3458 = vpop.f32.mrb[0].mxu0
        %v3459 = vadd.f32 %v3104, %v3458
        %v3460 = vpop.f32.mrb[0].mxu0
        %v3461 = vadd.f32 %v3106, %v3460
        %v3462 = vpop.f32.mrb[0].mxu0
        %v3463 = vadd.f32 %v3108, %v3462
        %v3464 = vpop.f32.mrb[0].mxu0
        %v3465 = vadd.f32 %v3110, %v3464
        %3466 = vmatprep.mubr.bf16.mxu0 %v3316
        %3467 = vmatmul.mubr.bf16.gmra.mrb[0].mxu0 %v2527
        %v3468 = vpop.f32.mrb[0].mxu0
        %v3469 = vadd.f32 %v3114, %v3468
        %v3470 = vpop.f32.mrb[0].mxu0
        %v3471 = vadd.f32 %v3116, %v3470
        %v3472 = vpop.f32.mrb[0].mxu0
        %v3473 = vadd.f32 %v3118, %v3472
        %v3474 = vpop.f32.mrb[0].mxu0
        %v3475 = vadd.f32 %v3120, %v3474
        %3476 = vmatprep.mubr.bf16.mxu0 %v3319
        %3477 = vmatmul.mubr.bf16.gmra.mrb[0].mxu0 %v2529
        %v3478 = vpop.f32.mrb[0].mxu0
        %v3479 = vadd.f32 %v3124, %v3478
        %v3480 = vpop.f32.mrb[0].mxu0
        %v3481 = vadd.f32 %v3126, %v3480
        %v3482 = vpop.f32.mrb[0].mxu0
        %v3483 = vadd.f32 %v3128, %v3482
        %v3484 = vpop.f32.mrb[0].mxu0
        %v3485 = vadd.f32 %v3130, %v3484
        %3486 = vmatprep.mubr.bf16.mxu0 %v3322
        %3487 = vmatmul.mubr.bf16.gmra.mrb[0].mxu0 %v2531
        %v3488 = vpop.f32.mrb[0].mxu0
        %v3489 = vadd.f32 %v3134, %v3488
        %v3490 = vpop.f32.mrb[0].mxu0
        %v3491 = vadd.f32 %v3136, %v3490
        %v3492 = vpop.f32.mrb[0].mxu0
        %v3493 = vadd.f32 %v3138, %v3492
        %v3494 = vpop.f32.mrb[0].mxu0
        %v3495 = vadd.f32 %v3140, %v3494
        %3496 = vdwg.mxu0
        %s3497 = scalar_lea.vmem %s7, 448
        %v3498 = vld [vmem:[%s3497] sm:$0xff]
        %v3499 = vld [vmem:[%s3497 + $0x8] sm:$0xff]
        %v3500 = vld [vmem:[%s3497 + $0x10] sm:$0xff]
        %v3501 = vld [vmem:[%s3497 + $0x18] sm:$0xff]
        %v3502 = vld [vmem:[%s3497 + $0x20] sm:$0xff]
        %v3503 = vld [vmem:[%s3497 + $0x28] sm:$0xff]
        %v3504 = vld [vmem:[%s3497 + $0x30] sm:$0xff]
        %v3505 = vld [vmem:[%s3497 + $0x38] sm:$0xff]
        %v3506 = vld [vmem:[%s3497 + $0x40] sm:$0xff]
        %v3507 = vld [vmem:[%s3497 + $0x48] sm:$0xff]
        %v3508 = vld [vmem:[%s3497 + $0x50] sm:$0xff]
        %v3509 = vld [vmem:[%s3497 + $0x58] sm:$0xff]
        %v3510 = vld [vmem:[%s3497 + $0x60] sm:$0xff]
        %v3511 = vld [vmem:[%s3497 + $0x68] sm:$0xff]
        %v3512 = vld [vmem:[%s3497 + $0x70] sm:$0xff]
        %v3513 = vld [vmem:[%s3497 + $0x78] sm:$0xff]
        %v3514 = vld [vmem:[%s3497 + $0x80] sm:$0xff]
        %v3515 = vld [vmem:[%s3497 + $0x88] sm:$0xff]
        %v3516 = vld [vmem:[%s3497 + $0x90] sm:$0xff]
        %v3517 = vld [vmem:[%s3497 + $0x98] sm:$0xff]
        %v3518 = vld [vmem:[%s3497 + $0xa0] sm:$0xff]
        %v3519 = vld [vmem:[%s3497 + $0xa8] sm:$0xff]
        %v3520 = vld [vmem:[%s3497 + $0xb0] sm:$0xff]
        %v3521 = vld [vmem:[%s3497 + $0xb8] sm:$0xff]
        %v3522 = vld [vmem:[%s3497 + $0xc0] sm:$0xff]
        %v3523 = vld [vmem:[%s3497 + $0xc8] sm:$0xff]
        %v3524 = vld [vmem:[%s3497 + $0xd0] sm:$0xff]
        %v3525 = vld [vmem:[%s3497 + $0xd8] sm:$0xff]
        %v3554 = vunpack.c.l.b16 %v3498
        %v3555 = vunpack.c.h.b16 %v3498
        %v3556 = vunpack.c.l.b16 %v3499
        %v3557 = vunpack.c.h.b16 %v3499
        %v3558 = vunpack.c.l.b16 %v3500
        %v3559 = vunpack.c.h.b16 %v3500
        %v3560 = vunpack.c.l.b16 %v3501
        %v3561 = vunpack.c.h.b16 %v3501
        %v3562 = vunpack.c.l.b16 %v3502
        %v3563 = vunpack.c.h.b16 %v3502
        %v3564 = vunpack.c.l.b16 %v3503
        %v3565 = vunpack.c.h.b16 %v3503
        %v3566 = vunpack.c.l.b16 %v3504
        %v3567 = vunpack.c.h.b16 %v3504
        %v3568 = vunpack.c.l.b16 %v3505
        %v3569 = vunpack.c.h.b16 %v3505
        %v3570 = vunpack.c.l.b16 %v3506
        %v3571 = vunpack.c.h.b16 %v3506
        %v3572 = vunpack.c.l.b16 %v3507
        %v3573 = vunpack.c.h.b16 %v3507
        %v3574 = vunpack.c.l.b16 %v3508
        %v3575 = vunpack.c.h.b16 %v3508
        %v3576 = vunpack.c.l.b16 %v3509
        %v3577 = vunpack.c.h.b16 %v3509
        %v3578 = vunpack.c.l.b16 %v3510
        %v3579 = vunpack.c.h.b16 %v3510
        %v3580 = vunpack.c.l.b16 %v3511
        %v3581 = vunpack.c.h.b16 %v3511
        %v3582 = vunpack.c.l.b16 %v3512
        %v3583 = vunpack.c.h.b16 %v3512
        %v3584 = vunpack.c.l.b16 %v3513
        %v3585 = vunpack.c.h.b16 %v3513
        %v3586 = vunpack.c.l.b16 %v3514
        %v3587 = vunpack.c.h.b16 %v3514
        %v3588 = vunpack.c.l.b16 %v3515
        %v3589 = vunpack.c.h.b16 %v3515
        %v3590 = vunpack.c.l.b16 %v3516
        %v3591 = vunpack.c.h.b16 %v3516
        %v3592 = vunpack.c.l.b16 %v3517
        %v3593 = vunpack.c.h.b16 %v3517
        %v3594 = vunpack.c.l.b16 %v3518
        %v3595 = vunpack.c.h.b16 %v3518
        %v3596 = vunpack.c.l.b16 %v3519
        %v3597 = vunpack.c.h.b16 %v3519
        %v3598 = vunpack.c.l.b16 %v3520
        %v3599 = vunpack.c.h.b16 %v3520
        %v3600 = vunpack.c.l.b16 %v3521
        %v3601 = vunpack.c.h.b16 %v3521
        %v3602 = vunpack.c.l.b16 %v3522
        %v3603 = vunpack.c.h.b16 %v3522
        %v3604 = vunpack.c.l.b16 %v3523
        %v3605 = vunpack.c.h.b16 %v3523
        %v3606 = vunpack.c.l.b16 %v3524
        %v3607 = vunpack.c.h.b16 %v3524
        %v3608 = vunpack.c.l.b16 %v3525
        %v3609 = vunpack.c.h.b16 %v3525
        %v3610 = vpack.c.b16 %v3556, %v3554
        %v3611 = vpack.c.b16 %v3557, %v3555
        %v3612 = vpack.c.b16 %v3560, %v3558
        %v3613 = vpack.c.b16 %v3561, %v3559
        %v3614 = vpack.c.b16 %v3564, %v3562
        %v3615 = vpack.c.b16 %v3565, %v3563
        %v3616 = vpack.c.b16 %v3568, %v3566
        %v3617 = vpack.c.b16 %v3569, %v3567
        %v3618 = vpack.c.b16 %v3572, %v3570
        %v3619 = vpack.c.b16 %v3573, %v3571
        %v3620 = vpack.c.b16 %v3576, %v3574
        %v3621 = vpack.c.b16 %v3577, %v3575
        %v3622 = vpack.c.b16 %v3580, %v3578
        %v3623 = vpack.c.b16 %v3581, %v3579
        %v3624 = vpack.c.b16 %v3584, %v3582
        %v3625 = vpack.c.b16 %v3585, %v3583
        %v3626 = vpack.c.b16 %v3588, %v3586
        %v3627 = vpack.c.b16 %v3589, %v3587
        %v3628 = vpack.c.b16 %v3592, %v3590
        %v3629 = vpack.c.b16 %v3593, %v3591
        %v3630 = vpack.c.b16 %v3596, %v3594
        %v3631 = vpack.c.b16 %v3597, %v3595
        %v3632 = vpack.c.b16 %v3600, %v3598
        %v3633 = vpack.c.b16 %v3601, %v3599
        %v3634 = vpack.c.b16 %v3604, %v3602
        %v3635 = vpack.c.b16 %v3605, %v3603
        %v3636 = vpack.c.b16 %v3608, %v3606
        %v3637 = vpack.c.b16 %v3609, %v3607
        %v3667 = vsel %vm2926, %v2702, 0
        %v3670 = vsel %vm2926, %v2704, 0
        %v3673 = vsel %vm2926, %v2706, 0
        %v3676 = vsel %vm2926, %v2708, 0
        %v3679 = vsel %vm2926, %v2710, 0
        %v3682 = vsel %vm2926, %v2712, 0
        %v3685 = vsel %vm2926, %v2714, 0
        %v3688 = vsel %vm2926, %v2716, 0
        %v3691 = vsel %vm2926, %v2718, 0
        %v3694 = vsel %vm2926, %v2720, 0
        %v3697 = vsel %vm2926, %v2722, 0
        %v3700 = vsel %vm2926, %v2724, 0
        %v3703 = vsel %vm2926, %v2726, 0
        %v3706 = vsel %vm2926, %v2728, 0
        %3708 = vmatprep.subr.bf16.mxu0 %v3611
        %3709 = vmatpush1.bf16.msra.mxu0 %v3610
        %3710 = vmatprep.subr.bf16.mxu0 %v3613
        %3711 = vmatpush1.bf16.msra.mxu0 %v3612
        %3712 = vmatprep.subr.bf16.mxu0 %v3615
        %3713 = vmatpush1.bf16.msra.mxu0 %v3614
        %3714 = vmatprep.subr.bf16.mxu0 %v3617
        %3715 = vmatpush1.bf16.msra.mxu0 %v3616
        %3716 = vmatprep.subr.bf16.mxu0 %v3619
        %3717 = vmatpush1.bf16.msra.mxu0 %v3618
        %3718 = vmatprep.subr.bf16.mxu0 %v3621
        %3719 = vmatpush1.bf16.msra.mxu0 %v3620
        %3720 = vmatprep.subr.bf16.mxu0 %v3623
        %3721 = vmatpush1.bf16.msra.mxu0 %v3622
        %3722 = vmatprep.subr.bf16.mxu0 %v3625
        %3723 = vmatpush1.bf16.msra.mxu0 %v3624
        %3724 = vmatprep.subr.bf16.mxu0 %v3627
        %3725 = vmatpush1.bf16.msra.mxu0 %v3626
        %3726 = vmatprep.subr.bf16.mxu0 %v3629
        %3727 = vmatpush1.bf16.msra.mxu0 %v3628
        %3728 = vmatprep.subr.bf16.mxu0 %v3631
        %3729 = vmatpush1.bf16.msra.mxu0 %v3630
        %3730 = vmatprep.subr.bf16.mxu0 %v3633
        %3731 = vmatpush1.bf16.msra.mxu0 %v3632
        %3732 = vmatprep.subr.bf16.mxu0 %v3635
        %3733 = vmatpush1.bf16.msra.mxu0 %v3634
        %3734 = vmatprep.subr.bf16.mxu0 %v3637
        %3735 = vmatpush1.bf16.msra.mxu0 %v3636
        %3736 = vmatprep.subr.bf16.mxu0 0
        %3737 = vmatpush1.bf16.msra.mxu0 0
        %3738 = vmatprep.subr.bf16.mxu0 0
        %3739 = vmatpush1.bf16.msra.mxu0 0
        %3740 = vmatprep.mubr.bf16.mxu0 %v3667
        %3741 = vmatmul.mubr.bf16.gmra.mrb[0].mxu0 %v2701
        %v3742 = vpop.f32.mrb[0].mxu0
        %v3743 = vadd.f32 0.0, %v3742
        %v3744 = vpop.f32.mrb[0].mxu0
        %v3745 = vadd.f32 0.0, %v3744
        %v3746 = vpop.f32.mrb[0].mxu0
        %v3747 = vadd.f32 0.0, %v3746
        %v3748 = vpop.f32.mrb[0].mxu0
        %v3749 = vadd.f32 0.0, %v3748
        %3750 = vmatprep.mubr.bf16.mxu0 %v3670
        %3751 = vmatmul.mubr.bf16.gmra.mrb[0].mxu0 %v2703
        %v3752 = vpop.f32.mrb[0].mxu0
        %v3753 = vadd.f32 0.0, %v3752
        %v3754 = vpop.f32.mrb[0].mxu0
        %v3755 = vadd.f32 0.0, %v3754
        %v3756 = vpop.f32.mrb[0].mxu0
        %v3757 = vadd.f32 0.0, %v3756
        %v3758 = vpop.f32.mrb[0].mxu0
        %v3759 = vadd.f32 0.0, %v3758
        %3760 = vmatprep.mubr.bf16.mxu0 %v3673
        %3761 = vmatmul.mubr.bf16.gmra.mrb[0].mxu0 %v2705
        %v3762 = vpop.f32.mrb[0].mxu0
        %v3763 = vadd.f32 0.0, %v3762
        %v3764 = vpop.f32.mrb[0].mxu0
        %v3765 = vadd.f32 0.0, %v3764
        %v3766 = vpop.f32.mrb[0].mxu0
        %v3767 = vadd.f32 0.0, %v3766
        %v3768 = vpop.f32.mrb[0].mxu0
        %v3769 = vadd.f32 0.0, %v3768
        %3770 = vmatprep.mubr.bf16.mxu0 %v3676
        %3771 = vmatmul.mubr.bf16.gmra.mrb[0].mxu0 %v2707
        %v3772 = vpop.f32.mrb[0].mxu0
        %v3773 = vadd.f32 0.0, %v3772
        %v3774 = vpop.f32.mrb[0].mxu0
        %v3775 = vadd.f32 0.0, %v3774
        %v3776 = vpop.f32.mrb[0].mxu0
        %v3777 = vadd.f32 0.0, %v3776
        %v3778 = vpop.f32.mrb[0].mxu0
        %v3779 = vadd.f32 0.0, %v3778
        %3780 = vmatprep.mubr.bf16.mxu0 %v3679
        %3781 = vmatmul.mubr.bf16.gmra.mrb[0].mxu0 %v2709
        %v3782 = vpop.f32.mrb[0].mxu0
        %v3783 = vadd.f32 0.0, %v3782
        %v3784 = vpop.f32.mrb[0].mxu0
        %v3785 = vadd.f32 0.0, %v3784
        %v3786 = vpop.f32.mrb[0].mxu0
        %v3787 = vadd.f32 0.0, %v3786
        %v3788 = vpop.f32.mrb[0].mxu0
        %v3789 = vadd.f32 0.0, %v3788
        %3790 = vmatprep.mubr.bf16.mxu0 %v3682
        %3791 = vmatmul.mubr.bf16.gmra.mrb[0].mxu0 %v2711
        %v3792 = vpop.f32.mrb[0].mxu0
        %v3793 = vadd.f32 0.0, %v3792
        %v3794 = vpop.f32.mrb[0].mxu0
        %v3795 = vadd.f32 0.0, %v3794
        %v3796 = vpop.f32.mrb[0].mxu0
        %v3797 = vadd.f32 0.0, %v3796
        %v3798 = vpop.f32.mrb[0].mxu0
        %v3799 = vadd.f32 0.0, %v3798
        %3800 = vmatprep.mubr.bf16.mxu0 %v3685
        %3801 = vmatmul.mubr.bf16.gmra.mrb[0].mxu0 %v2713
        %v3802 = vpop.f32.mrb[0].mxu0
        %v3803 = vadd.f32 0.0, %v3802
        %v3804 = vpop.f32.mrb[0].mxu0
        %v3805 = vadd.f32 0.0, %v3804
        %v3806 = vpop.f32.mrb[0].mxu0
        %v3807 = vadd.f32 0.0, %v3806
        %v3808 = vpop.f32.mrb[0].mxu0
        %v3809 = vadd.f32 0.0, %v3808
        %3810 = vmatprep.mubr.bf16.mxu0 %v3688
        %3811 = vmatmul.mubr.bf16.gmra.mrb[0].mxu0 %v2715
        %v3812 = vpop.f32.mrb[0].mxu0
        %v3813 = vadd.f32 0.0, %v3812
        %v3814 = vpop.f32.mrb[0].mxu0
        %v3815 = vadd.f32 0.0, %v3814
        %v3816 = vpop.f32.mrb[0].mxu0
        %v3817 = vadd.f32 0.0, %v3816
        %v3818 = vpop.f32.mrb[0].mxu0
        %v3819 = vadd.f32 0.0, %v3818
        %3820 = vmatprep.mubr.bf16.mxu0 %v3691
        %3821 = vmatmul.mubr.bf16.gmra.mrb[0].mxu0 %v2717
        %v3822 = vpop.f32.mrb[0].mxu0
        %v3823 = vadd.f32 0.0, %v3822
        %v3824 = vpop.f32.mrb[0].mxu0
        %v3825 = vadd.f32 0.0, %v3824
        %v3826 = vpop.f32.mrb[0].mxu0
        %v3827 = vadd.f32 0.0, %v3826
        %v3828 = vpop.f32.mrb[0].mxu0
        %v3829 = vadd.f32 0.0, %v3828
        %3830 = vmatprep.mubr.bf16.mxu0 %v3694
        %3831 = vmatmul.mubr.bf16.gmra.mrb[0].mxu0 %v2719
        %v3832 = vpop.f32.mrb[0].mxu0
        %v3833 = vadd.f32 0.0, %v3832
        %v3834 = vpop.f32.mrb[0].mxu0
        %v3835 = vadd.f32 0.0, %v3834
        %v3836 = vpop.f32.mrb[0].mxu0
        %v3837 = vadd.f32 0.0, %v3836
        %v3838 = vpop.f32.mrb[0].mxu0
        %v3839 = vadd.f32 0.0, %v3838
        %3840 = vmatprep.mubr.bf16.mxu0 %v3697
        %3841 = vmatmul.mubr.bf16.gmra.mrb[0].mxu0 %v2721
        %v3842 = vpop.f32.mrb[0].mxu0
        %v3843 = vadd.f32 0.0, %v3842
        %v3844 = vpop.f32.mrb[0].mxu0
        %v3845 = vadd.f32 0.0, %v3844
        %v3846 = vpop.f32.mrb[0].mxu0
        %v3847 = vadd.f32 0.0, %v3846
        %v3848 = vpop.f32.mrb[0].mxu0
        %v3849 = vadd.f32 0.0, %v3848
        %3850 = vmatprep.mubr.bf16.mxu0 %v3700
        %3851 = vmatmul.mubr.bf16.gmra.mrb[0].mxu0 %v2723
        %v3852 = vpop.f32.mrb[0].mxu0
        %v3853 = vadd.f32 0.0, %v3852
        %v3854 = vpop.f32.mrb[0].mxu0
        %v3855 = vadd.f32 0.0, %v3854
        %v3856 = vpop.f32.mrb[0].mxu0
        %v3857 = vadd.f32 0.0, %v3856
        %v3858 = vpop.f32.mrb[0].mxu0
        %v3859 = vadd.f32 0.0, %v3858
        %3860 = vmatprep.mubr.bf16.mxu0 %v3703
        %3861 = vmatmul.mubr.bf16.gmra.mrb[0].mxu0 %v2725
        %v3862 = vpop.f32.mrb[0].mxu0
        %v3863 = vadd.f32 0.0, %v3862
        %v3864 = vpop.f32.mrb[0].mxu0
        %v3865 = vadd.f32 0.0, %v3864
        %v3866 = vpop.f32.mrb[0].mxu0
        %v3867 = vadd.f32 0.0, %v3866
        %v3868 = vpop.f32.mrb[0].mxu0
        %v3869 = vadd.f32 0.0, %v3868
        %3870 = vmatprep.mubr.bf16.mxu0 %v3706
        %3871 = vmatmul.mubr.bf16.gmra.mrb[0].mxu0 %v2727
        %v3872 = vpop.f32.mrb[0].mxu0
        %v3873 = vadd.f32 0.0, %v3872
        %v3874 = vpop.f32.mrb[0].mxu0
        %v3875 = vadd.f32 0.0, %v3874
        %v3876 = vpop.f32.mrb[0].mxu0
        %v3877 = vadd.f32 0.0, %v3876
        %v3878 = vpop.f32.mrb[0].mxu0
        %v3879 = vadd.f32 0.0, %v3878
        %3880 = vdwg.mxu0
        %v3881 = vadd.f32 %v3359, %v3743
        %v3882 = vadd.f32 %v3361, %v3745
        %v3883 = vadd.f32 %v3363, %v3747
        %v3884 = vadd.f32 %v3365, %v3749
        %v3885 = vadd.f32 %v3369, %v3753
        %v3886 = vadd.f32 %v3371, %v3755
        %v3887 = vadd.f32 %v3373, %v3757
        %v3888 = vadd.f32 %v3375, %v3759
        %v3889 = vadd.f32 %v3379, %v3763
        %v3890 = vadd.f32 %v3381, %v3765
        %v3891 = vadd.f32 %v3383, %v3767
        %v3892 = vadd.f32 %v3385, %v3769
        %v3893 = vadd.f32 %v3389, %v3773
        %v3894 = vadd.f32 %v3391, %v3775
        %v3895 = vadd.f32 %v3393, %v3777
        %v3896 = vadd.f32 %v3395, %v3779
        %v3897 = vadd.f32 %v3399, %v3783
        %v3898 = vadd.f32 %v3401, %v3785
        %v3899 = vadd.f32 %v3403, %v3787
        %v3900 = vadd.f32 %v3405, %v3789
        %v3901 = vadd.f32 %v3409, %v3793
        %v3902 = vadd.f32 %v3411, %v3795
        %v3903 = vadd.f32 %v3413, %v3797
        %v3904 = vadd.f32 %v3415, %v3799
        %v3905 = vadd.f32 %v3419, %v3803
        %v3906 = vadd.f32 %v3421, %v3805
        %v3907 = vadd.f32 %v3423, %v3807
        %v3908 = vadd.f32 %v3425, %v3809
        %v3909 = vadd.f32 %v3429, %v3813
        %v3910 = vadd.f32 %v3431, %v3815
        %v3911 = vadd.f32 %v3433, %v3817
        %v3912 = vadd.f32 %v3435, %v3819
        %v3913 = vadd.f32 %v3439, %v3823
        %v3914 = vadd.f32 %v3441, %v3825
        %v3915 = vadd.f32 %v3443, %v3827
        %v3916 = vadd.f32 %v3445, %v3829
        %v3917 = vadd.f32 %v3449, %v3833
        %v3918 = vadd.f32 %v3451, %v3835
        %v3919 = vadd.f32 %v3453, %v3837
        %v3920 = vadd.f32 %v3455, %v3839
        %v3921 = vadd.f32 %v3459, %v3843
        %v3922 = vadd.f32 %v3461, %v3845
        %v3923 = vadd.f32 %v3463, %v3847
        %v3924 = vadd.f32 %v3465, %v3849
        %v3925 = vadd.f32 %v3469, %v3853
        %v3926 = vadd.f32 %v3471, %v3855
        %v3927 = vadd.f32 %v3473, %v3857
        %v3928 = vadd.f32 %v3475, %v3859
        %v3929 = vadd.f32 %v3479, %v3863
        %v3930 = vadd.f32 %v3481, %v3865
        %v3931 = vadd.f32 %v3483, %v3867
        %v3932 = vadd.f32 %v3485, %v3869
        %v3933 = vadd.f32 %v3489, %v3873
        %v3934 = vadd.f32 %v3491, %v3875
        %v3935 = vadd.f32 %v3493, %v3877
        %v3936 = vadd.f32 %v3495, %v3879
        %v3937 = vld [vmem:[%s8] sm:$0x3]
        %v3939 = vlaneseq
        %v3940 = vshrl.u32 %v3939, 7
        %v3941 = vsub.s32 0, %v3940
        %v3942 = vrot.slane %v3937, %v3941
        %v3943 = vlaneseq
        %v3944 = vshrl.u32 %v3943, 7
        %v3945 = vsub.s32 1, %v3944
        %v3946 = vrot.slane %v3937, %v3945
        %v3949 = vadd.f32 %v3881, %v3942
        %v3950 = vadd.f32 %v3882, %v3946
        %v3951 = vadd.f32 %v3883, %v3942
        %v3952 = vadd.f32 %v3884, %v3946
        %v3953 = vadd.f32 %v3885, %v3942
        %v3954 = vadd.f32 %v3886, %v3946
        %v3955 = vadd.f32 %v3887, %v3942
        %v3956 = vadd.f32 %v3888, %v3946
        %v3957 = vadd.f32 %v3889, %v3942
        %v3958 = vadd.f32 %v3890, %v3946
        %v3959 = vadd.f32 %v3891, %v3942
        %v3960 = vadd.f32 %v3892, %v3946
        %v3961 = vadd.f32 %v3893, %v3942
        %v3962 = vadd.f32 %v3894, %v3946
        %v3963 = vadd.f32 %v3895, %v3942
        %v3964 = vadd.f32 %v3896, %v3946
        %v3965 = vadd.f32 %v3897, %v3942
        %v3966 = vadd.f32 %v3898, %v3946
        %v3967 = vadd.f32 %v3899, %v3942
        %v3968 = vadd.f32 %v3900, %v3946
        %v3969 = vadd.f32 %v3901, %v3942
        %v3970 = vadd.f32 %v3902, %v3946
        %v3971 = vadd.f32 %v3903, %v3942
        %v3972 = vadd.f32 %v3904, %v3946
        %v3973 = vadd.f32 %v3905, %v3942
        %v3974 = vadd.f32 %v3906, %v3946
        %v3975 = vadd.f32 %v3907, %v3942
        %v3976 = vadd.f32 %v3908, %v3946
        %v3977 = vadd.f32 %v3909, %v3942
        %v3978 = vadd.f32 %v3910, %v3946
        %v3979 = vadd.f32 %v3911, %v3942
        %v3980 = vadd.f32 %v3912, %v3946
        %v3981 = vadd.f32 %v3913, %v3942
        %v3982 = vadd.f32 %v3914, %v3946
        %v3983 = vadd.f32 %v3915, %v3942
        %v3984 = vadd.f32 %v3916, %v3946
        %v3985 = vadd.f32 %v3917, %v3942
        %v3986 = vadd.f32 %v3918, %v3946
        %v3987 = vadd.f32 %v3919, %v3942
        %v3988 = vadd.f32 %v3920, %v3946
        %v3989 = vadd.f32 %v3921, %v3942
        %v3990 = vadd.f32 %v3922, %v3946
        %v3991 = vadd.f32 %v3923, %v3942
        %v3992 = vadd.f32 %v3924, %v3946
        %v3993 = vadd.f32 %v3925, %v3942
        %v3994 = vadd.f32 %v3926, %v3946
        %v3995 = vadd.f32 %v3927, %v3942
        %v3996 = vadd.f32 %v3928, %v3946
        %v3997 = vadd.f32 %v3929, %v3942
        %v3998 = vadd.f32 %v3930, %v3946
        %v3999 = vadd.f32 %v3931, %v3942
        %v4000 = vadd.f32 %v3932, %v3946
        %v4001 = vadd.f32 %v3933, %v3942
        %v4002 = vadd.f32 %v3934, %v3946
        %v4003 = vadd.f32 %v3935, %v3942
        %v4004 = vadd.f32 %v3936, %v3946
        %v4005 = vmax.f32 %v3949, 0.0
        %v4006 = vmax.f32 %v3950, 0.0
        %v4007 = vmax.f32 %v3951, 0.0
        %v4008 = vmax.f32 %v3952, 0.0
        %v4009 = vmax.f32 %v3953, 0.0
        %v4010 = vmax.f32 %v3954, 0.0
        %v4011 = vmax.f32 %v3955, 0.0
        %v4012 = vmax.f32 %v3956, 0.0
        %v4013 = vmax.f32 %v3957, 0.0
        %v4014 = vmax.f32 %v3958, 0.0
        %v4015 = vmax.f32 %v3959, 0.0
        %v4016 = vmax.f32 %v3960, 0.0
        %v4017 = vmax.f32 %v3961, 0.0
        %v4018 = vmax.f32 %v3962, 0.0
        %v4019 = vmax.f32 %v3963, 0.0
        %v4020 = vmax.f32 %v3964, 0.0
        %v4021 = vmax.f32 %v3965, 0.0
        %v4022 = vmax.f32 %v3966, 0.0
        %v4023 = vmax.f32 %v3967, 0.0
        %v4024 = vmax.f32 %v3968, 0.0
        %v4025 = vmax.f32 %v3969, 0.0
        %v4026 = vmax.f32 %v3970, 0.0
        %v4027 = vmax.f32 %v3971, 0.0
        %v4028 = vmax.f32 %v3972, 0.0
        %v4029 = vmax.f32 %v3973, 0.0
        %v4030 = vmax.f32 %v3974, 0.0
        %v4031 = vmax.f32 %v3975, 0.0
        %v4032 = vmax.f32 %v3976, 0.0
        %v4033 = vmax.f32 %v3977, 0.0
        %v4034 = vmax.f32 %v3978, 0.0
        %v4035 = vmax.f32 %v3979, 0.0
        %v4036 = vmax.f32 %v3980, 0.0
        %v4037 = vmax.f32 %v3981, 0.0
        %v4038 = vmax.f32 %v3982, 0.0
        %v4039 = vmax.f32 %v3983, 0.0
        %v4040 = vmax.f32 %v3984, 0.0
        %v4041 = vmax.f32 %v3985, 0.0
        %v4042 = vmax.f32 %v3986, 0.0
        %v4043 = vmax.f32 %v3987, 0.0
        %v4044 = vmax.f32 %v3988, 0.0
        %v4045 = vmax.f32 %v3989, 0.0
        %v4046 = vmax.f32 %v3990, 0.0
        %v4047 = vmax.f32 %v3991, 0.0
        %v4048 = vmax.f32 %v3992, 0.0
        %v4049 = vmax.f32 %v3993, 0.0
        %v4050 = vmax.f32 %v3994, 0.0
        %v4051 = vmax.f32 %v3995, 0.0
        %v4052 = vmax.f32 %v3996, 0.0
        %v4053 = vmax.f32 %v3997, 0.0
        %v4054 = vmax.f32 %v3998, 0.0
        %v4055 = vmax.f32 %v3999, 0.0
        %v4056 = vmax.f32 %v4000, 0.0
        %v4057 = vmax.f32 %v4001, 0.0
        %v4058 = vmax.f32 %v4002, 0.0
        %v4059 = vmax.f32 %v4003, 0.0
        %v4060 = vmax.f32 %v4004, 0.0
        %v4061 = vpack.c.bf16 %v4007, %v4005
        %v4062 = vpack.c.bf16 %v4008, %v4006
        %v4063 = vpack.c.bf16 %v4011, %v4009
        %v4064 = vpack.c.bf16 %v4012, %v4010
        %v4065 = vpack.c.bf16 %v4015, %v4013
        %v4066 = vpack.c.bf16 %v4016, %v4014
        %v4067 = vpack.c.bf16 %v4019, %v4017
        %v4068 = vpack.c.bf16 %v4020, %v4018
        %v4069 = vpack.c.bf16 %v4023, %v4021
        %v4070 = vpack.c.bf16 %v4024, %v4022
        %v4071 = vpack.c.bf16 %v4027, %v4025
        %v4072 = vpack.c.bf16 %v4028, %v4026
        %v4073 = vpack.c.bf16 %v4031, %v4029
        %v4074 = vpack.c.bf16 %v4032, %v4030
        %v4075 = vpack.c.bf16 %v4035, %v4033
        %v4076 = vpack.c.bf16 %v4036, %v4034
        %v4077 = vpack.c.bf16 %v4039, %v4037
        %v4078 = vpack.c.bf16 %v4040, %v4038
        %v4079 = vpack.c.bf16 %v4043, %v4041
        %v4080 = vpack.c.bf16 %v4044, %v4042
        %v4081 = vpack.c.bf16 %v4047, %v4045
        %v4082 = vpack.c.bf16 %v4048, %v4046
        %v4083 = vpack.c.bf16 %v4051, %v4049
        %v4084 = vpack.c.bf16 %v4052, %v4050
        %v4085 = vpack.c.bf16 %v4055, %v4053
        %v4086 = vpack.c.bf16 %v4056, %v4054
        %v4087 = vpack.c.bf16 %v4059, %v4057
        %v4088 = vpack.c.bf16 %v4060, %v4058
        %v4089 = vld [vmem:[%s13] sm:$0xf]
        %v4090 = vld [vmem:[%s13 + $0x4] sm:$0xf]
        %v4091 = vld [vmem:[%s13 + $0x8] sm:$0xf]
        %v4092 = vld [vmem:[%s13 + $0xc] sm:$0xf]
        %v4093 = vld [vmem:[%s13 + $0x10] sm:$0xf]
        %v4094 = vld [vmem:[%s13 + $0x14] sm:$0xf]
        %v4095 = vld [vmem:[%s13 + $0x18] sm:$0xf]
        %v4096 = vld [vmem:[%s13 + $0x1c] sm:$0xf]
        %v4097 = vld [vmem:[%s13 + $0x20] sm:$0xf]
        %v4098 = vld [vmem:[%s13 + $0x24] sm:$0xf]
        %v4099 = vld [vmem:[%s13 + $0x28] sm:$0xf]
        %v4100 = vld [vmem:[%s13 + $0x2c] sm:$0xf]
        %v4101 = vld [vmem:[%s13 + $0x30] sm:$0xf]
        %v4102 = vld [vmem:[%s13 + $0x34] sm:$0xf]
        %v4103 = vld [vmem:[%s13 + $0x38] sm:$0xf]
        %v4104 = vld [vmem:[%s13 + $0x3c] sm:$0xf]
        %v4105 = vld [vmem:[%s13 + $0x40] sm:$0xf]
        %v4106 = vld [vmem:[%s13 + $0x44] sm:$0xf]
        %v4107 = vld [vmem:[%s13 + $0x48] sm:$0xf]
        %v4108 = vld [vmem:[%s13 + $0x4c] sm:$0xf]
        %v4109 = vld [vmem:[%s13 + $0x50] sm:$0xf]
        %v4110 = vld [vmem:[%s13 + $0x54] sm:$0xf]
        %v4111 = vld [vmem:[%s13 + $0x58] sm:$0xf]
        %v4112 = vld [vmem:[%s13 + $0x5c] sm:$0xf]
        %v4113 = vld [vmem:[%s13 + $0x60] sm:$0xf]
        %v4114 = vld [vmem:[%s13 + $0x64] sm:$0xf]
        %v4115 = vld [vmem:[%s13 + $0x68] sm:$0xf]
        %v4116 = vld [vmem:[%s13 + $0x6c] sm:$0xf]
        %v4145 = vunpack.c.l.b16 %v4089
        %v4146 = vunpack.c.l.b16 %v4090
        %v4147 = vunpack.c.l.b16 %v4091
        %v4148 = vunpack.c.l.b16 %v4092
        %v4149 = vunpack.c.l.b16 %v4093
        %v4150 = vunpack.c.l.b16 %v4094
        %v4151 = vunpack.c.l.b16 %v4095
        %v4152 = vunpack.c.l.b16 %v4096
        %v4153 = vunpack.c.l.b16 %v4097
        %v4154 = vunpack.c.l.b16 %v4098
        %v4155 = vunpack.c.l.b16 %v4099
        %v4156 = vunpack.c.l.b16 %v4100
        %v4157 = vunpack.c.l.b16 %v4101
        %v4158 = vunpack.c.l.b16 %v4102
        %v4159 = vunpack.c.l.b16 %v4103
        %v4160 = vunpack.c.l.b16 %v4104
        %v4161 = vunpack.c.l.b16 %v4105
        %v4162 = vunpack.c.l.b16 %v4106
        %v4163 = vunpack.c.l.b16 %v4107
        %v4164 = vunpack.c.l.b16 %v4108
        %v4165 = vunpack.c.l.b16 %v4109
        %v4166 = vunpack.c.l.b16 %v4110
        %v4167 = vunpack.c.l.b16 %v4111
        %v4168 = vunpack.c.l.b16 %v4112
        %v4169 = vunpack.c.l.b16 %v4113
        %v4170 = vunpack.c.l.b16 %v4114
        %v4171 = vunpack.c.l.b16 %v4115
        %v4172 = vunpack.c.l.b16 %v4116
        %v4173 = vpack.c.b16 %v4146, %v4145
        %v4174 = vpack.c.b16 %v4148, %v4147
        %v4175 = vpack.c.b16 %v4150, %v4149
        %v4176 = vpack.c.b16 %v4152, %v4151
        %v4177 = vpack.c.b16 %v4154, %v4153
        %v4178 = vpack.c.b16 %v4156, %v4155
        %v4179 = vpack.c.b16 %v4158, %v4157
        %v4180 = vpack.c.b16 %v4160, %v4159
        %v4181 = vpack.c.b16 %v4162, %v4161
        %v4182 = vpack.c.b16 %v4164, %v4163
        %v4183 = vpack.c.b16 %v4166, %v4165
        %v4184 = vpack.c.b16 %v4168, %v4167
        %v4185 = vpack.c.b16 %v4170, %v4169
        %v4186 = vpack.c.b16 %v4172, %v4171
        %v4202 = vsel %vm2926, %v4062, 0
        %v4205 = vsel %vm2926, %v4064, 0
        %v4208 = vsel %vm2926, %v4066, 0
        %v4211 = vsel %vm2926, %v4068, 0
        %v4214 = vsel %vm2926, %v4070, 0
        %v4217 = vsel %vm2926, %v4072, 0
        %v4220 = vsel %vm2926, %v4074, 0
        %v4223 = vsel %vm2926, %v4076, 0
        %v4226 = vsel %vm2926, %v4078, 0
        %v4229 = vsel %vm2926, %v4080, 0
        %v4232 = vsel %vm2926, %v4082, 0
        %v4235 = vsel %vm2926, %v4084, 0
        %v4238 = vsel %vm2926, %v4086, 0
        %v4241 = vsel %vm2926, %v4088, 0
        %4243 = vmatprep.subr.bf16.mxu0 0
        %4244 = vmatpush1.bf16.msra.mxu0 %v4173
        %4245 = vmatprep.subr.bf16.mxu0 0
        %4246 = vmatpush1.bf16.msra.mxu0 %v4174
        %4247 = vmatprep.subr.bf16.mxu0 0
        %4248 = vmatpush1.bf16.msra.mxu0 %v4175
        %4249 = vmatprep.subr.bf16.mxu0 0
        %4250 = vmatpush1.bf16.msra.mxu0 %v4176
        %4251 = vmatprep.subr.bf16.mxu0 0
        %4252 = vmatpush1.bf16.msra.mxu0 %v4177
        %4253 = vmatprep.subr.bf16.mxu0 0
        %4254 = vmatpush1.bf16.msra.mxu0 %v4178
        %4255 = vmatprep.subr.bf16.mxu0 0
        %4256 = vmatpush1.bf16.msra.mxu0 %v4179
        %4257 = vmatprep.subr.bf16.mxu0 0
        %4258 = vmatpush1.bf16.msra.mxu0 %v4180
        %4259 = vmatprep.subr.bf16.mxu0 0
        %4260 = vmatpush1.bf16.msra.mxu0 %v4181
        %4261 = vmatprep.subr.bf16.mxu0 0
        %4262 = vmatpush1.bf16.msra.mxu0 %v4182
        %4263 = vmatprep.subr.bf16.mxu0 0
        %4264 = vmatpush1.bf16.msra.mxu0 %v4183
        %4265 = vmatprep.subr.bf16.mxu0 0
        %4266 = vmatpush1.bf16.msra.mxu0 %v4184
        %4267 = vmatprep.subr.bf16.mxu0 0
        %4268 = vmatpush1.bf16.msra.mxu0 %v4185
        %4269 = vmatprep.subr.bf16.mxu0 0
        %4270 = vmatpush1.bf16.msra.mxu0 %v4186
        %4271 = vmatprep.subr.bf16.mxu0 0
        %4272 = vmatpush1.bf16.msra.mxu0 0
        %4273 = vmatprep.subr.bf16.mxu0 0
        %4274 = vmatpush1.bf16.msra.mxu0 0
        %4275 = vmatprep.mubr.bf16.mxu0 %v4202
        %4276 = vmatmul.mubr.bf16.gmra.mrb[0].mxu0 %v4061
        %v4277 = vpop.f32.mrb[0].mxu0
        %v4278 = vadd.f32 0.0, %v4277
        %v4279 = vpop.f32.mrb[0].mxu0
        %v4280 = vpop.f32.mrb[0].mxu0
        %v4281 = vadd.f32 0.0, %v4280
        %v4282 = vpop.f32.mrb[0].mxu0
        %4283 = vmatprep.mubr.bf16.mxu0 %v4205
        %4284 = vmatmul.mubr.bf16.gmra.mrb[0].mxu0 %v4063
        %v4285 = vpop.f32.mrb[0].mxu0
        %v4286 = vadd.f32 0.0, %v4285
        %v4287 = vpop.f32.mrb[0].mxu0
        %v4288 = vpop.f32.mrb[0].mxu0
        %v4289 = vadd.f32 0.0, %v4288
        %v4290 = vpop.f32.mrb[0].mxu0
        %4291 = vmatprep.mubr.bf16.mxu0 %v4208
        %4292 = vmatmul.mubr.bf16.gmra.mrb[0].mxu0 %v4065
        %v4293 = vpop.f32.mrb[0].mxu0
        %v4294 = vadd.f32 0.0, %v4293
        %v4295 = vpop.f32.mrb[0].mxu0
        %v4296 = vpop.f32.mrb[0].mxu0
        %v4297 = vadd.f32 0.0, %v4296
        %v4298 = vpop.f32.mrb[0].mxu0
        %4299 = vmatprep.mubr.bf16.mxu0 %v4211
        %4300 = vmatmul.mubr.bf16.gmra.mrb[0].mxu0 %v4067
        %v4301 = vpop.f32.mrb[0].mxu0
        %v4302 = vadd.f32 0.0, %v4301
        %v4303 = vpop.f32.mrb[0].mxu0
        %v4304 = vpop.f32.mrb[0].mxu0
        %v4305 = vadd.f32 0.0, %v4304
        %v4306 = vpop.f32.mrb[0].mxu0
        %4307 = vmatprep.mubr.bf16.mxu0 %v4214
        %4308 = vmatmul.mubr.bf16.gmra.mrb[0].mxu0 %v4069
        %v4309 = vpop.f32.mrb[0].mxu0
        %v4310 = vadd.f32 0.0, %v4309
        %v4311 = vpop.f32.mrb[0].mxu0
        %v4312 = vpop.f32.mrb[0].mxu0
        %v4313 = vadd.f32 0.0, %v4312
        %v4314 = vpop.f32.mrb[0].mxu0
        %4315 = vmatprep.mubr.bf16.mxu0 %v4217
        %4316 = vmatmul.mubr.bf16.gmra.mrb[0].mxu0 %v4071
        %v4317 = vpop.f32.mrb[0].mxu0
        %v4318 = vadd.f32 0.0, %v4317
        %v4319 = vpop.f32.mrb[0].mxu0
        %v4320 = vpop.f32.mrb[0].mxu0
        %v4321 = vadd.f32 0.0, %v4320
        %v4322 = vpop.f32.mrb[0].mxu0
        %4323 = vmatprep.mubr.bf16.mxu0 %v4220
        %4324 = vmatmul.mubr.bf16.gmra.mrb[0].mxu0 %v4073
        %v4325 = vpop.f32.mrb[0].mxu0
        %v4326 = vadd.f32 0.0, %v4325
        %v4327 = vpop.f32.mrb[0].mxu0
        %v4328 = vpop.f32.mrb[0].mxu0
        %v4329 = vadd.f32 0.0, %v4328
        %v4330 = vpop.f32.mrb[0].mxu0
        %4331 = vmatprep.mubr.bf16.mxu0 %v4223
        %4332 = vmatmul.mubr.bf16.gmra.mrb[0].mxu0 %v4075
        %v4333 = vpop.f32.mrb[0].mxu0
        %v4334 = vadd.f32 0.0, %v4333
        %v4335 = vpop.f32.mrb[0].mxu0
        %v4336 = vpop.f32.mrb[0].mxu0
        %v4337 = vadd.f32 0.0, %v4336
        %v4338 = vpop.f32.mrb[0].mxu0
        %4339 = vmatprep.mubr.bf16.mxu0 %v4226
        %4340 = vmatmul.mubr.bf16.gmra.mrb[0].mxu0 %v4077
        %v4341 = vpop.f32.mrb[0].mxu0
        %v4342 = vadd.f32 0.0, %v4341
        %v4343 = vpop.f32.mrb[0].mxu0
        %v4344 = vpop.f32.mrb[0].mxu0
        %v4345 = vadd.f32 0.0, %v4344
        %v4346 = vpop.f32.mrb[0].mxu0
        %4347 = vmatprep.mubr.bf16.mxu0 %v4229
        %4348 = vmatmul.mubr.bf16.gmra.mrb[0].mxu0 %v4079
        %v4349 = vpop.f32.mrb[0].mxu0
        %v4350 = vadd.f32 0.0, %v4349
        %v4351 = vpop.f32.mrb[0].mxu0
        %v4352 = vpop.f32.mrb[0].mxu0
        %v4353 = vadd.f32 0.0, %v4352
        %v4354 = vpop.f32.mrb[0].mxu0
        %4355 = vmatprep.mubr.bf16.mxu0 %v4232
        %4356 = vmatmul.mubr.bf16.gmra.mrb[0].mxu0 %v4081
        %v4357 = vpop.f32.mrb[0].mxu0
        %v4358 = vadd.f32 0.0, %v4357
        %v4359 = vpop.f32.mrb[0].mxu0
        %v4360 = vpop.f32.mrb[0].mxu0
        %v4361 = vadd.f32 0.0, %v4360
        %v4362 = vpop.f32.mrb[0].mxu0
        %4363 = vmatprep.mubr.bf16.mxu0 %v4235
        %4364 = vmatmul.mubr.bf16.gmra.mrb[0].mxu0 %v4083
        %v4365 = vpop.f32.mrb[0].mxu0
        %v4366 = vadd.f32 0.0, %v4365
        %v4367 = vpop.f32.mrb[0].mxu0
        %v4368 = vpop.f32.mrb[0].mxu0
        %v4369 = vadd.f32 0.0, %v4368
        %v4370 = vpop.f32.mrb[0].mxu0
        %4371 = vmatprep.mubr.bf16.mxu0 %v4238
        %4372 = vmatmul.mubr.bf16.gmra.mrb[0].mxu0 %v4085
        %v4373 = vpop.f32.mrb[0].mxu0
        %v4374 = vadd.f32 0.0, %v4373
        %v4375 = vpop.f32.mrb[0].mxu0
        %v4376 = vpop.f32.mrb[0].mxu0
        %v4377 = vadd.f32 0.0, %v4376
        %v4378 = vpop.f32.mrb[0].mxu0
        %4379 = vmatprep.mubr.bf16.mxu0 %v4241
        %4380 = vmatmul.mubr.bf16.gmra.mrb[0].mxu0 %v4087
        %v4381 = vpop.f32.mrb[0].mxu0
        %v4382 = vadd.f32 0.0, %v4381
        %v4383 = vpop.f32.mrb[0].mxu0
        %v4384 = vpop.f32.mrb[0].mxu0
        %v4385 = vadd.f32 0.0, %v4384
        %v4386 = vpop.f32.mrb[0].mxu0
        %4387 = vdwg.mxu0
        %v4388 = vld [vmem:[%s14] sm:$0xf]
        %v4389 = vld [vmem:[%s14 + $0x4] sm:$0xf]
        %v4390 = vld [vmem:[%s14 + $0x8] sm:$0xf]
        %v4391 = vld [vmem:[%s14 + $0xc] sm:$0xf]
        %v4392 = vld [vmem:[%s14 + $0x10] sm:$0xf]
        %v4393 = vld [vmem:[%s14 + $0x14] sm:$0xf]
        %v4394 = vld [vmem:[%s14 + $0x18] sm:$0xf]
        %v4395 = vld [vmem:[%s14 + $0x1c] sm:$0xf]
        %v4396 = vld [vmem:[%s14 + $0x20] sm:$0xf]
        %v4397 = vld [vmem:[%s14 + $0x24] sm:$0xf]
        %v4398 = vld [vmem:[%s14 + $0x28] sm:$0xf]
        %v4399 = vld [vmem:[%s14 + $0x2c] sm:$0xf]
        %v4400 = vld [vmem:[%s14 + $0x30] sm:$0xf]
        %v4401 = vld [vmem:[%s14 + $0x34] sm:$0xf]
        %v4402 = vld [vmem:[%s14 + $0x38] sm:$0xf]
        %v4403 = vld [vmem:[%s14 + $0x3c] sm:$0xf]
        %v4404 = vld [vmem:[%s14 + $0x40] sm:$0xf]
        %v4405 = vld [vmem:[%s14 + $0x44] sm:$0xf]
        %v4406 = vld [vmem:[%s14 + $0x48] sm:$0xf]
        %v4407 = vld [vmem:[%s14 + $0x4c] sm:$0xf]
        %v4408 = vld [vmem:[%s14 + $0x50] sm:$0xf]
        %v4409 = vld [vmem:[%s14 + $0x54] sm:$0xf]
        %v4410 = vld [vmem:[%s14 + $0x58] sm:$0xf]
        %v4411 = vld [vmem:[%s14 + $0x5c] sm:$0xf]
        %v4412 = vld [vmem:[%s14 + $0x60] sm:$0xf]
        %v4413 = vld [vmem:[%s14 + $0x64] sm:$0xf]
        %v4414 = vld [vmem:[%s14 + $0x68] sm:$0xf]
        %v4415 = vld [vmem:[%s14 + $0x6c] sm:$0xf]
        %v4444 = vunpack.c.l.b16 %v4388
        %v4445 = vunpack.c.l.b16 %v4389
        %v4446 = vunpack.c.l.b16 %v4390
        %v4447 = vunpack.c.l.b16 %v4391
        %v4448 = vunpack.c.l.b16 %v4392
        %v4449 = vunpack.c.l.b16 %v4393
        %v4450 = vunpack.c.l.b16 %v4394
        %v4451 = vunpack.c.l.b16 %v4395
        %v4452 = vunpack.c.l.b16 %v4396
        %v4453 = vunpack.c.l.b16 %v4397
        %v4454 = vunpack.c.l.b16 %v4398
        %v4455 = vunpack.c.l.b16 %v4399
        %v4456 = vunpack.c.l.b16 %v4400
        %v4457 = vunpack.c.l.b16 %v4401
        %v4458 = vunpack.c.l.b16 %v4402
        %v4459 = vunpack.c.l.b16 %v4403
        %v4460 = vunpack.c.l.b16 %v4404
        %v4461 = vunpack.c.l.b16 %v4405
        %v4462 = vunpack.c.l.b16 %v4406
        %v4463 = vunpack.c.l.b16 %v4407
        %v4464 = vunpack.c.l.b16 %v4408
        %v4465 = vunpack.c.l.b16 %v4409
        %v4466 = vunpack.c.l.b16 %v4410
        %v4467 = vunpack.c.l.b16 %v4411
        %v4468 = vunpack.c.l.b16 %v4412
        %v4469 = vunpack.c.l.b16 %v4413
        %v4470 = vunpack.c.l.b16 %v4414
        %v4471 = vunpack.c.l.b16 %v4415
        %v4472 = vpack.c.b16 %v4445, %v4444
        %v4473 = vpack.c.b16 %v4447, %v4446
        %v4474 = vpack.c.b16 %v4449, %v4448
        %v4475 = vpack.c.b16 %v4451, %v4450
        %v4476 = vpack.c.b16 %v4453, %v4452
        %v4477 = vpack.c.b16 %v4455, %v4454
        %v4478 = vpack.c.b16 %v4457, %v4456
        %v4479 = vpack.c.b16 %v4459, %v4458
        %v4480 = vpack.c.b16 %v4461, %v4460
        %v4481 = vpack.c.b16 %v4463, %v4462
        %v4482 = vpack.c.b16 %v4465, %v4464
        %v4483 = vpack.c.b16 %v4467, %v4466
        %v4484 = vpack.c.b16 %v4469, %v4468
        %v4485 = vpack.c.b16 %v4471, %v4470
        %4500 = vmatprep.subr.bf16.mxu0 0
        %4501 = vmatpush1.bf16.msra.mxu0 %v4472
        %4502 = vmatprep.subr.bf16.mxu0 0
        %4503 = vmatpush1.bf16.msra.mxu0 %v4473
        %4504 = vmatprep.subr.bf16.mxu0 0
        %4505 = vmatpush1.bf16.msra.mxu0 %v4474
        %4506 = vmatprep.subr.bf16.mxu0 0
        %4507 = vmatpush1.bf16.msra.mxu0 %v4475
        %4508 = vmatprep.subr.bf16.mxu0 0
        %4509 = vmatpush1.bf16.msra.mxu0 %v4476
        %4510 = vmatprep.subr.bf16.mxu0 0
        %4511 = vmatpush1.bf16.msra.mxu0 %v4477
        %4512 = vmatprep.subr.bf16.mxu0 0
        %4513 = vmatpush1.bf16.msra.mxu0 %v4478
        %4514 = vmatprep.subr.bf16.mxu0 0
        %4515 = vmatpush1.bf16.msra.mxu0 %v4479
        %4516 = vmatprep.subr.bf16.mxu0 0
        %4517 = vmatpush1.bf16.msra.mxu0 %v4480
        %4518 = vmatprep.subr.bf16.mxu0 0
        %4519 = vmatpush1.bf16.msra.mxu0 %v4481
        %4520 = vmatprep.subr.bf16.mxu0 0
        %4521 = vmatpush1.bf16.msra.mxu0 %v4482
        %4522 = vmatprep.subr.bf16.mxu0 0
        %4523 = vmatpush1.bf16.msra.mxu0 %v4483
        %4524 = vmatprep.subr.bf16.mxu0 0
        %4525 = vmatpush1.bf16.msra.mxu0 %v4484
        %4526 = vmatprep.subr.bf16.mxu0 0
        %4527 = vmatpush1.bf16.msra.mxu0 %v4485
        %4528 = vmatprep.subr.bf16.mxu0 0
        %4529 = vmatpush1.bf16.msra.mxu0 0
        %4530 = vmatprep.subr.bf16.mxu0 0
        %4531 = vmatpush1.bf16.msra.mxu0 0
        %4532 = vmatprep.mubr.bf16.mxu0 %v4202
        %4533 = vmatmul.mubr.bf16.gmra.mrb[0].mxu0 %v4061
        %v4534 = vpop.f32.mrb[0].mxu0
        %v4535 = vadd.f32 0.0, %v4534
        %v4536 = vpop.f32.mrb[0].mxu0
        %v4537 = vpop.f32.mrb[0].mxu0
        %v4538 = vadd.f32 0.0, %v4537
        %v4539 = vpop.f32.mrb[0].mxu0
        %4540 = vmatprep.mubr.bf16.mxu0 %v4205
        %4541 = vmatmul.mubr.bf16.gmra.mrb[0].mxu0 %v4063
        %v4542 = vpop.f32.mrb[0].mxu0
        %v4543 = vadd.f32 0.0, %v4542
        %v4544 = vpop.f32.mrb[0].mxu0
        %v4545 = vpop.f32.mrb[0].mxu0
        %v4546 = vadd.f32 0.0, %v4545
        %v4547 = vpop.f32.mrb[0].mxu0
        %4548 = vmatprep.mubr.bf16.mxu0 %v4208
        %4549 = vmatmul.mubr.bf16.gmra.mrb[0].mxu0 %v4065
        %v4550 = vpop.f32.mrb[0].mxu0
        %v4551 = vadd.f32 0.0, %v4550
        %v4552 = vpop.f32.mrb[0].mxu0
        %v4553 = vpop.f32.mrb[0].mxu0
        %v4554 = vadd.f32 0.0, %v4553
        %v4555 = vpop.f32.mrb[0].mxu0
        %4556 = vmatprep.mubr.bf16.mxu0 %v4211
        %4557 = vmatmul.mubr.bf16.gmra.mrb[0].mxu0 %v4067
        %v4558 = vpop.f32.mrb[0].mxu0
        %v4559 = vadd.f32 0.0, %v4558
        %v4560 = vpop.f32.mrb[0].mxu0
        %v4561 = vpop.f32.mrb[0].mxu0
        %v4562 = vadd.f32 0.0, %v4561
        %v4563 = vpop.f32.mrb[0].mxu0
        %4564 = vmatprep.mubr.bf16.mxu0 %v4214
        %4565 = vmatmul.mubr.bf16.gmra.mrb[0].mxu0 %v4069
        %v4566 = vpop.f32.mrb[0].mxu0
        %v4567 = vadd.f32 0.0, %v4566
        %v4568 = vpop.f32.mrb[0].mxu0
        %v4569 = vpop.f32.mrb[0].mxu0
        %v4570 = vadd.f32 0.0, %v4569
        %v4571 = vpop.f32.mrb[0].mxu0
        %4572 = vmatprep.mubr.bf16.mxu0 %v4217
        %4573 = vmatmul.mubr.bf16.gmra.mrb[0].mxu0 %v4071
        %v4574 = vpop.f32.mrb[0].mxu0
        %v4575 = vadd.f32 0.0, %v4574
        %v4576 = vpop.f32.mrb[0].mxu0
        %v4577 = vpop.f32.mrb[0].mxu0
        %v4578 = vadd.f32 0.0, %v4577
        %v4579 = vpop.f32.mrb[0].mxu0
        %4580 = vmatprep.mubr.bf16.mxu0 %v4220
        %4581 = vmatmul.mubr.bf16.gmra.mrb[0].mxu0 %v4073
        %v4582 = vpop.f32.mrb[0].mxu0
        %v4583 = vadd.f32 0.0, %v4582
        %v4584 = vpop.f32.mrb[0].mxu0
        %v4585 = vpop.f32.mrb[0].mxu0
        %v4586 = vadd.f32 0.0, %v4585
        %v4587 = vpop.f32.mrb[0].mxu0
        %4588 = vmatprep.mubr.bf16.mxu0 %v4223
        %4589 = vmatmul.mubr.bf16.gmra.mrb[0].mxu0 %v4075
        %v4590 = vpop.f32.mrb[0].mxu0
        %v4591 = vadd.f32 0.0, %v4590
        %v4592 = vpop.f32.mrb[0].mxu0
        %v4593 = vpop.f32.mrb[0].mxu0
        %v4594 = vadd.f32 0.0, %v4593
        %v4595 = vpop.f32.mrb[0].mxu0
        %4596 = vmatprep.mubr.bf16.mxu0 %v4226
        %4597 = vmatmul.mubr.bf16.gmra.mrb[0].mxu0 %v4077
        %v4598 = vpop.f32.mrb[0].mxu0
        %v4599 = vadd.f32 0.0, %v4598
        %v4600 = vpop.f32.mrb[0].mxu0
        %v4601 = vpop.f32.mrb[0].mxu0
        %v4602 = vadd.f32 0.0, %v4601
        %v4603 = vpop.f32.mrb[0].mxu0
        %4604 = vmatprep.mubr.bf16.mxu0 %v4229
        %4605 = vmatmul.mubr.bf16.gmra.mrb[0].mxu0 %v4079
        %v4606 = vpop.f32.mrb[0].mxu0
        %v4607 = vadd.f32 0.0, %v4606
        %v4608 = vpop.f32.mrb[0].mxu0
        %v4609 = vpop.f32.mrb[0].mxu0
        %v4610 = vadd.f32 0.0, %v4609
        %v4611 = vpop.f32.mrb[0].mxu0
        %4612 = vmatprep.mubr.bf16.mxu0 %v4232
        %4613 = vmatmul.mubr.bf16.gmra.mrb[0].mxu0 %v4081
        %v4614 = vpop.f32.mrb[0].mxu0
        %v4615 = vadd.f32 0.0, %v4614
        %v4616 = vpop.f32.mrb[0].mxu0
        %v4617 = vpop.f32.mrb[0].mxu0
        %v4618 = vadd.f32 0.0, %v4617
        %v4619 = vpop.f32.mrb[0].mxu0
        %4620 = vmatprep.mubr.bf16.mxu0 %v4235
        %4621 = vmatmul.mubr.bf16.gmra.mrb[0].mxu0 %v4083
        %v4622 = vpop.f32.mrb[0].mxu0
        %v4623 = vadd.f32 0.0, %v4622
        %v4624 = vpop.f32.mrb[0].mxu0
        %v4625 = vpop.f32.mrb[0].mxu0
        %v4626 = vadd.f32 0.0, %v4625
        %v4627 = vpop.f32.mrb[0].mxu0
        %4628 = vmatprep.mubr.bf16.mxu0 %v4238
        %4629 = vmatmul.mubr.bf16.gmra.mrb[0].mxu0 %v4085
        %v4630 = vpop.f32.mrb[0].mxu0
        %v4631 = vadd.f32 0.0, %v4630
        %v4632 = vpop.f32.mrb[0].mxu0
        %v4633 = vpop.f32.mrb[0].mxu0
        %v4634 = vadd.f32 0.0, %v4633
        %v4635 = vpop.f32.mrb[0].mxu0
        %4636 = vmatprep.mubr.bf16.mxu0 %v4241
        %4637 = vmatmul.mubr.bf16.gmra.mrb[0].mxu0 %v4087
        %v4638 = vpop.f32.mrb[0].mxu0
        %v4639 = vadd.f32 0.0, %v4638
        %v4640 = vpop.f32.mrb[0].mxu0
        %v4641 = vpop.f32.mrb[0].mxu0
        %v4642 = vadd.f32 0.0, %v4641
        %v4643 = vpop.f32.mrb[0].mxu0
        %4644 = vdwg.mxu0
        %v4645 = vmax.f32 %v4278, %v4535
        %v4646 = vmax.f32 %v4281, %v4538
        %v4647 = vmax.f32 %v4286, %v4543
        %v4648 = vmax.f32 %v4289, %v4546
        %v4649 = vmax.f32 %v4294, %v4551
        %v4650 = vmax.f32 %v4297, %v4554
        %v4651 = vmax.f32 %v4302, %v4559
        %v4652 = vmax.f32 %v4305, %v4562
        %v4653 = vmax.f32 %v4310, %v4567
        %v4654 = vmax.f32 %v4313, %v4570
        %v4655 = vmax.f32 %v4318, %v4575
        %v4656 = vmax.f32 %v4321, %v4578
        %v4657 = vmax.f32 %v4326, %v4583
        %v4658 = vmax.f32 %v4329, %v4586
        %v4659 = vmax.f32 %v4334, %v4591
        %v4660 = vmax.f32 %v4337, %v4594
        %v4661 = vmax.f32 %v4342, %v4599
        %v4662 = vmax.f32 %v4345, %v4602
        %v4663 = vmax.f32 %v4350, %v4607
        %v4664 = vmax.f32 %v4353, %v4610
        %v4665 = vmax.f32 %v4358, %v4615
        %v4666 = vmax.f32 %v4361, %v4618
        %v4667 = vmax.f32 %v4366, %v4623
        %v4668 = vmax.f32 %v4369, %v4626
        %v4669 = vmax.f32 %v4374, %v4631
        %v4670 = vmax.f32 %v4377, %v4634
        %v4671 = vmax.f32 %v4382, %v4639
        %v4672 = vmax.f32 %v4385, %v4642
        %v4673 = vrot.slane %v4645, 1
        %v4674 = vrot.slane %v4646, 1
        %v4675 = vrot.slane %v4647, 1
        %v4676 = vrot.slane %v4648, 1
        %v4677 = vrot.slane %v4649, 1
        %v4678 = vrot.slane %v4650, 1
        %v4679 = vrot.slane %v4651, 1
        %v4680 = vrot.slane %v4652, 1
        %v4681 = vrot.slane %v4653, 1
        %v4682 = vrot.slane %v4654, 1
        %v4683 = vrot.slane %v4655, 1
        %v4684 = vrot.slane %v4656, 1
        %v4685 = vrot.slane %v4657, 1
        %v4686 = vrot.slane %v4658, 1
        %v4687 = vrot.slane %v4659, 1
        %v4688 = vrot.slane %v4660, 1
        %v4689 = vrot.slane %v4661, 1
        %v4690 = vrot.slane %v4662, 1
        %v4691 = vrot.slane %v4663, 1
        %v4692 = vrot.slane %v4664, 1
        %v4693 = vrot.slane %v4665, 1
        %v4694 = vrot.slane %v4666, 1
        %v4695 = vrot.slane %v4667, 1
        %v4696 = vrot.slane %v4668, 1
        %v4697 = vrot.slane %v4669, 1
        %v4698 = vrot.slane %v4670, 1
        %v4699 = vrot.slane %v4671, 1
        %v4700 = vrot.slane %v4672, 1
        %v4701 = vsel %vm1053, %v4699, %v4700
        %v4702 = vsel %vm1053, %v4698, %v4699
        %v4703 = vsel %vm1053, %v4697, %v4698
        %v4704 = vsel %vm1053, %v4696, %v4697
        %v4705 = vsel %vm1053, %v4695, %v4696
        %v4706 = vsel %vm1053, %v4694, %v4695
        %v4707 = vsel %vm1053, %v4693, %v4694
        %v4708 = vsel %vm1053, %v4692, %v4693
        %v4709 = vsel %vm1053, %v4691, %v4692
        %v4710 = vsel %vm1053, %v4690, %v4691
        %v4711 = vsel %vm1053, %v4689, %v4690
        %v4712 = vsel %vm1053, %v4688, %v4689
        %v4713 = vsel %vm1053, %v4687, %v4688
        %v4714 = vsel %vm1053, %v4686, %v4687
        %v4715 = vsel %vm1053, %v4685, %v4686
        %v4716 = vsel %vm1053, %v4684, %v4685
        %v4717 = vsel %vm1053, %v4683, %v4684
        %v4718 = vsel %vm1053, %v4682, %v4683
        %v4719 = vsel %vm1053, %v4681, %v4682
        %v4720 = vsel %vm1053, %v4680, %v4681
        %v4721 = vsel %vm1053, %v4679, %v4680
        %v4722 = vsel %vm1053, %v4678, %v4679
        %v4723 = vsel %vm1053, %v4677, %v4678
        %v4724 = vsel %vm1053, %v4676, %v4677
        %v4725 = vsel %vm1053, %v4675, %v4676
        %v4726 = vsel %vm1053, %v4674, %v4675
        %v4727 = vsel %vm1053, %v4673, %v4674
        %v4728 = vsel %vm1053, %v4700, %v4673
        %v4729 = vmax.f32 %v4645, %v4727
        %v4730 = vmax.f32 %v4646, %v4726
        %v4731 = vmax.f32 %v4647, %v4725
        %v4732 = vmax.f32 %v4648, %v4724
        %v4733 = vmax.f32 %v4649, %v4723
        %v4734 = vmax.f32 %v4650, %v4722
        %v4735 = vmax.f32 %v4651, %v4721
        %v4736 = vmax.f32 %v4652, %v4720
        %v4737 = vmax.f32 %v4653, %v4719
        %v4738 = vmax.f32 %v4654, %v4718
        %v4739 = vmax.f32 %v4655, %v4717
        %v4740 = vmax.f32 %v4656, %v4716
        %v4741 = vmax.f32 %v4657, %v4715
        %v4742 = vmax.f32 %v4658, %v4714
        %v4743 = vmax.f32 %v4659, %v4713
        %v4744 = vmax.f32 %v4660, %v4712
        %v4745 = vmax.f32 %v4661, %v4711
        %v4746 = vmax.f32 %v4662, %v4710
        %v4747 = vmax.f32 %v4663, %v4709
        %v4748 = vmax.f32 %v4664, %v4708
        %v4749 = vmax.f32 %v4665, %v4707
        %v4750 = vmax.f32 %v4666, %v4706
        %v4751 = vmax.f32 %v4667, %v4705
        %v4752 = vmax.f32 %v4668, %v4704
        %v4753 = vmax.f32 %v4669, %v4703
        %v4754 = vmax.f32 %v4670, %v4702
        %v4755 = vmax.f32 %v4671, %v4701
        %v4756 = vmax.f32 %v4672, %v4728
        %v4757 = vld [vmem:[%s15] sm:$0xff]
        %v4758 = vld [vmem:[%s15 + $0x8] sm:$0xff]
        %v4759 = vld [vmem:[%s15 + $0x10] sm:$0xff]
        %v4760 = vld [vmem:[%s15 + $0x18] sm:$0xff]
        %v4761 = vld [vmem:[%s15 + $0x20] sm:$0xff]
        %v4762 = vld [vmem:[%s15 + $0x28] sm:$0xff]
        %v4763 = vld [vmem:[%s15 + $0x30] sm:$0xff]
        %v4764 = vld [vmem:[%s15 + $0x38] sm:$0xff]
        %v4765 = vld [vmem:[%s15 + $0x40] sm:$0xff]
        %v4766 = vld [vmem:[%s15 + $0x48] sm:$0xff]
        %v4767 = vld [vmem:[%s15 + $0x50] sm:$0xff]
        %v4768 = vld [vmem:[%s15 + $0x58] sm:$0xff]
        %v4769 = vld [vmem:[%s15 + $0x60] sm:$0xff]
        %v4770 = vld [vmem:[%s15 + $0x68] sm:$0xff]
        %v4771 = vpack.c.bf16 %v4730, %v4729
        %v4772 = vpack.c.bf16 %v4732, %v4731
        %v4773 = vpack.c.bf16 %v4734, %v4733
        %v4774 = vpack.c.bf16 %v4736, %v4735
        %v4775 = vpack.c.bf16 %v4738, %v4737
        %v4776 = vpack.c.bf16 %v4740, %v4739
        %v4777 = vpack.c.bf16 %v4742, %v4741
        %v4778 = vpack.c.bf16 %v4744, %v4743
        %v4779 = vpack.c.bf16 %v4746, %v4745
        %v4780 = vpack.c.bf16 %v4748, %v4747
        %v4781 = vpack.c.bf16 %v4750, %v4749
        %v4782 = vpack.c.bf16 %v4752, %v4751
        %v4783 = vpack.c.bf16 %v4754, %v4753
        %v4784 = vpack.c.bf16 %v4756, %v4755
        %v4799 = vunpack.c.l.b16 %v4757
        %v4800 = vunpack.c.h.b16 %v4757
        %v4801 = vunpack.c.l.b16 %v4758
        %v4802 = vunpack.c.h.b16 %v4758
        %v4803 = vunpack.c.l.b16 %v4759
        %v4804 = vunpack.c.h.b16 %v4759
        %v4805 = vunpack.c.l.b16 %v4760
        %v4806 = vunpack.c.h.b16 %v4760
        %v4807 = vunpack.c.l.b16 %v4761
        %v4808 = vunpack.c.h.b16 %v4761
        %v4809 = vunpack.c.l.b16 %v4762
        %v4810 = vunpack.c.h.b16 %v4762
        %v4811 = vunpack.c.l.b16 %v4763
        %v4812 = vunpack.c.h.b16 %v4763
        %v4813 = vunpack.c.l.b16 %v4764
        %v4814 = vunpack.c.h.b16 %v4764
        %v4815 = vunpack.c.l.b16 %v4765
        %v4816 = vunpack.c.h.b16 %v4765
        %v4817 = vunpack.c.l.b16 %v4766
        %v4818 = vunpack.c.h.b16 %v4766
        %v4819 = vunpack.c.l.b16 %v4767
        %v4820 = vunpack.c.h.b16 %v4767
        %v4821 = vunpack.c.l.b16 %v4768
        %v4822 = vunpack.c.h.b16 %v4768
        %v4823 = vunpack.c.l.b16 %v4769
        %v4824 = vunpack.c.h.b16 %v4769
        %v4825 = vunpack.c.l.b16 %v4770
        %v4826 = vunpack.c.h.b16 %v4770
        %v4827 = vpack.c.b16 %v4801, %v4799
        %v4828 = vpack.c.b16 %v4802, %v4800
        %v4829 = vpack.c.b16 %v4805, %v4803
        %v4830 = vpack.c.b16 %v4806, %v4804
        %v4831 = vpack.c.b16 %v4809, %v4807
        %v4832 = vpack.c.b16 %v4810, %v4808
        %v4833 = vpack.c.b16 %v4813, %v4811
        %v4834 = vpack.c.b16 %v4814, %v4812
        %v4835 = vpack.c.b16 %v4817, %v4815
        %v4836 = vpack.c.b16 %v4818, %v4816
        %v4837 = vpack.c.b16 %v4821, %v4819
        %v4838 = vpack.c.b16 %v4822, %v4820
        %v4839 = vpack.c.b16 %v4825, %v4823
        %v4840 = vpack.c.b16 %v4826, %v4824
        %v4849 = vsel %vm2926, %v4828, 0
        %v4852 = vsel %vm2926, %v4830, 0
        %v4855 = vsel %vm2926, %v4832, 0
        %v4858 = vsel %vm2926, %v4834, 0
        %v4861 = vsel %vm2926, %v4836, 0
        %v4864 = vsel %vm2926, %v4838, 0
        %v4867 = vsel %vm2926, %v4840, 0
        %4869 = vmatprep.subr.bf16.mxu0 0
        %4870 = vmatpush1.bf16.msra.mxu0 %v4771
        %4871 = vmatprep.subr.bf16.mxu0 0
        %4872 = vmatpush1.bf16.msra.mxu0 %v4772
        %4873 = vmatprep.subr.bf16.mxu0 0
        %4874 = vmatpush1.bf16.msra.mxu0 %v4773
        %4875 = vmatprep.subr.bf16.mxu0 0
        %4876 = vmatpush1.bf16.msra.mxu0 %v4774
        %4877 = vmatprep.subr.bf16.mxu0 0
        %4878 = vmatpush1.bf16.msra.mxu0 %v4775
        %4879 = vmatprep.subr.bf16.mxu0 0
        %4880 = vmatpush1.bf16.msra.mxu0 %v4776
        %4881 = vmatprep.subr.bf16.mxu0 0
        %4882 = vmatpush1.bf16.msra.mxu0 %v4777
        %4883 = vmatprep.subr.bf16.mxu0 0
        %4884 = vmatpush1.bf16.msra.mxu0 %v4778
        %4885 = vmatprep.subr.bf16.mxu0 0
        %4886 = vmatpush1.bf16.msra.mxu0 %v4779
        %4887 = vmatprep.subr.bf16.mxu0 0
        %4888 = vmatpush1.bf16.msra.mxu0 %v4780
        %4889 = vmatprep.subr.bf16.mxu0 0
        %4890 = vmatpush1.bf16.msra.mxu0 %v4781
        %4891 = vmatprep.subr.bf16.mxu0 0
        %4892 = vmatpush1.bf16.msra.mxu0 %v4782
        %4893 = vmatprep.subr.bf16.mxu0 0
        %4894 = vmatpush1.bf16.msra.mxu0 %v4783
        %4895 = vmatprep.subr.bf16.mxu0 0
        %4896 = vmatpush1.bf16.msra.mxu0 %v4784
        %4897 = vmatprep.subr.bf16.mxu0 0
        %4898 = vmatpush1.bf16.msra.mxu0 0
        %4899 = vmatprep.subr.bf16.mxu0 0
        %4900 = vmatpush1.bf16.msra.mxu0 0
        %4901 = vmatprep.mubr.bf16.mxu0 %v4849
        %4902 = vmatmul.mubr.bf16.gmra.mrb[0].mxu0 %v4827
        %v4903 = vpop.f32.mrb[0].mxu0
        %v4904 = vadd.f32 0.0, %v4903
        %v4905 = vpop.f32.mrb[0].mxu0
        %v4906 = vpop.f32.mrb[0].mxu0
        %v4907 = vadd.f32 0.0, %v4906
        %v4908 = vpop.f32.mrb[0].mxu0
        %4909 = vmatprep.mubr.bf16.mxu0 %v4852
        %4910 = vmatmul.mubr.bf16.gmra.mrb[0].mxu0 %v4829
        %v4911 = vpop.f32.mrb[0].mxu0
        %v4912 = vadd.f32 0.0, %v4911
        %v4913 = vpop.f32.mrb[0].mxu0
        %v4914 = vpop.f32.mrb[0].mxu0
        %v4915 = vadd.f32 0.0, %v4914
        %v4916 = vpop.f32.mrb[0].mxu0
        %4917 = vmatprep.mubr.bf16.mxu0 %v4855
        %4918 = vmatmul.mubr.bf16.gmra.mrb[0].mxu0 %v4831
        %v4919 = vpop.f32.mrb[0].mxu0
        %v4920 = vadd.f32 0.0, %v4919
        %v4921 = vpop.f32.mrb[0].mxu0
        %v4922 = vpop.f32.mrb[0].mxu0
        %v4923 = vadd.f32 0.0, %v4922
        %v4924 = vpop.f32.mrb[0].mxu0
        %4925 = vmatprep.mubr.bf16.mxu0 %v4858
        %4926 = vmatmul.mubr.bf16.gmra.mrb[0].mxu0 %v4833
        %v4927 = vpop.f32.mrb[0].mxu0
        %v4928 = vadd.f32 0.0, %v4927
        %v4929 = vpop.f32.mrb[0].mxu0
        %v4930 = vpop.f32.mrb[0].mxu0
        %v4931 = vadd.f32 0.0, %v4930
        %v4932 = vpop.f32.mrb[0].mxu0
        %4933 = vmatprep.mubr.bf16.mxu0 %v4861
        %4934 = vmatmul.mubr.bf16.gmra.mrb[0].mxu0 %v4835
        %v4935 = vpop.f32.mrb[0].mxu0
        %v4936 = vadd.f32 0.0, %v4935
        %v4937 = vpop.f32.mrb[0].mxu0
        %v4938 = vpop.f32.mrb[0].mxu0
        %v4939 = vadd.f32 0.0, %v4938
        %v4940 = vpop.f32.mrb[0].mxu0
        %4941 = vmatprep.mubr.bf16.mxu0 %v4864
        %4942 = vmatmul.mubr.bf16.gmra.mrb[0].mxu0 %v4837
        %v4943 = vpop.f32.mrb[0].mxu0
        %v4944 = vadd.f32 0.0, %v4943
        %v4945 = vpop.f32.mrb[0].mxu0
        %v4946 = vpop.f32.mrb[0].mxu0
        %v4947 = vadd.f32 0.0, %v4946
        %v4948 = vpop.f32.mrb[0].mxu0
        %4949 = vmatprep.mubr.bf16.mxu0 %v4867
        %4950 = vmatmul.mubr.bf16.gmra.mrb[0].mxu0 %v4839
        %v4951 = vpop.f32.mrb[0].mxu0
        %v4952 = vadd.f32 0.0, %v4951
        %v4953 = vpop.f32.mrb[0].mxu0
        %v4954 = vpop.f32.mrb[0].mxu0
        %v4955 = vadd.f32 0.0, %v4954
        %v4956 = vpop.f32.mrb[0].mxu0
        %4957 = vdwg.mxu0
        %v4958 = vpack.c.bf16 %v4907, %v4904
        %v4959 = vpack.c.bf16 %v4915, %v4912
        %v4960 = vpack.c.bf16 %v4923, %v4920
        %v4961 = vpack.c.bf16 %v4931, %v4928
        %v4962 = vpack.c.bf16 %v4939, %v4936
        %v4963 = vpack.c.bf16 %v4947, %v4944
        %v4964 = vpack.c.bf16 %v4955, %v4952
        %v4965 = vrot.slane %v4904, 7
        %v4966 = vrot.slane %v4907, 7
        %v4967 = vrot.slane %v4912, 7
        %v4968 = vrot.slane %v4915, 7
        %v4969 = vrot.slane %v4920, 7
        %v4970 = vrot.slane %v4923, 7
        %v4971 = vrot.slane %v4928, 7
        %v4972 = vrot.slane %v4931, 7
        %v4973 = vrot.slane %v4936, 7
        %v4974 = vrot.slane %v4939, 7
        %v4975 = vrot.slane %v4944, 7
        %v4976 = vrot.slane %v4947, 7
        %v4977 = vrot.slane %v4952, 7
        %v4978 = vrot.slane %v4955, 7
        %v4979 = vsel %vm814, %v4977, %v4978
        %v4980 = vsel %vm814, %v4976, %v4977
        %v4981 = vsel %vm814, %v4975, %v4976
        %v4982 = vsel %vm814, %v4974, %v4975
        %v4983 = vsel %vm814, %v4973, %v4974
        %v4984 = vsel %vm814, %v4972, %v4973
        %v4985 = vsel %vm814, %v4971, %v4972
        %v4986 = vsel %vm814, %v4970, %v4971
        %v4987 = vsel %vm814, %v4969, %v4970
        %v4988 = vsel %vm814, %v4968, %v4969
        %v4989 = vsel %vm814, %v4967, %v4968
        %v4990 = vsel %vm814, %v4966, %v4967
        %v4991 = vsel %vm814, %v4965, %v4966
        %v4992 = vsel %vm814, %v4978, %v4965
        %4994 = vset.pattern.permute.xlu0 0
        %4995 = vperm.xlu0 %4994, %v742
        %v4996 = vpop.permute.xlu0 %4995
        %4999 = vset.pattern.permute.xlu0 0
        %5000 = vperm.xlu0 %4999, %v743
        %v5001 = vpop.permute.xlu0 %5000
        %5004 = vset.pattern.permute.xlu0 0
        %5005 = vperm.xlu0 %5004, %v744
        %v5006 = vpop.permute.xlu0 %5005
        %5009 = vset.pattern.permute.xlu0 0
        %5010 = vperm.xlu0 %5009, %v745
        %v5011 = vpop.permute.xlu0 %5010
        %5014 = vset.pattern.permute.xlu0 0
        %5015 = vperm.xlu0 %5014, %v746
        %v5016 = vpop.permute.xlu0 %5015
        %5019 = vset.pattern.permute.xlu0 0
        %5020 = vperm.xlu0 %5019, %v747
        %v5021 = vpop.permute.xlu0 %5020
        %5024 = vset.pattern.permute.xlu0 0
        %5025 = vperm.xlu0 %5024, %v748
        %v5026 = vpop.permute.xlu0 %5025
        %5029 = vset.pattern.permute.xlu0 0
        %5030 = vperm.xlu0 %5029, %v749
        %v5031 = vpop.permute.xlu0 %5030
        %5034 = vset.pattern.permute.xlu0 0
        %5035 = vperm.xlu0 %5034, %v750
        %v5036 = vpop.permute.xlu0 %5035
        %5039 = vset.pattern.permute.xlu0 0
        %5040 = vperm.xlu0 %5039, %v751
        %v5041 = vpop.permute.xlu0 %5040
        %5044 = vset.pattern.permute.xlu0 0
        %5045 = vperm.xlu0 %5044, %v752
        %v5046 = vpop.permute.xlu0 %5045
        %5049 = vset.pattern.permute.xlu0 0
        %5050 = vperm.xlu0 %5049, %v753
        %v5051 = vpop.permute.xlu0 %5050
        %5054 = vset.pattern.permute.xlu0 0
        %5055 = vperm.xlu0 %5054, %v754
        %v5056 = vpop.permute.xlu0 %5055
        %5059 = vset.pattern.permute.xlu0 0
        %5060 = vperm.xlu0 %5059, %v755
        %v5061 = vpop.permute.xlu0 %5060
        %v5063 = vmul.f32 %v4992, %v4996
        %v5064 = vmul.f32 %v4991, %v5001
        %v5065 = vmul.f32 %v4990, %v5006
        %v5066 = vmul.f32 %v4989, %v5011
        %v5067 = vmul.f32 %v4988, %v5016
        %v5068 = vmul.f32 %v4987, %v5021
        %v5069 = vmul.f32 %v4986, %v5026
        %v5070 = vmul.f32 %v4985, %v5031
        %v5071 = vmul.f32 %v4984, %v5036
        %v5072 = vmul.f32 %v4983, %v5041
        %v5073 = vmul.f32 %v4982, %v5046
        %v5074 = vmul.f32 %v4981, %v5051
        %v5075 = vmul.f32 %v4980, %v5056
        %v5076 = vmul.f32 %v4979, %v5061
        %v5077 = vpack.c.bf16 %v5064, %v5063
        %v5078 = vpack.c.bf16 %v5066, %v5065
        %v5079 = vpack.c.bf16 %v5068, %v5067
        %v5080 = vpack.c.bf16 %v5070, %v5069
        %v5081 = vpack.c.bf16 %v5072, %v5071
        %v5082 = vpack.c.bf16 %v5074, %v5073
        %v5083 = vpack.c.bf16 %v5076, %v5075
        %v5084 = vrot.slane %v4904, 1
        %v5085 = vrot.slane %v4907, 1
        %v5086 = vrot.slane %v4912, 1
        %v5087 = vrot.slane %v4915, 1
        %v5088 = vrot.slane %v4920, 1
        %v5089 = vrot.slane %v4923, 1
        %v5090 = vrot.slane %v4928, 1
        %v5091 = vrot.slane %v4931, 1
        %v5092 = vrot.slane %v4936, 1
        %v5093 = vrot.slane %v4939, 1
        %v5094 = vrot.slane %v4944, 1
        %v5095 = vrot.slane %v4947, 1
        %v5096 = vrot.slane %v4952, 1
        %v5097 = vrot.slane %v4955, 1
        %v5098 = vsel %vm1053, %v5096, %v5097
        %v5099 = vsel %vm1053, %v5095, %v5096
        %v5100 = vsel %vm1053, %v5094, %v5095
        %v5101 = vsel %vm1053, %v5093, %v5094
        %v5102 = vsel %vm1053, %v5092, %v5093
        %v5103 = vsel %vm1053, %v5091, %v5092
        %v5104 = vsel %vm1053, %v5090, %v5091
        %v5105 = vsel %vm1053, %v5089, %v5090
        %v5106 = vsel %vm1053, %v5088, %v5089
        %v5107 = vsel %vm1053, %v5087, %v5088
        %v5108 = vsel %vm1053, %v5086, %v5087
        %v5109 = vsel %vm1053, %v5085, %v5086
        %v5110 = vsel %vm1053, %v5084, %v5085
        %v5111 = vsel %vm1053, %v5097, %v5084
        %5113 = vset.pattern.permute.xlu0 0
        %5114 = vperm.xlu0 %5113, %v756
        %v5115 = vpop.permute.xlu0 %5114
        %5118 = vset.pattern.permute.xlu0 0
        %5119 = vperm.xlu0 %5118, %v757
        %v5120 = vpop.permute.xlu0 %5119
        %5123 = vset.pattern.permute.xlu0 0
        %5124 = vperm.xlu0 %5123, %v758
        %v5125 = vpop.permute.xlu0 %5124
        %5128 = vset.pattern.permute.xlu0 0
        %5129 = vperm.xlu0 %5128, %v759
        %v5130 = vpop.permute.xlu0 %5129
        %5133 = vset.pattern.permute.xlu0 0
        %5134 = vperm.xlu0 %5133, %v760
        %v5135 = vpop.permute.xlu0 %5134
        %5138 = vset.pattern.permute.xlu0 0
        %5139 = vperm.xlu0 %5138, %v761
        %v5140 = vpop.permute.xlu0 %5139
        %5143 = vset.pattern.permute.xlu0 0
        %5144 = vperm.xlu0 %5143, %v762
        %v5145 = vpop.permute.xlu0 %5144
        %5148 = vset.pattern.permute.xlu0 0
        %5149 = vperm.xlu0 %5148, %v763
        %v5150 = vpop.permute.xlu0 %5149
        %5153 = vset.pattern.permute.xlu0 0
        %5154 = vperm.xlu0 %5153, %v764
        %v5155 = vpop.permute.xlu0 %5154
        %5158 = vset.pattern.permute.xlu0 0
        %5159 = vperm.xlu0 %5158, %v765
        %v5160 = vpop.permute.xlu0 %5159
        %5163 = vset.pattern.permute.xlu0 0
        %5164 = vperm.xlu0 %5163, %v766
        %v5165 = vpop.permute.xlu0 %5164
        %5168 = vset.pattern.permute.xlu0 0
        %5169 = vperm.xlu0 %5168, %v767
        %v5170 = vpop.permute.xlu0 %5169
        %5173 = vset.pattern.permute.xlu0 0
        %5174 = vperm.xlu0 %5173, %v768
        %v5175 = vpop.permute.xlu0 %5174
        %5178 = vset.pattern.permute.xlu0 0
        %5179 = vperm.xlu0 %5178, %v769
        %v5180 = vpop.permute.xlu0 %5179
        %v5182 = vmul.f32 %v5110, %v5115
        %v5183 = vmul.f32 %v5109, %v5120
        %v5184 = vmul.f32 %v5108, %v5125
        %v5185 = vmul.f32 %v5107, %v5130
        %v5186 = vmul.f32 %v5106, %v5135
        %v5187 = vmul.f32 %v5105, %v5140
        %v5188 = vmul.f32 %v5104, %v5145
        %v5189 = vmul.f32 %v5103, %v5150
        %v5190 = vmul.f32 %v5102, %v5155
        %v5191 = vmul.f32 %v5101, %v5160
        %v5192 = vmul.f32 %v5100, %v5165
        %v5193 = vmul.f32 %v5099, %v5170
        %v5194 = vmul.f32 %v5098, %v5175
        %v5195 = vmul.f32 %v5111, %v5180
        %v5196 = vpack.c.bf16 %v5183, %v5182
        %v5197 = vpack.c.bf16 %v5185, %v5184
        %v5198 = vpack.c.bf16 %v5187, %v5186
        %v5199 = vpack.c.bf16 %v5189, %v5188
        %v5200 = vpack.c.bf16 %v5191, %v5190
        %v5201 = vpack.c.bf16 %v5193, %v5192
        %v5202 = vpack.c.bf16 %v5195, %v5194
        %v5203 = vld [vmem:[%s9] sm:$0xf]
        %v5204 = vld [vmem:[%s9 + $0x4] sm:$0xf]
        %v5205 = vld [vmem:[%s9 + $0x8] sm:$0xf]
        %v5206 = vld [vmem:[%s9 + $0xc] sm:$0xf]
        %v5207 = vld [vmem:[%s9 + $0x10] sm:$0xf]
        %v5208 = vld [vmem:[%s9 + $0x14] sm:$0xf]
        %v5209 = vld [vmem:[%s9 + $0x18] sm:$0xf]
        %v5210 = vld [vmem:[%s9 + $0x1c] sm:$0xf]
        %v5211 = vld [vmem:[%s9 + $0x20] sm:$0xf]
        %v5212 = vld [vmem:[%s9 + $0x24] sm:$0xf]
        %v5213 = vld [vmem:[%s9 + $0x28] sm:$0xf]
        %v5214 = vld [vmem:[%s9 + $0x2c] sm:$0xf]
        %v5215 = vld [vmem:[%s9 + $0x30] sm:$0xf]
        %v5216 = vld [vmem:[%s9 + $0x34] sm:$0xf]
        %s5217 = scalar_lea.vmem %s9, 56
        %v5218 = vld [vmem:[%s5217] sm:$0xf]
        %v5219 = vld [vmem:[%s5217 + $0x4] sm:$0xf]
        %v5220 = vld [vmem:[%s5217 + $0x8] sm:$0xf]
        %v5221 = vld [vmem:[%s5217 + $0xc] sm:$0xf]
        %v5222 = vld [vmem:[%s5217 + $0x10] sm:$0xf]
        %v5223 = vld [vmem:[%s5217 + $0x14] sm:$0xf]
        %v5224 = vld [vmem:[%s5217 + $0x18] sm:$0xf]
        %v5225 = vld [vmem:[%s5217 + $0x1c] sm:$0xf]
        %v5226 = vld [vmem:[%s5217 + $0x20] sm:$0xf]
        %v5227 = vld [vmem:[%s5217 + $0x24] sm:$0xf]
        %v5228 = vld [vmem:[%s5217 + $0x28] sm:$0xf]
        %v5229 = vld [vmem:[%s5217 + $0x2c] sm:$0xf]
        %v5230 = vld [vmem:[%s5217 + $0x30] sm:$0xf]
        %v5231 = vld [vmem:[%s5217 + $0x34] sm:$0xf]
        %v5246 = vunpack.c.l.b16 %v5218
        %v5247 = vunpack.c.l.b16 %v5219
        %v5248 = vunpack.c.l.b16 %v5220
        %v5249 = vunpack.c.l.b16 %v5221
        %v5250 = vunpack.c.l.b16 %v5222
        %v5251 = vunpack.c.l.b16 %v5223
        %v5252 = vunpack.c.l.b16 %v5224
        %v5253 = vunpack.c.l.b16 %v5225
        %v5254 = vunpack.c.l.b16 %v5226
        %v5255 = vunpack.c.l.b16 %v5227
        %v5256 = vunpack.c.l.b16 %v5228
        %v5257 = vunpack.c.l.b16 %v5229
        %v5258 = vunpack.c.l.b16 %v5230
        %v5259 = vunpack.c.l.b16 %v5231
        %v5260 = vpack.c.b16 %v5247, %v5246
        %v5261 = vpack.c.b16 %v5249, %v5248
        %v5262 = vpack.c.b16 %v5251, %v5250
        %v5263 = vpack.c.b16 %v5253, %v5252
        %v5264 = vpack.c.b16 %v5255, %v5254
        %v5265 = vpack.c.b16 %v5257, %v5256
        %v5266 = vpack.c.b16 %v5259, %v5258
        %vm5274 = vcmask 916480
        %v5276 = vsel %vm5274, %v4958, 0
        %v5279 = vsel %vm5274, %v4959, 0
        %v5282 = vsel %vm5274, %v4960, 0
        %v5285 = vsel %vm5274, %v4961, 0
        %v5288 = vsel %vm5274, %v4962, 0
        %v5291 = vsel %vm5274, %v4963, 0
        %v5294 = vsel %vm5274, %v4964, 0
        %5296 = vmatprep.subr.bf16.mxu0 0
        %5297 = vmatpush1.bf16.msra.mxu0 %v5260
        %5298 = vmatprep.subr.bf16.mxu0 0
        %5299 = vmatpush1.bf16.msra.mxu0 %v5261
        %5300 = vmatprep.subr.bf16.mxu0 0
        %5301 = vmatpush1.bf16.msra.mxu0 %v5262
        %5302 = vmatprep.subr.bf16.mxu0 0
        %5303 = vmatpush1.bf16.msra.mxu0 %v5263
        %5304 = vmatprep.subr.bf16.mxu0 0
        %5305 = vmatpush1.bf16.msra.mxu0 %v5264
        %5306 = vmatprep.subr.bf16.mxu0 0
        %5307 = vmatpush1.bf16.msra.mxu0 %v5265
        %5308 = vmatprep.subr.bf16.mxu0 0
        %5309 = vmatpush1.bf16.msra.mxu0 %v5266
        %5310 = vmatprep.subr.bf16.mxu0 0
        %5311 = vmatpush1.bf16.msra.mxu0 0
        %5312 = vmatprep.subr.bf16.mxu0 0
        %5313 = vmatpush1.bf16.msra.mxu0 0
        %5314 = vmatprep.subr.bf16.mxu0 0
        %5315 = vmatpush1.bf16.msra.mxu0 0
        %5316 = vmatprep.subr.bf16.mxu0 0
        %5317 = vmatpush1.bf16.msra.mxu0 0
        %5318 = vmatprep.subr.bf16.mxu0 0
        %5319 = vmatpush1.bf16.msra.mxu0 0
        %5320 = vmatprep.subr.bf16.mxu0 0
        %5321 = vmatpush1.bf16.msra.mxu0 0
        %5322 = vmatprep.subr.bf16.mxu0 0
        %5323 = vmatpush1.bf16.msra.mxu0 0
        %5324 = vmatprep.subr.bf16.mxu0 0
        %5325 = vmatpush1.bf16.msra.mxu0 0
        %5326 = vmatprep.subr.bf16.mxu0 0
        %5327 = vmatpush1.bf16.msra.mxu0 0
        %5328 = vmatprep.mubr.bf16.mxu0 0
        %5329 = vmatmul.mubr.bf16.gmra.mrb[0].mxu0 %v5276
        %v5330 = vpop.f32.mrb[0].mxu0
        %v5331 = vadd.f32 0.0, %v5330
        %v5332 = vpop.f32.mrb[0].mxu0
        %v5333 = vpop.f32.mrb[0].mxu0
        %v5334 = vadd.f32 0.0, %v5333
        %v5335 = vpop.f32.mrb[0].mxu0
        %5336 = vmatprep.mubr.bf16.mxu0 0
        %5337 = vmatmul.mubr.bf16.gmra.mrb[0].mxu0 %v5279
        %v5338 = vpop.f32.mrb[0].mxu0
        %v5339 = vadd.f32 0.0, %v5338
        %v5340 = vpop.f32.mrb[0].mxu0
        %v5341 = vpop.f32.mrb[0].mxu0
        %v5342 = vadd.f32 0.0, %v5341
        %v5343 = vpop.f32.mrb[0].mxu0
        %5344 = vmatprep.mubr.bf16.mxu0 0
        %5345 = vmatmul.mubr.bf16.gmra.mrb[0].mxu0 %v5282
        %v5346 = vpop.f32.mrb[0].mxu0
        %v5347 = vadd.f32 0.0, %v5346
        %v5348 = vpop.f32.mrb[0].mxu0
        %v5349 = vpop.f32.mrb[0].mxu0
        %v5350 = vadd.f32 0.0, %v5349
        %v5351 = vpop.f32.mrb[0].mxu0
        %5352 = vmatprep.mubr.bf16.mxu0 0
        %5353 = vmatmul.mubr.bf16.gmra.mrb[0].mxu0 %v5285
        %v5354 = vpop.f32.mrb[0].mxu0
        %v5355 = vadd.f32 0.0, %v5354
        %v5356 = vpop.f32.mrb[0].mxu0
        %v5357 = vpop.f32.mrb[0].mxu0
        %v5358 = vadd.f32 0.0, %v5357
        %v5359 = vpop.f32.mrb[0].mxu0
        %5360 = vmatprep.mubr.bf16.mxu0 0
        %5361 = vmatmul.mubr.bf16.gmra.mrb[0].mxu0 %v5288
        %v5362 = vpop.f32.mrb[0].mxu0
        %v5363 = vadd.f32 0.0, %v5362
        %v5364 = vpop.f32.mrb[0].mxu0
        %v5365 = vpop.f32.mrb[0].mxu0
        %v5366 = vadd.f32 0.0, %v5365
        %v5367 = vpop.f32.mrb[0].mxu0
        %5368 = vmatprep.mubr.bf16.mxu0 0
        %5369 = vmatmul.mubr.bf16.gmra.mrb[0].mxu0 %v5291
        %v5370 = vpop.f32.mrb[0].mxu0
        %v5371 = vadd.f32 0.0, %v5370
        %v5372 = vpop.f32.mrb[0].mxu0
        %v5373 = vpop.f32.mrb[0].mxu0
        %v5374 = vadd.f32 0.0, %v5373
        %v5375 = vpop.f32.mrb[0].mxu0
        %5376 = vmatprep.mubr.bf16.mxu0 0
        %5377 = vmatmul.mubr.bf16.gmra.mrb[0].mxu0 %v5294
        %v5378 = vpop.f32.mrb[0].mxu0
        %v5379 = vadd.f32 0.0, %v5378
        %v5380 = vpop.f32.mrb[0].mxu0
        %v5381 = vpop.f32.mrb[0].mxu0
        %v5382 = vadd.f32 0.0, %v5381
        %v5383 = vpop.f32.mrb[0].mxu0
        %5384 = vdwg.mxu0
        %v5399 = vunpack.c.l.b16 %v5203
        %v5400 = vunpack.c.l.b16 %v5204
        %v5401 = vunpack.c.l.b16 %v5205
        %v5402 = vunpack.c.l.b16 %v5206
        %v5403 = vunpack.c.l.b16 %v5207
        %v5404 = vunpack.c.l.b16 %v5208
        %v5405 = vunpack.c.l.b16 %v5209
        %v5406 = vunpack.c.l.b16 %v5210
        %v5407 = vunpack.c.l.b16 %v5211
        %v5408 = vunpack.c.l.b16 %v5212
        %v5409 = vunpack.c.l.b16 %v5213
        %v5410 = vunpack.c.l.b16 %v5214
        %v5411 = vunpack.c.l.b16 %v5215
        %v5412 = vunpack.c.l.b16 %v5216
        %v5413 = vpack.c.b16 %v5400, %v5399
        %v5414 = vpack.c.b16 %v5402, %v5401
        %v5415 = vpack.c.b16 %v5404, %v5403
        %v5416 = vpack.c.b16 %v5406, %v5405
        %v5417 = vpack.c.b16 %v5408, %v5407
        %v5418 = vpack.c.b16 %v5410, %v5409
        %v5419 = vpack.c.b16 %v5412, %v5411
        %v5428 = vsel %vm5274, %v5077, 0
        %v5431 = vsel %vm5274, %v5078, 0
        %v5434 = vsel %vm5274, %v5079, 0
        %v5437 = vsel %vm5274, %v5080, 0
        %v5440 = vsel %vm5274, %v5081, 0
        %v5443 = vsel %vm5274, %v5082, 0
        %v5446 = vsel %vm5274, %v5083, 0
        %5448 = vmatprep.subr.bf16.mxu0 0
        %5449 = vmatpush1.bf16.msra.mxu0 %v5413
        %5450 = vmatprep.subr.bf16.mxu0 0
        %5451 = vmatpush1.bf16.msra.mxu0 %v5414
        %5452 = vmatprep.subr.bf16.mxu0 0
        %5453 = vmatpush1.bf16.msra.mxu0 %v5415
        %5454 = vmatprep.subr.bf16.mxu0 0
        %5455 = vmatpush1.bf16.msra.mxu0 %v5416
        %5456 = vmatprep.subr.bf16.mxu0 0
        %5457 = vmatpush1.bf16.msra.mxu0 %v5417
        %5458 = vmatprep.subr.bf16.mxu0 0
        %5459 = vmatpush1.bf16.msra.mxu0 %v5418
        %5460 = vmatprep.subr.bf16.mxu0 0
        %5461 = vmatpush1.bf16.msra.mxu0 %v5419
        %5462 = vmatprep.subr.bf16.mxu0 0
        %5463 = vmatpush1.bf16.msra.mxu0 0
        %5464 = vmatprep.subr.bf16.mxu0 0
        %5465 = vmatpush1.bf16.msra.mxu0 0
        %5466 = vmatprep.subr.bf16.mxu0 0
        %5467 = vmatpush1.bf16.msra.mxu0 0
        %5468 = vmatprep.subr.bf16.mxu0 0
        %5469 = vmatpush1.bf16.msra.mxu0 0
        %5470 = vmatprep.subr.bf16.mxu0 0
        %5471 = vmatpush1.bf16.msra.mxu0 0
        %5472 = vmatprep.subr.bf16.mxu0 0
        %5473 = vmatpush1.bf16.msra.mxu0 0
        %5474 = vmatprep.subr.bf16.mxu0 0
        %5475 = vmatpush1.bf16.msra.mxu0 0
        %5476 = vmatprep.subr.bf16.mxu0 0
        %5477 = vmatpush1.bf16.msra.mxu0 0
        %5478 = vmatprep.subr.bf16.mxu0 0
        %5479 = vmatpush1.bf16.msra.mxu0 0
        %5480 = vmatprep.mubr.bf16.mxu0 0
        %5481 = vmatmul.mubr.bf16.gmra.mrb[0].mxu0 %v5428
        %v5482 = vpop.f32.mrb[0].mxu0
        %v5483 = vadd.f32 %v5331, %v5482
        %v5484 = vpop.f32.mrb[0].mxu0
        %v5485 = vpop.f32.mrb[0].mxu0
        %v5486 = vadd.f32 %v5334, %v5485
        %v5487 = vpop.f32.mrb[0].mxu0
        %5488 = vmatprep.mubr.bf16.mxu0 0
        %5489 = vmatmul.mubr.bf16.gmra.mrb[0].mxu0 %v5431
        %v5490 = vpop.f32.mrb[0].mxu0
        %v5491 = vadd.f32 %v5339, %v5490
        %v5492 = vpop.f32.mrb[0].mxu0
        %v5493 = vpop.f32.mrb[0].mxu0
        %v5494 = vadd.f32 %v5342, %v5493
        %v5495 = vpop.f32.mrb[0].mxu0
        %5496 = vmatprep.mubr.bf16.mxu0 0
        %5497 = vmatmul.mubr.bf16.gmra.mrb[0].mxu0 %v5434
        %v5498 = vpop.f32.mrb[0].mxu0
        %v5499 = vadd.f32 %v5347, %v5498
        %v5500 = vpop.f32.mrb[0].mxu0
        %v5501 = vpop.f32.mrb[0].mxu0
        %v5502 = vadd.f32 %v5350, %v5501
        %v5503 = vpop.f32.mrb[0].mxu0
        %5504 = vmatprep.mubr.bf16.mxu0 0
        %5505 = vmatmul.mubr.bf16.gmra.mrb[0].mxu0 %v5437
        %v5506 = vpop.f32.mrb[0].mxu0
        %v5507 = vadd.f32 %v5355, %v5506
        %v5508 = vpop.f32.mrb[0].mxu0
        %v5509 = vpop.f32.mrb[0].mxu0
        %v5510 = vadd.f32 %v5358, %v5509
        %v5511 = vpop.f32.mrb[0].mxu0
        %5512 = vmatprep.mubr.bf16.mxu0 0
        %5513 = vmatmul.mubr.bf16.gmra.mrb[0].mxu0 %v5440
        %v5514 = vpop.f32.mrb[0].mxu0
        %v5515 = vadd.f32 %v5363, %v5514
        %v5516 = vpop.f32.mrb[0].mxu0
        %v5517 = vpop.f32.mrb[0].mxu0
        %v5518 = vadd.f32 %v5366, %v5517
        %v5519 = vpop.f32.mrb[0].mxu0
        %5520 = vmatprep.mubr.bf16.mxu0 0
        %5521 = vmatmul.mubr.bf16.gmra.mrb[0].mxu0 %v5443
        %v5522 = vpop.f32.mrb[0].mxu0
        %v5523 = vadd.f32 %v5371, %v5522
        %v5524 = vpop.f32.mrb[0].mxu0
        %v5525 = vpop.f32.mrb[0].mxu0
        %v5526 = vadd.f32 %v5374, %v5525
        %v5527 = vpop.f32.mrb[0].mxu0
        %5528 = vmatprep.mubr.bf16.mxu0 0
        %5529 = vmatmul.mubr.bf16.gmra.mrb[0].mxu0 %v5446
        %v5530 = vpop.f32.mrb[0].mxu0
        %v5531 = vadd.f32 %v5379, %v5530
        %v5532 = vpop.f32.mrb[0].mxu0
        %v5533 = vpop.f32.mrb[0].mxu0
        %v5534 = vadd.f32 %v5382, %v5533
        %v5535 = vpop.f32.mrb[0].mxu0
        %5536 = vdwg.mxu0
        %s5537 = scalar_lea.vmem %s9, 112
        %v5538 = vld [vmem:[%s5537] sm:$0xf]
        %v5539 = vld [vmem:[%s5537 + $0x4] sm:$0xf]
        %v5540 = vld [vmem:[%s5537 + $0x8] sm:$0xf]
        %v5541 = vld [vmem:[%s5537 + $0xc] sm:$0xf]
        %v5542 = vld [vmem:[%s5537 + $0x10] sm:$0xf]
        %v5543 = vld [vmem:[%s5537 + $0x14] sm:$0xf]
        %v5544 = vld [vmem:[%s5537 + $0x18] sm:$0xf]
        %v5545 = vld [vmem:[%s5537 + $0x1c] sm:$0xf]
        %v5546 = vld [vmem:[%s5537 + $0x20] sm:$0xf]
        %v5547 = vld [vmem:[%s5537 + $0x24] sm:$0xf]
        %v5548 = vld [vmem:[%s5537 + $0x28] sm:$0xf]
        %v5549 = vld [vmem:[%s5537 + $0x2c] sm:$0xf]
        %v5550 = vld [vmem:[%s5537 + $0x30] sm:$0xf]
        %v5551 = vld [vmem:[%s5537 + $0x34] sm:$0xf]
        %v5566 = vunpack.c.l.b16 %v5538
        %v5567 = vunpack.c.l.b16 %v5539
        %v5568 = vunpack.c.l.b16 %v5540
        %v5569 = vunpack.c.l.b16 %v5541
        %v5570 = vunpack.c.l.b16 %v5542
        %v5571 = vunpack.c.l.b16 %v5543
        %v5572 = vunpack.c.l.b16 %v5544
        %v5573 = vunpack.c.l.b16 %v5545
        %v5574 = vunpack.c.l.b16 %v5546
        %v5575 = vunpack.c.l.b16 %v5547
        %v5576 = vunpack.c.l.b16 %v5548
        %v5577 = vunpack.c.l.b16 %v5549
        %v5578 = vunpack.c.l.b16 %v5550
        %v5579 = vunpack.c.l.b16 %v5551
        %v5580 = vpack.c.b16 %v5567, %v5566
        %v5581 = vpack.c.b16 %v5569, %v5568
        %v5582 = vpack.c.b16 %v5571, %v5570
        %v5583 = vpack.c.b16 %v5573, %v5572
        %v5584 = vpack.c.b16 %v5575, %v5574
        %v5585 = vpack.c.b16 %v5577, %v5576
        %v5586 = vpack.c.b16 %v5579, %v5578
        %v5595 = vsel %vm5274, %v5196, 0
        %v5598 = vsel %vm5274, %v5197, 0
        %v5601 = vsel %vm5274, %v5198, 0
        %v5604 = vsel %vm5274, %v5199, 0
        %v5607 = vsel %vm5274, %v5200, 0
        %v5610 = vsel %vm5274, %v5201, 0
        %v5613 = vsel %vm5274, %v5202, 0
        %5615 = vmatprep.subr.bf16.mxu0 0
        %5616 = vmatpush1.bf16.msra.mxu0 %v5580
        %5617 = vmatprep.subr.bf16.mxu0 0
        %5618 = vmatpush1.bf16.msra.mxu0 %v5581
        %5619 = vmatprep.subr.bf16.mxu0 0
        %5620 = vmatpush1.bf16.msra.mxu0 %v5582
        %5621 = vmatprep.subr.bf16.mxu0 0
        %5622 = vmatpush1.bf16.msra.mxu0 %v5583
        %5623 = vmatprep.subr.bf16.mxu0 0
        %5624 = vmatpush1.bf16.msra.mxu0 %v5584
        %5625 = vmatprep.subr.bf16.mxu0 0
        %5626 = vmatpush1.bf16.msra.mxu0 %v5585
        %5627 = vmatprep.subr.bf16.mxu0 0
        %5628 = vmatpush1.bf16.msra.mxu0 %v5586
        %5629 = vmatprep.subr.bf16.mxu0 0
        %5630 = vmatpush1.bf16.msra.mxu0 0
        %5631 = vmatprep.subr.bf16.mxu0 0
        %5632 = vmatpush1.bf16.msra.mxu0 0
        %5633 = vmatprep.subr.bf16.mxu0 0
        %5634 = vmatpush1.bf16.msra.mxu0 0
        %5635 = vmatprep.subr.bf16.mxu0 0
        %5636 = vmatpush1.bf16.msra.mxu0 0
        %5637 = vmatprep.subr.bf16.mxu0 0
        %5638 = vmatpush1.bf16.msra.mxu0 0
        %5639 = vmatprep.subr.bf16.mxu0 0
        %5640 = vmatpush1.bf16.msra.mxu0 0
        %5641 = vmatprep.subr.bf16.mxu0 0
        %5642 = vmatpush1.bf16.msra.mxu0 0
        %5643 = vmatprep.subr.bf16.mxu0 0
        %5644 = vmatpush1.bf16.msra.mxu0 0
        %5645 = vmatprep.subr.bf16.mxu0 0
        %5646 = vmatpush1.bf16.msra.mxu0 0
        %5647 = vmatprep.mubr.bf16.mxu0 0
        %5648 = vmatmul.mubr.bf16.gmra.mrb[0].mxu0 %v5595
        %v5649 = vpop.f32.mrb[0].mxu0
        %v5650 = vadd.f32 0.0, %v5649
        %v5651 = vpop.f32.mrb[0].mxu0
        %v5652 = vpop.f32.mrb[0].mxu0
        %v5653 = vadd.f32 0.0, %v5652
        %v5654 = vpop.f32.mrb[0].mxu0
        %5655 = vmatprep.mubr.bf16.mxu0 0
        %5656 = vmatmul.mubr.bf16.gmra.mrb[0].mxu0 %v5598
        %v5657 = vpop.f32.mrb[0].mxu0
        %v5658 = vadd.f32 0.0, %v5657
        %v5659 = vpop.f32.mrb[0].mxu0
        %v5660 = vpop.f32.mrb[0].mxu0
        %v5661 = vadd.f32 0.0, %v5660
        %v5662 = vpop.f32.mrb[0].mxu0
        %5663 = vmatprep.mubr.bf16.mxu0 0
        %5664 = vmatmul.mubr.bf16.gmra.mrb[0].mxu0 %v5601
        %v5665 = vpop.f32.mrb[0].mxu0
        %v5666 = vadd.f32 0.0, %v5665
        %v5667 = vpop.f32.mrb[0].mxu0
        %v5668 = vpop.f32.mrb[0].mxu0
        %v5669 = vadd.f32 0.0, %v5668
        %v5670 = vpop.f32.mrb[0].mxu0
        %5671 = vmatprep.mubr.bf16.mxu0 0
        %5672 = vmatmul.mubr.bf16.gmra.mrb[0].mxu0 %v5604
        %v5673 = vpop.f32.mrb[0].mxu0
        %v5674 = vadd.f32 0.0, %v5673
        %v5675 = vpop.f32.mrb[0].mxu0
        %v5676 = vpop.f32.mrb[0].mxu0
        %v5677 = vadd.f32 0.0, %v5676
        %v5678 = vpop.f32.mrb[0].mxu0
        %5679 = vmatprep.mubr.bf16.mxu0 0
        %5680 = vmatmul.mubr.bf16.gmra.mrb[0].mxu0 %v5607
        %v5681 = vpop.f32.mrb[0].mxu0
        %v5682 = vadd.f32 0.0, %v5681
        %v5683 = vpop.f32.mrb[0].mxu0
        %v5684 = vpop.f32.mrb[0].mxu0
        %v5685 = vadd.f32 0.0, %v5684
        %v5686 = vpop.f32.mrb[0].mxu0
        %5687 = vmatprep.mubr.bf16.mxu0 0
        %5688 = vmatmul.mubr.bf16.gmra.mrb[0].mxu0 %v5610
        %v5689 = vpop.f32.mrb[0].mxu0
        %v5690 = vadd.f32 0.0, %v5689
        %v5691 = vpop.f32.mrb[0].mxu0
        %v5692 = vpop.f32.mrb[0].mxu0
        %v5693 = vadd.f32 0.0, %v5692
        %v5694 = vpop.f32.mrb[0].mxu0
        %5695 = vmatprep.mubr.bf16.mxu0 0
        %5696 = vmatmul.mubr.bf16.gmra.mrb[0].mxu0 %v5613
        %v5697 = vpop.f32.mrb[0].mxu0
        %v5698 = vadd.f32 0.0, %v5697
        %v5699 = vpop.f32.mrb[0].mxu0
        %v5700 = vpop.f32.mrb[0].mxu0
        %v5701 = vadd.f32 0.0, %v5700
        %v5702 = vpop.f32.mrb[0].mxu0
        %5703 = vdwg.mxu0
        %v5704 = vadd.f32 %v5483, %v5650
        %v5705 = vadd.f32 %v5486, %v5653
        %v5706 = vadd.f32 %v5491, %v5658
        %v5707 = vadd.f32 %v5494, %v5661
        %v5708 = vadd.f32 %v5499, %v5666
        %v5709 = vadd.f32 %v5502, %v5669
        %v5710 = vadd.f32 %v5507, %v5674
        %v5711 = vadd.f32 %v5510, %v5677
        %v5712 = vadd.f32 %v5515, %v5682
        %v5713 = vadd.f32 %v5518, %v5685
        %v5714 = vadd.f32 %v5523, %v5690
        %v5715 = vadd.f32 %v5526, %v5693
        %v5716 = vadd.f32 %v5531, %v5698
        %v5717 = vadd.f32 %v5534, %v5701
        %v5718 = vld [vmem:[%s10] sm:$0x1]
        %v5720 = vlaneseq
        %v5721 = vshrl.u32 %v5720, 7
        %v5722 = vsub.s32 0, %v5721
        %v5723 = vrot.slane %v5718, %v5722
        %v5725 = vadd.f32 %v5704, %v5723
        %v5726 = vadd.f32 %v5705, %v5723
        %v5727 = vadd.f32 %v5706, %v5723
        %v5728 = vadd.f32 %v5707, %v5723
        %v5729 = vadd.f32 %v5708, %v5723
        %v5730 = vadd.f32 %v5709, %v5723
        %v5731 = vadd.f32 %v5710, %v5723
        %v5732 = vadd.f32 %v5711, %v5723
        %v5733 = vadd.f32 %v5712, %v5723
        %v5734 = vadd.f32 %v5713, %v5723
        %v5735 = vadd.f32 %v5714, %v5723
        %v5736 = vadd.f32 %v5715, %v5723
        %v5737 = vadd.f32 %v5716, %v5723
        %v5738 = vadd.f32 %v5717, %v5723
        %v5739 = vmax.f32 %v5725, 0.0
        %v5740 = vmax.f32 %v5726, 0.0
        %v5741 = vmax.f32 %v5727, 0.0
        %v5742 = vmax.f32 %v5728, 0.0
        %v5743 = vmax.f32 %v5729, 0.0
        %v5744 = vmax.f32 %v5730, 0.0
        %v5745 = vmax.f32 %v5731, 0.0
        %v5746 = vmax.f32 %v5732, 0.0
        %v5747 = vmax.f32 %v5733, 0.0
        %v5748 = vmax.f32 %v5734, 0.0
        %v5749 = vmax.f32 %v5735, 0.0
        %v5750 = vmax.f32 %v5736, 0.0
        %v5751 = vmax.f32 %v5737, 0.0
        %v5752 = vmax.f32 %v5738, 0.0
        %v5753 = vpack.c.bf16 %v5740, %v5739
        %v5754 = vpack.c.bf16 %v5742, %v5741
        %v5755 = vpack.c.bf16 %v5744, %v5743
        %v5756 = vpack.c.bf16 %v5746, %v5745
        %v5757 = vpack.c.bf16 %v5748, %v5747
        %v5758 = vpack.c.bf16 %v5750, %v5749
        %v5759 = vpack.c.bf16 %v5752, %v5751
        %v5760 = vrot.slane %v5739, 7
        %v5761 = vrot.slane %v5740, 7
        %v5762 = vrot.slane %v5741, 7
        %v5763 = vrot.slane %v5742, 7
        %v5764 = vrot.slane %v5743, 7
        %v5765 = vrot.slane %v5744, 7
        %v5766 = vrot.slane %v5745, 7
        %v5767 = vrot.slane %v5746, 7
        %v5768 = vrot.slane %v5747, 7
        %v5769 = vrot.slane %v5748, 7
        %v5770 = vrot.slane %v5749, 7
        %v5771 = vrot.slane %v5750, 7
        %v5772 = vrot.slane %v5751, 7
        %v5773 = vrot.slane %v5752, 7
        %v5774 = vsel %vm814, %v5772, %v5773
        %v5775 = vsel %vm814, %v5771, %v5772
        %v5776 = vsel %vm814, %v5770, %v5771
        %v5777 = vsel %vm814, %v5769, %v5770
        %v5778 = vsel %vm814, %v5768, %v5769
        %v5779 = vsel %vm814, %v5767, %v5768
        %v5780 = vsel %vm814, %v5766, %v5767
        %v5781 = vsel %vm814, %v5765, %v5766
        %v5782 = vsel %vm814, %v5764, %v5765
        %v5783 = vsel %vm814, %v5763, %v5764
        %v5784 = vsel %vm814, %v5762, %v5763
        %v5785 = vsel %vm814, %v5761, %v5762
        %v5786 = vsel %vm814, %v5760, %v5761
        %v5787 = vsel %vm814, %v5773, %v5760
        %v5788 = vmul.f32 %v5787, %v4996
        %v5789 = vmul.f32 %v5786, %v5001
        %v5790 = vmul.f32 %v5785, %v5006
        %v5791 = vmul.f32 %v5784, %v5011
        %v5792 = vmul.f32 %v5783, %v5016
        %v5793 = vmul.f32 %v5782, %v5021
        %v5794 = vmul.f32 %v5781, %v5026
        %v5795 = vmul.f32 %v5780, %v5031
        %v5796 = vmul.f32 %v5779, %v5036
        %v5797 = vmul.f32 %v5778, %v5041
        %v5798 = vmul.f32 %v5777, %v5046
        %v5799 = vmul.f32 %v5776, %v5051
        %v5800 = vmul.f32 %v5775, %v5056
        %v5801 = vmul.f32 %v5774, %v5061
        %v5802 = vpack.c.bf16 %v5789, %v5788
        %v5803 = vpack.c.bf16 %v5791, %v5790
        %v5804 = vpack.c.bf16 %v5793, %v5792
        %v5805 = vpack.c.bf16 %v5795, %v5794
        %v5806 = vpack.c.bf16 %v5797, %v5796
        %v5807 = vpack.c.bf16 %v5799, %v5798
        %v5808 = vpack.c.bf16 %v5801, %v5800
        %v5809 = vrot.slane %v5739, 1
        %v5810 = vrot.slane %v5740, 1
        %v5811 = vrot.slane %v5741, 1
        %v5812 = vrot.slane %v5742, 1
        %v5813 = vrot.slane %v5743, 1
        %v5814 = vrot.slane %v5744, 1
        %v5815 = vrot.slane %v5745, 1
        %v5816 = vrot.slane %v5746, 1
        %v5817 = vrot.slane %v5747, 1
        %v5818 = vrot.slane %v5748, 1
        %v5819 = vrot.slane %v5749, 1
        %v5820 = vrot.slane %v5750, 1
        %v5821 = vrot.slane %v5751, 1
        %v5822 = vrot.slane %v5752, 1
        %v5823 = vsel %vm1053, %v5821, %v5822
        %v5824 = vsel %vm1053, %v5820, %v5821
        %v5825 = vsel %vm1053, %v5819, %v5820
        %v5826 = vsel %vm1053, %v5818, %v5819
        %v5827 = vsel %vm1053, %v5817, %v5818
        %v5828 = vsel %vm1053, %v5816, %v5817
        %v5829 = vsel %vm1053, %v5815, %v5816
        %v5830 = vsel %vm1053, %v5814, %v5815
        %v5831 = vsel %vm1053, %v5813, %v5814
        %v5832 = vsel %vm1053, %v5812, %v5813
        %v5833 = vsel %vm1053, %v5811, %v5812
        %v5834 = vsel %vm1053, %v5810, %v5811
        %v5835 = vsel %vm1053, %v5809, %v5810
        %v5836 = vsel %vm1053, %v5822, %v5809
        %v5837 = vmul.f32 %v5835, %v5115
        %v5838 = vmul.f32 %v5834, %v5120
        %v5839 = vmul.f32 %v5833, %v5125
        %v5840 = vmul.f32 %v5832, %v5130
        %v5841 = vmul.f32 %v5831, %v5135
        %v5842 = vmul.f32 %v5830, %v5140
        %v5843 = vmul.f32 %v5829, %v5145
        %v5844 = vmul.f32 %v5828, %v5150
        %v5845 = vmul.f32 %v5827, %v5155
        %v5846 = vmul.f32 %v5826, %v5160
        %v5847 = vmul.f32 %v5825, %v5165
        %v5848 = vmul.f32 %v5824, %v5170
        %v5849 = vmul.f32 %v5823, %v5175
        %v5850 = vmul.f32 %v5836, %v5180
        %v5851 = vpack.c.bf16 %v5838, %v5837
        %v5852 = vpack.c.bf16 %v5840, %v5839
        %v5853 = vpack.c.bf16 %v5842, %v5841
        %v5854 = vpack.c.bf16 %v5844, %v5843
        %v5855 = vpack.c.bf16 %v5846, %v5845
        %v5856 = vpack.c.bf16 %v5848, %v5847
        %v5857 = vpack.c.bf16 %v5850, %v5849
        %v5858 = vld [vmem:[%s11] sm:$0xf]
        %v5859 = vld [vmem:[%s11 + $0x4] sm:$0xf]
        %v5860 = vld [vmem:[%s11 + $0x8] sm:$0xf]
        %v5861 = vld [vmem:[%s11 + $0xc] sm:$0xf]
        %v5862 = vld [vmem:[%s11 + $0x10] sm:$0xf]
        %v5863 = vld [vmem:[%s11 + $0x14] sm:$0xf]
        %v5864 = vld [vmem:[%s11 + $0x18] sm:$0xf]
        %v5865 = vld [vmem:[%s11 + $0x1c] sm:$0xf]
        %v5866 = vld [vmem:[%s11 + $0x20] sm:$0xf]
        %v5867 = vld [vmem:[%s11 + $0x24] sm:$0xf]
        %v5868 = vld [vmem:[%s11 + $0x28] sm:$0xf]
        %v5869 = vld [vmem:[%s11 + $0x2c] sm:$0xf]
        %v5870 = vld [vmem:[%s11 + $0x30] sm:$0xf]
        %v5871 = vld [vmem:[%s11 + $0x34] sm:$0xf]
        %s5872 = scalar_lea.vmem %s11, 56
        %v5873 = vld [vmem:[%s5872] sm:$0xf]
        %v5874 = vld [vmem:[%s5872 + $0x4] sm:$0xf]
        %v5875 = vld [vmem:[%s5872 + $0x8] sm:$0xf]
        %v5876 = vld [vmem:[%s5872 + $0xc] sm:$0xf]
        %v5877 = vld [vmem:[%s5872 + $0x10] sm:$0xf]
        %v5878 = vld [vmem:[%s5872 + $0x14] sm:$0xf]
        %v5879 = vld [vmem:[%s5872 + $0x18] sm:$0xf]
        %v5880 = vld [vmem:[%s5872 + $0x1c] sm:$0xf]
        %v5881 = vld [vmem:[%s5872 + $0x20] sm:$0xf]
        %v5882 = vld [vmem:[%s5872 + $0x24] sm:$0xf]
        %v5883 = vld [vmem:[%s5872 + $0x28] sm:$0xf]
        %v5884 = vld [vmem:[%s5872 + $0x2c] sm:$0xf]
        %v5885 = vld [vmem:[%s5872 + $0x30] sm:$0xf]
        %v5886 = vld [vmem:[%s5872 + $0x34] sm:$0xf]
        %v5901 = vunpack.c.l.b16 %v5873
        %v5902 = vunpack.c.l.b16 %v5874
        %v5903 = vunpack.c.l.b16 %v5875
        %v5904 = vunpack.c.l.b16 %v5876
        %v5905 = vunpack.c.l.b16 %v5877
        %v5906 = vunpack.c.l.b16 %v5878
        %v5907 = vunpack.c.l.b16 %v5879
        %v5908 = vunpack.c.l.b16 %v5880
        %v5909 = vunpack.c.l.b16 %v5881
        %v5910 = vunpack.c.l.b16 %v5882
        %v5911 = vunpack.c.l.b16 %v5883
        %v5912 = vunpack.c.l.b16 %v5884
        %v5913 = vunpack.c.l.b16 %v5885
        %v5914 = vunpack.c.l.b16 %v5886
        %v5915 = vpack.c.b16 %v5902, %v5901
        %v5916 = vpack.c.b16 %v5904, %v5903
        %v5917 = vpack.c.b16 %v5906, %v5905
        %v5918 = vpack.c.b16 %v5908, %v5907
        %v5919 = vpack.c.b16 %v5910, %v5909
        %v5920 = vpack.c.b16 %v5912, %v5911
        %v5921 = vpack.c.b16 %v5914, %v5913
        %v5930 = vsel %vm5274, %v5753, 0
        %v5933 = vsel %vm5274, %v5754, 0
        %v5936 = vsel %vm5274, %v5755, 0
        %v5939 = vsel %vm5274, %v5756, 0
        %v5942 = vsel %vm5274, %v5757, 0
        %v5945 = vsel %vm5274, %v5758, 0
        %v5948 = vsel %vm5274, %v5759, 0
        %5950 = vmatprep.subr.bf16.mxu0 0
        %5951 = vmatpush1.bf16.msra.mxu0 %v5915
        %5952 = vmatprep.subr.bf16.mxu0 0
        %5953 = vmatpush1.bf16.msra.mxu0 %v5916
        %5954 = vmatprep.subr.bf16.mxu0 0
        %5955 = vmatpush1.bf16.msra.mxu0 %v5917
        %5956 = vmatprep.subr.bf16.mxu0 0
        %5957 = vmatpush1.bf16.msra.mxu0 %v5918
        %5958 = vmatprep.subr.bf16.mxu0 0
        %5959 = vmatpush1.bf16.msra.mxu0 %v5919
        %5960 = vmatprep.subr.bf16.mxu0 0
        %5961 = vmatpush1.bf16.msra.mxu0 %v5920
        %5962 = vmatprep.subr.bf16.mxu0 0
        %5963 = vmatpush1.bf16.msra.mxu0 %v5921
        %5964 = vmatprep.subr.bf16.mxu0 0
        %5965 = vmatpush1.bf16.msra.mxu0 0
        %5966 = vmatprep.subr.bf16.mxu0 0
        %5967 = vmatpush1.bf16.msra.mxu0 0
        %5968 = vmatprep.subr.bf16.mxu0 0
        %5969 = vmatpush1.bf16.msra.mxu0 0
        %5970 = vmatprep.subr.bf16.mxu0 0
        %5971 = vmatpush1.bf16.msra.mxu0 0
        %5972 = vmatprep.subr.bf16.mxu0 0
        %5973 = vmatpush1.bf16.msra.mxu0 0
        %5974 = vmatprep.subr.bf16.mxu0 0
        %5975 = vmatpush1.bf16.msra.mxu0 0
        %5976 = vmatprep.subr.bf16.mxu0 0
        %5977 = vmatpush1.bf16.msra.mxu0 0
        %5978 = vmatprep.subr.bf16.mxu0 0
        %5979 = vmatpush1.bf16.msra.mxu0 0
        %5980 = vmatprep.subr.bf16.mxu0 0
        %5981 = vmatpush1.bf16.msra.mxu0 0
        %5982 = vmatprep.mubr.bf16.mxu0 0
        %5983 = vmatmul.mubr.bf16.gmra.mrb[0].mxu0 %v5930
        %v5984 = vpop.f32.mrb[0].mxu0
        %v5985 = vadd.f32 0.0, %v5984
        %v5986 = vpop.f32.mrb[0].mxu0
        %v5987 = vpop.f32.mrb[0].mxu0
        %v5988 = vadd.f32 0.0, %v5987
        %v5989 = vpop.f32.mrb[0].mxu0
        %5990 = vmatprep.mubr.bf16.mxu0 0
        %5991 = vmatmul.mubr.bf16.gmra.mrb[0].mxu0 %v5933
        %v5992 = vpop.f32.mrb[0].mxu0
        %v5993 = vadd.f32 0.0, %v5992
        %v5994 = vpop.f32.mrb[0].mxu0
        %v5995 = vpop.f32.mrb[0].mxu0
        %v5996 = vadd.f32 0.0, %v5995
        %v5997 = vpop.f32.mrb[0].mxu0
        %5998 = vmatprep.mubr.bf16.mxu0 0
        %5999 = vmatmul.mubr.bf16.gmra.mrb[0].mxu0 %v5936
        %v6000 = vpop.f32.mrb[0].mxu0
        %v6001 = vadd.f32 0.0, %v6000
        %v6002 = vpop.f32.mrb[0].mxu0
        %v6003 = vpop.f32.mrb[0].mxu0
        %v6004 = vadd.f32 0.0, %v6003
        %v6005 = vpop.f32.mrb[0].mxu0
        %6006 = vmatprep.mubr.bf16.mxu0 0
        %6007 = vmatmul.mubr.bf16.gmra.mrb[0].mxu0 %v5939
        %v6008 = vpop.f32.mrb[0].mxu0
        %v6009 = vadd.f32 0.0, %v6008
        %v6010 = vpop.f32.mrb[0].mxu0
        %v6011 = vpop.f32.mrb[0].mxu0
        %v6012 = vadd.f32 0.0, %v6011
        %v6013 = vpop.f32.mrb[0].mxu0
        %6014 = vmatprep.mubr.bf16.mxu0 0
        %6015 = vmatmul.mubr.bf16.gmra.mrb[0].mxu0 %v5942
        %v6016 = vpop.f32.mrb[0].mxu0
        %v6017 = vadd.f32 0.0, %v6016
        %v6018 = vpop.f32.mrb[0].mxu0
        %v6019 = vpop.f32.mrb[0].mxu0
        %v6020 = vadd.f32 0.0, %v6019
        %v6021 = vpop.f32.mrb[0].mxu0
        %6022 = vmatprep.mubr.bf16.mxu0 0
        %6023 = vmatmul.mubr.bf16.gmra.mrb[0].mxu0 %v5945
        %v6024 = vpop.f32.mrb[0].mxu0
        %v6025 = vadd.f32 0.0, %v6024
        %v6026 = vpop.f32.mrb[0].mxu0
        %v6027 = vpop.f32.mrb[0].mxu0
        %v6028 = vadd.f32 0.0, %v6027
        %v6029 = vpop.f32.mrb[0].mxu0
        %6030 = vmatprep.mubr.bf16.mxu0 0
        %6031 = vmatmul.mubr.bf16.gmra.mrb[0].mxu0 %v5948
        %v6032 = vpop.f32.mrb[0].mxu0
        %v6033 = vadd.f32 0.0, %v6032
        %v6034 = vpop.f32.mrb[0].mxu0
        %v6035 = vpop.f32.mrb[0].mxu0
        %v6036 = vadd.f32 0.0, %v6035
        %v6037 = vpop.f32.mrb[0].mxu0
        %6038 = vdwg.mxu0
        %v6053 = vunpack.c.l.b16 %v5858
        %v6054 = vunpack.c.l.b16 %v5859
        %v6055 = vunpack.c.l.b16 %v5860
        %v6056 = vunpack.c.l.b16 %v5861
        %v6057 = vunpack.c.l.b16 %v5862
        %v6058 = vunpack.c.l.b16 %v5863
        %v6059 = vunpack.c.l.b16 %v5864
        %v6060 = vunpack.c.l.b16 %v5865
        %v6061 = vunpack.c.l.b16 %v5866
        %v6062 = vunpack.c.l.b16 %v5867
        %v6063 = vunpack.c.l.b16 %v5868
        %v6064 = vunpack.c.l.b16 %v5869
        %v6065 = vunpack.c.l.b16 %v5870
        %v6066 = vunpack.c.l.b16 %v5871
        %v6067 = vpack.c.b16 %v6054, %v6053
        %v6068 = vpack.c.b16 %v6056, %v6055
        %v6069 = vpack.c.b16 %v6058, %v6057
        %v6070 = vpack.c.b16 %v6060, %v6059
        %v6071 = vpack.c.b16 %v6062, %v6061
        %v6072 = vpack.c.b16 %v6064, %v6063
        %v6073 = vpack.c.b16 %v6066, %v6065
        %v6082 = vsel %vm5274, %v5802, 0
        %v6085 = vsel %vm5274, %v5803, 0
        %v6088 = vsel %vm5274, %v5804, 0
        %v6091 = vsel %vm5274, %v5805, 0
        %v6094 = vsel %vm5274, %v5806, 0
        %v6097 = vsel %vm5274, %v5807, 0
        %v6100 = vsel %vm5274, %v5808, 0
        %6102 = vmatprep.subr.bf16.mxu0 0
        %6103 = vmatpush1.bf16.msra.mxu0 %v6067
        %6104 = vmatprep.subr.bf16.mxu0 0
        %6105 = vmatpush1.bf16.msra.mxu0 %v6068
        %6106 = vmatprep.subr.bf16.mxu0 0
        %6107 = vmatpush1.bf16.msra.mxu0 %v6069
        %6108 = vmatprep.subr.bf16.mxu0 0
        %6109 = vmatpush1.bf16.msra.mxu0 %v6070
        %6110 = vmatprep.subr.bf16.mxu0 0
        %6111 = vmatpush1.bf16.msra.mxu0 %v6071
        %6112 = vmatprep.subr.bf16.mxu0 0
        %6113 = vmatpush1.bf16.msra.mxu0 %v6072
        %6114 = vmatprep.subr.bf16.mxu0 0
        %6115 = vmatpush1.bf16.msra.mxu0 %v6073
        %6116 = vmatprep.subr.bf16.mxu0 0
        %6117 = vmatpush1.bf16.msra.mxu0 0
        %6118 = vmatprep.subr.bf16.mxu0 0
        %6119 = vmatpush1.bf16.msra.mxu0 0
        %6120 = vmatprep.subr.bf16.mxu0 0
        %6121 = vmatpush1.bf16.msra.mxu0 0
        %6122 = vmatprep.subr.bf16.mxu0 0
        %6123 = vmatpush1.bf16.msra.mxu0 0
        %6124 = vmatprep.subr.bf16.mxu0 0
        %6125 = vmatpush1.bf16.msra.mxu0 0
        %6126 = vmatprep.subr.bf16.mxu0 0
        %6127 = vmatpush1.bf16.msra.mxu0 0
        %6128 = vmatprep.subr.bf16.mxu0 0
        %6129 = vmatpush1.bf16.msra.mxu0 0
        %6130 = vmatprep.subr.bf16.mxu0 0
        %6131 = vmatpush1.bf16.msra.mxu0 0
        %6132 = vmatprep.subr.bf16.mxu0 0
        %6133 = vmatpush1.bf16.msra.mxu0 0
        %6134 = vmatprep.mubr.bf16.mxu0 0
        %6135 = vmatmul.mubr.bf16.gmra.mrb[0].mxu0 %v6082
        %v6136 = vpop.f32.mrb[0].mxu0
        %v6137 = vadd.f32 %v5985, %v6136
        %v6138 = vpop.f32.mrb[0].mxu0
        %v6139 = vpop.f32.mrb[0].mxu0
        %v6140 = vadd.f32 %v5988, %v6139
        %v6141 = vpop.f32.mrb[0].mxu0
        %6142 = vmatprep.mubr.bf16.mxu0 0
        %6143 = vmatmul.mubr.bf16.gmra.mrb[0].mxu0 %v6085
        %v6144 = vpop.f32.mrb[0].mxu0
        %v6145 = vadd.f32 %v5993, %v6144
        %v6146 = vpop.f32.mrb[0].mxu0
        %v6147 = vpop.f32.mrb[0].mxu0
        %v6148 = vadd.f32 %v5996, %v6147
        %v6149 = vpop.f32.mrb[0].mxu0
        %6150 = vmatprep.mubr.bf16.mxu0 0
        %6151 = vmatmul.mubr.bf16.gmra.mrb[0].mxu0 %v6088
        %v6152 = vpop.f32.mrb[0].mxu0
        %v6153 = vadd.f32 %v6001, %v6152
        %v6154 = vpop.f32.mrb[0].mxu0
        %v6155 = vpop.f32.mrb[0].mxu0
        %v6156 = vadd.f32 %v6004, %v6155
        %v6157 = vpop.f32.mrb[0].mxu0
        %6158 = vmatprep.mubr.bf16.mxu0 0
        %6159 = vmatmul.mubr.bf16.gmra.mrb[0].mxu0 %v6091
        %v6160 = vpop.f32.mrb[0].mxu0
        %v6161 = vadd.f32 %v6009, %v6160
        %v6162 = vpop.f32.mrb[0].mxu0
        %v6163 = vpop.f32.mrb[0].mxu0
        %v6164 = vadd.f32 %v6012, %v6163
        %v6165 = vpop.f32.mrb[0].mxu0
        %6166 = vmatprep.mubr.bf16.mxu0 0
        %6167 = vmatmul.mubr.bf16.gmra.mrb[0].mxu0 %v6094
        %v6168 = vpop.f32.mrb[0].mxu0
        %v6169 = vadd.f32 %v6017, %v6168
        %v6170 = vpop.f32.mrb[0].mxu0
        %v6171 = vpop.f32.mrb[0].mxu0
        %v6172 = vadd.f32 %v6020, %v6171
        %v6173 = vpop.f32.mrb[0].mxu0
        %6174 = vmatprep.mubr.bf16.mxu0 0
        %6175 = vmatmul.mubr.bf16.gmra.mrb[0].mxu0 %v6097
        %v6176 = vpop.f32.mrb[0].mxu0
        %v6177 = vadd.f32 %v6025, %v6176
        %v6178 = vpop.f32.mrb[0].mxu0
        %v6179 = vpop.f32.mrb[0].mxu0
        %v6180 = vadd.f32 %v6028, %v6179
        %v6181 = vpop.f32.mrb[0].mxu0
        %6182 = vmatprep.mubr.bf16.mxu0 0
        %6183 = vmatmul.mubr.bf16.gmra.mrb[0].mxu0 %v6100
        %v6184 = vpop.f32.mrb[0].mxu0
        %v6185 = vadd.f32 %v6033, %v6184
        %v6186 = vpop.f32.mrb[0].mxu0
        %v6187 = vpop.f32.mrb[0].mxu0
        %v6188 = vadd.f32 %v6036, %v6187
        %v6189 = vpop.f32.mrb[0].mxu0
        %6190 = vdwg.mxu0
        %s6191 = scalar_lea.vmem %s11, 112
        %v6192 = vld [vmem:[%s6191] sm:$0xf]
        %v6193 = vld [vmem:[%s6191 + $0x4] sm:$0xf]
        %v6194 = vld [vmem:[%s6191 + $0x8] sm:$0xf]
        %v6195 = vld [vmem:[%s6191 + $0xc] sm:$0xf]
        %v6196 = vld [vmem:[%s6191 + $0x10] sm:$0xf]
        %v6197 = vld [vmem:[%s6191 + $0x14] sm:$0xf]
        %v6198 = vld [vmem:[%s6191 + $0x18] sm:$0xf]
        %v6199 = vld [vmem:[%s6191 + $0x1c] sm:$0xf]
        %v6200 = vld [vmem:[%s6191 + $0x20] sm:$0xf]
        %v6201 = vld [vmem:[%s6191 + $0x24] sm:$0xf]
        %v6202 = vld [vmem:[%s6191 + $0x28] sm:$0xf]
        %v6203 = vld [vmem:[%s6191 + $0x2c] sm:$0xf]
        %v6204 = vld [vmem:[%s6191 + $0x30] sm:$0xf]
        %v6205 = vld [vmem:[%s6191 + $0x34] sm:$0xf]
        %v6220 = vunpack.c.l.b16 %v6192
        %v6221 = vunpack.c.l.b16 %v6193
        %v6222 = vunpack.c.l.b16 %v6194
        %v6223 = vunpack.c.l.b16 %v6195
        %v6224 = vunpack.c.l.b16 %v6196
        %v6225 = vunpack.c.l.b16 %v6197
        %v6226 = vunpack.c.l.b16 %v6198
        %v6227 = vunpack.c.l.b16 %v6199
        %v6228 = vunpack.c.l.b16 %v6200
        %v6229 = vunpack.c.l.b16 %v6201
        %v6230 = vunpack.c.l.b16 %v6202
        %v6231 = vunpack.c.l.b16 %v6203
        %v6232 = vunpack.c.l.b16 %v6204
        %v6233 = vunpack.c.l.b16 %v6205
        %v6234 = vpack.c.b16 %v6221, %v6220
        %v6235 = vpack.c.b16 %v6223, %v6222
        %v6236 = vpack.c.b16 %v6225, %v6224
        %v6237 = vpack.c.b16 %v6227, %v6226
        %v6238 = vpack.c.b16 %v6229, %v6228
        %v6239 = vpack.c.b16 %v6231, %v6230
        %v6240 = vpack.c.b16 %v6233, %v6232
        %v6249 = vsel %vm5274, %v5851, 0
        %v6252 = vsel %vm5274, %v5852, 0
        %v6255 = vsel %vm5274, %v5853, 0
        %v6258 = vsel %vm5274, %v5854, 0
        %v6261 = vsel %vm5274, %v5855, 0
        %v6264 = vsel %vm5274, %v5856, 0
        %v6267 = vsel %vm5274, %v5857, 0
        %6269 = vmatprep.subr.bf16.mxu0 0
        %6270 = vmatpush1.bf16.msra.mxu0 %v6234
        %6271 = vmatprep.subr.bf16.mxu0 0
        %6272 = vmatpush1.bf16.msra.mxu0 %v6235
        %6273 = vmatprep.subr.bf16.mxu0 0
        %6274 = vmatpush1.bf16.msra.mxu0 %v6236
        %6275 = vmatprep.subr.bf16.mxu0 0
        %6276 = vmatpush1.bf16.msra.mxu0 %v6237
        %6277 = vmatprep.subr.bf16.mxu0 0
        %6278 = vmatpush1.bf16.msra.mxu0 %v6238
        %6279 = vmatprep.subr.bf16.mxu0 0
        %6280 = vmatpush1.bf16.msra.mxu0 %v6239
        %6281 = vmatprep.subr.bf16.mxu0 0
        %6282 = vmatpush1.bf16.msra.mxu0 %v6240
        %6283 = vmatprep.subr.bf16.mxu0 0
        %6284 = vmatpush1.bf16.msra.mxu0 0
        %6285 = vmatprep.subr.bf16.mxu0 0
        %6286 = vmatpush1.bf16.msra.mxu0 0
        %6287 = vmatprep.subr.bf16.mxu0 0
        %6288 = vmatpush1.bf16.msra.mxu0 0
        %6289 = vmatprep.subr.bf16.mxu0 0
        %6290 = vmatpush1.bf16.msra.mxu0 0
        %6291 = vmatprep.subr.bf16.mxu0 0
        %6292 = vmatpush1.bf16.msra.mxu0 0
        %6293 = vmatprep.subr.bf16.mxu0 0
        %6294 = vmatpush1.bf16.msra.mxu0 0
        %6295 = vmatprep.subr.bf16.mxu0 0
        %6296 = vmatpush1.bf16.msra.mxu0 0
        %6297 = vmatprep.subr.bf16.mxu0 0
        %6298 = vmatpush1.bf16.msra.mxu0 0
        %6299 = vmatprep.subr.bf16.mxu0 0
        %6300 = vmatpush1.bf16.msra.mxu0 0
        %6301 = vmatprep.mubr.bf16.mxu0 0
        %6302 = vmatmul.mubr.bf16.gmra.mrb[0].mxu0 %v6249
        %v6303 = vpop.f32.mrb[0].mxu0
        %v6304 = vadd.f32 0.0, %v6303
        %v6305 = vpop.f32.mrb[0].mxu0
        %v6306 = vpop.f32.mrb[0].mxu0
        %v6307 = vadd.f32 0.0, %v6306
        %v6308 = vpop.f32.mrb[0].mxu0
        %6309 = vmatprep.mubr.bf16.mxu0 0
        %6310 = vmatmul.mubr.bf16.gmra.mrb[0].mxu0 %v6252
        %v6311 = vpop.f32.mrb[0].mxu0
        %v6312 = vadd.f32 0.0, %v6311
        %v6313 = vpop.f32.mrb[0].mxu0
        %v6314 = vpop.f32.mrb[0].mxu0
        %v6315 = vadd.f32 0.0, %v6314
        %v6316 = vpop.f32.mrb[0].mxu0
        %6317 = vmatprep.mubr.bf16.mxu0 0
        %6318 = vmatmul.mubr.bf16.gmra.mrb[0].mxu0 %v6255
        %v6319 = vpop.f32.mrb[0].mxu0
        %v6320 = vadd.f32 0.0, %v6319
        %v6321 = vpop.f32.mrb[0].mxu0
        %v6322 = vpop.f32.mrb[0].mxu0
        %v6323 = vadd.f32 0.0, %v6322
        %v6324 = vpop.f32.mrb[0].mxu0
        %6325 = vmatprep.mubr.bf16.mxu0 0
        %6326 = vmatmul.mubr.bf16.gmra.mrb[0].mxu0 %v6258
        %v6327 = vpop.f32.mrb[0].mxu0
        %v6328 = vadd.f32 0.0, %v6327
        %v6329 = vpop.f32.mrb[0].mxu0
        %v6330 = vpop.f32.mrb[0].mxu0
        %v6331 = vadd.f32 0.0, %v6330
        %v6332 = vpop.f32.mrb[0].mxu0
        %6333 = vmatprep.mubr.bf16.mxu0 0
        %6334 = vmatmul.mubr.bf16.gmra.mrb[0].mxu0 %v6261
        %v6335 = vpop.f32.mrb[0].mxu0
        %v6336 = vadd.f32 0.0, %v6335
        %v6337 = vpop.f32.mrb[0].mxu0
        %v6338 = vpop.f32.mrb[0].mxu0
        %v6339 = vadd.f32 0.0, %v6338
        %v6340 = vpop.f32.mrb[0].mxu0
        %6341 = vmatprep.mubr.bf16.mxu0 0
        %6342 = vmatmul.mubr.bf16.gmra.mrb[0].mxu0 %v6264
        %v6343 = vpop.f32.mrb[0].mxu0
        %v6344 = vadd.f32 0.0, %v6343
        %v6345 = vpop.f32.mrb[0].mxu0
        %v6346 = vpop.f32.mrb[0].mxu0
        %v6347 = vadd.f32 0.0, %v6346
        %v6348 = vpop.f32.mrb[0].mxu0
        %6349 = vmatprep.mubr.bf16.mxu0 0
        %6350 = vmatmul.mubr.bf16.gmra.mrb[0].mxu0 %v6267
        %v6351 = vpop.f32.mrb[0].mxu0
        %v6352 = vadd.f32 0.0, %v6351
        %v6353 = vpop.f32.mrb[0].mxu0
        %v6354 = vpop.f32.mrb[0].mxu0
        %v6355 = vadd.f32 0.0, %v6354
        %v6356 = vpop.f32.mrb[0].mxu0
        %6357 = vdwg.mxu0
        %v6358 = vadd.f32 %v6137, %v6304
        %v6359 = vadd.f32 %v6140, %v6307
        %v6360 = vadd.f32 %v6145, %v6312
        %v6361 = vadd.f32 %v6148, %v6315
        %v6362 = vadd.f32 %v6153, %v6320
        %v6363 = vadd.f32 %v6156, %v6323
        %v6364 = vadd.f32 %v6161, %v6328
        %v6365 = vadd.f32 %v6164, %v6331
        %v6366 = vadd.f32 %v6169, %v6336
        %v6367 = vadd.f32 %v6172, %v6339
        %v6368 = vadd.f32 %v6177, %v6344
        %v6369 = vadd.f32 %v6180, %v6347
        %v6370 = vadd.f32 %v6185, %v6352
        %v6371 = vadd.f32 %v6188, %v6355
        %v6372 = vld [vmem:[%s12] sm:$0x1]
        %v6374 = vlaneseq
        %v6375 = vshrl.u32 %v6374, 7
        %v6376 = vsub.s32 0, %v6375
        %v6377 = vrot.slane %v6372, %v6376
        %v6379 = vadd.f32 %v6358, %v6377
        %v6380 = vadd.f32 %v6359, %v6377
        %v6381 = vadd.f32 %v6360, %v6377
        %v6382 = vadd.f32 %v6361, %v6377
        %v6383 = vadd.f32 %v6362, %v6377
        %v6384 = vadd.f32 %v6363, %v6377
        %v6385 = vadd.f32 %v6364, %v6377
        %v6386 = vadd.f32 %v6365, %v6377
        %v6387 = vadd.f32 %v6366, %v6377
        %v6388 = vadd.f32 %v6367, %v6377
        %v6389 = vadd.f32 %v6368, %v6377
        %v6390 = vadd.f32 %v6369, %v6377
        %v6391 = vadd.f32 %v6370, %v6377
        %v6392 = vadd.f32 %v6371, %v6377
        %v6393 = vmax.f32 %v6379, 0.0
        %v6394 = vmax.f32 %v6380, 0.0
        %v6395 = vmax.f32 %v6381, 0.0
        %v6396 = vmax.f32 %v6382, 0.0
        %v6397 = vmax.f32 %v6383, 0.0
        %v6398 = vmax.f32 %v6384, 0.0
        %v6399 = vmax.f32 %v6385, 0.0
        %v6400 = vmax.f32 %v6386, 0.0
        %v6401 = vmax.f32 %v6387, 0.0
        %v6402 = vmax.f32 %v6388, 0.0
        %v6403 = vmax.f32 %v6389, 0.0
        %v6404 = vmax.f32 %v6390, 0.0
        %v6405 = vmax.f32 %v6391, 0.0
        %v6406 = vmax.f32 %v6392, 0.0
        %v6407 = vpack.c.bf16 %v6394, %v6393
        %v6408 = vpack.c.bf16 %v6396, %v6395
        %v6409 = vpack.c.bf16 %v6398, %v6397
        %v6410 = vpack.c.bf16 %v6400, %v6399
        %v6411 = vpack.c.bf16 %v6402, %v6401
        %v6412 = vpack.c.bf16 %v6404, %v6403
        %v6413 = vpack.c.bf16 %v6406, %v6405
        %v6414 = vld [vmem:[%s16] sm:$0xf]
        %v6415 = vld [vmem:[%s16 + $0x4] sm:$0xf]
        %v6416 = vld [vmem:[%s16 + $0x8] sm:$0xf]
        %v6417 = vld [vmem:[%s16 + $0xc] sm:$0xf]
        %v6418 = vld [vmem:[%s16 + $0x10] sm:$0xf]
        %v6419 = vld [vmem:[%s16 + $0x14] sm:$0xf]
        %v6420 = vld [vmem:[%s16 + $0x18] sm:$0xf]
        %v6421 = vld [vmem:[%s16 + $0x1c] sm:$0xf]
        %v6422 = vld [vmem:[%s16 + $0x20] sm:$0xf]
        %v6423 = vld [vmem:[%s16 + $0x24] sm:$0xf]
        %v6424 = vld [vmem:[%s16 + $0x28] sm:$0xf]
        %v6425 = vld [vmem:[%s16 + $0x2c] sm:$0xf]
        %v6426 = vld [vmem:[%s16 + $0x30] sm:$0xf]
        %v6427 = vld [vmem:[%s16 + $0x34] sm:$0xf]
        %v6442 = vunpack.c.l.b16 %v6414
        %v6443 = vunpack.c.l.b16 %v6415
        %v6444 = vunpack.c.l.b16 %v6416
        %v6445 = vunpack.c.l.b16 %v6417
        %v6446 = vunpack.c.l.b16 %v6418
        %v6447 = vunpack.c.l.b16 %v6419
        %v6448 = vunpack.c.l.b16 %v6420
        %v6449 = vunpack.c.l.b16 %v6421
        %v6450 = vunpack.c.l.b16 %v6422
        %v6451 = vunpack.c.l.b16 %v6423
        %v6452 = vunpack.c.l.b16 %v6424
        %v6453 = vunpack.c.l.b16 %v6425
        %v6454 = vunpack.c.l.b16 %v6426
        %v6455 = vunpack.c.l.b16 %v6427
        %v6456 = vpack.c.b16 %v6443, %v6442
        %v6457 = vpack.c.b16 %v6445, %v6444
        %v6458 = vpack.c.b16 %v6447, %v6446
        %v6459 = vpack.c.b16 %v6449, %v6448
        %v6460 = vpack.c.b16 %v6451, %v6450
        %v6461 = vpack.c.b16 %v6453, %v6452
        %v6462 = vpack.c.b16 %v6455, %v6454
        %v6471 = vsel %vm5274, %v6407, 0
        %v6474 = vsel %vm5274, %v6408, 0
        %v6477 = vsel %vm5274, %v6409, 0
        %v6480 = vsel %vm5274, %v6410, 0
        %v6483 = vsel %vm5274, %v6411, 0
        %v6486 = vsel %vm5274, %v6412, 0
        %v6489 = vsel %vm5274, %v6413, 0
        %6491 = vmatprep.subr.bf16.mxu0 0
        %6492 = vmatpush1.bf16.msra.mxu0 %v6456
        %6493 = vmatprep.subr.bf16.mxu0 0
        %6494 = vmatpush1.bf16.msra.mxu0 %v6457
        %6495 = vmatprep.subr.bf16.mxu0 0
        %6496 = vmatpush1.bf16.msra.mxu0 %v6458
        %6497 = vmatprep.subr.bf16.mxu0 0
        %6498 = vmatpush1.bf16.msra.mxu0 %v6459
        %6499 = vmatprep.subr.bf16.mxu0 0
        %6500 = vmatpush1.bf16.msra.mxu0 %v6460
        %6501 = vmatprep.subr.bf16.mxu0 0
        %6502 = vmatpush1.bf16.msra.mxu0 %v6461
        %6503 = vmatprep.subr.bf16.mxu0 0
        %6504 = vmatpush1.bf16.msra.mxu0 %v6462
        %6505 = vmatprep.subr.bf16.mxu0 0
        %6506 = vmatpush1.bf16.msra.mxu0 0
        %6507 = vmatprep.subr.bf16.mxu0 0
        %6508 = vmatpush1.bf16.msra.mxu0 0
        %6509 = vmatprep.subr.bf16.mxu0 0
        %6510 = vmatpush1.bf16.msra.mxu0 0
        %6511 = vmatprep.subr.bf16.mxu0 0
        %6512 = vmatpush1.bf16.msra.mxu0 0
        %6513 = vmatprep.subr.bf16.mxu0 0
        %6514 = vmatpush1.bf16.msra.mxu0 0
        %6515 = vmatprep.subr.bf16.mxu0 0
        %6516 = vmatpush1.bf16.msra.mxu0 0
        %6517 = vmatprep.subr.bf16.mxu0 0
        %6518 = vmatpush1.bf16.msra.mxu0 0
        %6519 = vmatprep.subr.bf16.mxu0 0
        %6520 = vmatpush1.bf16.msra.mxu0 0
        %6521 = vmatprep.subr.bf16.mxu0 0
        %6522 = vmatpush1.bf16.msra.mxu0 0
        %6523 = vmatprep.mubr.bf16.mxu0 0
        %6524 = vmatmul.mubr.bf16.gmra.mrb[0].mxu0 %v6471
        %v6525 = vpop.f32.mrb[0].mxu0
        %v6526 = vadd.f32 0.0, %v6525
        %v6527 = vpop.f32.mrb[0].mxu0
        %v6528 = vpop.f32.mrb[0].mxu0
        %v6529 = vadd.f32 0.0, %v6528
        %v6530 = vpop.f32.mrb[0].mxu0
        %6531 = vmatprep.mubr.bf16.mxu0 0
        %6532 = vmatmul.mubr.bf16.gmra.mrb[0].mxu0 %v6474
        %v6533 = vpop.f32.mrb[0].mxu0
        %v6534 = vadd.f32 0.0, %v6533
        %v6535 = vpop.f32.mrb[0].mxu0
        %v6536 = vpop.f32.mrb[0].mxu0
        %v6537 = vadd.f32 0.0, %v6536
        %v6538 = vpop.f32.mrb[0].mxu0
        %6539 = vmatprep.mubr.bf16.mxu0 0
        %6540 = vmatmul.mubr.bf16.gmra.mrb[0].mxu0 %v6477
        %v6541 = vpop.f32.mrb[0].mxu0
        %v6542 = vadd.f32 0.0, %v6541
        %v6543 = vpop.f32.mrb[0].mxu0
        %v6544 = vpop.f32.mrb[0].mxu0
        %v6545 = vadd.f32 0.0, %v6544
        %v6546 = vpop.f32.mrb[0].mxu0
        %6547 = vmatprep.mubr.bf16.mxu0 0
        %6548 = vmatmul.mubr.bf16.gmra.mrb[0].mxu0 %v6480
        %v6549 = vpop.f32.mrb[0].mxu0
        %v6550 = vadd.f32 0.0, %v6549
        %v6551 = vpop.f32.mrb[0].mxu0
        %v6552 = vpop.f32.mrb[0].mxu0
        %v6553 = vadd.f32 0.0, %v6552
        %v6554 = vpop.f32.mrb[0].mxu0
        %6555 = vmatprep.mubr.bf16.mxu0 0
        %6556 = vmatmul.mubr.bf16.gmra.mrb[0].mxu0 %v6483
        %v6557 = vpop.f32.mrb[0].mxu0
        %v6558 = vadd.f32 0.0, %v6557
        %v6559 = vpop.f32.mrb[0].mxu0
        %v6560 = vpop.f32.mrb[0].mxu0
        %v6561 = vadd.f32 0.0, %v6560
        %v6562 = vpop.f32.mrb[0].mxu0
        %6563 = vmatprep.mubr.bf16.mxu0 0
        %6564 = vmatmul.mubr.bf16.gmra.mrb[0].mxu0 %v6486
        %v6565 = vpop.f32.mrb[0].mxu0
        %v6566 = vadd.f32 0.0, %v6565
        %v6567 = vpop.f32.mrb[0].mxu0
        %v6568 = vpop.f32.mrb[0].mxu0
        %v6569 = vadd.f32 0.0, %v6568
        %v6570 = vpop.f32.mrb[0].mxu0
        %6571 = vmatprep.mubr.bf16.mxu0 0
        %6572 = vmatmul.mubr.bf16.gmra.mrb[0].mxu0 %v6489
        %v6573 = vpop.f32.mrb[0].mxu0
        %v6574 = vadd.f32 0.0, %v6573
        %v6575 = vpop.f32.mrb[0].mxu0
        %v6576 = vpop.f32.mrb[0].mxu0
        %v6577 = vadd.f32 0.0, %v6576
        %v6578 = vpop.f32.mrb[0].mxu0
        %6579 = vdwg.mxu0
        %v6580 = vld [vmem:[%s17] sm:$0xf]
        %v6581 = vld [vmem:[%s17 + $0x4] sm:$0xf]
        %v6582 = vld [vmem:[%s17 + $0x8] sm:$0xf]
        %v6583 = vld [vmem:[%s17 + $0xc] sm:$0xf]
        %v6584 = vld [vmem:[%s17 + $0x10] sm:$0xf]
        %v6585 = vld [vmem:[%s17 + $0x14] sm:$0xf]
        %v6586 = vld [vmem:[%s17 + $0x18] sm:$0xf]
        %v6587 = vld [vmem:[%s17 + $0x1c] sm:$0xf]
        %v6588 = vld [vmem:[%s17 + $0x20] sm:$0xf]
        %v6589 = vld [vmem:[%s17 + $0x24] sm:$0xf]
        %v6590 = vld [vmem:[%s17 + $0x28] sm:$0xf]
        %v6591 = vld [vmem:[%s17 + $0x2c] sm:$0xf]
        %v6592 = vld [vmem:[%s17 + $0x30] sm:$0xf]
        %v6593 = vld [vmem:[%s17 + $0x34] sm:$0xf]
        %v6608 = vunpack.c.l.b16 %v6580
        %v6609 = vunpack.c.l.b16 %v6581
        %v6610 = vunpack.c.l.b16 %v6582
        %v6611 = vunpack.c.l.b16 %v6583
        %v6612 = vunpack.c.l.b16 %v6584
        %v6613 = vunpack.c.l.b16 %v6585
        %v6614 = vunpack.c.l.b16 %v6586
        %v6615 = vunpack.c.l.b16 %v6587
        %v6616 = vunpack.c.l.b16 %v6588
        %v6617 = vunpack.c.l.b16 %v6589
        %v6618 = vunpack.c.l.b16 %v6590
        %v6619 = vunpack.c.l.b16 %v6591
        %v6620 = vunpack.c.l.b16 %v6592
        %v6621 = vunpack.c.l.b16 %v6593
        %v6622 = vpack.c.b16 %v6609, %v6608
        %v6623 = vpack.c.b16 %v6611, %v6610
        %v6624 = vpack.c.b16 %v6613, %v6612
        %v6625 = vpack.c.b16 %v6615, %v6614
        %v6626 = vpack.c.b16 %v6617, %v6616
        %v6627 = vpack.c.b16 %v6619, %v6618
        %v6628 = vpack.c.b16 %v6621, %v6620
        %6636 = vmatprep.subr.bf16.mxu0 0
        %6637 = vmatpush1.bf16.msra.mxu0 %v6622
        %6638 = vmatprep.subr.bf16.mxu0 0
        %6639 = vmatpush1.bf16.msra.mxu0 %v6623
        %6640 = vmatprep.subr.bf16.mxu0 0
        %6641 = vmatpush1.bf16.msra.mxu0 %v6624
        %6642 = vmatprep.subr.bf16.mxu0 0
        %6643 = vmatpush1.bf16.msra.mxu0 %v6625
        %6644 = vmatprep.subr.bf16.mxu0 0
        %6645 = vmatpush1.bf16.msra.mxu0 %v6626
        %6646 = vmatprep.subr.bf16.mxu0 0
        %6647 = vmatpush1.bf16.msra.mxu0 %v6627
        %6648 = vmatprep.subr.bf16.mxu0 0
        %6649 = vmatpush1.bf16.msra.mxu0 %v6628
        %6650 = vmatprep.subr.bf16.mxu0 0
        %6651 = vmatpush1.bf16.msra.mxu0 0
        %6652 = vmatprep.subr.bf16.mxu0 0
        %6653 = vmatpush1.bf16.msra.mxu0 0
        %6654 = vmatprep.subr.bf16.mxu0 0
        %6655 = vmatpush1.bf16.msra.mxu0 0
        %6656 = vmatprep.subr.bf16.mxu0 0
        %6657 = vmatpush1.bf16.msra.mxu0 0
        %6658 = vmatprep.subr.bf16.mxu0 0
        %6659 = vmatpush1.bf16.msra.mxu0 0
        %6660 = vmatprep.subr.bf16.mxu0 0
        %6661 = vmatpush1.bf16.msra.mxu0 0
        %6662 = vmatprep.subr.bf16.mxu0 0
        %6663 = vmatpush1.bf16.msra.mxu0 0
        %6664 = vmatprep.subr.bf16.mxu0 0
        %6665 = vmatpush1.bf16.msra.mxu0 0
        %6666 = vmatprep.subr.bf16.mxu0 0
        %6667 = vmatpush1.bf16.msra.mxu0 0
        %6668 = vmatprep.mubr.bf16.mxu0 0
        %6669 = vmatmul.mubr.bf16.gmra.mrb[0].mxu0 %v6471
        %v6670 = vpop.f32.mrb[0].mxu0
        %v6671 = vadd.f32 0.0, %v6670
        %v6672 = vpop.f32.mrb[0].mxu0
        %v6673 = vpop.f32.mrb[0].mxu0
        %v6674 = vadd.f32 0.0, %v6673
        %v6675 = vpop.f32.mrb[0].mxu0
        %6676 = vmatprep.mubr.bf16.mxu0 0
        %6677 = vmatmul.mubr.bf16.gmra.mrb[0].mxu0 %v6474
        %v6678 = vpop.f32.mrb[0].mxu0
        %v6679 = vadd.f32 0.0, %v6678
        %v6680 = vpop.f32.mrb[0].mxu0
        %v6681 = vpop.f32.mrb[0].mxu0
        %v6682 = vadd.f32 0.0, %v6681
        %v6683 = vpop.f32.mrb[0].mxu0
        %6684 = vmatprep.mubr.bf16.mxu0 0
        %6685 = vmatmul.mubr.bf16.gmra.mrb[0].mxu0 %v6477
        %v6686 = vpop.f32.mrb[0].mxu0
        %v6687 = vadd.f32 0.0, %v6686
        %v6688 = vpop.f32.mrb[0].mxu0
        %v6689 = vpop.f32.mrb[0].mxu0
        %v6690 = vadd.f32 0.0, %v6689
        %v6691 = vpop.f32.mrb[0].mxu0
        %6692 = vmatprep.mubr.bf16.mxu0 0
        %6693 = vmatmul.mubr.bf16.gmra.mrb[0].mxu0 %v6480
        %v6694 = vpop.f32.mrb[0].mxu0
        %v6695 = vadd.f32 0.0, %v6694
        %v6696 = vpop.f32.mrb[0].mxu0
        %v6697 = vpop.f32.mrb[0].mxu0
        %v6698 = vadd.f32 0.0, %v6697
        %v6699 = vpop.f32.mrb[0].mxu0
        %6700 = vmatprep.mubr.bf16.mxu0 0
        %6701 = vmatmul.mubr.bf16.gmra.mrb[0].mxu0 %v6483
        %v6702 = vpop.f32.mrb[0].mxu0
        %v6703 = vadd.f32 0.0, %v6702
        %v6704 = vpop.f32.mrb[0].mxu0
        %v6705 = vpop.f32.mrb[0].mxu0
        %v6706 = vadd.f32 0.0, %v6705
        %v6707 = vpop.f32.mrb[0].mxu0
        %6708 = vmatprep.mubr.bf16.mxu0 0
        %6709 = vmatmul.mubr.bf16.gmra.mrb[0].mxu0 %v6486
        %v6710 = vpop.f32.mrb[0].mxu0
        %v6711 = vadd.f32 0.0, %v6710
        %v6712 = vpop.f32.mrb[0].mxu0
        %v6713 = vpop.f32.mrb[0].mxu0
        %v6714 = vadd.f32 0.0, %v6713
        %v6715 = vpop.f32.mrb[0].mxu0
        %6716 = vmatprep.mubr.bf16.mxu0 0
        %6717 = vmatmul.mubr.bf16.gmra.mrb[0].mxu0 %v6489
        %v6718 = vpop.f32.mrb[0].mxu0
        %v6719 = vadd.f32 0.0, %v6718
        %v6720 = vpop.f32.mrb[0].mxu0
        %v6721 = vpop.f32.mrb[0].mxu0
        %v6722 = vadd.f32 0.0, %v6721
        %v6723 = vpop.f32.mrb[0].mxu0
        %6724 = vdwg.mxu0
        %v6725 = vmax.f32 %v6526, %v6671
        %v6726 = vmax.f32 %v6529, %v6674
        %v6727 = vmax.f32 %v6534, %v6679
        %v6728 = vmax.f32 %v6537, %v6682
        %v6729 = vmax.f32 %v6542, %v6687
        %v6730 = vmax.f32 %v6545, %v6690
        %v6731 = vmax.f32 %v6550, %v6695
        %v6732 = vmax.f32 %v6553, %v6698
        %v6733 = vmax.f32 %v6558, %v6703
        %v6734 = vmax.f32 %v6561, %v6706
        %v6735 = vmax.f32 %v6566, %v6711
        %v6736 = vmax.f32 %v6569, %v6714
        %v6737 = vmax.f32 %v6574, %v6719
        %v6738 = vmax.f32 %v6577, %v6722
        %v6739 = vrot.slane %v6725, 1
        %v6740 = vrot.slane %v6726, 1
        %v6741 = vrot.slane %v6727, 1
        %v6742 = vrot.slane %v6728, 1
        %v6743 = vrot.slane %v6729, 1
        %v6744 = vrot.slane %v6730, 1
        %v6745 = vrot.slane %v6731, 1
        %v6746 = vrot.slane %v6732, 1
        %v6747 = vrot.slane %v6733, 1
        %v6748 = vrot.slane %v6734, 1
        %v6749 = vrot.slane %v6735, 1
        %v6750 = vrot.slane %v6736, 1
        %v6751 = vrot.slane %v6737, 1
        %v6752 = vrot.slane %v6738, 1
        %v6753 = vsel %vm1053, %v6751, %v6752
        %v6754 = vsel %vm1053, %v6750, %v6751
        %v6755 = vsel %vm1053, %v6749, %v6750
        %v6756 = vsel %vm1053, %v6748, %v6749
        %v6757 = vsel %vm1053, %v6747, %v6748
        %v6758 = vsel %vm1053, %v6746, %v6747
        %v6759 = vsel %vm1053, %v6745, %v6746
        %v6760 = vsel %vm1053, %v6744, %v6745
        %v6761 = vsel %vm1053, %v6743, %v6744
        %v6762 = vsel %vm1053, %v6742, %v6743
        %v6763 = vsel %vm1053, %v6741, %v6742
        %v6764 = vsel %vm1053, %v6740, %v6741
        %v6765 = vsel %vm1053, %v6739, %v6740
        %v6766 = vsel %vm1053, %v6752, %v6739
        %v6767 = vmax.f32 %v6725, %v6765
        %v6768 = vmax.f32 %v6726, %v6764
        %v6769 = vmax.f32 %v6727, %v6763
        %v6770 = vmax.f32 %v6728, %v6762
        %v6771 = vmax.f32 %v6729, %v6761
        %v6772 = vmax.f32 %v6730, %v6760
        %v6773 = vmax.f32 %v6731, %v6759
        %v6774 = vmax.f32 %v6732, %v6758
        %v6775 = vmax.f32 %v6733, %v6757
        %v6776 = vmax.f32 %v6734, %v6756
        %v6777 = vmax.f32 %v6735, %v6755
        %v6778 = vmax.f32 %v6736, %v6754
        %v6779 = vmax.f32 %v6737, %v6753
        %v6780 = vmax.f32 %v6738, %v6766
        %v6781 = vld [vmem:[%s18] sm:$0xf]
        %v6782 = vld [vmem:[%s18 + $0x4] sm:$0xf]
        %v6783 = vld [vmem:[%s18 + $0x8] sm:$0xf]
        %v6784 = vld [vmem:[%s18 + $0xc] sm:$0xf]
        %v6785 = vld [vmem:[%s18 + $0x10] sm:$0xf]
        %v6786 = vld [vmem:[%s18 + $0x14] sm:$0xf]
        %v6787 = vld [vmem:[%s18 + $0x18] sm:$0xf]
        %v6788 = vpack.c.bf16 %v6768, %v6767
        %v6789 = vpack.c.bf16 %v6770, %v6769
        %v6790 = vpack.c.bf16 %v6772, %v6771
        %v6791 = vpack.c.bf16 %v6774, %v6773
        %v6792 = vpack.c.bf16 %v6776, %v6775
        %v6793 = vpack.c.bf16 %v6778, %v6777
        %v6794 = vpack.c.bf16 %v6780, %v6779
        %v6802 = vunpack.c.l.b16 %v6781
        %v6803 = vunpack.c.l.b16 %v6782
        %v6804 = vunpack.c.l.b16 %v6783
        %v6805 = vunpack.c.l.b16 %v6784
        %v6806 = vunpack.c.l.b16 %v6785
        %v6807 = vunpack.c.l.b16 %v6786
        %v6808 = vunpack.c.l.b16 %v6787
        %v6809 = vpack.c.b16 %v6803, %v6802
        %v6810 = vpack.c.b16 %v6805, %v6804
        %v6811 = vpack.c.b16 %v6807, %v6806
        %v6812 = vpack.c.b16 %v6808, %v6808
        %v6814 = vsel %vm5274, %v6809, 0
        %v6817 = vsel %vm5274, %v6810, 0
        %v6820 = vsel %vm5274, %v6811, 0
        %v6823 = vsel %vm5274, %v6812, 0
        %6825 = vmatprep.subr.bf16.mxu0 0
        %6826 = vmatpush1.bf16.msra.mxu0 %v6788
        %6827 = vmatprep.subr.bf16.mxu0 0
        %6828 = vmatpush1.bf16.msra.mxu0 %v6789
        %6829 = vmatprep.subr.bf16.mxu0 0
        %6830 = vmatpush1.bf16.msra.mxu0 %v6790
        %6831 = vmatprep.subr.bf16.mxu0 0
        %6832 = vmatpush1.bf16.msra.mxu0 %v6791
        %6833 = vmatprep.subr.bf16.mxu0 0
        %6834 = vmatpush1.bf16.msra.mxu0 %v6792
        %6835 = vmatprep.subr.bf16.mxu0 0
        %6836 = vmatpush1.bf16.msra.mxu0 %v6793
        %6837 = vmatprep.subr.bf16.mxu0 0
        %6838 = vmatpush1.bf16.msra.mxu0 %v6794
        %6839 = vmatprep.subr.bf16.mxu0 0
        %6840 = vmatpush1.bf16.msra.mxu0 0
        %6841 = vmatprep.subr.bf16.mxu0 0
        %6842 = vmatpush1.bf16.msra.mxu0 0
        %6843 = vmatprep.subr.bf16.mxu0 0
        %6844 = vmatpush1.bf16.msra.mxu0 0
        %6845 = vmatprep.subr.bf16.mxu0 0
        %6846 = vmatpush1.bf16.msra.mxu0 0
        %6847 = vmatprep.subr.bf16.mxu0 0
        %6848 = vmatpush1.bf16.msra.mxu0 0
        %6849 = vmatprep.subr.bf16.mxu0 0
        %6850 = vmatpush1.bf16.msra.mxu0 0
        %6851 = vmatprep.subr.bf16.mxu0 0
        %6852 = vmatpush1.bf16.msra.mxu0 0
        %6853 = vmatprep.subr.bf16.mxu0 0
        %6854 = vmatpush1.bf16.msra.mxu0 0
        %6855 = vmatprep.subr.bf16.mxu0 0
        %6856 = vmatpush1.bf16.msra.mxu0 0
        %6857 = vmatprep.mubr.bf16.mxu0 0
        %6858 = vmatmul.mubr.bf16.gmra.mrb[0].mxu0 %v6814
        %v6859 = vpop.f32.mrb[0].mxu0
        %v6860 = vadd.f32 0.0, %v6859
        %v6861 = vpop.f32.mrb[0].mxu0
        %v6862 = vpop.f32.mrb[0].mxu0
        %v6863 = vadd.f32 0.0, %v6862
        %v6864 = vpop.f32.mrb[0].mxu0
        %6865 = vmatprep.mubr.bf16.mxu0 0
        %6866 = vmatmul.mubr.bf16.gmra.mrb[0].mxu0 %v6817
        %v6867 = vpop.f32.mrb[0].mxu0
        %v6868 = vadd.f32 0.0, %v6867
        %v6869 = vpop.f32.mrb[0].mxu0
        %v6870 = vpop.f32.mrb[0].mxu0
        %v6871 = vadd.f32 0.0, %v6870
        %v6872 = vpop.f32.mrb[0].mxu0
        %6873 = vmatprep.mubr.bf16.mxu0 0
        %6874 = vmatmul.mubr.bf16.gmra.mrb[0].mxu0 %v6820
        %v6875 = vpop.f32.mrb[0].mxu0
        %v6876 = vadd.f32 0.0, %v6875
        %v6877 = vpop.f32.mrb[0].mxu0
        %v6878 = vpop.f32.mrb[0].mxu0
        %v6879 = vadd.f32 0.0, %v6878
        %v6880 = vpop.f32.mrb[0].mxu0
        %6881 = vmatprep.mubr.bf16.mxu0 0
        %6882 = vmatmul.mubr.bf16.gmra.mrb[0].mxu0 %v6823
        %v6883 = vpop.f32.mrb[0].mxu0
        %v6884 = vadd.f32 0.0, %v6883
        %v6885 = vpop.f32.mrb[0].mxu0
        %v6886 = vpop.f32.mrb[0].mxu0
        %v6887 = vpop.f32.mrb[0].mxu0
        %6888 = vdwg.mxu0
        %v6889 = vpack.c.bf16 %v6860, %v6860
        %v6890 = vld [vmem:[%s19] sm:$0xf]
        %v6891 = vld [vmem:[%s19 + $0x4] sm:$0xf]
        %v6892 = vld [vmem:[%s19 + $0x8] sm:$0xf]
        %v6893 = vld [vmem:[%s19 + $0xc] sm:$0xf]
        %v6894 = vld [vmem:[%s19 + $0x10] sm:$0xf]
        %v6895 = vld [vmem:[%s19 + $0x14] sm:$0xf]
        %v6896 = vld [vmem:[%s19 + $0x18] sm:$0xf]
        %v6897 = vpack.c.bf16 %v6863, %v6863
        %s6898 = scalar_lea.vmem %s19, 28
        %v6899 = vld [vmem:[%s6898] sm:$0xf]
        %v6900 = vld [vmem:[%s6898 + $0x4] sm:$0xf]
        %v6901 = vld [vmem:[%s6898 + $0x8] sm:$0xf]
        %v6902 = vld [vmem:[%s6898 + $0xc] sm:$0xf]
        %v6903 = vld [vmem:[%s6898 + $0x10] sm:$0xf]
        %v6904 = vld [vmem:[%s6898 + $0x14] sm:$0xf]
        %v6905 = vld [vmem:[%s6898 + $0x18] sm:$0xf]
        %v6913 = vunpack.c.l.b16 %v6899
        %v6914 = vunpack.c.l.b16 %v6900
        %v6915 = vunpack.c.l.b16 %v6901
        %v6916 = vunpack.c.l.b16 %v6902
        %v6917 = vunpack.c.l.b16 %v6903
        %v6918 = vunpack.c.l.b16 %v6904
        %v6919 = vunpack.c.l.b16 %v6905
        %v6920 = vpack.c.b16 %v6914, %v6913
        %v6921 = vpack.c.b16 %v6916, %v6915
        %v6922 = vpack.c.b16 %v6918, %v6917
        %v6923 = vpack.c.b16 %v6919, %v6919
        %vm6927 = vcmask 457728
        %v6929 = vsel %vm6927, %v6897, 0
        %vm6931 = vcmask 1043456
        %v6933 = vsel %vm6931, %v6923, 0
        %6935 = vmatprep.subr.bf16.mxu0 0
        %6936 = vmatpush1.bf16.msra.mxu0 %v6920
        %6937 = vmatprep.subr.bf16.mxu0 0
        %6938 = vmatpush1.bf16.msra.mxu0 %v6921
        %6939 = vmatprep.subr.bf16.mxu0 0
        %6940 = vmatpush1.bf16.msra.mxu0 %v6922
        %6941 = vmatprep.subr.bf16.mxu0 0
        %6942 = vmatpush1.bf16.msra.mxu0 %v6933
        %6943 = vmatprep.subr.bf16.mxu0 0
        %6944 = vmatpush1.bf16.msra.mxu0 0
        %6945 = vmatprep.subr.bf16.mxu0 0
        %6946 = vmatpush1.bf16.msra.mxu0 0
        %6947 = vmatprep.subr.bf16.mxu0 0
        %6948 = vmatpush1.bf16.msra.mxu0 0
        %6949 = vmatprep.subr.bf16.mxu0 0
        %6950 = vmatpush1.bf16.msra.mxu0 0
        %6951 = vmatprep.subr.bf16.mxu0 0
        %6952 = vmatpush1.bf16.msra.mxu0 0
        %6953 = vmatprep.subr.bf16.mxu0 0
        %6954 = vmatpush1.bf16.msra.mxu0 0
        %6955 = vmatprep.subr.bf16.mxu0 0
        %6956 = vmatpush1.bf16.msra.mxu0 0
        %6957 = vmatprep.subr.bf16.mxu0 0
        %6958 = vmatpush1.bf16.msra.mxu0 0
        %6959 = vmatprep.subr.bf16.mxu0 0
        %6960 = vmatpush1.bf16.msra.mxu0 0
        %6961 = vmatprep.subr.bf16.mxu0 0
        %6962 = vmatpush1.bf16.msra.mxu0 0
        %6963 = vmatprep.subr.bf16.mxu0 0
        %6964 = vmatpush1.bf16.msra.mxu0 0
        %6965 = vmatprep.subr.bf16.mxu0 0
        %6966 = vmatpush1.bf16.msra.mxu0 0
        %6967 = vmatprep.mubr.bf16.mxu0 0
        %6968 = vmatmul.mubr.bf16.gmra.mrb[0].mxu0 %v6929
        %v6969 = vpop.f32.mrb[0].mxu0
        %v6970 = vadd.f32 0.0, %v6969
        %v6971 = vpop.f32.mrb[0].mxu0
        %v6972 = vpop.f32.mrb[0].mxu0
        %v6973 = vpop.f32.mrb[0].mxu0
        %6974 = vdwg.mxu0
        %v6982 = vunpack.c.l.b16 %v6890
        %v6983 = vunpack.c.l.b16 %v6891
        %v6984 = vunpack.c.l.b16 %v6892
        %v6985 = vunpack.c.l.b16 %v6893
        %v6986 = vunpack.c.l.b16 %v6894
        %v6987 = vunpack.c.l.b16 %v6895
        %v6988 = vunpack.c.l.b16 %v6896
        %v6989 = vpack.c.b16 %v6983, %v6982
        %v6990 = vpack.c.b16 %v6985, %v6984
        %v6991 = vpack.c.b16 %v6987, %v6986
        %v6992 = vpack.c.b16 %v6988, %v6988
        %v6997 = vsel %vm6927, %v6889, 0
        %v7000 = vsel %vm6931, %v6992, 0
        %7002 = vmatprep.subr.bf16.mxu0 0
        %7003 = vmatpush1.bf16.msra.mxu0 %v6989
        %7004 = vmatprep.subr.bf16.mxu0 0
        %7005 = vmatpush1.bf16.msra.mxu0 %v6990
        %7006 = vmatprep.subr.bf16.mxu0 0
        %7007 = vmatpush1.bf16.msra.mxu0 %v6991
        %7008 = vmatprep.subr.bf16.mxu0 0
        %7009 = vmatpush1.bf16.msra.mxu0 %v7000
        %7010 = vmatprep.subr.bf16.mxu0 0
        %7011 = vmatpush1.bf16.msra.mxu0 0
        %7012 = vmatprep.subr.bf16.mxu0 0
        %7013 = vmatpush1.bf16.msra.mxu0 0
        %7014 = vmatprep.subr.bf16.mxu0 0
        %7015 = vmatpush1.bf16.msra.mxu0 0
        %7016 = vmatprep.subr.bf16.mxu0 0
        %7017 = vmatpush1.bf16.msra.mxu0 0
        %7018 = vmatprep.subr.bf16.mxu0 0
        %7019 = vmatpush1.bf16.msra.mxu0 0
        %7020 = vmatprep.subr.bf16.mxu0 0
        %7021 = vmatpush1.bf16.msra.mxu0 0
        %7022 = vmatprep.subr.bf16.mxu0 0
        %7023 = vmatpush1.bf16.msra.mxu0 0
        %7024 = vmatprep.subr.bf16.mxu0 0
        %7025 = vmatpush1.bf16.msra.mxu0 0
        %7026 = vmatprep.subr.bf16.mxu0 0
        %7027 = vmatpush1.bf16.msra.mxu0 0
        %7028 = vmatprep.subr.bf16.mxu0 0
        %7029 = vmatpush1.bf16.msra.mxu0 0
        %7030 = vmatprep.subr.bf16.mxu0 0
        %7031 = vmatpush1.bf16.msra.mxu0 0
        %7032 = vmatprep.subr.bf16.mxu0 0
        %7033 = vmatpush1.bf16.msra.mxu0 0
        %7034 = vmatprep.mubr.bf16.mxu0 0
        %7035 = vmatmul.mubr.bf16.gmra.mrb[0].mxu0 %v6997
        %v7036 = vpop.f32.mrb[0].mxu0
        %v7037 = vadd.f32 %v6970, %v7036
        %v7038 = vpop.f32.mrb[0].mxu0
        %v7039 = vpop.f32.mrb[0].mxu0
        %v7040 = vpop.f32.mrb[0].mxu0
        %7041 = vdwg.mxu0
        %v7042 = vpack.c.bf16 %v6868, %v6868
        %s7043 = scalar_lea.vmem %s19, 56
        %v7044 = vld [vmem:[%s7043] sm:$0xf]
        %v7045 = vld [vmem:[%s7043 + $0x4] sm:$0xf]
        %v7046 = vld [vmem:[%s7043 + $0x8] sm:$0xf]
        %v7047 = vld [vmem:[%s7043 + $0xc] sm:$0xf]
        %v7048 = vld [vmem:[%s7043 + $0x10] sm:$0xf]
        %v7049 = vld [vmem:[%s7043 + $0x14] sm:$0xf]
        %v7050 = vld [vmem:[%s7043 + $0x18] sm:$0xf]
        %v7058 = vunpack.c.l.b16 %v7044
        %v7059 = vunpack.c.l.b16 %v7045
        %v7060 = vunpack.c.l.b16 %v7046
        %v7061 = vunpack.c.l.b16 %v7047
        %v7062 = vunpack.c.l.b16 %v7048
        %v7063 = vunpack.c.l.b16 %v7049
        %v7064 = vunpack.c.l.b16 %v7050
        %v7065 = vpack.c.b16 %v7059, %v7058
        %v7066 = vpack.c.b16 %v7061, %v7060
        %v7067 = vpack.c.b16 %v7063, %v7062
        %v7068 = vpack.c.b16 %v7064, %v7064
        %v7073 = vsel %vm6927, %v7042, 0
        %v7076 = vsel %vm6931, %v7068, 0
        %7078 = vmatprep.subr.bf16.mxu0 0
        %7079 = vmatpush1.bf16.msra.mxu0 %v7065
        %7080 = vmatprep.subr.bf16.mxu0 0
        %7081 = vmatpush1.bf16.msra.mxu0 %v7066
        %7082 = vmatprep.subr.bf16.mxu0 0
        %7083 = vmatpush1.bf16.msra.mxu0 %v7067
        %7084 = vmatprep.subr.bf16.mxu0 0
        %7085 = vmatpush1.bf16.msra.mxu0 %v7076
        %7086 = vmatprep.subr.bf16.mxu0 0
        %7087 = vmatpush1.bf16.msra.mxu0 0
        %7088 = vmatprep.subr.bf16.mxu0 0
        %7089 = vmatpush1.bf16.msra.mxu0 0
        %7090 = vmatprep.subr.bf16.mxu0 0
        %7091 = vmatpush1.bf16.msra.mxu0 0
        %7092 = vmatprep.subr.bf16.mxu0 0
        %7093 = vmatpush1.bf16.msra.mxu0 0
        %7094 = vmatprep.subr.bf16.mxu0 0
        %7095 = vmatpush1.bf16.msra.mxu0 0
        %7096 = vmatprep.subr.bf16.mxu0 0
        %7097 = vmatpush1.bf16.msra.mxu0 0
        %7098 = vmatprep.subr.bf16.mxu0 0
        %7099 = vmatpush1.bf16.msra.mxu0 0
        %7100 = vmatprep.subr.bf16.mxu0 0
        %7101 = vmatpush1.bf16.msra.mxu0 0
        %7102 = vmatprep.subr.bf16.mxu0 0
        %7103 = vmatpush1.bf16.msra.mxu0 0
        %7104 = vmatprep.subr.bf16.mxu0 0
        %7105 = vmatpush1.bf16.msra.mxu0 0
        %7106 = vmatprep.subr.bf16.mxu0 0
        %7107 = vmatpush1.bf16.msra.mxu0 0
        %7108 = vmatprep.subr.bf16.mxu0 0
        %7109 = vmatpush1.bf16.msra.mxu0 0
        %7110 = vmatprep.mubr.bf16.mxu0 0
        %7111 = vmatmul.mubr.bf16.gmra.mrb[0].mxu0 %v7073
        %v7112 = vpop.f32.mrb[0].mxu0
        %v7113 = vadd.f32 0.0, %v7112
        %v7114 = vpop.f32.mrb[0].mxu0
        %v7115 = vpop.f32.mrb[0].mxu0
        %v7116 = vpop.f32.mrb[0].mxu0
        %7117 = vdwg.mxu0
        %v7118 = vadd.f32 %v7037, %v7113
        %v7119 = vpack.c.bf16 %v6871, %v6871
        %s7120 = scalar_lea.vmem %s19, 84
        %v7121 = vld [vmem:[%s7120] sm:$0xf]
        %v7122 = vld [vmem:[%s7120 + $0x4] sm:$0xf]
        %v7123 = vld [vmem:[%s7120 + $0x8] sm:$0xf]
        %v7124 = vld [vmem:[%s7120 + $0xc] sm:$0xf]
        %v7125 = vld [vmem:[%s7120 + $0x10] sm:$0xf]
        %v7126 = vld [vmem:[%s7120 + $0x14] sm:$0xf]
        %v7127 = vld [vmem:[%s7120 + $0x18] sm:$0xf]
        %v7135 = vunpack.c.l.b16 %v7121
        %v7136 = vunpack.c.l.b16 %v7122
        %v7137 = vunpack.c.l.b16 %v7123
        %v7138 = vunpack.c.l.b16 %v7124
        %v7139 = vunpack.c.l.b16 %v7125
        %v7140 = vunpack.c.l.b16 %v7126
        %v7141 = vunpack.c.l.b16 %v7127
        %v7142 = vpack.c.b16 %v7136, %v7135
        %v7143 = vpack.c.b16 %v7138, %v7137
        %v7144 = vpack.c.b16 %v7140, %v7139
        %v7145 = vpack.c.b16 %v7141, %v7141
        %v7150 = vsel %vm6927, %v7119, 0
        %v7153 = vsel %vm6931, %v7145, 0
        %7155 = vmatprep.subr.bf16.mxu0 0
        %7156 = vmatpush1.bf16.msra.mxu0 %v7142
        %7157 = vmatprep.subr.bf16.mxu0 0
        %7158 = vmatpush1.bf16.msra.mxu0 %v7143
        %7159 = vmatprep.subr.bf16.mxu0 0
        %7160 = vmatpush1.bf16.msra.mxu0 %v7144
        %7161 = vmatprep.subr.bf16.mxu0 0
        %7162 = vmatpush1.bf16.msra.mxu0 %v7153
        %7163 = vmatprep.subr.bf16.mxu0 0
        %7164 = vmatpush1.bf16.msra.mxu0 0
        %7165 = vmatprep.subr.bf16.mxu0 0
        %7166 = vmatpush1.bf16.msra.mxu0 0
        %7167 = vmatprep.subr.bf16.mxu0 0
        %7168 = vmatpush1.bf16.msra.mxu0 0
        %7169 = vmatprep.subr.bf16.mxu0 0
        %7170 = vmatpush1.bf16.msra.mxu0 0
        %7171 = vmatprep.subr.bf16.mxu0 0
        %7172 = vmatpush1.bf16.msra.mxu0 0
        %7173 = vmatprep.subr.bf16.mxu0 0
        %7174 = vmatpush1.bf16.msra.mxu0 0
        %7175 = vmatprep.subr.bf16.mxu0 0
        %7176 = vmatpush1.bf16.msra.mxu0 0
        %7177 = vmatprep.subr.bf16.mxu0 0
        %7178 = vmatpush1.bf16.msra.mxu0 0
        %7179 = vmatprep.subr.bf16.mxu0 0
        %7180 = vmatpush1.bf16.msra.mxu0 0
        %7181 = vmatprep.subr.bf16.mxu0 0
        %7182 = vmatpush1.bf16.msra.mxu0 0
        %7183 = vmatprep.subr.bf16.mxu0 0
        %7184 = vmatpush1.bf16.msra.mxu0 0
        %7185 = vmatprep.subr.bf16.mxu0 0
        %7186 = vmatpush1.bf16.msra.mxu0 0
        %7187 = vmatprep.mubr.bf16.mxu0 0
        %7188 = vmatmul.mubr.bf16.gmra.mrb[0].mxu0 %v7150
        %v7189 = vpop.f32.mrb[0].mxu0
        %v7190 = vadd.f32 0.0, %v7189
        %v7191 = vpop.f32.mrb[0].mxu0
        %v7192 = vpop.f32.mrb[0].mxu0
        %v7193 = vpop.f32.mrb[0].mxu0
        %7194 = vdwg.mxu0
        %v7195 = vadd.f32 %v7118, %v7190
        %v7196 = vpack.c.bf16 %v6876, %v6876
        %s7197 = scalar_lea.vmem %s19, 112
        %v7198 = vld [vmem:[%s7197] sm:$0xf]
        %v7199 = vld [vmem:[%s7197 + $0x4] sm:$0xf]
        %v7200 = vld [vmem:[%s7197 + $0x8] sm:$0xf]
        %v7201 = vld [vmem:[%s7197 + $0xc] sm:$0xf]
        %v7202 = vld [vmem:[%s7197 + $0x10] sm:$0xf]
        %v7203 = vld [vmem:[%s7197 + $0x14] sm:$0xf]
        %v7204 = vld [vmem:[%s7197 + $0x18] sm:$0xf]
        %v7212 = vunpack.c.l.b16 %v7198
        %v7213 = vunpack.c.l.b16 %v7199
        %v7214 = vunpack.c.l.b16 %v7200
        %v7215 = vunpack.c.l.b16 %v7201
        %v7216 = vunpack.c.l.b16 %v7202
        %v7217 = vunpack.c.l.b16 %v7203
        %v7218 = vunpack.c.l.b16 %v7204
        %v7219 = vpack.c.b16 %v7213, %v7212
        %v7220 = vpack.c.b16 %v7215, %v7214
        %v7221 = vpack.c.b16 %v7217, %v7216
        %v7222 = vpack.c.b16 %v7218, %v7218
        %v7227 = vsel %vm6927, %v7196, 0
        %v7230 = vsel %vm6931, %v7222, 0
        %7232 = vmatprep.subr.bf16.mxu0 0
        %7233 = vmatpush1.bf16.msra.mxu0 %v7219
        %7234 = vmatprep.subr.bf16.mxu0 0
        %7235 = vmatpush1.bf16.msra.mxu0 %v7220
        %7236 = vmatprep.subr.bf16.mxu0 0
        %7237 = vmatpush1.bf16.msra.mxu0 %v7221
        %7238 = vmatprep.subr.bf16.mxu0 0
        %7239 = vmatpush1.bf16.msra.mxu0 %v7230
        %7240 = vmatprep.subr.bf16.mxu0 0
        %7241 = vmatpush1.bf16.msra.mxu0 0
        %7242 = vmatprep.subr.bf16.mxu0 0
        %7243 = vmatpush1.bf16.msra.mxu0 0
        %7244 = vmatprep.subr.bf16.mxu0 0
        %7245 = vmatpush1.bf16.msra.mxu0 0
        %7246 = vmatprep.subr.bf16.mxu0 0
        %7247 = vmatpush1.bf16.msra.mxu0 0
        %7248 = vmatprep.subr.bf16.mxu0 0
        %7249 = vmatpush1.bf16.msra.mxu0 0
        %7250 = vmatprep.subr.bf16.mxu0 0
        %7251 = vmatpush1.bf16.msra.mxu0 0
        %7252 = vmatprep.subr.bf16.mxu0 0
        %7253 = vmatpush1.bf16.msra.mxu0 0
        %7254 = vmatprep.subr.bf16.mxu0 0
        %7255 = vmatpush1.bf16.msra.mxu0 0
        %7256 = vmatprep.subr.bf16.mxu0 0
        %7257 = vmatpush1.bf16.msra.mxu0 0
        %7258 = vmatprep.subr.bf16.mxu0 0
        %7259 = vmatpush1.bf16.msra.mxu0 0
        %7260 = vmatprep.subr.bf16.mxu0 0
        %7261 = vmatpush1.bf16.msra.mxu0 0
        %7262 = vmatprep.subr.bf16.mxu0 0
        %7263 = vmatpush1.bf16.msra.mxu0 0
        %7264 = vmatprep.mubr.bf16.mxu0 0
        %7265 = vmatmul.mubr.bf16.gmra.mrb[0].mxu0 %v7227
        %v7266 = vpop.f32.mrb[0].mxu0
        %v7267 = vadd.f32 0.0, %v7266
        %v7268 = vpop.f32.mrb[0].mxu0
        %v7269 = vpop.f32.mrb[0].mxu0
        %v7270 = vpop.f32.mrb[0].mxu0
        %7271 = vdwg.mxu0
        %v7272 = vadd.f32 %v7195, %v7267
        %v7273 = vpack.c.bf16 %v6879, %v6879
        %s7274 = scalar_lea.vmem %s19, 140
        %v7275 = vld [vmem:[%s7274] sm:$0xf]
        %v7276 = vld [vmem:[%s7274 + $0x4] sm:$0xf]
        %v7277 = vld [vmem:[%s7274 + $0x8] sm:$0xf]
        %v7278 = vld [vmem:[%s7274 + $0xc] sm:$0xf]
        %v7279 = vld [vmem:[%s7274 + $0x10] sm:$0xf]
        %v7280 = vld [vmem:[%s7274 + $0x14] sm:$0xf]
        %v7281 = vld [vmem:[%s7274 + $0x18] sm:$0xf]
        %v7289 = vunpack.c.l.b16 %v7275
        %v7290 = vunpack.c.l.b16 %v7276
        %v7291 = vunpack.c.l.b16 %v7277
        %v7292 = vunpack.c.l.b16 %v7278
        %v7293 = vunpack.c.l.b16 %v7279
        %v7294 = vunpack.c.l.b16 %v7280
        %v7295 = vunpack.c.l.b16 %v7281
        %v7296 = vpack.c.b16 %v7290, %v7289
        %v7297 = vpack.c.b16 %v7292, %v7291
        %v7298 = vpack.c.b16 %v7294, %v7293
        %v7299 = vpack.c.b16 %v7295, %v7295
        %v7304 = vsel %vm6927, %v7273, 0
        %v7307 = vsel %vm6931, %v7299, 0
        %7309 = vmatprep.subr.bf16.mxu0 0
        %7310 = vmatpush1.bf16.msra.mxu0 %v7296
        %7311 = vmatprep.subr.bf16.mxu0 0
        %7312 = vmatpush1.bf16.msra.mxu0 %v7297
        %7313 = vmatprep.subr.bf16.mxu0 0
        %7314 = vmatpush1.bf16.msra.mxu0 %v7298
        %7315 = vmatprep.subr.bf16.mxu0 0
        %7316 = vmatpush1.bf16.msra.mxu0 %v7307
        %7317 = vmatprep.subr.bf16.mxu0 0
        %7318 = vmatpush1.bf16.msra.mxu0 0
        %7319 = vmatprep.subr.bf16.mxu0 0
        %7320 = vmatpush1.bf16.msra.mxu0 0
        %7321 = vmatprep.subr.bf16.mxu0 0
        %7322 = vmatpush1.bf16.msra.mxu0 0
        %7323 = vmatprep.subr.bf16.mxu0 0
        %7324 = vmatpush1.bf16.msra.mxu0 0
        %7325 = vmatprep.subr.bf16.mxu0 0
        %7326 = vmatpush1.bf16.msra.mxu0 0
        %7327 = vmatprep.subr.bf16.mxu0 0
        %7328 = vmatpush1.bf16.msra.mxu0 0
        %7329 = vmatprep.subr.bf16.mxu0 0
        %7330 = vmatpush1.bf16.msra.mxu0 0
        %7331 = vmatprep.subr.bf16.mxu0 0
        %7332 = vmatpush1.bf16.msra.mxu0 0
        %7333 = vmatprep.subr.bf16.mxu0 0
        %7334 = vmatpush1.bf16.msra.mxu0 0
        %7335 = vmatprep.subr.bf16.mxu0 0
        %7336 = vmatpush1.bf16.msra.mxu0 0
        %7337 = vmatprep.subr.bf16.mxu0 0
        %7338 = vmatpush1.bf16.msra.mxu0 0
        %7339 = vmatprep.subr.bf16.mxu0 0
        %7340 = vmatpush1.bf16.msra.mxu0 0
        %7341 = vmatprep.mubr.bf16.mxu0 0
        %7342 = vmatmul.mubr.bf16.gmra.mrb[0].mxu0 %v7304
        %v7343 = vpop.f32.mrb[0].mxu0
        %v7344 = vadd.f32 0.0, %v7343
        %v7345 = vpop.f32.mrb[0].mxu0
        %v7346 = vpop.f32.mrb[0].mxu0
        %v7347 = vpop.f32.mrb[0].mxu0
        %7348 = vdwg.mxu0
        %v7349 = vadd.f32 %v7272, %v7344
        %v7350 = vpack.c.bf16 %v6884, %v6884
        %s7351 = scalar_lea.vmem %s19, 168
        %v7352 = vld [vmem:[%s7351] sm:$0xf]
        %v7353 = vld [vmem:[%s7351 + $0x4] sm:$0xf]
        %v7354 = vld [vmem:[%s7351 + $0x8] sm:$0xf]
        %v7355 = vld [vmem:[%s7351 + $0xc] sm:$0xf]
        %v7356 = vld [vmem:[%s7351 + $0x10] sm:$0xf]
        %v7357 = vld [vmem:[%s7351 + $0x14] sm:$0xf]
        %v7358 = vld [vmem:[%s7351 + $0x18] sm:$0xf]
        %v7366 = vunpack.c.l.b16 %v7352
        %v7367 = vunpack.c.l.b16 %v7353
        %v7368 = vunpack.c.l.b16 %v7354
        %v7369 = vunpack.c.l.b16 %v7355
        %v7370 = vunpack.c.l.b16 %v7356
        %v7371 = vunpack.c.l.b16 %v7357
        %v7372 = vunpack.c.l.b16 %v7358
        %v7373 = vpack.c.b16 %v7367, %v7366
        %v7374 = vpack.c.b16 %v7369, %v7368
        %v7375 = vpack.c.b16 %v7371, %v7370
        %v7376 = vpack.c.b16 %v7372, %v7372
        %v7381 = vsel %vm6927, %v7350, 0
        %v7384 = vsel %vm6931, %v7376, 0
        %7386 = vmatprep.subr.bf16.mxu0 0
        %7387 = vmatpush1.bf16.msra.mxu0 %v7373
        %7388 = vmatprep.subr.bf16.mxu0 0
        %7389 = vmatpush1.bf16.msra.mxu0 %v7374
        %7390 = vmatprep.subr.bf16.mxu0 0
        %7391 = vmatpush1.bf16.msra.mxu0 %v7375
        %7392 = vmatprep.subr.bf16.mxu0 0
        %7393 = vmatpush1.bf16.msra.mxu0 %v7384
        %7394 = vmatprep.subr.bf16.mxu0 0
        %7395 = vmatpush1.bf16.msra.mxu0 0
        %7396 = vmatprep.subr.bf16.mxu0 0
        %7397 = vmatpush1.bf16.msra.mxu0 0
        %7398 = vmatprep.subr.bf16.mxu0 0
        %7399 = vmatpush1.bf16.msra.mxu0 0
        %7400 = vmatprep.subr.bf16.mxu0 0
        %7401 = vmatpush1.bf16.msra.mxu0 0
        %7402 = vmatprep.subr.bf16.mxu0 0
        %7403 = vmatpush1.bf16.msra.mxu0 0
        %7404 = vmatprep.subr.bf16.mxu0 0
        %7405 = vmatpush1.bf16.msra.mxu0 0
        %7406 = vmatprep.subr.bf16.mxu0 0
        %7407 = vmatpush1.bf16.msra.mxu0 0
        %7408 = vmatprep.subr.bf16.mxu0 0
        %7409 = vmatpush1.bf16.msra.mxu0 0
        %7410 = vmatprep.subr.bf16.mxu0 0
        %7411 = vmatpush1.bf16.msra.mxu0 0
        %7412 = vmatprep.subr.bf16.mxu0 0
        %7413 = vmatpush1.bf16.msra.mxu0 0
        %7414 = vmatprep.subr.bf16.mxu0 0
        %7415 = vmatpush1.bf16.msra.mxu0 0
        %7416 = vmatprep.subr.bf16.mxu0 0
        %7417 = vmatpush1.bf16.msra.mxu0 0
        %7418 = vmatprep.mubr.bf16.mxu0 0
        %7419 = vmatmul.mubr.bf16.gmra.mrb[0].mxu0 %v7381
        %v7420 = vpop.f32.mrb[0].mxu0
        %v7421 = vadd.f32 0.0, %v7420
        %v7422 = vpop.f32.mrb[0].mxu0
        %v7423 = vpop.f32.mrb[0].mxu0
        %v7424 = vpop.f32.mrb[0].mxu0
        %7425 = vdwg.mxu0
        %v7426 = vadd.f32 %v7349, %v7421
        %v7427 = vld [vmem:[%s20] sm:$0x1]
        %v7429 = vlaneseq
        %v7430 = vshrl.u32 %v7429, 7
        %v7431 = vsub.s32 0, %v7430
        %v7432 = vrot.slane %v7427, %v7431
        %v7434 = vadd.f32 %v7426, %v7432
        %7435 = vst [vmem:[%s650] sm:$0xff] %v7434
        %s7436 = sand.u32 %s489, 1
        %s7437 = scalar_lea.sflag [#allocation3], %s7436
        %s7438 = sand.u32 %s489, 1
        %s7439 = smul.addr %s7438, 8
        %s7440 = scalar_lea.vmem [#allocation2], %s7439
        // Predicated region
        $region105: #{cnn_model_forward.1} parent=103 // pred_check
          %p7441 = pneg %p499
        $region106: #{cnn_model_forward.1} parent=103 // pred_check_branch
          %7443 = sbr.rel (%p7441) target = $region108
        $region107: #{cnn_model_forward.1} parent=103 // pred_region
          %s7445 = ssub.s32 128, 128
          %7446 = vsyncadd %s7437, %s7445
          %s7447 = smul.addr %s35, 128
          %s7448 = scalar_lea.hbm %s21, %s7447
          %s7450 = sshll.u32 %s7440, 4
          %s7451 = int_to_ptr.vmem [resolvable:$true] %s7450
          %7453 = dma.vmem_to_hbm [thread:$0]  %s7451, 128, %s7448, %s7437
        $region108: #{cnn_model_forward.1} parent=103 // pred_fallthru
          _
      $region104: #{cnn_model_forward.1} parent=5 // pred_fallthru
        _
      %p7454 = scmp.le.s32.totalorder 2, %s30
      // Predicated region
      $region109: #{cnn_model_forward.1} parent=5 // pred_check
        %p7455 = pneg %p7454
      $region110: #{cnn_model_forward.1} parent=5 // pred_check_branch
        %7457 = sbr.rel (%p7455) target = $region112
      $region111: #{cnn_model_forward.1} parent=5 // pred_region
        %s7458 = ssub.s32 %s30, 2
        // Predicated region
        $region113: #{cnn_model_forward.1} parent=111 // pred_check
          %p7459 = pneg %p505
        $region114: #{cnn_model_forward.1} parent=111 // pred_check_branch
          %7461 = sbr.rel (%p7459) target = $region116
        $region115: #{cnn_model_forward.1} parent=111 // pred_region
          %s7462 = sand.u32 %s490, 1
          %s7463 = scalar_lea.sflag [#allocation3], %s7462
          %s7464 = sand.u32 %s490, 1
          %s7465 = smul.addr %s7464, 8
          %s7466 = scalar_lea.vmem [#allocation2], %s7465
          %7467 = dma.done %s7463, 128
        $region116: #{cnn_model_forward.1} parent=111 // pred_fallthru
          _
      $region112: #{cnn_model_forward.1} parent=5 // pred_fallthru
        _
    $region6: #{cnn_model_forward.1} parent=1 // loop_footer
      %s34 = sadd.s32 1, %s30
    $region7: #{cnn_model_forward.1} parent=1 // loop_footer_branch
      %29 = sbr.rel target = $region3
    $region8: #{cnn_model_forward.1} parent=1 // loop_exit
      _
    %7468 = vsyncpa [#allocation3], 1
    %s7469 = scalar_lea.sflag [#allocation3], 1
    %7470 = vsyncpa %s7469, 1

</llo_original>
